<compile_context>
chip_gen: v7x
topology: tpu7x:2x2x1
jax: 0.10.0
libtpu: 0.0.40
codegen_flags: <defaults>
</compile_context>

<pallas_src>
import jax
import jax.numpy as jnp
from jax import lax
from jax.experimental import pallas as pl
from jax.experimental.pallas import tpu as pltpu

C_IN = 192
C_OUT = 192
K = 3
STRIDE = 2
BN_EPS = 1e-3
N_TAPS = K * K * K          # 27
K_DIM = N_TAPS * C_IN       # 5184


def _round_up(x, m):
    return ((x + m - 1) // m) * m


def _pick_tm(m, tm_max=256):
    """Row-tile size. Big tiles amortize per-step overhead and fill the MXU row
    dimension (v6e/v7x), but small problems are split into >= 2 tiles so both
    v7x TensorCores (parallel grid axis) get work."""
    m16 = _round_up(m, 16)
    if m16 <= tm_max:
        if m16 >= 32:
            return _round_up(m16 // 2, 16)
        return m16
    return tm_max


def _mixed5a_kernel(p_ref, w_ref, bias_ref, conv_ref, pool_ref):
    """p_ref: (tm, 27*192) bf16 im2col block, w_ref: (27*192, 192) bf16
    (BN scale folded), bias_ref: (1, 192) f32,
    conv_ref: (tm, 192) f32, pool_ref: (tm, 192) f32."""
    # Conv3d(192->192, 3x3x3, stride 2): single K=5184 MXU contraction,
    # bf16 inputs, f32 accumulation. Epilogue: folded-BN bias + ReLU.
    acc = jnp.dot(p_ref[...], w_ref[...], preferred_element_type=jnp.float32)
    conv_ref[...] = jnp.maximum(acc + bias_ref[...], 0.0).astype(conv_ref.dtype)

    # MaxPool3d(3, stride=2) over the same 27 taps already resident in VMEM.
    # bf16 max accumulator keeps live vregs low; cast to f32 only at the store.
    mx = p_ref[:, 0:C_IN]
    for t in range(1, N_TAPS):  # static unroll over the kernel taps
        mx = jnp.maximum(mx, p_ref[:, t * C_IN:(t + 1) * C_IN])
    pool_ref[...] = mx.astype(pool_ref.dtype)


def _im2col(x_ndhwc, d_out, h_out, w_out):
    """Classic im2col for the stride-2 3x3x3 window: -> (N*Do*Ho*Wo, 27*C),
    tap-major / channel-minor (matches the (kd,kh,kw,Cin,Cout) weight flatten)."""
    n, _, _, _, c = x_ndhwc.shape
    taps = []
    for kd in range(K):
        for kh in range(K):
            for kw in range(K):
                t = lax.slice(
                    x_ndhwc,
                    (0, kd, kh, kw, 0),
                    (n, kd + STRIDE * (d_out - 1) + 1,
                     kh + STRIDE * (h_out - 1) + 1,
                     kw + STRIDE * (w_out - 1) + 1, c),
                    (1, STRIDE, STRIDE, STRIDE, 1),
                )
                taps.append(t.reshape(-1, c))
    return jnp.concatenate(taps, axis=1)  # (M, 27*C)


@jax.jit
def mixed5a_forward(x_ncdhw, conv_w, gamma, beta, run_mean, run_var):
    """x_ncdhw: (N, 192, D, H, W) f32; conv_w: (192, 192, 3, 3, 3) (OIDHW)."""
    n, c, d, h, w = x_ncdhw.shape
    assert c == C_IN
    d_out = (d - K) // STRIDE + 1
    h_out = (h - K) // STRIDE + 1
    w_out = (w - K) // STRIDE + 1

    # --- glue: layout + im2col (bf16 halves the staged HBM traffic) ---------
    x_ndhwc = jnp.transpose(x_ncdhw, (0, 2, 3, 4, 1)).astype(jnp.bfloat16)
    patches = _im2col(x_ndhwc, d_out, h_out, w_out)            # (M, 5184) bf16
    m = patches.shape[0]
    tm = _pick_tm(m)
    m_pad = _round_up(m, tm)
    if m_pad != m:
        patches = jnp.pad(patches, ((0, m_pad - m), (0, 0)))

    # Fold inference BatchNorm: y = conv(x, W*scale) + bias
    scale = gamma / jnp.sqrt(run_var + BN_EPS)                  # (Cout,)
    bias = (beta - run_mean * scale).reshape(1, C_OUT).astype(jnp.float32)
    w_mat = jnp.transpose(conv_w, (2, 3, 4, 1, 0)).reshape(K_DIM, C_OUT)
    w_mat = (w_mat * scale[None, :]).astype(jnp.bfloat16)       # (5184, 192) bf16

    # --- Pallas hot path -----------------------------------------------------
    conv_flat, pool_flat = pl.pallas_call(
        _mixed5a_kernel,
        out_shape=(
            jax.ShapeDtypeStruct((m_pad, C_OUT), jnp.float32),
            jax.ShapeDtypeStruct((m_pad, C_IN), jnp.float32),
        ),
        grid_spec=pltpu.PrefetchScalarGridSpec(
            num_scalar_prefetch=0,
            grid=(m_pad // tm,),
            in_specs=[
                pl.BlockSpec((tm, K_DIM), lambda i: (i, 0)),
                pl.BlockSpec((K_DIM, C_OUT), lambda i: (0, 0)),
                pl.BlockSpec((1, C_OUT), lambda i: (0, 0)),
            ],
            out_specs=(
                pl.BlockSpec((tm, C_OUT), lambda i: (i, 0)),
                pl.BlockSpec((tm, C_IN), lambda i: (i, 0)),
            ),
        ),
        compiler_params=pltpu.CompilerParams(
            dimension_semantics=("parallel",),
            vmem_limit_bytes=32 << 20,   # ~10 MiB actually used at tm=256 bf16
        ),
    )(patches, w_mat, bias)

    # --- glue: back to NCDHW with channel concat [conv(192) | maxpool(192)] --
    conv_o = conv_flat[:m].reshape(n, d_out, h_out, w_out, C_OUT)
    pool_o = pool_flat[:m].reshape(n, d_out, h_out, w_out, C_IN)
    out = jnp.concatenate([conv_o, pool_o], axis=-1)
    return jnp.transpose(out, (0, 4, 1, 2, 3))  # -> (N, 384, Do, Ho, Wo)


def _reference(x_ncdhw, conv_w, gamma, beta, run_mean, run_var):
    """Reference with the same precision policy as the kernel (BN scale folded
    into bf16 weights, bf16 activations, f32 accumulation), so the comparison
    is apples-to-apples."""
    scale = gamma / jnp.sqrt(run_var + BN_EPS)
    bias = beta - run_mean * scale
    w_folded = (conv_w * scale[:, None, None, None, None]).astype(jnp.bfloat16)
    xq = x_ncdhw.astype(jnp.bfloat16)
    x0 = lax.conv_general_dilated(
        xq, w_folded, window_strides=(STRIDE,) * 3, padding="VALID",
        dimension_numbers=("NCDHW", "OIDHW", "NCDHW"),
        preferred_element_type=jnp.float32,
    )
    x0 = jnp.maximum(x0 + bias.reshape(1, C_OUT, 1, 1, 1), 0.0)
    x1 = lax.reduce_window(
        xq.astype(jnp.float32), -jnp.inf, lax.max,
        (1, 1, K, K, K), (1, 1, STRIDE, STRIDE, STRIDE), "VALID",
    )
    return jnp.concatenate([x0, x1], axis=1)


if __name__ == "__main__":
    key = jax.random.PRNGKey(0)
    k_x, k_w, k_g, k_b, k_m, k_v = jax.random.split(key, 6)

    # Small-but-consistent shapes: batch=2, channels fixed at 192 by the module,
    # spatial 9x9x9 -> conv/pool output 4x4x4.
    N, D, H, W = 2, 9, 9, 9
    x = jax.random.normal(k_x, (N, C_IN, D, H, W), dtype=jnp.float32)

    conv_w = jax.random.normal(k_w, (C_OUT, C_IN, K, K, K), dtype=jnp.float32) * 0.05
    gamma = 1.0 + 0.1 * jax.random.normal(k_g, (C_OUT,), dtype=jnp.float32)
    beta = 0.1 * jax.random.normal(k_b, (C_OUT,), dtype=jnp.float32)
    run_mean = 0.1 * jax.random.normal(k_m, (C_OUT,), dtype=jnp.float32)
    run_var = jnp.abs(jax.random.normal(k_v, (C_OUT,), dtype=jnp.float32)) + 0.5

    out = mixed5a_forward(x, conv_w, gamma, beta, run_mean, run_var)
    out = jax.block_until_ready(out)

    ref = jax.block_until_ready(_reference(x, conv_w, gamma, beta, run_mean, run_var))
    assert out.shape == (N, C_OUT + C_IN, 4, 4, 4), out.shape
    assert jnp.allclose(out, ref, rtol=5e-3, atol=5e-3), float(
        jnp.max(jnp.abs(out - ref))
    )
    print("KERNEL_OK")
</pallas_src>

<mosaic_0001>
module attributes {stable_mosaic.version = 11 : i64} {
  func.func @_mixed5a_kernel(%arg0: i32, %arg1: memref<64x5184xbf16, #tpu.memory_space<vmem>>, %arg2: memref<5184x192xbf16, #tpu.memory_space<vmem>>, %arg3: memref<1x192xf32, #tpu.memory_space<vmem>>, %arg4: memref<64x192xf32, #tpu.memory_space<vmem>>, %arg5: memref<64x192xf32, #tpu.memory_space<vmem>>) attributes {dimension_semantics = [#tpu.dimension_semantics<parallel>], iteration_bounds = array<i64: 2>, scalar_prefetch = 0 : i64, scratch_operands = 0 : i64, tpu.core_type = #tpu.core_type<tc>, window_params = [{transform_indices = @transform_0, window_bounds = array<i64: 64, 5184>}, {pipeline_mode = #tpu.pipeline_mode<synchronous>, transform_indices = @transform_1, window_bounds = array<i64: 5184, 192>}, {pipeline_mode = #tpu.pipeline_mode<synchronous>, transform_indices = @transform_2, window_bounds = array<i64: 1, 192>}, {transform_indices = @transform_3, window_bounds = array<i64: 64, 192>}, {transform_indices = @transform_4, window_bounds = array<i64: 64, 192>}]} {
    %c0 = arith.constant 0 : index
    %c0_0 = arith.constant 0 : index
    %0 = vector.load %arg1[%c0, %c0_0] : memref<64x5184xbf16, #tpu.memory_space<vmem>>, vector<64x5184xbf16>
    %c0_1 = arith.constant 0 : index
    %c0_2 = arith.constant 0 : index
    %1 = vector.load %arg2[%c0_1, %c0_2] : memref<5184x192xbf16, #tpu.memory_space<vmem>>, vector<5184x192xbf16>
    %cst = arith.constant dense<0.000000e+00> : vector<64x192xf32>
    %2 = tpu.matmul %0, %1, %cst {dimension_numbers = #tpu.dot_dimension_numbers<[1], [0], [0], [1], [0, 0, 1, 1], [], []>} : vector<64x5184xbf16>, vector<5184x192xbf16>, vector<64x192xf32> -> vector<64x192xf32>
    %c0_3 = arith.constant 0 : index
    %c0_4 = arith.constant 0 : index
    %3 = vector.load %arg3[%c0_3, %c0_4] : memref<1x192xf32, #tpu.memory_space<vmem>>, vector<1x192xf32>
    %4 = vector.broadcast %3 : vector<1x192xf32> to vector<64x192xf32>
    %5 = arith.addf %2, %4 : vector<64x192xf32>
    %cst_5 = arith.constant 0.000000e+00 : f32
    %6 = vector.broadcast %cst_5 : f32 to vector<64x192xf32>
    %7 = arith.maximumf %5, %6 : vector<64x192xf32>
    %c0_6 = arith.constant 0 : index
    %c0_7 = arith.constant 0 : index
    %8 = vector.load %arg4[%c0_6, %c0_7] : memref<64x192xf32, #tpu.memory_space<vmem>>, vector<64x192xf32>
    tpu.vector_store %arg4[%c0_6, %c0_7], %7 {strides = array<i32>} : memref<64x192xf32, #tpu.memory_space<vmem>>, vector<64x192xf32>,
    %c0_8 = arith.constant 0 : index
    %c0_9 = arith.constant 0 : index
    %9 = vector.load %arg1[%c0_8, %c0_9] : memref<64x5184xbf16, #tpu.memory_space<vmem>>, vector<64x192xbf16>
    %c0_10 = arith.constant 0 : index
    %c192 = arith.constant 192 : index
    %10 = vector.load %arg1[%c0_10, %c192] : memref<64x5184xbf16, #tpu.memory_space<vmem>>, vector<64x192xbf16>
    %11 = arith.maximumf %9, %10 : vector<64x192xbf16>
    %c0_11 = arith.constant 0 : index
    %c384 = arith.constant 384 : index
    %12 = vector.load %arg1[%c0_11, %c384] : memref<64x5184xbf16, #tpu.memory_space<vmem>>, vector<64x192xbf16>
    %13 = arith.maximumf %11, %12 : vector<64x192xbf16>
    %c0_12 = arith.constant 0 : index
    %c576 = arith.constant 576 : index
    %14 = vector.load %arg1[%c0_12, %c576] : memref<64x5184xbf16, #tpu.memory_space<vmem>>, vector<64x192xbf16>
    %15 = arith.maximumf %13, %14 : vector<64x192xbf16>
    %c0_13 = arith.constant 0 : index
    %c768 = arith.constant 768 : index
    %16 = vector.load %arg1[%c0_13, %c768] : memref<64x5184xbf16, #tpu.memory_space<vmem>>, vector<64x192xbf16>
    %17 = arith.maximumf %15, %16 : vector<64x192xbf16>
    %c0_14 = arith.constant 0 : index
    %c960 = arith.constant 960 : index
    %18 = vector.load %arg1[%c0_14, %c960] : memref<64x5184xbf16, #tpu.memory_space<vmem>>, vector<64x192xbf16>
    %19 = arith.maximumf %17, %18 : vector<64x192xbf16>
    %c0_15 = arith.constant 0 : index
    %c1152 = arith.constant 1152 : index
    %20 = vector.load %arg1[%c0_15, %c1152] : memref<64x5184xbf16, #tpu.memory_space<vmem>>, vector<64x192xbf16>
    %21 = arith.maximumf %19, %20 : vector<64x192xbf16>
    %c0_16 = arith.constant 0 : index
    %c1344 = arith.constant 1344 : index
    %22 = vector.load %arg1[%c0_16, %c1344] : memref<64x5184xbf16, #tpu.memory_space<vmem>>, vector<64x192xbf16>
    %23 = arith.maximumf %21, %22 : vector<64x192xbf16>
    %c0_17 = arith.constant 0 : index
    %c1536 = arith.constant 1536 : index
    %24 = vector.load %arg1[%c0_17, %c1536] : memref<64x5184xbf16, #tpu.memory_space<vmem>>, vector<64x192xbf16>
    %25 = arith.maximumf %23, %24 : vector<64x192xbf16>
    %c0_18 = arith.constant 0 : index
    %c1728 = arith.constant 1728 : index
    %26 = vector.load %arg1[%c0_18, %c1728] : memref<64x5184xbf16, #tpu.memory_space<vmem>>, vector<64x192xbf16>
    %27 = arith.maximumf %25, %26 : vector<64x192xbf16>
    %c0_19 = arith.constant 0 : index
    %c1920 = arith.constant 1920 : index
    %28 = vector.load %arg1[%c0_19, %c1920] : memref<64x5184xbf16, #tpu.memory_space<vmem>>, vector<64x192xbf16>
    %29 = arith.maximumf %27, %28 : vector<64x192xbf16>
    %c0_20 = arith.constant 0 : index
    %c2112 = arith.constant 2112 : index
    %30 = vector.load %arg1[%c0_20, %c2112] : memref<64x5184xbf16, #tpu.memory_space<vmem>>, vector<64x192xbf16>
    %31 = arith.maximumf %29, %30 : vector<64x192xbf16>
    %c0_21 = arith.constant 0 : index
    %c2304 = arith.constant 2304 : index
    %32 = vector.load %arg1[%c0_21, %c2304] : memref<64x5184xbf16, #tpu.memory_space<vmem>>, vector<64x192xbf16>
    %33 = arith.maximumf %31, %32 : vector<64x192xbf16>
    %c0_22 = arith.constant 0 : index
    %c2496 = arith.constant 2496 : index
    %34 = vector.load %arg1[%c0_22, %c2496] : memref<64x5184xbf16, #tpu.memory_space<vmem>>, vector<64x192xbf16>
    %35 = arith.maximumf %33, %34 : vector<64x192xbf16>
    %c0_23 = arith.constant 0 : index
    %c2688 = arith.constant 2688 : index
    %36 = vector.load %arg1[%c0_23, %c2688] : memref<64x5184xbf16, #tpu.memory_space<vmem>>, vector<64x192xbf16>
    %37 = arith.maximumf %35, %36 : vector<64x192xbf16>
    %c0_24 = arith.constant 0 : index
    %c2880 = arith.constant 2880 : index
    %38 = vector.load %arg1[%c0_24, %c2880] : memref<64x5184xbf16, #tpu.memory_space<vmem>>, vector<64x192xbf16>
    %39 = arith.maximumf %37, %38 : vector<64x192xbf16>
    %c0_25 = arith.constant 0 : index
    %c3072 = arith.constant 3072 : index
    %40 = vector.load %arg1[%c0_25, %c3072] : memref<64x5184xbf16, #tpu.memory_space<vmem>>, vector<64x192xbf16>
    %41 = arith.maximumf %39, %40 : vector<64x192xbf16>
    %c0_26 = arith.constant 0 : index
    %c3264 = arith.constant 3264 : index
    %42 = vector.load %arg1[%c0_26, %c3264] : memref<64x5184xbf16, #tpu.memory_space<vmem>>, vector<64x192xbf16>
    %43 = arith.maximumf %41, %42 : vector<64x192xbf16>
    %c0_27 = arith.constant 0 : index
    %c3456 = arith.constant 3456 : index
    %44 = vector.load %arg1[%c0_27, %c3456] : memref<64x5184xbf16, #tpu.memory_space<vmem>>, vector<64x192xbf16>
    %45 = arith.maximumf %43, %44 : vector<64x192xbf16>
    %c0_28 = arith.constant 0 : index
    %c3648 = arith.constant 3648 : index
    %46 = vector.load %arg1[%c0_28, %c3648] : memref<64x5184xbf16, #tpu.memory_space<vmem>>, vector<64x192xbf16>
    %47 = arith.maximumf %45, %46 : vector<64x192xbf16>
    %c0_29 = arith.constant 0 : index
    %c3840 = arith.constant 3840 : index
    %48 = vector.load %arg1[%c0_29, %c3840] : memref<64x5184xbf16, #tpu.memory_space<vmem>>, vector<64x192xbf16>
    %49 = arith.maximumf %47, %48 : vector<64x192xbf16>
    %c0_30 = arith.constant 0 : index
    %c4032 = arith.constant 4032 : index
    %50 = vector.load %arg1[%c0_30, %c4032] : memref<64x5184xbf16, #tpu.memory_space<vmem>>, vector<64x192xbf16>
    %51 = arith.maximumf %49, %50 : vector<64x192xbf16>
    %c0_31 = arith.constant 0 : index
    %c4224 = arith.constant 4224 : index
    %52 = vector.load %arg1[%c0_31, %c4224] : memref<64x5184xbf16, #tpu.memory_space<vmem>>, vector<64x192xbf16>
    %53 = arith.maximumf %51, %52 : vector<64x192xbf16>
    %c0_32 = arith.constant 0 : index
    %c4416 = arith.constant 4416 : index
    %54 = vector.load %arg1[%c0_32, %c4416] : memref<64x5184xbf16, #tpu.memory_space<vmem>>, vector<64x192xbf16>
    %55 = arith.maximumf %53, %54 : vector<64x192xbf16>
    %c0_33 = arith.constant 0 : index
    %c4608 = arith.constant 4608 : index
    %56 = vector.load %arg1[%c0_33, %c4608] : memref<64x5184xbf16, #tpu.memory_space<vmem>>, vector<64x192xbf16>
    %57 = arith.maximumf %55, %56 : vector<64x192xbf16>
    %c0_34 = arith.constant 0 : index
    %c4800 = arith.constant 4800 : index
    %58 = vector.load %arg1[%c0_34, %c4800] : memref<64x5184xbf16, #tpu.memory_space<vmem>>, vector<64x192xbf16>
    %59 = arith.maximumf %57, %58 : vector<64x192xbf16>
    %c0_35 = arith.constant 0 : index
    %c4992 = arith.constant 4992 : index
    %60 = vector.load %arg1[%c0_35, %c4992] : memref<64x5184xbf16, #tpu.memory_space<vmem>>, vector<64x192xbf16>
    %61 = arith.maximumf %59, %60 : vector<64x192xbf16>
    %62 = arith.extf %61 : vector<64x192xbf16> to vector<64x192xf32>
    %c0_36 = arith.constant 0 : index
    %c0_37 = arith.constant 0 : index
    %63 = vector.load %arg5[%c0_36, %c0_37] : memref<64x192xf32, #tpu.memory_space<vmem>>, vector<64x192xf32>
    tpu.vector_store %arg5[%c0_36, %c0_37], %62 {strides = array<i32>} : memref<64x192xf32, #tpu.memory_space<vmem>>, vector<64x192xf32>,
    return
  }
  func.func @transform_0(%arg0: i32) -> (i32, i32) {
    %c0_i32 = arith.constant 0 : i32
    %c0_i32_0 = arith.constant 0 : i32
    return %arg0, %c0_i32 : i32, i32
  }
  func.func @transform_1(%arg0: i32) -> (i32, i32) {
    %c0_i32 = arith.constant 0 : i32
    %c0_i32_0 = arith.constant 0 : i32
    %c0_i32_1 = arith.constant 0 : i32
    return %c0_i32, %c0_i32_0 : i32, i32
  }
  func.func @transform_2(%arg0: i32) -> (i32, i32) {
    %c0_i32 = arith.constant 0 : i32
    %c0_i32_0 = arith.constant 0 : i32
    %c0_i32_1 = arith.constant 0 : i32
    return %c0_i32, %c0_i32_0 : i32, i32
  }
  func.func @transform_3(%arg0: i32) -> (i32, i32) {
    %c0_i32 = arith.constant 0 : i32
    %c0_i32_0 = arith.constant 0 : i32
    return %arg0, %c0_i32 : i32, i32
  }
  func.func @transform_4(%arg0: i32) -> (i32, i32) {
    %c0_i32 = arith.constant 0 : i32
    %c0_i32_0 = arith.constant 0 : i32
    return %arg0, %c0_i32 : i32, i32
  }
}

</mosaic_0001>

<llo_original>
// kernel: mixed5a_forward.1
$region0: #{mixed5a_forward.1}
  #allocation0 [shape = 'u32[]', space=smem, size = 0x4, offset = 0x4, fixed_abs, tag = 'smem constant byte address 0x4 - core index']
  #allocation1 [shape = 'u32[144,128]{1,0:T(1,128)}', space=vmem, size = 0x12000, scoped, tag = 'internal scratch']
  %s0 = inlined_call_operand.vmem [shape: bf16[128,5184], index: 0, kind: input, shape index: {}]
  %s1 = inlined_call_operand.vmem [shape: bf16[5184,192], index: 1, kind: input, shape index: {}]
  %s2 = inlined_call_operand.vmem [shape: f32[1,192], index: 2, kind: input, shape index: {}]
  %s3 = inlined_call_operand.vmem [shape: f32[128,192], index: 3, kind: output, shape index: {0}]
  %s4 = inlined_call_operand.vmem [shape: f32[128,192], index: 4, kind: output, shape index: {1}]
  %5 = xla_tuple %s3, %s4
  %s6 = sld [smem:[#allocation0]]
  $region53: #{mixed5a_forward.1} parent=0
    _
  %s8 = ssub.s32 1, %s6
  %s9 = scalar_select 0, %s8, %s6
  loop: start=0, step=1, limit=4
  $region2: #{mixed5a_forward.1} parent=0 // loop_pre_header
    _
  $region3: #{mixed5a_forward.1} parent=0 // loop_header
    %s11 = sphi 0, %s15
    %p12 = scmp.ge.s32.totalorder %s11, 4
    %s21 = sphi 0, %s23
    %s24 = sphi 0, %s21
    %s25 = sphi 0, %s24
    %s41 = sphi 0, %s25
    %s45 = sphi 0, %s45
    %s47 = sphi 0, %s45
    %s48 = sphi 0, %s47
    %s62 = sphi 0, %s48
    %s66 = sphi 0, %s66
    %s68 = sphi 0, %s66
    %s69 = sphi 0, %s68
    %s83 = sphi 0, %s69
    %s89 = sphi 0, %s91
    %s92 = sphi 0, %s89
    %s93 = sphi 0, %s92
    %s109 = sphi 0, %s93
    %s115 = sphi 0, %s117
    %s118 = sphi 0, %s115
    %s119 = sphi 0, %s118
    %s135 = sphi 0, %s119
  $region4: #{mixed5a_forward.1} parent=0 // loop_header_branch
    %14 = sbr.rel (%p12) target = $region8
  $region5: #{mixed5a_forward.1} parent=0 // loop_body
    %s16 = ssub.s32 %s11, 1
    %s17 = ssub.s32 %s11, 2
    %s18 = sadd.s32 %s11, 1
    %s19 = ssub.s32 %s11, %s18
    %p20 = scmp.eq.s32.totalorder %s19, 0
    %s22 = sadd.s32 %s21, 1
    %s23 = scalar_select %p20, %s21, %s22
    %p26 = pneg %p20
    %p27 = scmp.eq.s32.totalorder %s11, 1
    %p28 = por %p26, %p27
    %p29 = scmp.ne.s32.totalorder %s21, %s24
    %p30 = scmp.eq.s32.totalorder %s11, 0
    %p31 = por %p29, %p30
    %p32 = scmp.ne.s32.totalorder %s21, %s24
    %p33 = scmp.eq.s32.totalorder %s16, 1
    %p34 = por %p32, %p33
    %p35 = scmp.ne.s32.totalorder %s24, %s25
    %p36 = scmp.eq.s32.totalorder %s16, 0
    %p37 = por %p35, %p36
    %p38 = scmp.ne.s32.totalorder %s24, %s25
    %p39 = scmp.eq.s32.totalorder %s17, 1
    %p40 = por %p38, %p39
    %p42 = scmp.ne.s32.totalorder %s25, %s41
    %p43 = scmp.eq.s32.totalorder %s17, 0
    %p44 = por %p42, %p43
    %s46 = sadd.s32 %s45, 1
    %p49 = scmp.eq.s32.totalorder %s11, 1
    %p50 = scmp.ne.s32.totalorder %s45, %s47
    %p51 = scmp.eq.s32.totalorder %s11, 0
    %p52 = por %p50, %p51
    %p53 = scmp.ne.s32.totalorder %s45, %s47
    %p54 = scmp.eq.s32.totalorder %s16, 1
    %p55 = por %p53, %p54
    %p56 = scmp.ne.s32.totalorder %s47, %s48
    %p57 = scmp.eq.s32.totalorder %s16, 0
    %p58 = por %p56, %p57
    %p59 = scmp.ne.s32.totalorder %s47, %s48
    %p60 = scmp.eq.s32.totalorder %s17, 1
    %p61 = por %p59, %p60
    %p63 = scmp.ne.s32.totalorder %s48, %s62
    %p64 = scmp.eq.s32.totalorder %s17, 0
    %p65 = por %p63, %p64
    %s67 = sadd.s32 %s66, 1
    %p70 = scmp.eq.s32.totalorder %s11, 1
    %p71 = scmp.ne.s32.totalorder %s66, %s68
    %p72 = scmp.eq.s32.totalorder %s11, 0
    %p73 = por %p71, %p72
    %p74 = scmp.ne.s32.totalorder %s66, %s68
    %p75 = scmp.eq.s32.totalorder %s16, 1
    %p76 = por %p74, %p75
    %p77 = scmp.ne.s32.totalorder %s68, %s69
    %p78 = scmp.eq.s32.totalorder %s16, 0
    %p79 = por %p77, %p78
    %p80 = scmp.ne.s32.totalorder %s68, %s69
    %p81 = scmp.eq.s32.totalorder %s17, 1
    %p82 = por %p80, %p81
    %p84 = scmp.ne.s32.totalorder %s69, %s83
    %p85 = scmp.eq.s32.totalorder %s17, 0
    %p86 = por %p84, %p85
    %s87 = ssub.s32 %s11, %s18
    %p88 = scmp.eq.s32.totalorder %s87, 0
    %s90 = sadd.s32 %s89, 1
    %s91 = scalar_select %p88, %s89, %s90
    %p94 = pneg %p88
    %p95 = scmp.eq.s32.totalorder %s11, 1
    %p96 = por %p94, %p95
    %p97 = scmp.ne.s32.totalorder %s89, %s92
    %p98 = scmp.eq.s32.totalorder %s11, 0
    %p99 = por %p97, %p98
    %p100 = scmp.ne.s32.totalorder %s89, %s92
    %p101 = scmp.eq.s32.totalorder %s16, 1
    %p102 = por %p100, %p101
    %p103 = scmp.ne.s32.totalorder %s92, %s93
    %p104 = scmp.eq.s32.totalorder %s16, 0
    %p105 = por %p103, %p104
    %p106 = scmp.ne.s32.totalorder %s92, %s93
    %p107 = scmp.eq.s32.totalorder %s17, 1
    %p108 = por %p106, %p107
    %p110 = scmp.ne.s32.totalorder %s93, %s109
    %p111 = scmp.eq.s32.totalorder %s17, 0
    %p112 = por %p110, %p111
    %s113 = ssub.s32 %s11, %s18
    %p114 = scmp.eq.s32.totalorder %s113, 0
    %s116 = sadd.s32 %s115, 1
    %s117 = scalar_select %p114, %s115, %s116
    %p120 = pneg %p114
    %p121 = scmp.eq.s32.totalorder %s11, 1
    %p122 = por %p120, %p121
    %p123 = scmp.ne.s32.totalorder %s115, %s118
    %p124 = scmp.eq.s32.totalorder %s11, 0
    %p125 = por %p123, %p124
    %p126 = scmp.ne.s32.totalorder %s115, %s118
    %p127 = scmp.eq.s32.totalorder %s16, 1
    %p128 = por %p126, %p127
    %p129 = scmp.ne.s32.totalorder %s118, %s119
    %p130 = scmp.eq.s32.totalorder %s16, 0
    %p131 = por %p129, %p130
    %p132 = scmp.ne.s32.totalorder %s118, %s119
    %p133 = scmp.eq.s32.totalorder %s17, 1
    %p134 = por %p132, %p133
    %p136 = scmp.ne.s32.totalorder %s119, %s135
    %p137 = scmp.eq.s32.totalorder %s17, 0
    %p138 = por %p136, %p137
    %p139 = scmp.le.s32.totalorder 1, %s11
    %p140 = scmp.lt.s32.totalorder %s11, 3
    %p141 = pnand %p139, %p140
    %p142 = pneg %p141
    // Predicated region
    $region9: #{mixed5a_forward.1} parent=5 // pred_check
      _
    $region10: #{mixed5a_forward.1} parent=5 // pred_check_branch
      %144 = sbr.rel (%p141) target = $region12
    $region11: #{mixed5a_forward.1} parent=5 // pred_region
      %s145 = ssub.s32 %s11, 1
      // Predicated region
      $region13: #{mixed5a_forward.1} parent=11 // pred_check
        %p146 = pneg %p58
      $region14: #{mixed5a_forward.1} parent=11 // pred_check_branch
        %148 = sbr.rel (%p146) target = $region16
      $region15: #{mixed5a_forward.1} parent=11 // pred_region
        _
      $region16: #{mixed5a_forward.1} parent=11 // pred_fallthru
        _
      // Predicated region
      $region17: #{mixed5a_forward.1} parent=11 // pred_check
        %p149 = pneg %p79
      $region18: #{mixed5a_forward.1} parent=11 // pred_check_branch
        %151 = sbr.rel (%p149) target = $region20
      $region19: #{mixed5a_forward.1} parent=11 // pred_region
        _
      $region20: #{mixed5a_forward.1} parent=11 // pred_fallthru
        _
    $region12: #{mixed5a_forward.1} parent=5 // pred_fallthru
      _
    %p152 = scmp.lt.s32.totalorder %s11, 2
    // Predicated region
    $region21: #{mixed5a_forward.1} parent=5 // pred_check
      %p153 = pneg %p152
    $region22: #{mixed5a_forward.1} parent=5 // pred_check_branch
      %155 = sbr.rel (%p153) target = $region24
    $region23: #{mixed5a_forward.1} parent=5 // pred_region
      // Predicated region
      $region25: #{mixed5a_forward.1} parent=23 // pred_check
        %p156 = pneg %p31
      $region26: #{mixed5a_forward.1} parent=23 // pred_check_branch
        %158 = sbr.rel (%p156) target = $region28
      $region27: #{mixed5a_forward.1} parent=23 // pred_region
        %s159 = smul.u32 8, %s11
        %p160 = scmp.lt.s32.totalorder %s159, 15
        %s161 = scalar_select %p160, %s159, 15
        %s162 = smul.addr %s161, 41
        %s163 = smul.addr %s162, 4
        %s164 = scalar_lea.vmem %s0, %s163
        %s165 = smul.u32 8, %s11
      $region28: #{mixed5a_forward.1} parent=23 // pred_fallthru
        _
    $region24: #{mixed5a_forward.1} parent=5 // pred_fallthru
      _
    %p166 = scmp.le.s32.totalorder 1, %s11
    %p167 = scmp.lt.s32.totalorder %s11, 3
    %p168 = pnand %p166, %p167
    %p169 = pneg %p168
    // Predicated region
    $region29: #{mixed5a_forward.1} parent=5 // pred_check
      _
    $region30: #{mixed5a_forward.1} parent=5 // pred_check_branch
      %171 = sbr.rel (%p168) target = $region32
    $region31: #{mixed5a_forward.1} parent=5 // pred_region
      %s172 = ssub.s32 %s11, 1
      %s173 = smul.u32 8, %s16
      %p174 = scmp.lt.s32.totalorder %s173, 15
      %s175 = scalar_select %p174, %s173, 15
      %s176 = smul.addr %s175, 41
      %s177 = smul.addr %s176, 4
      %s178 = scalar_lea.vmem %s0, %s177
      %p179 = pneg %p37
      %p180 = pneg %p34
      %p181 = pneg %p58
      %p182 = pneg %p55
      %p183 = pneg %p79
      %p184 = pneg %p76
      %p185 = pneg %p105
      %p186 = pneg %p102
      %s187 = smul.u32 8, %s16
      %p188 = scmp.lt.s32.totalorder %s187, 15
      %s189 = scalar_select %p188, %s187, 15
      %s190 = smul.addr %s189, 2
      %s191 = smul.addr %s190, 8
      %s192 = scalar_lea.vmem %s3, %s191
      %p193 = pneg %p131
      %p194 = pneg %p128
      %s195 = smul.u32 8, %s16
      %p196 = scmp.lt.s32.totalorder %s195, 15
      %s197 = scalar_select %p196, %s195, 15
      %s198 = smul.addr %s197, 2
      %s199 = smul.addr %s198, 8
      %s200 = scalar_lea.vmem %s4, %s199
      %s201 = smul.u32 8, %s16
      %p202 = scmp.lt.s32.totalorder %s201, 15
      %s203 = scalar_select %p202, %s201, 15
      %s204 = smul.addr %s203, 41
      %s205 = smul.addr %s204, 4
      %s206 = scalar_lea.vmem %s0, %s205
      %s207 = smul.u32 8, %s16
      %s208 = smul.u32 8, %s16
      %p209 = scmp.lt.s32.totalorder %s208, 15
      %s210 = scalar_select %p209, %s208, 15
      %s211 = smul.addr %s210, 2
      %s212 = smul.addr %s211, 8
      %s213 = scalar_lea.vmem %s3, %s212
      %s214 = smul.u32 8, %s16
      %s215 = smul.u32 8, %s16
      %p216 = scmp.lt.s32.totalorder %s215, 15
      %s217 = scalar_select %p216, %s215, 15
      %s218 = smul.addr %s217, 2
      %s219 = smul.addr %s218, 8
      %s220 = scalar_lea.vmem %s4, %s219
      %s221 = smul.u32 8, %s16
      %v223 = vld [vmem:[%s206] sm:$0xff]
      %v224 = vld [vmem:[%s206 + $0x8] sm:$0xff]
      %v225 = vld [vmem:[%s206 + $0x10] sm:$0xff]
      %v226 = vld [vmem:[%s206 + $0x18] sm:$0xff]
      %v227 = vld [vmem:[%s206 + $0x20] sm:$0xff]
      %v228 = vld [vmem:[%s206 + $0x28] sm:$0xff]
      %v229 = vld [vmem:[%s206 + $0x30] sm:$0xff]
      %v230 = vld [vmem:[%s206 + $0x38] sm:$0xff]
      %v231 = vld [vmem:[%s206 + $0x40] sm:$0xff]
      %v232 = vld [vmem:[%s206 + $0x48] sm:$0xff]
      %v233 = vld [vmem:[%s206 + $0x50] sm:$0xff]
      %v234 = vld [vmem:[%s206 + $0x58] sm:$0xff]
      %v235 = vld [vmem:[%s206 + $0x60] sm:$0xff]
      %v236 = vld [vmem:[%s206 + $0x68] sm:$0xff]
      %v237 = vld [vmem:[%s206 + $0x70] sm:$0xff]
      %v238 = vld [vmem:[%s206 + $0x78] sm:$0xff]
      %v239 = vld [vmem:[%s206 + $0x80] sm:$0xff]
      %v240 = vld [vmem:[%s206 + $0x88] sm:$0xff]
      %v241 = vld [vmem:[%s206 + $0x90] sm:$0xff]
      %v242 = vld [vmem:[%s206 + $0x98] sm:$0xff]
      %v243 = vld [vmem:[%s206 + $0xa0] sm:$0xf]
      %v244 = vld [vmem:[%s206 + $0xa4] sm:$0xff]
      %v245 = vld [vmem:[%s206 + $0xac] sm:$0xff]
      %v246 = vld [vmem:[%s206 + $0xb4] sm:$0xff]
      %v247 = vld [vmem:[%s206 + $0xbc] sm:$0xff]
      %v248 = vld [vmem:[%s206 + $0xc4] sm:$0xff]
      %v249 = vld [vmem:[%s206 + $0xcc] sm:$0xff]
      %v250 = vld [vmem:[%s206 + $0xd4] sm:$0xff]
      %v251 = vld [vmem:[%s206 + $0xdc] sm:$0xff]
      %v252 = vld [vmem:[%s206 + $0xe4] sm:$0xff]
      %v253 = vld [vmem:[%s206 + $0xec] sm:$0xff]
      %v254 = vld [vmem:[%s206 + $0xf4] sm:$0xff]
      %v255 = vld [vmem:[%s206 + $0xfc] sm:$0xff]
      %v256 = vld [vmem:[%s206 + $0x104] sm:$0xff]
      %v257 = vld [vmem:[%s206 + $0x10c] sm:$0xff]
      %v258 = vld [vmem:[%s206 + $0x114] sm:$0xff]
      %v259 = vld [vmem:[%s206 + $0x11c] sm:$0xff]
      %v260 = vld [vmem:[%s206 + $0x124] sm:$0xff]
      %v261 = vld [vmem:[%s206 + $0x12c] sm:$0xff]
      %v262 = vld [vmem:[%s206 + $0x134] sm:$0xff]
      %v263 = vld [vmem:[%s206 + $0x13c] sm:$0xff]
      %v264 = vld [vmem:[%s206 + $0x144] sm:$0xf]
      %v265 = vld [vmem:[%s206 + $0x148] sm:$0xff]
      %v266 = vld [vmem:[%s206 + $0x150] sm:$0xff]
      %v267 = vld [vmem:[%s206 + $0x158] sm:$0xff]
      %v268 = vld [vmem:[%s206 + $0x160] sm:$0xff]
      %v269 = vld [vmem:[%s206 + $0x168] sm:$0xff]
      %v270 = vld [vmem:[%s206 + $0x170] sm:$0xff]
      %v271 = vld [vmem:[%s206 + $0x178] sm:$0xff]
      %v272 = vld [vmem:[%s206 + $0x180] sm:$0xff]
      %v273 = vld [vmem:[%s206 + $0x188] sm:$0xff]
      %v274 = vld [vmem:[%s206 + $0x190] sm:$0xff]
      %v275 = vld [vmem:[%s206 + $0x198] sm:$0xff]
      %v276 = vld [vmem:[%s206 + $0x1a0] sm:$0xff]
      %v277 = vld [vmem:[%s206 + $0x1a8] sm:$0xff]
      %v278 = vld [vmem:[%s206 + $0x1b0] sm:$0xff]
      %v279 = vld [vmem:[%s206 + $0x1b8] sm:$0xff]
      %v280 = vld [vmem:[%s206 + $0x1c0] sm:$0xff]
      %v281 = vld [vmem:[%s206 + $0x1c8] sm:$0xff]
      %v282 = vld [vmem:[%s206 + $0x1d0] sm:$0xff]
      %v283 = vld [vmem:[%s206 + $0x1d8] sm:$0xff]
      %v284 = vld [vmem:[%s206 + $0x1e0] sm:$0xff]
      %v285 = vld [vmem:[%s206 + $0x1e8] sm:$0xf]
      %v286 = vld [vmem:[%s206 + $0x1ec] sm:$0xff]
      %v287 = vld [vmem:[%s206 + $0x1f4] sm:$0xff]
      %v288 = vld [vmem:[%s206 + $0x1fc] sm:$0xff]
      %v289 = vld [vmem:[%s206 + $0x204] sm:$0xff]
      %v290 = vld [vmem:[%s206 + $0x20c] sm:$0xff]
      %v291 = vld [vmem:[%s206 + $0x214] sm:$0xff]
      %v292 = vld [vmem:[%s206 + $0x21c] sm:$0xff]
      %v293 = vld [vmem:[%s206 + $0x224] sm:$0xff]
      %v294 = vld [vmem:[%s206 + $0x22c] sm:$0xff]
      %v295 = vld [vmem:[%s206 + $0x234] sm:$0xff]
      %v296 = vld [vmem:[%s206 + $0x23c] sm:$0xff]
      %v297 = vld [vmem:[%s206 + $0x244] sm:$0xff]
      %v298 = vld [vmem:[%s206 + $0x24c] sm:$0xff]
      %v299 = vld [vmem:[%s206 + $0x254] sm:$0xff]
      %v300 = vld [vmem:[%s206 + $0x25c] sm:$0xff]
      %v301 = vld [vmem:[%s206 + $0x264] sm:$0xff]
      %v302 = vld [vmem:[%s206 + $0x26c] sm:$0xff]
      %v303 = vld [vmem:[%s206 + $0x274] sm:$0xff]
      %v304 = vld [vmem:[%s206 + $0x27c] sm:$0xff]
      %v305 = vld [vmem:[%s206 + $0x284] sm:$0xff]
      %v306 = vld [vmem:[%s206 + $0x28c] sm:$0xf]
      %v307 = vld [vmem:[%s206 + $0x290] sm:$0xff]
      %v308 = vld [vmem:[%s206 + $0x298] sm:$0xff]
      %v309 = vld [vmem:[%s206 + $0x2a0] sm:$0xff]
      %v310 = vld [vmem:[%s206 + $0x2a8] sm:$0xff]
      %v311 = vld [vmem:[%s206 + $0x2b0] sm:$0xff]
      %v312 = vld [vmem:[%s206 + $0x2b8] sm:$0xff]
      %v313 = vld [vmem:[%s206 + $0x2c0] sm:$0xff]
      %v314 = vld [vmem:[%s206 + $0x2c8] sm:$0xff]
      %v315 = vld [vmem:[%s206 + $0x2d0] sm:$0xff]
      %v316 = vld [vmem:[%s206 + $0x2d8] sm:$0xff]
      %v317 = vld [vmem:[%s206 + $0x2e0] sm:$0xff]
      %v318 = vld [vmem:[%s206 + $0x2e8] sm:$0xff]
      %v319 = vld [vmem:[%s206 + $0x2f0] sm:$0xff]
      %v320 = vld [vmem:[%s206 + $0x2f8] sm:$0xff]
      %v321 = vld [vmem:[%s206 + $0x300] sm:$0xff]
      %v322 = vld [vmem:[%s206 + $0x308] sm:$0xff]
      %v323 = vld [vmem:[%s206 + $0x310] sm:$0xff]
      %v324 = vld [vmem:[%s206 + $0x318] sm:$0xff]
      %v325 = vld [vmem:[%s206 + $0x320] sm:$0xff]
      %v326 = vld [vmem:[%s206 + $0x328] sm:$0xff]
      %v327 = vld [vmem:[%s206 + $0x330] sm:$0xf]
      %v328 = vld [vmem:[%s206 + $0x334] sm:$0xff]
      %v329 = vld [vmem:[%s206 + $0x33c] sm:$0xff]
      %v330 = vld [vmem:[%s206 + $0x344] sm:$0xff]
      %v331 = vld [vmem:[%s206 + $0x34c] sm:$0xff]
      %v332 = vld [vmem:[%s206 + $0x354] sm:$0xff]
      %v333 = vld [vmem:[%s206 + $0x35c] sm:$0xff]
      %v334 = vld [vmem:[%s206 + $0x364] sm:$0xff]
      %v335 = vld [vmem:[%s206 + $0x36c] sm:$0xff]
      %v336 = vld [vmem:[%s206 + $0x374] sm:$0xff]
      %v337 = vld [vmem:[%s206 + $0x37c] sm:$0xff]
      %v338 = vld [vmem:[%s206 + $0x384] sm:$0xff]
      %v339 = vld [vmem:[%s206 + $0x38c] sm:$0xff]
      %v340 = vld [vmem:[%s206 + $0x394] sm:$0xff]
      %v341 = vld [vmem:[%s206 + $0x39c] sm:$0xff]
      %v342 = vld [vmem:[%s206 + $0x3a4] sm:$0xff]
      %v343 = vld [vmem:[%s206 + $0x3ac] sm:$0xff]
      %v344 = vld [vmem:[%s206 + $0x3b4] sm:$0xff]
      %v345 = vld [vmem:[%s206 + $0x3bc] sm:$0xff]
      %v346 = vld [vmem:[%s206 + $0x3c4] sm:$0xff]
      %v347 = vld [vmem:[%s206 + $0x3cc] sm:$0xff]
      %v348 = vld [vmem:[%s206 + $0x3d4] sm:$0xf]
      %v349 = vld [vmem:[%s206 + $0x3d8] sm:$0xff]
      %v350 = vld [vmem:[%s206 + $0x3e0] sm:$0xff]
      %v351 = vld [vmem:[%s206 + $0x3e8] sm:$0xff]
      %v352 = vld [vmem:[%s206 + $0x3f0] sm:$0xff]
      %v353 = vld [vmem:[%s206 + $0x3f8] sm:$0xff]
      %v354 = vld [vmem:[%s206 + $0x400] sm:$0xff]
      %v355 = vld [vmem:[%s206 + $0x408] sm:$0xff]
      %v356 = vld [vmem:[%s206 + $0x410] sm:$0xff]
      %v357 = vld [vmem:[%s206 + $0x418] sm:$0xff]
      %v358 = vld [vmem:[%s206 + $0x420] sm:$0xff]
      %v359 = vld [vmem:[%s206 + $0x428] sm:$0xff]
      %v360 = vld [vmem:[%s206 + $0x430] sm:$0xff]
      %v361 = vld [vmem:[%s206 + $0x438] sm:$0xff]
      %v362 = vld [vmem:[%s206 + $0x440] sm:$0xff]
      %v363 = vld [vmem:[%s206 + $0x448] sm:$0xff]
      %v364 = vld [vmem:[%s206 + $0x450] sm:$0xff]
      %v365 = vld [vmem:[%s206 + $0x458] sm:$0xff]
      %v366 = vld [vmem:[%s206 + $0x460] sm:$0xff]
      %v367 = vld [vmem:[%s206 + $0x468] sm:$0xff]
      %v368 = vld [vmem:[%s206 + $0x470] sm:$0xff]
      %v369 = vld [vmem:[%s206 + $0x478] sm:$0xf]
      %v370 = vld [vmem:[%s206 + $0x47c] sm:$0xff]
      %v371 = vld [vmem:[%s206 + $0x484] sm:$0xff]
      %v372 = vld [vmem:[%s206 + $0x48c] sm:$0xff]
      %v373 = vld [vmem:[%s206 + $0x494] sm:$0xff]
      %v374 = vld [vmem:[%s206 + $0x49c] sm:$0xff]
      %v375 = vld [vmem:[%s206 + $0x4a4] sm:$0xff]
      %v376 = vld [vmem:[%s206 + $0x4ac] sm:$0xff]
      %v377 = vld [vmem:[%s206 + $0x4b4] sm:$0xff]
      %v378 = vld [vmem:[%s206 + $0x4bc] sm:$0xff]
      %v379 = vld [vmem:[%s206 + $0x4c4] sm:$0xff]
      %v380 = vld [vmem:[%s206 + $0x4cc] sm:$0xff]
      %v381 = vld [vmem:[%s206 + $0x4d4] sm:$0xff]
      %v382 = vld [vmem:[%s206 + $0x4dc] sm:$0xff]
      %v383 = vld [vmem:[%s206 + $0x4e4] sm:$0xff]
      %v384 = vld [vmem:[%s206 + $0x4ec] sm:$0xff]
      %v385 = vld [vmem:[%s206 + $0x4f4] sm:$0xff]
      %v386 = vld [vmem:[%s206 + $0x4fc] sm:$0xff]
      %v387 = vld [vmem:[%s206 + $0x504] sm:$0xff]
      %v388 = vld [vmem:[%s206 + $0x50c] sm:$0xff]
      %v389 = vld [vmem:[%s206 + $0x514] sm:$0xff]
      %v390 = vld [vmem:[%s206 + $0x51c] sm:$0xf]
      %v391 = vld [vmem:[%s1] sm:$0xff]
      %v392 = vld [vmem:[%s1 + $0x8] sm:$0xff]
      %v393 = vld [vmem:[%s1 + $0x10] sm:$0xff]
      %v394 = vld [vmem:[%s1 + $0x18] sm:$0xff]
      %v395 = vld [vmem:[%s1 + $0x20] sm:$0xff]
      %v396 = vld [vmem:[%s1 + $0x28] sm:$0xff]
      %v397 = vld [vmem:[%s1 + $0x30] sm:$0xff]
      %v398 = vld [vmem:[%s1 + $0x38] sm:$0xff]
      %v399 = vld [vmem:[%s1 + $0x40] sm:$0xff]
      %v400 = vld [vmem:[%s1 + $0x48] sm:$0xff]
      %v401 = vld [vmem:[%s1 + $0x50] sm:$0xff]
      %v402 = vld [vmem:[%s1 + $0x58] sm:$0xff]
      %v403 = vld [vmem:[%s1 + $0x60] sm:$0xff]
      %v404 = vld [vmem:[%s1 + $0x68] sm:$0xff]
      %v405 = vld [vmem:[%s1 + $0x70] sm:$0xff]
      %v406 = vld [vmem:[%s1 + $0x78] sm:$0xff]
      %v407 = vld [vmem:[%s1 + $0x80] sm:$0xff]
      %v408 = vld [vmem:[%s1 + $0x88] sm:$0xff]
      %v409 = vld [vmem:[%s1 + $0x90] sm:$0xff]
      %v410 = vld [vmem:[%s1 + $0x98] sm:$0xff]
      %v411 = vld [vmem:[%s1 + $0xa0] sm:$0xff]
      %v412 = vld [vmem:[%s1 + $0xa8] sm:$0xff]
      %v413 = vld [vmem:[%s1 + $0xb0] sm:$0xff]
      %v414 = vld [vmem:[%s1 + $0xb8] sm:$0xff]
      %v415 = vld [vmem:[%s1 + $0xc0] sm:$0xff]
      %v416 = vld [vmem:[%s1 + $0xc8] sm:$0xff]
      %v417 = vld [vmem:[%s1 + $0xd0] sm:$0xff]
      %v418 = vld [vmem:[%s1 + $0xd8] sm:$0xff]
      %v419 = vld [vmem:[%s1 + $0xe0] sm:$0xff]
      %v420 = vld [vmem:[%s1 + $0xe8] sm:$0xff]
      %v421 = vld [vmem:[%s1 + $0xf0] sm:$0xff]
      %v422 = vld [vmem:[%s1 + $0xf8] sm:$0xff]
      %v423 = vld [vmem:[%s1 + $0x100] sm:$0xff]
      %v424 = vld [vmem:[%s1 + $0x108] sm:$0xff]
      %v425 = vld [vmem:[%s1 + $0x110] sm:$0xff]
      %v426 = vld [vmem:[%s1 + $0x118] sm:$0xff]
      %v427 = vld [vmem:[%s1 + $0x120] sm:$0xff]
      %v428 = vld [vmem:[%s1 + $0x128] sm:$0xff]
      %v429 = vld [vmem:[%s1 + $0x130] sm:$0xff]
      %v430 = vld [vmem:[%s1 + $0x138] sm:$0xff]
      %v431 = vld [vmem:[%s1 + $0x140] sm:$0xff]
      %v432 = vld [vmem:[%s1 + $0x148] sm:$0xff]
      %v433 = vld [vmem:[%s1 + $0x150] sm:$0xff]
      %v434 = vld [vmem:[%s1 + $0x158] sm:$0xff]
      %v435 = vld [vmem:[%s1 + $0x160] sm:$0xff]
      %v436 = vld [vmem:[%s1 + $0x168] sm:$0xff]
      %v437 = vld [vmem:[%s1 + $0x170] sm:$0xff]
      %v438 = vld [vmem:[%s1 + $0x178] sm:$0xff]
      %v439 = vld [vmem:[%s1 + $0x180] sm:$0xff]
      %v440 = vld [vmem:[%s1 + $0x188] sm:$0xff]
      %v441 = vld [vmem:[%s1 + $0x190] sm:$0xff]
      %v442 = vld [vmem:[%s1 + $0x198] sm:$0xff]
      %v443 = vld [vmem:[%s1 + $0x1a0] sm:$0xff]
      %v444 = vld [vmem:[%s1 + $0x1a8] sm:$0xff]
      %v445 = vld [vmem:[%s1 + $0x1b0] sm:$0xff]
      %v446 = vld [vmem:[%s1 + $0x1b8] sm:$0xff]
      %v447 = vld [vmem:[%s1 + $0x1c0] sm:$0xff]
      %v448 = vld [vmem:[%s1 + $0x1c8] sm:$0xff]
      %v449 = vld [vmem:[%s1 + $0x1d0] sm:$0xff]
      %v450 = vld [vmem:[%s1 + $0x1d8] sm:$0xff]
      %v451 = vld [vmem:[%s1 + $0x1e0] sm:$0xff]
      %v452 = vld [vmem:[%s1 + $0x1e8] sm:$0xff]
      %v453 = vld [vmem:[%s1 + $0x1f0] sm:$0xff]
      %v454 = vld [vmem:[%s1 + $0x1f8] sm:$0xff]
      %v455 = vld [vmem:[%s1 + $0x200] sm:$0xff]
      %v456 = vld [vmem:[%s1 + $0x208] sm:$0xff]
      %v457 = vld [vmem:[%s1 + $0x210] sm:$0xff]
      %v458 = vld [vmem:[%s1 + $0x218] sm:$0xff]
      %v459 = vld [vmem:[%s1 + $0x220] sm:$0xff]
      %v460 = vld [vmem:[%s1 + $0x228] sm:$0xff]
      %v461 = vld [vmem:[%s1 + $0x230] sm:$0xff]
      %v462 = vld [vmem:[%s1 + $0x238] sm:$0xff]
      %v463 = vld [vmem:[%s1 + $0x240] sm:$0xff]
      %v464 = vld [vmem:[%s1 + $0x248] sm:$0xff]
      %v465 = vld [vmem:[%s1 + $0x250] sm:$0xff]
      %v466 = vld [vmem:[%s1 + $0x258] sm:$0xff]
      %v467 = vld [vmem:[%s1 + $0x260] sm:$0xff]
      %v468 = vld [vmem:[%s1 + $0x268] sm:$0xff]
      %v469 = vld [vmem:[%s1 + $0x270] sm:$0xff]
      %v470 = vld [vmem:[%s1 + $0x278] sm:$0xff]
      %v471 = vld [vmem:[%s1 + $0x280] sm:$0xff]
      %v472 = vld [vmem:[%s1 + $0x288] sm:$0xff]
      %v473 = vld [vmem:[%s1 + $0x290] sm:$0xff]
      %v474 = vld [vmem:[%s1 + $0x298] sm:$0xff]
      %v475 = vld [vmem:[%s1 + $0x2a0] sm:$0xff]
      %v476 = vld [vmem:[%s1 + $0x2a8] sm:$0xff]
      %v477 = vld [vmem:[%s1 + $0x2b0] sm:$0xff]
      %v478 = vld [vmem:[%s1 + $0x2b8] sm:$0xff]
      %v479 = vld [vmem:[%s1 + $0x2c0] sm:$0xff]
      %v480 = vld [vmem:[%s1 + $0x2c8] sm:$0xff]
      %v481 = vld [vmem:[%s1 + $0x2d0] sm:$0xff]
      %v482 = vld [vmem:[%s1 + $0x2d8] sm:$0xff]
      %v483 = vld [vmem:[%s1 + $0x2e0] sm:$0xff]
      %v484 = vld [vmem:[%s1 + $0x2e8] sm:$0xff]
      %v485 = vld [vmem:[%s1 + $0x2f0] sm:$0xff]
      %v486 = vld [vmem:[%s1 + $0x2f8] sm:$0xff]
      %v487 = vld [vmem:[%s1 + $0x300] sm:$0xff]
      %v488 = vld [vmem:[%s1 + $0x308] sm:$0xff]
      %v489 = vld [vmem:[%s1 + $0x310] sm:$0xff]
      %v490 = vld [vmem:[%s1 + $0x318] sm:$0xff]
      %v491 = vld [vmem:[%s1 + $0x320] sm:$0xff]
      %v492 = vld [vmem:[%s1 + $0x328] sm:$0xff]
      %v493 = vld [vmem:[%s1 + $0x330] sm:$0xff]
      %v494 = vld [vmem:[%s1 + $0x338] sm:$0xff]
      %v495 = vld [vmem:[%s1 + $0x340] sm:$0xff]
      %v496 = vld [vmem:[%s1 + $0x348] sm:$0xff]
      %v497 = vld [vmem:[%s1 + $0x350] sm:$0xff]
      %v498 = vld [vmem:[%s1 + $0x358] sm:$0xff]
      %v499 = vld [vmem:[%s1 + $0x360] sm:$0xff]
      %v500 = vld [vmem:[%s1 + $0x368] sm:$0xff]
      %v501 = vld [vmem:[%s1 + $0x370] sm:$0xff]
      %v502 = vld [vmem:[%s1 + $0x378] sm:$0xff]
      %v503 = vld [vmem:[%s1 + $0x380] sm:$0xff]
      %v504 = vld [vmem:[%s1 + $0x388] sm:$0xff]
      %v505 = vld [vmem:[%s1 + $0x390] sm:$0xff]
      %v506 = vld [vmem:[%s1 + $0x398] sm:$0xff]
      %v507 = vld [vmem:[%s1 + $0x3a0] sm:$0xff]
      %v508 = vld [vmem:[%s1 + $0x3a8] sm:$0xff]
      %v509 = vld [vmem:[%s1 + $0x3b0] sm:$0xff]
      %v510 = vld [vmem:[%s1 + $0x3b8] sm:$0xff]
      %v511 = vld [vmem:[%s1 + $0x3c0] sm:$0xff]
      %v512 = vld [vmem:[%s1 + $0x3c8] sm:$0xff]
      %v513 = vld [vmem:[%s1 + $0x3d0] sm:$0xff]
      %v514 = vld [vmem:[%s1 + $0x3d8] sm:$0xff]
      %v515 = vld [vmem:[%s1 + $0x3e0] sm:$0xff]
      %v516 = vld [vmem:[%s1 + $0x3e8] sm:$0xff]
      %v517 = vld [vmem:[%s1 + $0x3f0] sm:$0xff]
      %v518 = vld [vmem:[%s1 + $0x3f8] sm:$0xff]
      %v519 = vld [vmem:[%s1 + $0x400] sm:$0xff]
      %v520 = vld [vmem:[%s1 + $0x408] sm:$0xff]
      %v521 = vld [vmem:[%s1 + $0x410] sm:$0xff]
      %v522 = vld [vmem:[%s1 + $0x418] sm:$0xff]
      %v523 = vld [vmem:[%s1 + $0x420] sm:$0xff]
      %v524 = vld [vmem:[%s1 + $0x428] sm:$0xff]
      %v525 = vld [vmem:[%s1 + $0x430] sm:$0xff]
      %v526 = vld [vmem:[%s1 + $0x438] sm:$0xff]
      %v527 = vld [vmem:[%s1 + $0x440] sm:$0xff]
      %v528 = vld [vmem:[%s1 + $0x448] sm:$0xff]
      %v529 = vld [vmem:[%s1 + $0x450] sm:$0xff]
      %v530 = vld [vmem:[%s1 + $0x458] sm:$0xff]
      %v531 = vld [vmem:[%s1 + $0x460] sm:$0xff]
      %v532 = vld [vmem:[%s1 + $0x468] sm:$0xff]
      %v533 = vld [vmem:[%s1 + $0x470] sm:$0xff]
      %v534 = vld [vmem:[%s1 + $0x478] sm:$0xff]
      %v535 = vld [vmem:[%s1 + $0x480] sm:$0xff]
      %v536 = vld [vmem:[%s1 + $0x488] sm:$0xff]
      %v537 = vld [vmem:[%s1 + $0x490] sm:$0xff]
      %v538 = vld [vmem:[%s1 + $0x498] sm:$0xff]
      %v539 = vld [vmem:[%s1 + $0x4a0] sm:$0xff]
      %v540 = vld [vmem:[%s1 + $0x4a8] sm:$0xff]
      %v541 = vld [vmem:[%s1 + $0x4b0] sm:$0xff]
      %v542 = vld [vmem:[%s1 + $0x4b8] sm:$0xff]
      %v543 = vld [vmem:[%s1 + $0x4c0] sm:$0xff]
      %v544 = vld [vmem:[%s1 + $0x4c8] sm:$0xff]
      %v545 = vld [vmem:[%s1 + $0x4d0] sm:$0xff]
      %v546 = vld [vmem:[%s1 + $0x4d8] sm:$0xff]
      %v547 = vld [vmem:[%s1 + $0x4e0] sm:$0xff]
      %v548 = vld [vmem:[%s1 + $0x4e8] sm:$0xff]
      %v549 = vld [vmem:[%s1 + $0x4f0] sm:$0xff]
      %v550 = vld [vmem:[%s1 + $0x4f8] sm:$0xff]
      %v551 = vld [vmem:[%s1 + $0x500] sm:$0xff]
      %v552 = vld [vmem:[%s1 + $0x508] sm:$0xff]
      %v553 = vld [vmem:[%s1 + $0x510] sm:$0xff]
      %v554 = vld [vmem:[%s1 + $0x518] sm:$0xff]
      %v555 = vld [vmem:[%s1 + $0x520] sm:$0xff]
      %v556 = vld [vmem:[%s1 + $0x528] sm:$0xff]
      %v557 = vld [vmem:[%s1 + $0x530] sm:$0xff]
      %v558 = vld [vmem:[%s1 + $0x538] sm:$0xff]
      %v559 = vld [vmem:[%s1 + $0x540] sm:$0xff]
      %v560 = vld [vmem:[%s1 + $0x548] sm:$0xff]
      %v561 = vld [vmem:[%s1 + $0x550] sm:$0xff]
      %v562 = vld [vmem:[%s1 + $0x558] sm:$0xff]
      %v563 = vld [vmem:[%s1 + $0x560] sm:$0xff]
      %v564 = vld [vmem:[%s1 + $0x568] sm:$0xff]
      %v565 = vld [vmem:[%s1 + $0x570] sm:$0xff]
      %v566 = vld [vmem:[%s1 + $0x578] sm:$0xff]
      %v567 = vld [vmem:[%s1 + $0x580] sm:$0xff]
      %v568 = vld [vmem:[%s1 + $0x588] sm:$0xff]
      %v569 = vld [vmem:[%s1 + $0x590] sm:$0xff]
      %v570 = vld [vmem:[%s1 + $0x598] sm:$0xff]
      %v571 = vld [vmem:[%s1 + $0x5a0] sm:$0xff]
      %v572 = vld [vmem:[%s1 + $0x5a8] sm:$0xff]
      %v573 = vld [vmem:[%s1 + $0x5b0] sm:$0xff]
      %v574 = vld [vmem:[%s1 + $0x5b8] sm:$0xff]
      %v575 = vld [vmem:[%s1 + $0x5c0] sm:$0xff]
      %v576 = vld [vmem:[%s1 + $0x5c8] sm:$0xff]
      %v577 = vld [vmem:[%s1 + $0x5d0] sm:$0xff]
      %v578 = vld [vmem:[%s1 + $0x5d8] sm:$0xff]
      %v579 = vld [vmem:[%s1 + $0x5e0] sm:$0xff]
      %v580 = vld [vmem:[%s1 + $0x5e8] sm:$0xff]
      %v581 = vld [vmem:[%s1 + $0x5f0] sm:$0xff]
      %v582 = vld [vmem:[%s1 + $0x5f8] sm:$0xff]
      %v583 = vld [vmem:[%s1 + $0x600] sm:$0xff]
      %v584 = vld [vmem:[%s1 + $0x608] sm:$0xff]
      %v585 = vld [vmem:[%s1 + $0x610] sm:$0xff]
      %v586 = vld [vmem:[%s1 + $0x618] sm:$0xff]
      %v587 = vld [vmem:[%s1 + $0x620] sm:$0xff]
      %v588 = vld [vmem:[%s1 + $0x628] sm:$0xff]
      %v589 = vld [vmem:[%s1 + $0x630] sm:$0xff]
      %v590 = vld [vmem:[%s1 + $0x638] sm:$0xff]
      %v591 = vld [vmem:[%s1 + $0x640] sm:$0xff]
      %v592 = vld [vmem:[%s1 + $0x648] sm:$0xff]
      %v593 = vld [vmem:[%s1 + $0x650] sm:$0xff]
      %v594 = vld [vmem:[%s1 + $0x658] sm:$0xff]
      %v595 = vld [vmem:[%s1 + $0x660] sm:$0xff]
      %v596 = vld [vmem:[%s1 + $0x668] sm:$0xff]
      %v597 = vld [vmem:[%s1 + $0x670] sm:$0xff]
      %v598 = vld [vmem:[%s1 + $0x678] sm:$0xff]
      %v599 = vld [vmem:[%s1 + $0x680] sm:$0xff]
      %v600 = vld [vmem:[%s1 + $0x688] sm:$0xff]
      %v601 = vld [vmem:[%s1 + $0x690] sm:$0xff]
      %v602 = vld [vmem:[%s1 + $0x698] sm:$0xff]
      %v603 = vld [vmem:[%s1 + $0x6a0] sm:$0xff]
      %v604 = vld [vmem:[%s1 + $0x6a8] sm:$0xff]
      %v605 = vld [vmem:[%s1 + $0x6b0] sm:$0xff]
      %v606 = vld [vmem:[%s1 + $0x6b8] sm:$0xff]
      %v607 = vld [vmem:[%s1 + $0x6c0] sm:$0xff]
      %v608 = vld [vmem:[%s1 + $0x6c8] sm:$0xff]
      %v609 = vld [vmem:[%s1 + $0x6d0] sm:$0xff]
      %v610 = vld [vmem:[%s1 + $0x6d8] sm:$0xff]
      %v611 = vld [vmem:[%s1 + $0x6e0] sm:$0xff]
      %v612 = vld [vmem:[%s1 + $0x6e8] sm:$0xff]
      %v613 = vld [vmem:[%s1 + $0x6f0] sm:$0xff]
      %v614 = vld [vmem:[%s1 + $0x6f8] sm:$0xff]
      %v615 = vld [vmem:[%s1 + $0x700] sm:$0xff]
      %v616 = vld [vmem:[%s1 + $0x708] sm:$0xff]
      %v617 = vld [vmem:[%s1 + $0x710] sm:$0xff]
      %v618 = vld [vmem:[%s1 + $0x718] sm:$0xff]
      %v619 = vld [vmem:[%s1 + $0x720] sm:$0xff]
      %v620 = vld [vmem:[%s1 + $0x728] sm:$0xff]
      %v621 = vld [vmem:[%s1 + $0x730] sm:$0xff]
      %v622 = vld [vmem:[%s1 + $0x738] sm:$0xff]
      %v623 = vld [vmem:[%s1 + $0x740] sm:$0xff]
      %v624 = vld [vmem:[%s1 + $0x748] sm:$0xff]
      %v625 = vld [vmem:[%s1 + $0x750] sm:$0xff]
      %v626 = vld [vmem:[%s1 + $0x758] sm:$0xff]
      %v627 = vld [vmem:[%s1 + $0x760] sm:$0xff]
      %v628 = vld [vmem:[%s1 + $0x768] sm:$0xff]
      %v629 = vld [vmem:[%s1 + $0x770] sm:$0xff]
      %v630 = vld [vmem:[%s1 + $0x778] sm:$0xff]
      %v631 = vld [vmem:[%s1 + $0x780] sm:$0xff]
      %v632 = vld [vmem:[%s1 + $0x788] sm:$0xff]
      %v633 = vld [vmem:[%s1 + $0x790] sm:$0xff]
      %v634 = vld [vmem:[%s1 + $0x798] sm:$0xff]
      %v635 = vld [vmem:[%s1 + $0x7a0] sm:$0xff]
      %v636 = vld [vmem:[%s1 + $0x7a8] sm:$0xff]
      %v637 = vld [vmem:[%s1 + $0x7b0] sm:$0xff]
      %v638 = vld [vmem:[%s1 + $0x7b8] sm:$0xff]
      %v639 = vld [vmem:[%s1 + $0x7c0] sm:$0xff]
      %v640 = vld [vmem:[%s1 + $0x7c8] sm:$0xff]
      %v641 = vld [vmem:[%s1 + $0x7d0] sm:$0xff]
      %v642 = vld [vmem:[%s1 + $0x7d8] sm:$0xff]
      %v643 = vld [vmem:[%s1 + $0x7e0] sm:$0xff]
      %v644 = vld [vmem:[%s1 + $0x7e8] sm:$0xff]
      %v645 = vld [vmem:[%s1 + $0x7f0] sm:$0xff]
      %v646 = vld [vmem:[%s1 + $0x7f8] sm:$0xff]
      %v647 = vld [vmem:[%s1 + $0x800] sm:$0xff]
      %v648 = vld [vmem:[%s1 + $0x808] sm:$0xff]
      %v649 = vld [vmem:[%s1 + $0x810] sm:$0xff]
      %v650 = vld [vmem:[%s1 + $0x818] sm:$0xff]
      %v651 = vld [vmem:[%s1 + $0x820] sm:$0xff]
      %v652 = vld [vmem:[%s1 + $0x828] sm:$0xff]
      %v653 = vld [vmem:[%s1 + $0x830] sm:$0xff]
      %v654 = vld [vmem:[%s1 + $0x838] sm:$0xff]
      %v655 = vld [vmem:[%s1 + $0x840] sm:$0xff]
      %v656 = vld [vmem:[%s1 + $0x848] sm:$0xff]
      %v657 = vld [vmem:[%s1 + $0x850] sm:$0xff]
      %v658 = vld [vmem:[%s1 + $0x858] sm:$0xff]
      %v659 = vld [vmem:[%s1 + $0x860] sm:$0xff]
      %v660 = vld [vmem:[%s1 + $0x868] sm:$0xff]
      %v661 = vld [vmem:[%s1 + $0x870] sm:$0xff]
      %v662 = vld [vmem:[%s1 + $0x878] sm:$0xff]
      %v663 = vld [vmem:[%s1 + $0x880] sm:$0xff]
      %v664 = vld [vmem:[%s1 + $0x888] sm:$0xff]
      %v665 = vld [vmem:[%s1 + $0x890] sm:$0xff]
      %v666 = vld [vmem:[%s1 + $0x898] sm:$0xff]
      %v667 = vld [vmem:[%s1 + $0x8a0] sm:$0xff]
      %v668 = vld [vmem:[%s1 + $0x8a8] sm:$0xff]
      %v669 = vld [vmem:[%s1 + $0x8b0] sm:$0xff]
      %v670 = vld [vmem:[%s1 + $0x8b8] sm:$0xff]
      %v671 = vld [vmem:[%s1 + $0x8c0] sm:$0xff]
      %v672 = vld [vmem:[%s1 + $0x8c8] sm:$0xff]
      %v673 = vld [vmem:[%s1 + $0x8d0] sm:$0xff]
      %v674 = vld [vmem:[%s1 + $0x8d8] sm:$0xff]
      %v675 = vld [vmem:[%s1 + $0x8e0] sm:$0xff]
      %v676 = vld [vmem:[%s1 + $0x8e8] sm:$0xff]
      %v677 = vld [vmem:[%s1 + $0x8f0] sm:$0xff]
      %v678 = vld [vmem:[%s1 + $0x8f8] sm:$0xff]
      %v679 = vld [vmem:[%s1 + $0x900] sm:$0xff]
      %v680 = vld [vmem:[%s1 + $0x908] sm:$0xff]
      %v681 = vld [vmem:[%s1 + $0x910] sm:$0xff]
      %v682 = vld [vmem:[%s1 + $0x918] sm:$0xff]
      %v683 = vld [vmem:[%s1 + $0x920] sm:$0xff]
      %v684 = vld [vmem:[%s1 + $0x928] sm:$0xff]
      %v685 = vld [vmem:[%s1 + $0x930] sm:$0xff]
      %v686 = vld [vmem:[%s1 + $0x938] sm:$0xff]
      %v687 = vld [vmem:[%s1 + $0x940] sm:$0xff]
      %v688 = vld [vmem:[%s1 + $0x948] sm:$0xff]
      %v689 = vld [vmem:[%s1 + $0x950] sm:$0xff]
      %v690 = vld [vmem:[%s1 + $0x958] sm:$0xff]
      %v691 = vld [vmem:[%s1 + $0x960] sm:$0xff]
      %v692 = vld [vmem:[%s1 + $0x968] sm:$0xff]
      %v693 = vld [vmem:[%s1 + $0x970] sm:$0xff]
      %v694 = vld [vmem:[%s1 + $0x978] sm:$0xff]
      %v695 = vld [vmem:[%s1 + $0x980] sm:$0xff]
      %v696 = vld [vmem:[%s1 + $0x988] sm:$0xff]
      %v697 = vld [vmem:[%s1 + $0x990] sm:$0xff]
      %v698 = vld [vmem:[%s1 + $0x998] sm:$0xff]
      %v699 = vld [vmem:[%s1 + $0x9a0] sm:$0xff]
      %v700 = vld [vmem:[%s1 + $0x9a8] sm:$0xff]
      %v701 = vld [vmem:[%s1 + $0x9b0] sm:$0xff]
      %v702 = vld [vmem:[%s1 + $0x9b8] sm:$0xff]
      %v703 = vld [vmem:[%s1 + $0x9c0] sm:$0xff]
      %v704 = vld [vmem:[%s1 + $0x9c8] sm:$0xff]
      %v705 = vld [vmem:[%s1 + $0x9d0] sm:$0xff]
      %v706 = vld [vmem:[%s1 + $0x9d8] sm:$0xff]
      %v707 = vld [vmem:[%s1 + $0x9e0] sm:$0xff]
      %v708 = vld [vmem:[%s1 + $0x9e8] sm:$0xff]
      %v709 = vld [vmem:[%s1 + $0x9f0] sm:$0xff]
      %v710 = vld [vmem:[%s1 + $0x9f8] sm:$0xff]
      %v711 = vld [vmem:[%s1 + $0xa00] sm:$0xff]
      %v712 = vld [vmem:[%s1 + $0xa08] sm:$0xff]
      %v713 = vld [vmem:[%s1 + $0xa10] sm:$0xff]
      %v714 = vld [vmem:[%s1 + $0xa18] sm:$0xff]
      %v715 = vld [vmem:[%s1 + $0xa20] sm:$0xff]
      %v716 = vld [vmem:[%s1 + $0xa28] sm:$0xff]
      %v717 = vld [vmem:[%s1 + $0xa30] sm:$0xff]
      %v718 = vld [vmem:[%s1 + $0xa38] sm:$0xff]
      %v719 = vld [vmem:[%s1 + $0xa40] sm:$0xff]
      %v720 = vld [vmem:[%s1 + $0xa48] sm:$0xff]
      %v721 = vld [vmem:[%s1 + $0xa50] sm:$0xff]
      %v722 = vld [vmem:[%s1 + $0xa58] sm:$0xff]
      %v723 = vld [vmem:[%s1 + $0xa60] sm:$0xff]
      %v724 = vld [vmem:[%s1 + $0xa68] sm:$0xff]
      %v725 = vld [vmem:[%s1 + $0xa70] sm:$0xff]
      %v726 = vld [vmem:[%s1 + $0xa78] sm:$0xff]
      %v727 = vld [vmem:[%s1 + $0xa80] sm:$0xff]
      %v728 = vld [vmem:[%s1 + $0xa88] sm:$0xff]
      %v729 = vld [vmem:[%s1 + $0xa90] sm:$0xff]
      %v730 = vld [vmem:[%s1 + $0xa98] sm:$0xff]
      %v731 = vld [vmem:[%s1 + $0xaa0] sm:$0xff]
      %v732 = vld [vmem:[%s1 + $0xaa8] sm:$0xff]
      %v733 = vld [vmem:[%s1 + $0xab0] sm:$0xff]
      %v734 = vld [vmem:[%s1 + $0xab8] sm:$0xff]
      %v735 = vld [vmem:[%s1 + $0xac0] sm:$0xff]
      %v736 = vld [vmem:[%s1 + $0xac8] sm:$0xff]
      %v737 = vld [vmem:[%s1 + $0xad0] sm:$0xff]
      %v738 = vld [vmem:[%s1 + $0xad8] sm:$0xff]
      %v739 = vld [vmem:[%s1 + $0xae0] sm:$0xff]
      %v740 = vld [vmem:[%s1 + $0xae8] sm:$0xff]
      %v741 = vld [vmem:[%s1 + $0xaf0] sm:$0xff]
      %v742 = vld [vmem:[%s1 + $0xaf8] sm:$0xff]
      %v743 = vld [vmem:[%s1 + $0xb00] sm:$0xff]
      %v744 = vld [vmem:[%s1 + $0xb08] sm:$0xff]
      %v745 = vld [vmem:[%s1 + $0xb10] sm:$0xff]
      %v746 = vld [vmem:[%s1 + $0xb18] sm:$0xff]
      %v747 = vld [vmem:[%s1 + $0xb20] sm:$0xff]
      %v748 = vld [vmem:[%s1 + $0xb28] sm:$0xff]
      %v749 = vld [vmem:[%s1 + $0xb30] sm:$0xff]
      %v750 = vld [vmem:[%s1 + $0xb38] sm:$0xff]
      %v751 = vld [vmem:[%s1 + $0xb40] sm:$0xff]
      %v752 = vld [vmem:[%s1 + $0xb48] sm:$0xff]
      %v753 = vld [vmem:[%s1 + $0xb50] sm:$0xff]
      %v754 = vld [vmem:[%s1 + $0xb58] sm:$0xff]
      %v755 = vld [vmem:[%s1 + $0xb60] sm:$0xff]
      %v756 = vld [vmem:[%s1 + $0xb68] sm:$0xff]
      %v757 = vld [vmem:[%s1 + $0xb70] sm:$0xff]
      %v758 = vld [vmem:[%s1 + $0xb78] sm:$0xff]
      %v759 = vld [vmem:[%s1 + $0xb80] sm:$0xff]
      %v760 = vld [vmem:[%s1 + $0xb88] sm:$0xff]
      %v761 = vld [vmem:[%s1 + $0xb90] sm:$0xff]
      %v762 = vld [vmem:[%s1 + $0xb98] sm:$0xff]
      %v763 = vld [vmem:[%s1 + $0xba0] sm:$0xff]
      %v764 = vld [vmem:[%s1 + $0xba8] sm:$0xff]
      %v765 = vld [vmem:[%s1 + $0xbb0] sm:$0xff]
      %v766 = vld [vmem:[%s1 + $0xbb8] sm:$0xff]
      %v767 = vld [vmem:[%s1 + $0xbc0] sm:$0xff]
      %v768 = vld [vmem:[%s1 + $0xbc8] sm:$0xff]
      %v769 = vld [vmem:[%s1 + $0xbd0] sm:$0xff]
      %v770 = vld [vmem:[%s1 + $0xbd8] sm:$0xff]
      %v771 = vld [vmem:[%s1 + $0xbe0] sm:$0xff]
      %v772 = vld [vmem:[%s1 + $0xbe8] sm:$0xff]
      %v773 = vld [vmem:[%s1 + $0xbf0] sm:$0xff]
      %v774 = vld [vmem:[%s1 + $0xbf8] sm:$0xff]
      %v775 = vld [vmem:[%s1 + $0xc00] sm:$0xff]
      %v776 = vld [vmem:[%s1 + $0xc08] sm:$0xff]
      %v777 = vld [vmem:[%s1 + $0xc10] sm:$0xff]
      %v778 = vld [vmem:[%s1 + $0xc18] sm:$0xff]
      %v779 = vld [vmem:[%s1 + $0xc20] sm:$0xff]
      %v780 = vld [vmem:[%s1 + $0xc28] sm:$0xff]
      %v781 = vld [vmem:[%s1 + $0xc30] sm:$0xff]
      %v782 = vld [vmem:[%s1 + $0xc38] sm:$0xff]
      %v783 = vld [vmem:[%s1 + $0xc40] sm:$0xff]
      %v784 = vld [vmem:[%s1 + $0xc48] sm:$0xff]
      %v785 = vld [vmem:[%s1 + $0xc50] sm:$0xff]
      %v786 = vld [vmem:[%s1 + $0xc58] sm:$0xff]
      %v787 = vld [vmem:[%s1 + $0xc60] sm:$0xff]
      %v788 = vld [vmem:[%s1 + $0xc68] sm:$0xff]
      %v789 = vld [vmem:[%s1 + $0xc70] sm:$0xff]
      %v790 = vld [vmem:[%s1 + $0xc78] sm:$0xff]
      %v791 = vld [vmem:[%s1 + $0xc80] sm:$0xff]
      %v792 = vld [vmem:[%s1 + $0xc88] sm:$0xff]
      %v793 = vld [vmem:[%s1 + $0xc90] sm:$0xff]
      %v794 = vld [vmem:[%s1 + $0xc98] sm:$0xff]
      %v795 = vld [vmem:[%s1 + $0xca0] sm:$0xff]
      %v796 = vld [vmem:[%s1 + $0xca8] sm:$0xff]
      %v797 = vld [vmem:[%s1 + $0xcb0] sm:$0xff]
      %v798 = vld [vmem:[%s1 + $0xcb8] sm:$0xff]
      %v799 = vld [vmem:[%s1 + $0xcc0] sm:$0xff]
      %v800 = vld [vmem:[%s1 + $0xcc8] sm:$0xff]
      %v801 = vld [vmem:[%s1 + $0xcd0] sm:$0xff]
      %v802 = vld [vmem:[%s1 + $0xcd8] sm:$0xff]
      %v803 = vld [vmem:[%s1 + $0xce0] sm:$0xff]
      %v804 = vld [vmem:[%s1 + $0xce8] sm:$0xff]
      %v805 = vld [vmem:[%s1 + $0xcf0] sm:$0xff]
      %v806 = vld [vmem:[%s1 + $0xcf8] sm:$0xff]
      %v807 = vld [vmem:[%s1 + $0xd00] sm:$0xff]
      %v808 = vld [vmem:[%s1 + $0xd08] sm:$0xff]
      %v809 = vld [vmem:[%s1 + $0xd10] sm:$0xff]
      %v810 = vld [vmem:[%s1 + $0xd18] sm:$0xff]
      %v811 = vld [vmem:[%s1 + $0xd20] sm:$0xff]
      %v812 = vld [vmem:[%s1 + $0xd28] sm:$0xff]
      %v813 = vld [vmem:[%s1 + $0xd30] sm:$0xff]
      %v814 = vld [vmem:[%s1 + $0xd38] sm:$0xff]
      %v815 = vld [vmem:[%s1 + $0xd40] sm:$0xff]
      %v816 = vld [vmem:[%s1 + $0xd48] sm:$0xff]
      %v817 = vld [vmem:[%s1 + $0xd50] sm:$0xff]
      %v818 = vld [vmem:[%s1 + $0xd58] sm:$0xff]
      %v819 = vld [vmem:[%s1 + $0xd60] sm:$0xff]
      %v820 = vld [vmem:[%s1 + $0xd68] sm:$0xff]
      %v821 = vld [vmem:[%s1 + $0xd70] sm:$0xff]
      %v822 = vld [vmem:[%s1 + $0xd78] sm:$0xff]
      %v823 = vld [vmem:[%s1 + $0xd80] sm:$0xff]
      %v824 = vld [vmem:[%s1 + $0xd88] sm:$0xff]
      %v825 = vld [vmem:[%s1 + $0xd90] sm:$0xff]
      %v826 = vld [vmem:[%s1 + $0xd98] sm:$0xff]
      %v827 = vld [vmem:[%s1 + $0xda0] sm:$0xff]
      %v828 = vld [vmem:[%s1 + $0xda8] sm:$0xff]
      %v829 = vld [vmem:[%s1 + $0xdb0] sm:$0xff]
      %v830 = vld [vmem:[%s1 + $0xdb8] sm:$0xff]
      %v831 = vld [vmem:[%s1 + $0xdc0] sm:$0xff]
      %v832 = vld [vmem:[%s1 + $0xdc8] sm:$0xff]
      %v833 = vld [vmem:[%s1 + $0xdd0] sm:$0xff]
      %v834 = vld [vmem:[%s1 + $0xdd8] sm:$0xff]
      %v835 = vld [vmem:[%s1 + $0xde0] sm:$0xff]
      %v836 = vld [vmem:[%s1 + $0xde8] sm:$0xff]
      %v837 = vld [vmem:[%s1 + $0xdf0] sm:$0xff]
      %v838 = vld [vmem:[%s1 + $0xdf8] sm:$0xff]
      %v839 = vld [vmem:[%s1 + $0xe00] sm:$0xff]
      %v840 = vld [vmem:[%s1 + $0xe08] sm:$0xff]
      %v841 = vld [vmem:[%s1 + $0xe10] sm:$0xff]
      %v842 = vld [vmem:[%s1 + $0xe18] sm:$0xff]
      %v843 = vld [vmem:[%s1 + $0xe20] sm:$0xff]
      %v844 = vld [vmem:[%s1 + $0xe28] sm:$0xff]
      %v845 = vld [vmem:[%s1 + $0xe30] sm:$0xff]
      %v846 = vld [vmem:[%s1 + $0xe38] sm:$0xff]
      %v847 = vld [vmem:[%s1 + $0xe40] sm:$0xff]
      %v848 = vld [vmem:[%s1 + $0xe48] sm:$0xff]
      %v849 = vld [vmem:[%s1 + $0xe50] sm:$0xff]
      %v850 = vld [vmem:[%s1 + $0xe58] sm:$0xff]
      %v851 = vld [vmem:[%s1 + $0xe60] sm:$0xff]
      %v852 = vld [vmem:[%s1 + $0xe68] sm:$0xff]
      %v853 = vld [vmem:[%s1 + $0xe70] sm:$0xff]
      %v854 = vld [vmem:[%s1 + $0xe78] sm:$0xff]
      %v855 = vld [vmem:[%s1 + $0xe80] sm:$0xff]
      %v856 = vld [vmem:[%s1 + $0xe88] sm:$0xff]
      %v857 = vld [vmem:[%s1 + $0xe90] sm:$0xff]
      %v858 = vld [vmem:[%s1 + $0xe98] sm:$0xff]
      %v859 = vld [vmem:[%s1 + $0xea0] sm:$0xff]
      %v860 = vld [vmem:[%s1 + $0xea8] sm:$0xff]
      %v861 = vld [vmem:[%s1 + $0xeb0] sm:$0xff]
      %v862 = vld [vmem:[%s1 + $0xeb8] sm:$0xff]
      %v863 = vld [vmem:[%s1 + $0xec0] sm:$0xff]
      %v864 = vld [vmem:[%s1 + $0xec8] sm:$0xff]
      %v865 = vld [vmem:[%s1 + $0xed0] sm:$0xff]
      %v866 = vld [vmem:[%s1 + $0xed8] sm:$0xff]
      %v867 = vld [vmem:[%s1 + $0xee0] sm:$0xff]
      %v868 = vld [vmem:[%s1 + $0xee8] sm:$0xff]
      %v869 = vld [vmem:[%s1 + $0xef0] sm:$0xff]
      %v870 = vld [vmem:[%s1 + $0xef8] sm:$0xff]
      %v871 = vld [vmem:[%s1 + $0xf00] sm:$0xff]
      %v872 = vld [vmem:[%s1 + $0xf08] sm:$0xff]
      %v873 = vld [vmem:[%s1 + $0xf10] sm:$0xff]
      %v874 = vld [vmem:[%s1 + $0xf18] sm:$0xff]
      %v875 = vld [vmem:[%s1 + $0xf20] sm:$0xff]
      %v876 = vld [vmem:[%s1 + $0xf28] sm:$0xff]
      %v877 = vld [vmem:[%s1 + $0xf30] sm:$0xff]
      %v878 = vld [vmem:[%s1 + $0xf38] sm:$0xff]
      %v879 = vld [vmem:[%s1 + $0xf40] sm:$0xff]
      %v880 = vld [vmem:[%s1 + $0xf48] sm:$0xff]
      %v881 = vld [vmem:[%s1 + $0xf50] sm:$0xff]
      %v882 = vld [vmem:[%s1 + $0xf58] sm:$0xff]
      %v883 = vld [vmem:[%s1 + $0xf60] sm:$0xff]
      %v884 = vld [vmem:[%s1 + $0xf68] sm:$0xff]
      %v885 = vld [vmem:[%s1 + $0xf70] sm:$0xff]
      %v886 = vld [vmem:[%s1 + $0xf78] sm:$0xff]
      %v887 = vld [vmem:[%s1 + $0xf80] sm:$0xff]
      %v888 = vld [vmem:[%s1 + $0xf88] sm:$0xff]
      %v889 = vld [vmem:[%s1 + $0xf90] sm:$0xff]
      %v890 = vld [vmem:[%s1 + $0xf98] sm:$0xff]
      %v891 = vld [vmem:[%s1 + $0xfa0] sm:$0xff]
      %v892 = vld [vmem:[%s1 + $0xfa8] sm:$0xff]
      %v893 = vld [vmem:[%s1 + $0xfb0] sm:$0xff]
      %v894 = vld [vmem:[%s1 + $0xfb8] sm:$0xff]
      %v895 = vld [vmem:[%s1 + $0xfc0] sm:$0xff]
      %v896 = vld [vmem:[%s1 + $0xfc8] sm:$0xff]
      %v897 = vld [vmem:[%s1 + $0xfd0] sm:$0xff]
      %v898 = vld [vmem:[%s1 + $0xfd8] sm:$0xff]
      %v899 = vld [vmem:[%s1 + $0xfe0] sm:$0xff]
      %v900 = vld [vmem:[%s1 + $0xfe8] sm:$0xff]
      %v901 = vld [vmem:[%s1 + $0xff0] sm:$0xff]
      %v902 = vld [vmem:[%s1 + $0xff8] sm:$0xff]
      %v903 = vld [vmem:[%s1 + $0x1000] sm:$0xff]
      %v904 = vld [vmem:[%s1 + $0x1008] sm:$0xff]
      %v905 = vld [vmem:[%s1 + $0x1010] sm:$0xff]
      %v906 = vld [vmem:[%s1 + $0x1018] sm:$0xff]
      %v907 = vld [vmem:[%s1 + $0x1020] sm:$0xff]
      %v908 = vld [vmem:[%s1 + $0x1028] sm:$0xff]
      %v909 = vld [vmem:[%s1 + $0x1030] sm:$0xff]
      %v910 = vld [vmem:[%s1 + $0x1038] sm:$0xff]
      %v911 = vld [vmem:[%s1 + $0x1040] sm:$0xff]
      %v912 = vld [vmem:[%s1 + $0x1048] sm:$0xff]
      %v913 = vld [vmem:[%s1 + $0x1050] sm:$0xff]
      %v914 = vld [vmem:[%s1 + $0x1058] sm:$0xff]
      %v915 = vld [vmem:[%s1 + $0x1060] sm:$0xff]
      %v916 = vld [vmem:[%s1 + $0x1068] sm:$0xff]
      %v917 = vld [vmem:[%s1 + $0x1070] sm:$0xff]
      %v918 = vld [vmem:[%s1 + $0x1078] sm:$0xff]
      %v919 = vld [vmem:[%s1 + $0x1080] sm:$0xff]
      %v920 = vld [vmem:[%s1 + $0x1088] sm:$0xff]
      %v921 = vld [vmem:[%s1 + $0x1090] sm:$0xff]
      %v922 = vld [vmem:[%s1 + $0x1098] sm:$0xff]
      %v923 = vld [vmem:[%s1 + $0x10a0] sm:$0xff]
      %v924 = vld [vmem:[%s1 + $0x10a8] sm:$0xff]
      %v925 = vld [vmem:[%s1 + $0x10b0] sm:$0xff]
      %v926 = vld [vmem:[%s1 + $0x10b8] sm:$0xff]
      %v927 = vld [vmem:[%s1 + $0x10c0] sm:$0xff]
      %v928 = vld [vmem:[%s1 + $0x10c8] sm:$0xff]
      %v929 = vld [vmem:[%s1 + $0x10d0] sm:$0xff]
      %v930 = vld [vmem:[%s1 + $0x10d8] sm:$0xff]
      %v931 = vld [vmem:[%s1 + $0x10e0] sm:$0xff]
      %v932 = vld [vmem:[%s1 + $0x10e8] sm:$0xff]
      %v933 = vld [vmem:[%s1 + $0x10f0] sm:$0xff]
      %v934 = vld [vmem:[%s1 + $0x10f8] sm:$0xff]
      %v935 = vld [vmem:[%s1 + $0x1100] sm:$0xff]
      %v936 = vld [vmem:[%s1 + $0x1108] sm:$0xff]
      %v937 = vld [vmem:[%s1 + $0x1110] sm:$0xff]
      %v938 = vld [vmem:[%s1 + $0x1118] sm:$0xff]
      %v939 = vld [vmem:[%s1 + $0x1120] sm:$0xff]
      %v940 = vld [vmem:[%s1 + $0x1128] sm:$0xff]
      %v941 = vld [vmem:[%s1 + $0x1130] sm:$0xff]
      %v942 = vld [vmem:[%s1 + $0x1138] sm:$0xff]
      %v943 = vld [vmem:[%s1 + $0x1140] sm:$0xff]
      %v944 = vld [vmem:[%s1 + $0x1148] sm:$0xff]
      %v945 = vld [vmem:[%s1 + $0x1150] sm:$0xff]
      %v946 = vld [vmem:[%s1 + $0x1158] sm:$0xff]
      %v947 = vld [vmem:[%s1 + $0x1160] sm:$0xff]
      %v948 = vld [vmem:[%s1 + $0x1168] sm:$0xff]
      %v949 = vld [vmem:[%s1 + $0x1170] sm:$0xff]
      %v950 = vld [vmem:[%s1 + $0x1178] sm:$0xff]
      %v951 = vld [vmem:[%s1 + $0x1180] sm:$0xff]
      %v952 = vld [vmem:[%s1 + $0x1188] sm:$0xff]
      %v953 = vld [vmem:[%s1 + $0x1190] sm:$0xff]
      %v954 = vld [vmem:[%s1 + $0x1198] sm:$0xff]
      %v955 = vld [vmem:[%s1 + $0x11a0] sm:$0xff]
      %v956 = vld [vmem:[%s1 + $0x11a8] sm:$0xff]
      %v957 = vld [vmem:[%s1 + $0x11b0] sm:$0xff]
      %v958 = vld [vmem:[%s1 + $0x11b8] sm:$0xff]
      %v959 = vld [vmem:[%s1 + $0x11c0] sm:$0xff]
      %v960 = vld [vmem:[%s1 + $0x11c8] sm:$0xff]
      %v961 = vld [vmem:[%s1 + $0x11d0] sm:$0xff]
      %v962 = vld [vmem:[%s1 + $0x11d8] sm:$0xff]
      %v963 = vld [vmem:[%s1 + $0x11e0] sm:$0xff]
      %v964 = vld [vmem:[%s1 + $0x11e8] sm:$0xff]
      %v965 = vld [vmem:[%s1 + $0x11f0] sm:$0xff]
      %v966 = vld [vmem:[%s1 + $0x11f8] sm:$0xff]
      %v967 = vld [vmem:[%s1 + $0x1200] sm:$0xff]
      %v968 = vld [vmem:[%s1 + $0x1208] sm:$0xff]
      %v969 = vld [vmem:[%s1 + $0x1210] sm:$0xff]
      %v970 = vld [vmem:[%s1 + $0x1218] sm:$0xff]
      %v971 = vld [vmem:[%s1 + $0x1220] sm:$0xff]
      %v972 = vld [vmem:[%s1 + $0x1228] sm:$0xff]
      %v973 = vld [vmem:[%s1 + $0x1230] sm:$0xff]
      %v974 = vld [vmem:[%s1 + $0x1238] sm:$0xff]
      %v975 = vld [vmem:[%s1 + $0x1240] sm:$0xff]
      %v976 = vld [vmem:[%s1 + $0x1248] sm:$0xff]
      %v977 = vld [vmem:[%s1 + $0x1250] sm:$0xff]
      %v978 = vld [vmem:[%s1 + $0x1258] sm:$0xff]
      %v979 = vld [vmem:[%s1 + $0x1260] sm:$0xff]
      %v980 = vld [vmem:[%s1 + $0x1268] sm:$0xff]
      %v981 = vld [vmem:[%s1 + $0x1270] sm:$0xff]
      %v982 = vld [vmem:[%s1 + $0x1278] sm:$0xff]
      %v983 = vld [vmem:[%s1 + $0x1280] sm:$0xff]
      %v984 = vld [vmem:[%s1 + $0x1288] sm:$0xff]
      %v985 = vld [vmem:[%s1 + $0x1290] sm:$0xff]
      %v986 = vld [vmem:[%s1 + $0x1298] sm:$0xff]
      %v987 = vld [vmem:[%s1 + $0x12a0] sm:$0xff]
      %v988 = vld [vmem:[%s1 + $0x12a8] sm:$0xff]
      %v989 = vld [vmem:[%s1 + $0x12b0] sm:$0xff]
      %v990 = vld [vmem:[%s1 + $0x12b8] sm:$0xff]
      %v991 = vld [vmem:[%s1 + $0x12c0] sm:$0xff]
      %v992 = vld [vmem:[%s1 + $0x12c8] sm:$0xff]
      %v993 = vld [vmem:[%s1 + $0x12d0] sm:$0xff]
      %v994 = vld [vmem:[%s1 + $0x12d8] sm:$0xff]
      %v995 = vld [vmem:[%s1 + $0x12e0] sm:$0xff]
      %v996 = vld [vmem:[%s1 + $0x12e8] sm:$0xff]
      %v997 = vld [vmem:[%s1 + $0x12f0] sm:$0xff]
      %v998 = vld [vmem:[%s1 + $0x12f8] sm:$0xff]
      %v999 = vld [vmem:[%s1 + $0x1300] sm:$0xff]
      %v1000 = vld [vmem:[%s1 + $0x1308] sm:$0xff]
      %v1001 = vld [vmem:[%s1 + $0x1310] sm:$0xff]
      %v1002 = vld [vmem:[%s1 + $0x1318] sm:$0xff]
      %v1003 = vld [vmem:[%s1 + $0x1320] sm:$0xff]
      %v1004 = vld [vmem:[%s1 + $0x1328] sm:$0xff]
      %v1005 = vld [vmem:[%s1 + $0x1330] sm:$0xff]
      %v1006 = vld [vmem:[%s1 + $0x1338] sm:$0xff]
      %v1007 = vld [vmem:[%s1 + $0x1340] sm:$0xff]
      %v1008 = vld [vmem:[%s1 + $0x1348] sm:$0xff]
      %v1009 = vld [vmem:[%s1 + $0x1350] sm:$0xff]
      %v1010 = vld [vmem:[%s1 + $0x1358] sm:$0xff]
      %v1011 = vld [vmem:[%s1 + $0x1360] sm:$0xff]
      %v1012 = vld [vmem:[%s1 + $0x1368] sm:$0xff]
      %v1013 = vld [vmem:[%s1 + $0x1370] sm:$0xff]
      %v1014 = vld [vmem:[%s1 + $0x1378] sm:$0xff]
      %v1015 = vld [vmem:[%s1 + $0x1380] sm:$0xff]
      %v1016 = vld [vmem:[%s1 + $0x1388] sm:$0xff]
      %v1017 = vld [vmem:[%s1 + $0x1390] sm:$0xff]
      %v1018 = vld [vmem:[%s1 + $0x1398] sm:$0xff]
      %v1019 = vld [vmem:[%s1 + $0x13a0] sm:$0xff]
      %v1020 = vld [vmem:[%s1 + $0x13a8] sm:$0xff]
      %v1021 = vld [vmem:[%s1 + $0x13b0] sm:$0xff]
      %v1022 = vld [vmem:[%s1 + $0x13b8] sm:$0xff]
      %v1023 = vld [vmem:[%s1 + $0x13c0] sm:$0xff]
      %v1024 = vld [vmem:[%s1 + $0x13c8] sm:$0xff]
      %v1025 = vld [vmem:[%s1 + $0x13d0] sm:$0xff]
      %v1026 = vld [vmem:[%s1 + $0x13d8] sm:$0xff]
      %v1027 = vld [vmem:[%s1 + $0x13e0] sm:$0xff]
      %v1028 = vld [vmem:[%s1 + $0x13e8] sm:$0xff]
      %v1029 = vld [vmem:[%s1 + $0x13f0] sm:$0xff]
      %v1030 = vld [vmem:[%s1 + $0x13f8] sm:$0xff]
      %v1031 = vld [vmem:[%s1 + $0x1400] sm:$0xff]
      %v1032 = vld [vmem:[%s1 + $0x1408] sm:$0xff]
      %v1033 = vld [vmem:[%s1 + $0x1410] sm:$0xff]
      %v1034 = vld [vmem:[%s1 + $0x1418] sm:$0xff]
      %v1035 = vld [vmem:[%s1 + $0x1420] sm:$0xff]
      %v1036 = vld [vmem:[%s1 + $0x1428] sm:$0xff]
      %v1037 = vld [vmem:[%s1 + $0x1430] sm:$0xff]
      %v1038 = vld [vmem:[%s1 + $0x1438] sm:$0xff]
      %v1039 = vld [vmem:[%s2] sm:$0x3]
      %v1041 = vlaneseq
      %v1042 = vshrl.u32 %v1041, 7
      %v1043 = vsub.s32 0, %v1042
      %v1044 = vrot.slane %v1039, %v1043
      %v1045 = vlaneseq
      %v1046 = vshrl.u32 %v1045, 7
      %v1047 = vsub.s32 1, %v1046
      %v1048 = vrot.slane %v1039, %v1047
      %v1219 = vunpack.c.l.b16 %v223
      %v1220 = vunpack.c.h.b16 %v223
      %v1221 = vunpack.c.l.b16 %v224
      %v1222 = vunpack.c.h.b16 %v224
      %v1223 = vunpack.c.l.b16 %v225
      %v1224 = vunpack.c.h.b16 %v225
      %v1225 = vunpack.c.l.b16 %v226
      %v1226 = vunpack.c.h.b16 %v226
      %v1227 = vunpack.c.l.b16 %v227
      %v1228 = vunpack.c.h.b16 %v227
      %v1229 = vunpack.c.l.b16 %v228
      %v1230 = vunpack.c.h.b16 %v228
      %v1231 = vunpack.c.l.b16 %v229
      %v1232 = vunpack.c.h.b16 %v229
      %v1233 = vunpack.c.l.b16 %v230
      %v1234 = vunpack.c.h.b16 %v230
      %v1235 = vunpack.c.l.b16 %v231
      %v1236 = vunpack.c.h.b16 %v231
      %v1237 = vunpack.c.l.b16 %v232
      %v1238 = vunpack.c.h.b16 %v232
      %v1239 = vunpack.c.l.b16 %v233
      %v1240 = vunpack.c.h.b16 %v233
      %v1241 = vunpack.c.l.b16 %v234
      %v1242 = vunpack.c.h.b16 %v234
      %v1243 = vunpack.c.l.b16 %v235
      %v1244 = vunpack.c.h.b16 %v235
      %v1245 = vunpack.c.l.b16 %v236
      %v1246 = vunpack.c.h.b16 %v236
      %v1247 = vunpack.c.l.b16 %v237
      %v1248 = vunpack.c.h.b16 %v237
      %v1249 = vunpack.c.l.b16 %v238
      %v1250 = vunpack.c.h.b16 %v238
      %v1251 = vunpack.c.l.b16 %v239
      %v1252 = vunpack.c.h.b16 %v239
      %v1253 = vunpack.c.l.b16 %v240
      %v1254 = vunpack.c.h.b16 %v240
      %v1255 = vunpack.c.l.b16 %v241
      %v1256 = vunpack.c.h.b16 %v241
      %v1257 = vunpack.c.l.b16 %v242
      %v1258 = vunpack.c.h.b16 %v242
      %v1259 = vunpack.c.l.b16 %v243
      %v1260 = vunpack.c.l.b16 %v244
      %v1261 = vunpack.c.h.b16 %v244
      %v1262 = vunpack.c.l.b16 %v245
      %v1263 = vunpack.c.h.b16 %v245
      %v1264 = vunpack.c.l.b16 %v246
      %v1265 = vunpack.c.h.b16 %v246
      %v1266 = vunpack.c.l.b16 %v247
      %v1267 = vunpack.c.h.b16 %v247
      %v1268 = vunpack.c.l.b16 %v248
      %v1269 = vunpack.c.h.b16 %v248
      %v1270 = vunpack.c.l.b16 %v249
      %v1271 = vunpack.c.h.b16 %v249
      %v1272 = vunpack.c.l.b16 %v250
      %v1273 = vunpack.c.h.b16 %v250
      %v1274 = vunpack.c.l.b16 %v251
      %v1275 = vunpack.c.h.b16 %v251
      %v1276 = vunpack.c.l.b16 %v252
      %v1277 = vunpack.c.h.b16 %v252
      %v1278 = vunpack.c.l.b16 %v253
      %v1279 = vunpack.c.h.b16 %v253
      %v1280 = vunpack.c.l.b16 %v254
      %v1281 = vunpack.c.h.b16 %v254
      %v1282 = vunpack.c.l.b16 %v255
      %v1283 = vunpack.c.h.b16 %v255
      %v1284 = vunpack.c.l.b16 %v256
      %v1285 = vunpack.c.h.b16 %v256
      %v1286 = vunpack.c.l.b16 %v257
      %v1287 = vunpack.c.h.b16 %v257
      %v1288 = vunpack.c.l.b16 %v258
      %v1289 = vunpack.c.h.b16 %v258
      %v1290 = vunpack.c.l.b16 %v259
      %v1291 = vunpack.c.h.b16 %v259
      %v1292 = vunpack.c.l.b16 %v260
      %v1293 = vunpack.c.h.b16 %v260
      %v1294 = vunpack.c.l.b16 %v261
      %v1295 = vunpack.c.h.b16 %v261
      %v1296 = vunpack.c.l.b16 %v262
      %v1297 = vunpack.c.h.b16 %v262
      %v1298 = vunpack.c.l.b16 %v263
      %v1299 = vunpack.c.h.b16 %v263
      %v1300 = vunpack.c.l.b16 %v264
      %v1301 = vunpack.c.l.b16 %v265
      %v1302 = vunpack.c.h.b16 %v265
      %v1303 = vunpack.c.l.b16 %v266
      %v1304 = vunpack.c.h.b16 %v266
      %v1305 = vunpack.c.l.b16 %v267
      %v1306 = vunpack.c.h.b16 %v267
      %v1307 = vunpack.c.l.b16 %v268
      %v1308 = vunpack.c.h.b16 %v268
      %v1309 = vunpack.c.l.b16 %v269
      %v1310 = vunpack.c.h.b16 %v269
      %v1311 = vunpack.c.l.b16 %v270
      %v1312 = vunpack.c.h.b16 %v270
      %v1313 = vunpack.c.l.b16 %v271
      %v1314 = vunpack.c.h.b16 %v271
      %v1315 = vunpack.c.l.b16 %v272
      %v1316 = vunpack.c.h.b16 %v272
      %v1317 = vunpack.c.l.b16 %v273
      %v1318 = vunpack.c.h.b16 %v273
      %v1319 = vunpack.c.l.b16 %v274
      %v1320 = vunpack.c.h.b16 %v274
      %v1321 = vunpack.c.l.b16 %v275
      %v1322 = vunpack.c.h.b16 %v275
      %v1323 = vunpack.c.l.b16 %v276
      %v1324 = vunpack.c.h.b16 %v276
      %v1325 = vunpack.c.l.b16 %v277
      %v1326 = vunpack.c.h.b16 %v277
      %v1327 = vunpack.c.l.b16 %v278
      %v1328 = vunpack.c.h.b16 %v278
      %v1329 = vunpack.c.l.b16 %v279
      %v1330 = vunpack.c.h.b16 %v279
      %v1331 = vunpack.c.l.b16 %v280
      %v1332 = vunpack.c.h.b16 %v280
      %v1333 = vunpack.c.l.b16 %v281
      %v1334 = vunpack.c.h.b16 %v281
      %v1335 = vunpack.c.l.b16 %v282
      %v1336 = vunpack.c.h.b16 %v282
      %v1337 = vunpack.c.l.b16 %v283
      %v1338 = vunpack.c.h.b16 %v283
      %v1339 = vunpack.c.l.b16 %v284
      %v1340 = vunpack.c.h.b16 %v284
      %v1341 = vunpack.c.l.b16 %v285
      %v1342 = vunpack.c.l.b16 %v286
      %v1343 = vunpack.c.h.b16 %v286
      %v1344 = vunpack.c.l.b16 %v287
      %v1345 = vunpack.c.h.b16 %v287
      %v1346 = vunpack.c.l.b16 %v288
      %v1347 = vunpack.c.h.b16 %v288
      %v1348 = vunpack.c.l.b16 %v289
      %v1349 = vunpack.c.h.b16 %v289
      %v1350 = vunpack.c.l.b16 %v290
      %v1351 = vunpack.c.h.b16 %v290
      %v1352 = vunpack.c.l.b16 %v291
      %v1353 = vunpack.c.h.b16 %v291
      %v1354 = vunpack.c.l.b16 %v292
      %v1355 = vunpack.c.h.b16 %v292
      %v1356 = vunpack.c.l.b16 %v293
      %v1357 = vunpack.c.h.b16 %v293
      %v1358 = vunpack.c.l.b16 %v294
      %v1359 = vunpack.c.h.b16 %v294
      %v1360 = vunpack.c.l.b16 %v295
      %v1361 = vunpack.c.h.b16 %v295
      %v1362 = vunpack.c.l.b16 %v296
      %v1363 = vunpack.c.h.b16 %v296
      %v1364 = vunpack.c.l.b16 %v297
      %v1365 = vunpack.c.h.b16 %v297
      %v1366 = vunpack.c.l.b16 %v298
      %v1367 = vunpack.c.h.b16 %v298
      %v1368 = vunpack.c.l.b16 %v299
      %v1369 = vunpack.c.h.b16 %v299
      %v1370 = vunpack.c.l.b16 %v300
      %v1371 = vunpack.c.h.b16 %v300
      %v1372 = vunpack.c.l.b16 %v301
      %v1373 = vunpack.c.h.b16 %v301
      %v1374 = vunpack.c.l.b16 %v302
      %v1375 = vunpack.c.h.b16 %v302
      %v1376 = vunpack.c.l.b16 %v303
      %v1377 = vunpack.c.h.b16 %v303
      %v1378 = vunpack.c.l.b16 %v304
      %v1379 = vunpack.c.h.b16 %v304
      %v1380 = vunpack.c.l.b16 %v305
      %v1381 = vunpack.c.h.b16 %v305
      %v1382 = vunpack.c.l.b16 %v306
      %v1383 = vunpack.c.l.b16 %v307
      %v1384 = vunpack.c.h.b16 %v307
      %v1385 = vunpack.c.l.b16 %v308
      %v1386 = vunpack.c.h.b16 %v308
      %v1387 = vunpack.c.l.b16 %v309
      %v1388 = vunpack.c.h.b16 %v309
      %v1389 = vunpack.c.l.b16 %v310
      %v1390 = vunpack.c.h.b16 %v310
      %v1391 = vunpack.c.l.b16 %v311
      %v1392 = vunpack.c.h.b16 %v311
      %v1393 = vunpack.c.l.b16 %v312
      %v1394 = vunpack.c.h.b16 %v312
      %v1395 = vunpack.c.l.b16 %v313
      %v1396 = vunpack.c.h.b16 %v313
      %v1397 = vunpack.c.l.b16 %v314
      %v1398 = vunpack.c.h.b16 %v314
      %v1399 = vunpack.c.l.b16 %v315
      %v1400 = vunpack.c.h.b16 %v315
      %v1401 = vunpack.c.l.b16 %v316
      %v1402 = vunpack.c.h.b16 %v316
      %v1403 = vunpack.c.l.b16 %v317
      %v1404 = vunpack.c.h.b16 %v317
      %v1405 = vunpack.c.l.b16 %v318
      %v1406 = vunpack.c.h.b16 %v318
      %v1407 = vunpack.c.l.b16 %v319
      %v1408 = vunpack.c.h.b16 %v319
      %v1409 = vunpack.c.l.b16 %v320
      %v1410 = vunpack.c.h.b16 %v320
      %v1411 = vunpack.c.l.b16 %v321
      %v1412 = vunpack.c.h.b16 %v321
      %v1413 = vunpack.c.l.b16 %v322
      %v1414 = vunpack.c.h.b16 %v322
      %v1415 = vunpack.c.l.b16 %v323
      %v1416 = vunpack.c.h.b16 %v323
      %v1417 = vunpack.c.l.b16 %v324
      %v1418 = vunpack.c.h.b16 %v324
      %v1419 = vunpack.c.l.b16 %v325
      %v1420 = vunpack.c.h.b16 %v325
      %v1421 = vunpack.c.l.b16 %v326
      %v1422 = vunpack.c.h.b16 %v326
      %v1423 = vunpack.c.l.b16 %v327
      %v1424 = vunpack.c.l.b16 %v328
      %v1425 = vunpack.c.h.b16 %v328
      %v1426 = vunpack.c.l.b16 %v329
      %v1427 = vunpack.c.h.b16 %v329
      %v1428 = vunpack.c.l.b16 %v330
      %v1429 = vunpack.c.h.b16 %v330
      %v1430 = vunpack.c.l.b16 %v331
      %v1431 = vunpack.c.h.b16 %v331
      %v1432 = vunpack.c.l.b16 %v332
      %v1433 = vunpack.c.h.b16 %v332
      %v1434 = vunpack.c.l.b16 %v333
      %v1435 = vunpack.c.h.b16 %v333
      %v1436 = vunpack.c.l.b16 %v334
      %v1437 = vunpack.c.h.b16 %v334
      %v1438 = vunpack.c.l.b16 %v335
      %v1439 = vunpack.c.h.b16 %v335
      %v1440 = vunpack.c.l.b16 %v336
      %v1441 = vunpack.c.h.b16 %v336
      %v1442 = vunpack.c.l.b16 %v337
      %v1443 = vunpack.c.h.b16 %v337
      %v1444 = vunpack.c.l.b16 %v338
      %v1445 = vunpack.c.h.b16 %v338
      %v1446 = vunpack.c.l.b16 %v339
      %v1447 = vunpack.c.h.b16 %v339
      %v1448 = vunpack.c.l.b16 %v340
      %v1449 = vunpack.c.h.b16 %v340
      %v1450 = vunpack.c.l.b16 %v341
      %v1451 = vunpack.c.h.b16 %v341
      %v1452 = vunpack.c.l.b16 %v342
      %v1453 = vunpack.c.h.b16 %v342
      %v1454 = vunpack.c.l.b16 %v343
      %v1455 = vunpack.c.h.b16 %v343
      %v1456 = vunpack.c.l.b16 %v344
      %v1457 = vunpack.c.h.b16 %v344
      %v1458 = vunpack.c.l.b16 %v345
      %v1459 = vunpack.c.h.b16 %v345
      %v1460 = vunpack.c.l.b16 %v346
      %v1461 = vunpack.c.h.b16 %v346
      %v1462 = vunpack.c.l.b16 %v347
      %v1463 = vunpack.c.h.b16 %v347
      %v1464 = vunpack.c.l.b16 %v348
      %v1465 = vunpack.c.l.b16 %v349
      %v1466 = vunpack.c.h.b16 %v349
      %v1467 = vunpack.c.l.b16 %v350
      %v1468 = vunpack.c.h.b16 %v350
      %v1469 = vunpack.c.l.b16 %v351
      %v1470 = vunpack.c.h.b16 %v351
      %v1471 = vunpack.c.l.b16 %v352
      %v1472 = vunpack.c.h.b16 %v352
      %v1473 = vunpack.c.l.b16 %v353
      %v1474 = vunpack.c.h.b16 %v353
      %v1475 = vunpack.c.l.b16 %v354
      %v1476 = vunpack.c.h.b16 %v354
      %v1477 = vunpack.c.l.b16 %v355
      %v1478 = vunpack.c.h.b16 %v355
      %v1479 = vunpack.c.l.b16 %v356
      %v1480 = vunpack.c.h.b16 %v356
      %v1481 = vunpack.c.l.b16 %v357
      %v1482 = vunpack.c.h.b16 %v357
      %v1483 = vunpack.c.l.b16 %v358
      %v1484 = vunpack.c.h.b16 %v358
      %v1485 = vunpack.c.l.b16 %v359
      %v1486 = vunpack.c.h.b16 %v359
      %v1487 = vunpack.c.l.b16 %v360
      %v1488 = vunpack.c.h.b16 %v360
      %v1489 = vunpack.c.l.b16 %v361
      %v1490 = vunpack.c.h.b16 %v361
      %v1491 = vunpack.c.l.b16 %v362
      %v1492 = vunpack.c.h.b16 %v362
      %v1493 = vunpack.c.l.b16 %v363
      %v1494 = vunpack.c.h.b16 %v363
      %v1495 = vunpack.c.l.b16 %v364
      %v1496 = vunpack.c.h.b16 %v364
      %v1497 = vunpack.c.l.b16 %v365
      %v1498 = vunpack.c.h.b16 %v365
      %v1499 = vunpack.c.l.b16 %v366
      %v1500 = vunpack.c.h.b16 %v366
      %v1501 = vunpack.c.l.b16 %v367
      %v1502 = vunpack.c.h.b16 %v367
      %v1503 = vunpack.c.l.b16 %v368
      %v1504 = vunpack.c.h.b16 %v368
      %v1505 = vunpack.c.l.b16 %v369
      %v1506 = vunpack.c.l.b16 %v370
      %v1507 = vunpack.c.h.b16 %v370
      %v1508 = vunpack.c.l.b16 %v371
      %v1509 = vunpack.c.h.b16 %v371
      %v1510 = vunpack.c.l.b16 %v372
      %v1511 = vunpack.c.h.b16 %v372
      %v1512 = vunpack.c.l.b16 %v373
      %v1513 = vunpack.c.h.b16 %v373
      %v1514 = vunpack.c.l.b16 %v374
      %v1515 = vunpack.c.h.b16 %v374
      %v1516 = vunpack.c.l.b16 %v375
      %v1517 = vunpack.c.h.b16 %v375
      %v1518 = vunpack.c.l.b16 %v376
      %v1519 = vunpack.c.h.b16 %v376
      %v1520 = vunpack.c.l.b16 %v377
      %v1521 = vunpack.c.h.b16 %v377
      %v1522 = vunpack.c.l.b16 %v378
      %v1523 = vunpack.c.h.b16 %v378
      %v1524 = vunpack.c.l.b16 %v379
      %v1525 = vunpack.c.h.b16 %v379
      %v1526 = vunpack.c.l.b16 %v380
      %v1527 = vunpack.c.h.b16 %v380
      %v1528 = vunpack.c.l.b16 %v381
      %v1529 = vunpack.c.h.b16 %v381
      %v1530 = vunpack.c.l.b16 %v382
      %v1531 = vunpack.c.h.b16 %v382
      %v1532 = vunpack.c.l.b16 %v383
      %v1533 = vunpack.c.h.b16 %v383
      %v1534 = vunpack.c.l.b16 %v384
      %v1535 = vunpack.c.h.b16 %v384
      %v1536 = vunpack.c.l.b16 %v385
      %v1537 = vunpack.c.h.b16 %v385
      %v1538 = vunpack.c.l.b16 %v386
      %v1539 = vunpack.c.h.b16 %v386
      %v1540 = vunpack.c.l.b16 %v387
      %v1541 = vunpack.c.h.b16 %v387
      %v1542 = vunpack.c.l.b16 %v388
      %v1543 = vunpack.c.h.b16 %v388
      %v1544 = vunpack.c.l.b16 %v389
      %v1545 = vunpack.c.h.b16 %v389
      %v1546 = vunpack.c.l.b16 %v390
      %v1547 = vpack.c.b16 %v1260, %v1219
      %v1548 = vpack.c.b16 %v1261, %v1220
      %v1549 = vpack.c.b16 %v1262, %v1221
      %v1550 = vpack.c.b16 %v1263, %v1222
      %v1551 = vpack.c.b16 %v1264, %v1223
      %v1552 = vpack.c.b16 %v1265, %v1224
      %v1553 = vpack.c.b16 %v1266, %v1225
      %v1554 = vpack.c.b16 %v1267, %v1226
      %v1555 = vpack.c.b16 %v1268, %v1227
      %v1556 = vpack.c.b16 %v1269, %v1228
      %v1557 = vpack.c.b16 %v1270, %v1229
      %v1558 = vpack.c.b16 %v1271, %v1230
      %v1559 = vpack.c.b16 %v1272, %v1231
      %v1560 = vpack.c.b16 %v1273, %v1232
      %v1561 = vpack.c.b16 %v1274, %v1233
      %v1562 = vpack.c.b16 %v1275, %v1234
      %v1563 = vpack.c.b16 %v1276, %v1235
      %v1564 = vpack.c.b16 %v1277, %v1236
      %v1565 = vpack.c.b16 %v1278, %v1237
      %v1566 = vpack.c.b16 %v1279, %v1238
      %v1567 = vpack.c.b16 %v1280, %v1239
      %v1568 = vpack.c.b16 %v1281, %v1240
      %v1569 = vpack.c.b16 %v1282, %v1241
      %v1570 = vpack.c.b16 %v1283, %v1242
      %v1571 = vpack.c.b16 %v1284, %v1243
      %v1572 = vpack.c.b16 %v1285, %v1244
      %v1573 = vpack.c.b16 %v1286, %v1245
      %v1574 = vpack.c.b16 %v1287, %v1246
      %v1575 = vpack.c.b16 %v1288, %v1247
      %v1576 = vpack.c.b16 %v1289, %v1248
      %v1577 = vpack.c.b16 %v1290, %v1249
      %v1578 = vpack.c.b16 %v1291, %v1250
      %v1579 = vpack.c.b16 %v1292, %v1251
      %v1580 = vpack.c.b16 %v1293, %v1252
      %v1581 = vpack.c.b16 %v1294, %v1253
      %v1582 = vpack.c.b16 %v1295, %v1254
      %v1583 = vpack.c.b16 %v1296, %v1255
      %v1584 = vpack.c.b16 %v1297, %v1256
      %v1585 = vpack.c.b16 %v1298, %v1257
      %v1586 = vpack.c.b16 %v1299, %v1258
      %v1587 = vpack.c.b16 %v1300, %v1259
      %v1588 = vpack.c.b16 %v1342, %v1301
      %v1589 = vpack.c.b16 %v1343, %v1302
      %v1590 = vpack.c.b16 %v1344, %v1303
      %v1591 = vpack.c.b16 %v1345, %v1304
      %v1592 = vpack.c.b16 %v1346, %v1305
      %v1593 = vpack.c.b16 %v1347, %v1306
      %v1594 = vpack.c.b16 %v1348, %v1307
      %v1595 = vpack.c.b16 %v1349, %v1308
      %v1596 = vpack.c.b16 %v1350, %v1309
      %v1597 = vpack.c.b16 %v1351, %v1310
      %v1598 = vpack.c.b16 %v1352, %v1311
      %v1599 = vpack.c.b16 %v1353, %v1312
      %v1600 = vpack.c.b16 %v1354, %v1313
      %v1601 = vpack.c.b16 %v1355, %v1314
      %v1602 = vpack.c.b16 %v1356, %v1315
      %v1603 = vpack.c.b16 %v1357, %v1316
      %v1604 = vpack.c.b16 %v1358, %v1317
      %v1605 = vpack.c.b16 %v1359, %v1318
      %v1606 = vpack.c.b16 %v1360, %v1319
      %v1607 = vpack.c.b16 %v1361, %v1320
      %v1608 = vpack.c.b16 %v1362, %v1321
      %v1609 = vpack.c.b16 %v1363, %v1322
      %v1610 = vpack.c.b16 %v1364, %v1323
      %v1611 = vpack.c.b16 %v1365, %v1324
      %v1612 = vpack.c.b16 %v1366, %v1325
      %v1613 = vpack.c.b16 %v1367, %v1326
      %v1614 = vpack.c.b16 %v1368, %v1327
      %v1615 = vpack.c.b16 %v1369, %v1328
      %v1616 = vpack.c.b16 %v1370, %v1329
      %v1617 = vpack.c.b16 %v1371, %v1330
      %v1618 = vpack.c.b16 %v1372, %v1331
      %v1619 = vpack.c.b16 %v1373, %v1332
      %v1620 = vpack.c.b16 %v1374, %v1333
      %v1621 = vpack.c.b16 %v1375, %v1334
      %v1622 = vpack.c.b16 %v1376, %v1335
      %v1623 = vpack.c.b16 %v1377, %v1336
      %v1624 = vpack.c.b16 %v1378, %v1337
      %v1625 = vpack.c.b16 %v1379, %v1338
      %v1626 = vpack.c.b16 %v1380, %v1339
      %v1627 = vpack.c.b16 %v1381, %v1340
      %v1628 = vpack.c.b16 %v1382, %v1341
      %v1629 = vpack.c.b16 %v1424, %v1383
      %v1630 = vpack.c.b16 %v1425, %v1384
      %v1631 = vpack.c.b16 %v1426, %v1385
      %v1632 = vpack.c.b16 %v1427, %v1386
      %v1633 = vpack.c.b16 %v1428, %v1387
      %v1634 = vpack.c.b16 %v1429, %v1388
      %v1635 = vpack.c.b16 %v1430, %v1389
      %v1636 = vpack.c.b16 %v1431, %v1390
      %v1637 = vpack.c.b16 %v1432, %v1391
      %v1638 = vpack.c.b16 %v1433, %v1392
      %v1639 = vpack.c.b16 %v1434, %v1393
      %v1640 = vpack.c.b16 %v1435, %v1394
      %v1641 = vpack.c.b16 %v1436, %v1395
      %v1642 = vpack.c.b16 %v1437, %v1396
      %v1643 = vpack.c.b16 %v1438, %v1397
      %v1644 = vpack.c.b16 %v1439, %v1398
      %v1645 = vpack.c.b16 %v1440, %v1399
      %v1646 = vpack.c.b16 %v1441, %v1400
      %v1647 = vpack.c.b16 %v1442, %v1401
      %v1648 = vpack.c.b16 %v1443, %v1402
      %v1649 = vpack.c.b16 %v1444, %v1403
      %v1650 = vpack.c.b16 %v1445, %v1404
      %v1651 = vpack.c.b16 %v1446, %v1405
      %v1652 = vpack.c.b16 %v1447, %v1406
      %v1653 = vpack.c.b16 %v1448, %v1407
      %v1654 = vpack.c.b16 %v1449, %v1408
      %v1655 = vpack.c.b16 %v1450, %v1409
      %v1656 = vpack.c.b16 %v1451, %v1410
      %v1657 = vpack.c.b16 %v1452, %v1411
      %v1658 = vpack.c.b16 %v1453, %v1412
      %v1659 = vpack.c.b16 %v1454, %v1413
      %v1660 = vpack.c.b16 %v1455, %v1414
      %v1661 = vpack.c.b16 %v1456, %v1415
      %v1662 = vpack.c.b16 %v1457, %v1416
      %v1663 = vpack.c.b16 %v1458, %v1417
      %v1664 = vpack.c.b16 %v1459, %v1418
      %v1665 = vpack.c.b16 %v1460, %v1419
      %v1666 = vpack.c.b16 %v1461, %v1420
      %v1667 = vpack.c.b16 %v1462, %v1421
      %v1668 = vpack.c.b16 %v1463, %v1422
      %v1669 = vpack.c.b16 %v1464, %v1423
      %v1670 = vpack.c.b16 %v1506, %v1465
      %v1671 = vpack.c.b16 %v1507, %v1466
      %v1672 = vpack.c.b16 %v1508, %v1467
      %v1673 = vpack.c.b16 %v1509, %v1468
      %v1674 = vpack.c.b16 %v1510, %v1469
      %v1675 = vpack.c.b16 %v1511, %v1470
      %v1676 = vpack.c.b16 %v1512, %v1471
      %v1677 = vpack.c.b16 %v1513, %v1472
      %v1678 = vpack.c.b16 %v1514, %v1473
      %v1679 = vpack.c.b16 %v1515, %v1474
      %v1680 = vpack.c.b16 %v1516, %v1475
      %v1681 = vpack.c.b16 %v1517, %v1476
      %v1682 = vpack.c.b16 %v1518, %v1477
      %v1683 = vpack.c.b16 %v1519, %v1478
      %v1684 = vpack.c.b16 %v1520, %v1479
      %v1685 = vpack.c.b16 %v1521, %v1480
      %v1686 = vpack.c.b16 %v1522, %v1481
      %v1687 = vpack.c.b16 %v1523, %v1482
      %v1688 = vpack.c.b16 %v1524, %v1483
      %v1689 = vpack.c.b16 %v1525, %v1484
      %v1690 = vpack.c.b16 %v1526, %v1485
      %v1691 = vpack.c.b16 %v1527, %v1486
      %v1692 = vpack.c.b16 %v1528, %v1487
      %v1693 = vpack.c.b16 %v1529, %v1488
      %v1694 = vpack.c.b16 %v1530, %v1489
      %v1695 = vpack.c.b16 %v1531, %v1490
      %v1696 = vpack.c.b16 %v1532, %v1491
      %v1697 = vpack.c.b16 %v1533, %v1492
      %v1698 = vpack.c.b16 %v1534, %v1493
      %v1699 = vpack.c.b16 %v1535, %v1494
      %v1700 = vpack.c.b16 %v1536, %v1495
      %v1701 = vpack.c.b16 %v1537, %v1496
      %v1702 = vpack.c.b16 %v1538, %v1497
      %v1703 = vpack.c.b16 %v1539, %v1498
      %v1704 = vpack.c.b16 %v1540, %v1499
      %v1705 = vpack.c.b16 %v1541, %v1500
      %v1706 = vpack.c.b16 %v1542, %v1501
      %v1707 = vpack.c.b16 %v1543, %v1502
      %v1708 = vpack.c.b16 %v1544, %v1503
      %v1709 = vpack.c.b16 %v1545, %v1504
      %v1710 = vpack.c.b16 %v1546, %v1505
      %v2519 = vunpack.c.l.b16 %v391
      %v2520 = vunpack.c.h.b16 %v391
      %v2521 = vunpack.c.l.b16 %v392
      %v2522 = vunpack.c.h.b16 %v392
      %v2523 = vunpack.c.l.b16 %v393
      %v2524 = vunpack.c.h.b16 %v393
      %v2525 = vunpack.c.l.b16 %v394
      %v2526 = vunpack.c.h.b16 %v394
      %v2527 = vunpack.c.l.b16 %v395
      %v2528 = vunpack.c.h.b16 %v395
      %v2529 = vunpack.c.l.b16 %v396
      %v2530 = vunpack.c.h.b16 %v396
      %v2531 = vunpack.c.l.b16 %v397
      %v2532 = vunpack.c.h.b16 %v397
      %v2533 = vunpack.c.l.b16 %v398
      %v2534 = vunpack.c.h.b16 %v398
      %v2535 = vunpack.c.l.b16 %v399
      %v2536 = vunpack.c.h.b16 %v399
      %v2537 = vunpack.c.l.b16 %v400
      %v2538 = vunpack.c.h.b16 %v400
      %v2539 = vunpack.c.l.b16 %v401
      %v2540 = vunpack.c.h.b16 %v401
      %v2541 = vunpack.c.l.b16 %v402
      %v2542 = vunpack.c.h.b16 %v402
      %v2543 = vunpack.c.l.b16 %v403
      %v2544 = vunpack.c.h.b16 %v403
      %v2545 = vunpack.c.l.b16 %v404
      %v2546 = vunpack.c.h.b16 %v404
      %v2547 = vunpack.c.l.b16 %v405
      %v2548 = vunpack.c.h.b16 %v405
      %v2549 = vunpack.c.l.b16 %v406
      %v2550 = vunpack.c.h.b16 %v406
      %v2551 = vunpack.c.l.b16 %v407
      %v2552 = vunpack.c.h.b16 %v407
      %v2553 = vunpack.c.l.b16 %v408
      %v2554 = vunpack.c.h.b16 %v408
      %v2555 = vunpack.c.l.b16 %v409
      %v2556 = vunpack.c.h.b16 %v409
      %v2557 = vunpack.c.l.b16 %v410
      %v2558 = vunpack.c.h.b16 %v410
      %v2559 = vunpack.c.l.b16 %v411
      %v2560 = vunpack.c.h.b16 %v411
      %v2561 = vunpack.c.l.b16 %v412
      %v2562 = vunpack.c.h.b16 %v412
      %v2563 = vunpack.c.l.b16 %v413
      %v2564 = vunpack.c.h.b16 %v413
      %v2565 = vunpack.c.l.b16 %v414
      %v2566 = vunpack.c.h.b16 %v414
      %v2567 = vunpack.c.l.b16 %v415
      %v2568 = vunpack.c.h.b16 %v415
      %v2569 = vunpack.c.l.b16 %v416
      %v2570 = vunpack.c.h.b16 %v416
      %v2571 = vunpack.c.l.b16 %v417
      %v2572 = vunpack.c.h.b16 %v417
      %v2573 = vunpack.c.l.b16 %v418
      %v2574 = vunpack.c.h.b16 %v418
      %v2575 = vunpack.c.l.b16 %v419
      %v2576 = vunpack.c.h.b16 %v419
      %v2577 = vunpack.c.l.b16 %v420
      %v2578 = vunpack.c.h.b16 %v420
      %v2579 = vunpack.c.l.b16 %v421
      %v2580 = vunpack.c.h.b16 %v421
      %v2581 = vunpack.c.l.b16 %v422
      %v2582 = vunpack.c.h.b16 %v422
      %v2583 = vunpack.c.l.b16 %v423
      %v2584 = vunpack.c.h.b16 %v423
      %v2585 = vunpack.c.l.b16 %v424
      %v2586 = vunpack.c.h.b16 %v424
      %v2587 = vunpack.c.l.b16 %v425
      %v2588 = vunpack.c.h.b16 %v425
      %v2589 = vunpack.c.l.b16 %v426
      %v2590 = vunpack.c.h.b16 %v426
      %v2591 = vunpack.c.l.b16 %v427
      %v2592 = vunpack.c.h.b16 %v427
      %v2593 = vunpack.c.l.b16 %v428
      %v2594 = vunpack.c.h.b16 %v428
      %v2595 = vunpack.c.l.b16 %v429
      %v2596 = vunpack.c.h.b16 %v429
      %v2597 = vunpack.c.l.b16 %v430
      %v2598 = vunpack.c.h.b16 %v430
      %v2599 = vunpack.c.l.b16 %v431
      %v2600 = vunpack.c.h.b16 %v431
      %v2601 = vunpack.c.l.b16 %v432
      %v2602 = vunpack.c.h.b16 %v432
      %v2603 = vunpack.c.l.b16 %v433
      %v2604 = vunpack.c.h.b16 %v433
      %v2605 = vunpack.c.l.b16 %v434
      %v2606 = vunpack.c.h.b16 %v434
      %v2607 = vunpack.c.l.b16 %v435
      %v2608 = vunpack.c.h.b16 %v435
      %v2609 = vunpack.c.l.b16 %v436
      %v2610 = vunpack.c.h.b16 %v436
      %v2611 = vunpack.c.l.b16 %v437
      %v2612 = vunpack.c.h.b16 %v437
      %v2613 = vunpack.c.l.b16 %v438
      %v2614 = vunpack.c.h.b16 %v438
      %v2615 = vunpack.c.l.b16 %v439
      %v2616 = vunpack.c.h.b16 %v439
      %v2617 = vunpack.c.l.b16 %v440
      %v2618 = vunpack.c.h.b16 %v440
      %v2619 = vunpack.c.l.b16 %v441
      %v2620 = vunpack.c.h.b16 %v441
      %v2621 = vunpack.c.l.b16 %v442
      %v2622 = vunpack.c.h.b16 %v442
      %v2623 = vunpack.c.l.b16 %v443
      %v2624 = vunpack.c.h.b16 %v443
      %v2625 = vunpack.c.l.b16 %v444
      %v2626 = vunpack.c.h.b16 %v444
      %v2627 = vunpack.c.l.b16 %v445
      %v2628 = vunpack.c.h.b16 %v445
      %v2629 = vunpack.c.l.b16 %v446
      %v2630 = vunpack.c.h.b16 %v446
      %v2631 = vunpack.c.l.b16 %v447
      %v2632 = vunpack.c.h.b16 %v447
      %v2633 = vunpack.c.l.b16 %v448
      %v2634 = vunpack.c.h.b16 %v448
      %v2635 = vunpack.c.l.b16 %v449
      %v2636 = vunpack.c.h.b16 %v449
      %v2637 = vunpack.c.l.b16 %v450
      %v2638 = vunpack.c.h.b16 %v450
      %v2639 = vunpack.c.l.b16 %v451
      %v2640 = vunpack.c.h.b16 %v451
      %v2641 = vunpack.c.l.b16 %v452
      %v2642 = vunpack.c.h.b16 %v452
      %v2643 = vunpack.c.l.b16 %v453
      %v2644 = vunpack.c.h.b16 %v453
      %v2645 = vunpack.c.l.b16 %v454
      %v2646 = vunpack.c.h.b16 %v454
      %v2647 = vunpack.c.l.b16 %v455
      %v2648 = vunpack.c.h.b16 %v455
      %v2649 = vunpack.c.l.b16 %v456
      %v2650 = vunpack.c.h.b16 %v456
      %v2651 = vunpack.c.l.b16 %v457
      %v2652 = vunpack.c.h.b16 %v457
      %v2653 = vunpack.c.l.b16 %v458
      %v2654 = vunpack.c.h.b16 %v458
      %v2655 = vunpack.c.l.b16 %v459
      %v2656 = vunpack.c.h.b16 %v459
      %v2657 = vunpack.c.l.b16 %v460
      %v2658 = vunpack.c.h.b16 %v460
      %v2659 = vunpack.c.l.b16 %v461
      %v2660 = vunpack.c.h.b16 %v461
      %v2661 = vunpack.c.l.b16 %v462
      %v2662 = vunpack.c.h.b16 %v462
      %v2663 = vunpack.c.l.b16 %v463
      %v2664 = vunpack.c.h.b16 %v463
      %v2665 = vunpack.c.l.b16 %v464
      %v2666 = vunpack.c.h.b16 %v464
      %v2667 = vunpack.c.l.b16 %v465
      %v2668 = vunpack.c.h.b16 %v465
      %v2669 = vunpack.c.l.b16 %v466
      %v2670 = vunpack.c.h.b16 %v466
      %v2671 = vunpack.c.l.b16 %v467
      %v2672 = vunpack.c.h.b16 %v467
      %v2673 = vunpack.c.l.b16 %v468
      %v2674 = vunpack.c.h.b16 %v468
      %v2675 = vunpack.c.l.b16 %v469
      %v2676 = vunpack.c.h.b16 %v469
      %v2677 = vunpack.c.l.b16 %v470
      %v2678 = vunpack.c.h.b16 %v470
      %v2679 = vunpack.c.l.b16 %v471
      %v2680 = vunpack.c.h.b16 %v471
      %v2681 = vunpack.c.l.b16 %v472
      %v2682 = vunpack.c.h.b16 %v472
      %v2683 = vunpack.c.l.b16 %v473
      %v2684 = vunpack.c.h.b16 %v473
      %v2685 = vunpack.c.l.b16 %v474
      %v2686 = vunpack.c.h.b16 %v474
      %v2687 = vunpack.c.l.b16 %v475
      %v2688 = vunpack.c.h.b16 %v475
      %v2689 = vunpack.c.l.b16 %v476
      %v2690 = vunpack.c.h.b16 %v476
      %v2691 = vunpack.c.l.b16 %v477
      %v2692 = vunpack.c.h.b16 %v477
      %v2693 = vunpack.c.l.b16 %v478
      %v2694 = vunpack.c.h.b16 %v478
      %v2695 = vunpack.c.l.b16 %v479
      %v2696 = vunpack.c.h.b16 %v479
      %v2697 = vunpack.c.l.b16 %v480
      %v2698 = vunpack.c.h.b16 %v480
      %v2699 = vunpack.c.l.b16 %v481
      %v2700 = vunpack.c.h.b16 %v481
      %v2701 = vunpack.c.l.b16 %v482
      %v2702 = vunpack.c.h.b16 %v482
      %v2703 = vunpack.c.l.b16 %v483
      %v2704 = vunpack.c.h.b16 %v483
      %v2705 = vunpack.c.l.b16 %v484
      %v2706 = vunpack.c.h.b16 %v484
      %v2707 = vunpack.c.l.b16 %v485
      %v2708 = vunpack.c.h.b16 %v485
      %v2709 = vunpack.c.l.b16 %v486
      %v2710 = vunpack.c.h.b16 %v486
      %v2711 = vunpack.c.l.b16 %v487
      %v2712 = vunpack.c.h.b16 %v487
      %v2713 = vunpack.c.l.b16 %v488
      %v2714 = vunpack.c.h.b16 %v488
      %v2715 = vunpack.c.l.b16 %v489
      %v2716 = vunpack.c.h.b16 %v489
      %v2717 = vunpack.c.l.b16 %v490
      %v2718 = vunpack.c.h.b16 %v490
      %v2719 = vunpack.c.l.b16 %v491
      %v2720 = vunpack.c.h.b16 %v491
      %v2721 = vunpack.c.l.b16 %v492
      %v2722 = vunpack.c.h.b16 %v492
      %v2723 = vunpack.c.l.b16 %v493
      %v2724 = vunpack.c.h.b16 %v493
      %v2725 = vunpack.c.l.b16 %v494
      %v2726 = vunpack.c.h.b16 %v494
      %v2727 = vunpack.c.l.b16 %v495
      %v2728 = vunpack.c.h.b16 %v495
      %v2729 = vunpack.c.l.b16 %v496
      %v2730 = vunpack.c.h.b16 %v496
      %v2731 = vunpack.c.l.b16 %v497
      %v2732 = vunpack.c.h.b16 %v497
      %v2733 = vunpack.c.l.b16 %v498
      %v2734 = vunpack.c.h.b16 %v498
      %v2735 = vunpack.c.l.b16 %v499
      %v2736 = vunpack.c.h.b16 %v499
      %v2737 = vunpack.c.l.b16 %v500
      %v2738 = vunpack.c.h.b16 %v500
      %v2739 = vunpack.c.l.b16 %v501
      %v2740 = vunpack.c.h.b16 %v501
      %v2741 = vunpack.c.l.b16 %v502
      %v2742 = vunpack.c.h.b16 %v502
      %v2743 = vunpack.c.l.b16 %v503
      %v2744 = vunpack.c.h.b16 %v503
      %v2745 = vunpack.c.l.b16 %v504
      %v2746 = vunpack.c.h.b16 %v504
      %v2747 = vunpack.c.l.b16 %v505
      %v2748 = vunpack.c.h.b16 %v505
      %v2749 = vunpack.c.l.b16 %v506
      %v2750 = vunpack.c.h.b16 %v506
      %v2751 = vunpack.c.l.b16 %v507
      %v2752 = vunpack.c.h.b16 %v507
      %v2753 = vunpack.c.l.b16 %v508
      %v2754 = vunpack.c.h.b16 %v508
      %v2755 = vunpack.c.l.b16 %v509
      %v2756 = vunpack.c.h.b16 %v509
      %v2757 = vunpack.c.l.b16 %v510
      %v2758 = vunpack.c.h.b16 %v510
      %v2759 = vunpack.c.l.b16 %v511
      %v2760 = vunpack.c.h.b16 %v511
      %v2761 = vunpack.c.l.b16 %v512
      %v2762 = vunpack.c.h.b16 %v512
      %v2763 = vunpack.c.l.b16 %v513
      %v2764 = vunpack.c.h.b16 %v513
      %v2765 = vunpack.c.l.b16 %v514
      %v2766 = vunpack.c.h.b16 %v514
      %v2767 = vunpack.c.l.b16 %v515
      %v2768 = vunpack.c.h.b16 %v515
      %v2769 = vunpack.c.l.b16 %v516
      %v2770 = vunpack.c.h.b16 %v516
      %v2771 = vunpack.c.l.b16 %v517
      %v2772 = vunpack.c.h.b16 %v517
      %v2773 = vunpack.c.l.b16 %v518
      %v2774 = vunpack.c.h.b16 %v518
      %v2775 = vunpack.c.l.b16 %v519
      %v2776 = vunpack.c.h.b16 %v519
      %v2777 = vunpack.c.l.b16 %v520
      %v2778 = vunpack.c.h.b16 %v520
      %v2779 = vunpack.c.l.b16 %v521
      %v2780 = vunpack.c.h.b16 %v521
      %v2781 = vunpack.c.l.b16 %v522
      %v2782 = vunpack.c.h.b16 %v522
      %v2783 = vunpack.c.l.b16 %v523
      %v2784 = vunpack.c.h.b16 %v523
      %v2785 = vunpack.c.l.b16 %v524
      %v2786 = vunpack.c.h.b16 %v524
      %v2787 = vunpack.c.l.b16 %v525
      %v2788 = vunpack.c.h.b16 %v525
      %v2789 = vunpack.c.l.b16 %v526
      %v2790 = vunpack.c.h.b16 %v526
      %v2791 = vunpack.c.l.b16 %v527
      %v2792 = vunpack.c.h.b16 %v527
      %v2793 = vunpack.c.l.b16 %v528
      %v2794 = vunpack.c.h.b16 %v528
      %v2795 = vunpack.c.l.b16 %v529
      %v2796 = vunpack.c.h.b16 %v529
      %v2797 = vunpack.c.l.b16 %v530
      %v2798 = vunpack.c.h.b16 %v530
      %v2799 = vunpack.c.l.b16 %v531
      %v2800 = vunpack.c.h.b16 %v531
      %v2801 = vunpack.c.l.b16 %v532
      %v2802 = vunpack.c.h.b16 %v532
      %v2803 = vunpack.c.l.b16 %v533
      %v2804 = vunpack.c.h.b16 %v533
      %v2805 = vunpack.c.l.b16 %v534
      %v2806 = vunpack.c.h.b16 %v534
      %v2807 = vunpack.c.l.b16 %v535
      %v2808 = vunpack.c.h.b16 %v535
      %v2809 = vunpack.c.l.b16 %v536
      %v2810 = vunpack.c.h.b16 %v536
      %v2811 = vunpack.c.l.b16 %v537
      %v2812 = vunpack.c.h.b16 %v537
      %v2813 = vunpack.c.l.b16 %v538
      %v2814 = vunpack.c.h.b16 %v538
      %v2815 = vunpack.c.l.b16 %v539
      %v2816 = vunpack.c.h.b16 %v539
      %v2817 = vunpack.c.l.b16 %v540
      %v2818 = vunpack.c.h.b16 %v540
      %v2819 = vunpack.c.l.b16 %v541
      %v2820 = vunpack.c.h.b16 %v541
      %v2821 = vunpack.c.l.b16 %v542
      %v2822 = vunpack.c.h.b16 %v542
      %v2823 = vunpack.c.l.b16 %v543
      %v2824 = vunpack.c.h.b16 %v543
      %v2825 = vunpack.c.l.b16 %v544
      %v2826 = vunpack.c.h.b16 %v544
      %v2827 = vunpack.c.l.b16 %v545
      %v2828 = vunpack.c.h.b16 %v545
      %v2829 = vunpack.c.l.b16 %v546
      %v2830 = vunpack.c.h.b16 %v546
      %v2831 = vunpack.c.l.b16 %v547
      %v2832 = vunpack.c.h.b16 %v547
      %v2833 = vunpack.c.l.b16 %v548
      %v2834 = vunpack.c.h.b16 %v548
      %v2835 = vunpack.c.l.b16 %v549
      %v2836 = vunpack.c.h.b16 %v549
      %v2837 = vunpack.c.l.b16 %v550
      %v2838 = vunpack.c.h.b16 %v550
      %v2839 = vunpack.c.l.b16 %v551
      %v2840 = vunpack.c.h.b16 %v551
      %v2841 = vunpack.c.l.b16 %v552
      %v2842 = vunpack.c.h.b16 %v552
      %v2843 = vunpack.c.l.b16 %v553
      %v2844 = vunpack.c.h.b16 %v553
      %v2845 = vunpack.c.l.b16 %v554
      %v2846 = vunpack.c.h.b16 %v554
      %v2847 = vunpack.c.l.b16 %v555
      %v2848 = vunpack.c.h.b16 %v555
      %v2849 = vunpack.c.l.b16 %v556
      %v2850 = vunpack.c.h.b16 %v556
      %v2851 = vunpack.c.l.b16 %v557
      %v2852 = vunpack.c.h.b16 %v557
      %v2853 = vunpack.c.l.b16 %v558
      %v2854 = vunpack.c.h.b16 %v558
      %v2855 = vunpack.c.l.b16 %v559
      %v2856 = vunpack.c.h.b16 %v559
      %v2857 = vunpack.c.l.b16 %v560
      %v2858 = vunpack.c.h.b16 %v560
      %v2859 = vunpack.c.l.b16 %v561
      %v2860 = vunpack.c.h.b16 %v561
      %v2861 = vunpack.c.l.b16 %v562
      %v2862 = vunpack.c.h.b16 %v562
      %v2863 = vunpack.c.l.b16 %v563
      %v2864 = vunpack.c.h.b16 %v563
      %v2865 = vunpack.c.l.b16 %v564
      %v2866 = vunpack.c.h.b16 %v564
      %v2867 = vunpack.c.l.b16 %v565
      %v2868 = vunpack.c.h.b16 %v565
      %v2869 = vunpack.c.l.b16 %v566
      %v2870 = vunpack.c.h.b16 %v566
      %v2871 = vunpack.c.l.b16 %v567
      %v2872 = vunpack.c.h.b16 %v567
      %v2873 = vunpack.c.l.b16 %v568
      %v2874 = vunpack.c.h.b16 %v568
      %v2875 = vunpack.c.l.b16 %v569
      %v2876 = vunpack.c.h.b16 %v569
      %v2877 = vunpack.c.l.b16 %v570
      %v2878 = vunpack.c.h.b16 %v570
      %v2879 = vunpack.c.l.b16 %v571
      %v2880 = vunpack.c.h.b16 %v571
      %v2881 = vunpack.c.l.b16 %v572
      %v2882 = vunpack.c.h.b16 %v572
      %v2883 = vunpack.c.l.b16 %v573
      %v2884 = vunpack.c.h.b16 %v573
      %v2885 = vunpack.c.l.b16 %v574
      %v2886 = vunpack.c.h.b16 %v574
      %v2887 = vunpack.c.l.b16 %v575
      %v2888 = vunpack.c.h.b16 %v575
      %v2889 = vunpack.c.l.b16 %v576
      %v2890 = vunpack.c.h.b16 %v576
      %v2891 = vunpack.c.l.b16 %v577
      %v2892 = vunpack.c.h.b16 %v577
      %v2893 = vunpack.c.l.b16 %v578
      %v2894 = vunpack.c.h.b16 %v578
      %v2895 = vunpack.c.l.b16 %v579
      %v2896 = vunpack.c.h.b16 %v579
      %v2897 = vunpack.c.l.b16 %v580
      %v2898 = vunpack.c.h.b16 %v580
      %v2899 = vunpack.c.l.b16 %v581
      %v2900 = vunpack.c.h.b16 %v581
      %v2901 = vunpack.c.l.b16 %v582
      %v2902 = vunpack.c.h.b16 %v582
      %v2903 = vunpack.c.l.b16 %v583
      %v2904 = vunpack.c.h.b16 %v583
      %v2905 = vunpack.c.l.b16 %v584
      %v2906 = vunpack.c.h.b16 %v584
      %v2907 = vunpack.c.l.b16 %v585
      %v2908 = vunpack.c.h.b16 %v585
      %v2909 = vunpack.c.l.b16 %v586
      %v2910 = vunpack.c.h.b16 %v586
      %v2911 = vunpack.c.l.b16 %v587
      %v2912 = vunpack.c.h.b16 %v587
      %v2913 = vunpack.c.l.b16 %v588
      %v2914 = vunpack.c.h.b16 %v588
      %v2915 = vunpack.c.l.b16 %v589
      %v2916 = vunpack.c.h.b16 %v589
      %v2917 = vunpack.c.l.b16 %v590
      %v2918 = vunpack.c.h.b16 %v590
      %v2919 = vunpack.c.l.b16 %v591
      %v2920 = vunpack.c.h.b16 %v591
      %v2921 = vunpack.c.l.b16 %v592
      %v2922 = vunpack.c.h.b16 %v592
      %v2923 = vunpack.c.l.b16 %v593
      %v2924 = vunpack.c.h.b16 %v593
      %v2925 = vunpack.c.l.b16 %v594
      %v2926 = vunpack.c.h.b16 %v594
      %v2927 = vunpack.c.l.b16 %v595
      %v2928 = vunpack.c.h.b16 %v595
      %v2929 = vunpack.c.l.b16 %v596
      %v2930 = vunpack.c.h.b16 %v596
      %v2931 = vunpack.c.l.b16 %v597
      %v2932 = vunpack.c.h.b16 %v597
      %v2933 = vunpack.c.l.b16 %v598
      %v2934 = vunpack.c.h.b16 %v598
      %v2935 = vunpack.c.l.b16 %v599
      %v2936 = vunpack.c.h.b16 %v599
      %v2937 = vunpack.c.l.b16 %v600
      %v2938 = vunpack.c.h.b16 %v600
      %v2939 = vunpack.c.l.b16 %v601
      %v2940 = vunpack.c.h.b16 %v601
      %v2941 = vunpack.c.l.b16 %v602
      %v2942 = vunpack.c.h.b16 %v602
      %v2943 = vunpack.c.l.b16 %v603
      %v2944 = vunpack.c.h.b16 %v603
      %v2945 = vunpack.c.l.b16 %v604
      %v2946 = vunpack.c.h.b16 %v604
      %v2947 = vunpack.c.l.b16 %v605
      %v2948 = vunpack.c.h.b16 %v605
      %v2949 = vunpack.c.l.b16 %v606
      %v2950 = vunpack.c.h.b16 %v606
      %v2951 = vunpack.c.l.b16 %v607
      %v2952 = vunpack.c.h.b16 %v607
      %v2953 = vunpack.c.l.b16 %v608
      %v2954 = vunpack.c.h.b16 %v608
      %v2955 = vunpack.c.l.b16 %v609
      %v2956 = vunpack.c.h.b16 %v609
      %v2957 = vunpack.c.l.b16 %v610
      %v2958 = vunpack.c.h.b16 %v610
      %v2959 = vunpack.c.l.b16 %v611
      %v2960 = vunpack.c.h.b16 %v611
      %v2961 = vunpack.c.l.b16 %v612
      %v2962 = vunpack.c.h.b16 %v612
      %v2963 = vunpack.c.l.b16 %v613
      %v2964 = vunpack.c.h.b16 %v613
      %v2965 = vunpack.c.l.b16 %v614
      %v2966 = vunpack.c.h.b16 %v614
      %v2967 = vunpack.c.l.b16 %v615
      %v2968 = vunpack.c.h.b16 %v615
      %v2969 = vunpack.c.l.b16 %v616
      %v2970 = vunpack.c.h.b16 %v616
      %v2971 = vunpack.c.l.b16 %v617
      %v2972 = vunpack.c.h.b16 %v617
      %v2973 = vunpack.c.l.b16 %v618
      %v2974 = vunpack.c.h.b16 %v618
      %v2975 = vunpack.c.l.b16 %v619
      %v2976 = vunpack.c.h.b16 %v619
      %v2977 = vunpack.c.l.b16 %v620
      %v2978 = vunpack.c.h.b16 %v620
      %v2979 = vunpack.c.l.b16 %v621
      %v2980 = vunpack.c.h.b16 %v621
      %v2981 = vunpack.c.l.b16 %v622
      %v2982 = vunpack.c.h.b16 %v622
      %v2983 = vunpack.c.l.b16 %v623
      %v2984 = vunpack.c.h.b16 %v623
      %v2985 = vunpack.c.l.b16 %v624
      %v2986 = vunpack.c.h.b16 %v624
      %v2987 = vunpack.c.l.b16 %v625
      %v2988 = vunpack.c.h.b16 %v625
      %v2989 = vunpack.c.l.b16 %v626
      %v2990 = vunpack.c.h.b16 %v626
      %v2991 = vunpack.c.l.b16 %v627
      %v2992 = vunpack.c.h.b16 %v627
      %v2993 = vunpack.c.l.b16 %v628
      %v2994 = vunpack.c.h.b16 %v628
      %v2995 = vunpack.c.l.b16 %v629
      %v2996 = vunpack.c.h.b16 %v629
      %v2997 = vunpack.c.l.b16 %v630
      %v2998 = vunpack.c.h.b16 %v630
      %v2999 = vunpack.c.l.b16 %v631
      %v3000 = vunpack.c.h.b16 %v631
      %v3001 = vunpack.c.l.b16 %v632
      %v3002 = vunpack.c.h.b16 %v632
      %v3003 = vunpack.c.l.b16 %v633
      %v3004 = vunpack.c.h.b16 %v633
      %v3005 = vunpack.c.l.b16 %v634
      %v3006 = vunpack.c.h.b16 %v634
      %v3007 = vunpack.c.l.b16 %v635
      %v3008 = vunpack.c.h.b16 %v635
      %v3009 = vunpack.c.l.b16 %v636
      %v3010 = vunpack.c.h.b16 %v636
      %v3011 = vunpack.c.l.b16 %v637
      %v3012 = vunpack.c.h.b16 %v637
      %v3013 = vunpack.c.l.b16 %v638
      %v3014 = vunpack.c.h.b16 %v638
      %v3015 = vunpack.c.l.b16 %v639
      %v3016 = vunpack.c.h.b16 %v639
      %v3017 = vunpack.c.l.b16 %v640
      %v3018 = vunpack.c.h.b16 %v640
      %v3019 = vunpack.c.l.b16 %v641
      %v3020 = vunpack.c.h.b16 %v641
      %v3021 = vunpack.c.l.b16 %v642
      %v3022 = vunpack.c.h.b16 %v642
      %v3023 = vunpack.c.l.b16 %v643
      %v3024 = vunpack.c.h.b16 %v643
      %v3025 = vunpack.c.l.b16 %v644
      %v3026 = vunpack.c.h.b16 %v644
      %v3027 = vunpack.c.l.b16 %v645
      %v3028 = vunpack.c.h.b16 %v645
      %v3029 = vunpack.c.l.b16 %v646
      %v3030 = vunpack.c.h.b16 %v646
      %v3031 = vunpack.c.l.b16 %v647
      %v3032 = vunpack.c.h.b16 %v647
      %v3033 = vunpack.c.l.b16 %v648
      %v3034 = vunpack.c.h.b16 %v648
      %v3035 = vunpack.c.l.b16 %v649
      %v3036 = vunpack.c.h.b16 %v649
      %v3037 = vunpack.c.l.b16 %v650
      %v3038 = vunpack.c.h.b16 %v650
      %v3039 = vunpack.c.l.b16 %v651
      %v3040 = vunpack.c.h.b16 %v651
      %v3041 = vunpack.c.l.b16 %v652
      %v3042 = vunpack.c.h.b16 %v652
      %v3043 = vunpack.c.l.b16 %v653
      %v3044 = vunpack.c.h.b16 %v653
      %v3045 = vunpack.c.l.b16 %v654
      %v3046 = vunpack.c.h.b16 %v654
      %v3047 = vunpack.c.l.b16 %v655
      %v3048 = vunpack.c.h.b16 %v655
      %v3049 = vunpack.c.l.b16 %v656
      %v3050 = vunpack.c.h.b16 %v656
      %v3051 = vunpack.c.l.b16 %v657
      %v3052 = vunpack.c.h.b16 %v657
      %v3053 = vunpack.c.l.b16 %v658
      %v3054 = vunpack.c.h.b16 %v658
      %v3055 = vunpack.c.l.b16 %v659
      %v3056 = vunpack.c.h.b16 %v659
      %v3057 = vunpack.c.l.b16 %v660
      %v3058 = vunpack.c.h.b16 %v660
      %v3059 = vunpack.c.l.b16 %v661
      %v3060 = vunpack.c.h.b16 %v661
      %v3061 = vunpack.c.l.b16 %v662
      %v3062 = vunpack.c.h.b16 %v662
      %v3063 = vunpack.c.l.b16 %v663
      %v3064 = vunpack.c.h.b16 %v663
      %v3065 = vunpack.c.l.b16 %v664
      %v3066 = vunpack.c.h.b16 %v664
      %v3067 = vunpack.c.l.b16 %v665
      %v3068 = vunpack.c.h.b16 %v665
      %v3069 = vunpack.c.l.b16 %v666
      %v3070 = vunpack.c.h.b16 %v666
      %v3071 = vunpack.c.l.b16 %v667
      %v3072 = vunpack.c.h.b16 %v667
      %v3073 = vunpack.c.l.b16 %v668
      %v3074 = vunpack.c.h.b16 %v668
      %v3075 = vunpack.c.l.b16 %v669
      %v3076 = vunpack.c.h.b16 %v669
      %v3077 = vunpack.c.l.b16 %v670
      %v3078 = vunpack.c.h.b16 %v670
      %v3079 = vunpack.c.l.b16 %v671
      %v3080 = vunpack.c.h.b16 %v671
      %v3081 = vunpack.c.l.b16 %v672
      %v3082 = vunpack.c.h.b16 %v672
      %v3083 = vunpack.c.l.b16 %v673
      %v3084 = vunpack.c.h.b16 %v673
      %v3085 = vunpack.c.l.b16 %v674
      %v3086 = vunpack.c.h.b16 %v674
      %v3087 = vunpack.c.l.b16 %v675
      %v3088 = vunpack.c.h.b16 %v675
      %v3089 = vunpack.c.l.b16 %v676
      %v3090 = vunpack.c.h.b16 %v676
      %v3091 = vunpack.c.l.b16 %v677
      %v3092 = vunpack.c.h.b16 %v677
      %v3093 = vunpack.c.l.b16 %v678
      %v3094 = vunpack.c.h.b16 %v678
      %v3095 = vunpack.c.l.b16 %v679
      %v3096 = vunpack.c.h.b16 %v679
      %v3097 = vunpack.c.l.b16 %v680
      %v3098 = vunpack.c.h.b16 %v680
      %v3099 = vunpack.c.l.b16 %v681
      %v3100 = vunpack.c.h.b16 %v681
      %v3101 = vunpack.c.l.b16 %v682
      %v3102 = vunpack.c.h.b16 %v682
      %v3103 = vunpack.c.l.b16 %v683
      %v3104 = vunpack.c.h.b16 %v683
      %v3105 = vunpack.c.l.b16 %v684
      %v3106 = vunpack.c.h.b16 %v684
      %v3107 = vunpack.c.l.b16 %v685
      %v3108 = vunpack.c.h.b16 %v685
      %v3109 = vunpack.c.l.b16 %v686
      %v3110 = vunpack.c.h.b16 %v686
      %v3111 = vunpack.c.l.b16 %v687
      %v3112 = vunpack.c.h.b16 %v687
      %v3113 = vunpack.c.l.b16 %v688
      %v3114 = vunpack.c.h.b16 %v688
      %v3115 = vunpack.c.l.b16 %v689
      %v3116 = vunpack.c.h.b16 %v689
      %v3117 = vunpack.c.l.b16 %v690
      %v3118 = vunpack.c.h.b16 %v690
      %v3119 = vunpack.c.l.b16 %v691
      %v3120 = vunpack.c.h.b16 %v691
      %v3121 = vunpack.c.l.b16 %v692
      %v3122 = vunpack.c.h.b16 %v692
      %v3123 = vunpack.c.l.b16 %v693
      %v3124 = vunpack.c.h.b16 %v693
      %v3125 = vunpack.c.l.b16 %v694
      %v3126 = vunpack.c.h.b16 %v694
      %v3127 = vunpack.c.l.b16 %v695
      %v3128 = vunpack.c.h.b16 %v695
      %v3129 = vunpack.c.l.b16 %v696
      %v3130 = vunpack.c.h.b16 %v696
      %v3131 = vunpack.c.l.b16 %v697
      %v3132 = vunpack.c.h.b16 %v697
      %v3133 = vunpack.c.l.b16 %v698
      %v3134 = vunpack.c.h.b16 %v698
      %v3135 = vunpack.c.l.b16 %v699
      %v3136 = vunpack.c.h.b16 %v699
      %v3137 = vunpack.c.l.b16 %v700
      %v3138 = vunpack.c.h.b16 %v700
      %v3139 = vunpack.c.l.b16 %v701
      %v3140 = vunpack.c.h.b16 %v701
      %v3141 = vunpack.c.l.b16 %v702
      %v3142 = vunpack.c.h.b16 %v702
      %v3143 = vunpack.c.l.b16 %v703
      %v3144 = vunpack.c.h.b16 %v703
      %v3145 = vunpack.c.l.b16 %v704
      %v3146 = vunpack.c.h.b16 %v704
      %v3147 = vunpack.c.l.b16 %v705
      %v3148 = vunpack.c.h.b16 %v705
      %v3149 = vunpack.c.l.b16 %v706
      %v3150 = vunpack.c.h.b16 %v706
      %v3151 = vunpack.c.l.b16 %v707
      %v3152 = vunpack.c.h.b16 %v707
      %v3153 = vunpack.c.l.b16 %v708
      %v3154 = vunpack.c.h.b16 %v708
      %v3155 = vunpack.c.l.b16 %v709
      %v3156 = vunpack.c.h.b16 %v709
      %v3157 = vunpack.c.l.b16 %v710
      %v3158 = vunpack.c.h.b16 %v710
      %v3159 = vunpack.c.l.b16 %v711
      %v3160 = vunpack.c.h.b16 %v711
      %v3161 = vunpack.c.l.b16 %v712
      %v3162 = vunpack.c.h.b16 %v712
      %v3163 = vunpack.c.l.b16 %v713
      %v3164 = vunpack.c.h.b16 %v713
      %v3165 = vunpack.c.l.b16 %v714
      %v3166 = vunpack.c.h.b16 %v714
      %v3167 = vunpack.c.l.b16 %v715
      %v3168 = vunpack.c.h.b16 %v715
      %v3169 = vunpack.c.l.b16 %v716
      %v3170 = vunpack.c.h.b16 %v716
      %v3171 = vunpack.c.l.b16 %v717
      %v3172 = vunpack.c.h.b16 %v717
      %v3173 = vunpack.c.l.b16 %v718
      %v3174 = vunpack.c.h.b16 %v718
      %v3175 = vunpack.c.l.b16 %v719
      %v3176 = vunpack.c.h.b16 %v719
      %v3177 = vunpack.c.l.b16 %v720
      %v3178 = vunpack.c.h.b16 %v720
      %v3179 = vunpack.c.l.b16 %v721
      %v3180 = vunpack.c.h.b16 %v721
      %v3181 = vunpack.c.l.b16 %v722
      %v3182 = vunpack.c.h.b16 %v722
      %v3183 = vunpack.c.l.b16 %v723
      %v3184 = vunpack.c.h.b16 %v723
      %v3185 = vunpack.c.l.b16 %v724
      %v3186 = vunpack.c.h.b16 %v724
      %v3187 = vunpack.c.l.b16 %v725
      %v3188 = vunpack.c.h.b16 %v725
      %v3189 = vunpack.c.l.b16 %v726
      %v3190 = vunpack.c.h.b16 %v726
      %v3191 = vunpack.c.l.b16 %v727
      %v3192 = vunpack.c.h.b16 %v727
      %v3193 = vunpack.c.l.b16 %v728
      %v3194 = vunpack.c.h.b16 %v728
      %v3195 = vunpack.c.l.b16 %v729
      %v3196 = vunpack.c.h.b16 %v729
      %v3197 = vunpack.c.l.b16 %v730
      %v3198 = vunpack.c.h.b16 %v730
      %v3199 = vunpack.c.l.b16 %v731
      %v3200 = vunpack.c.h.b16 %v731
      %v3201 = vunpack.c.l.b16 %v732
      %v3202 = vunpack.c.h.b16 %v732
      %v3203 = vunpack.c.l.b16 %v733
      %v3204 = vunpack.c.h.b16 %v733
      %v3205 = vunpack.c.l.b16 %v734
      %v3206 = vunpack.c.h.b16 %v734
      %v3207 = vunpack.c.l.b16 %v735
      %v3208 = vunpack.c.h.b16 %v735
      %v3209 = vunpack.c.l.b16 %v736
      %v3210 = vunpack.c.h.b16 %v736
      %v3211 = vunpack.c.l.b16 %v737
      %v3212 = vunpack.c.h.b16 %v737
      %v3213 = vunpack.c.l.b16 %v738
      %v3214 = vunpack.c.h.b16 %v738
      %v3215 = vunpack.c.l.b16 %v739
      %v3216 = vunpack.c.h.b16 %v739
      %v3217 = vunpack.c.l.b16 %v740
      %v3218 = vunpack.c.h.b16 %v740
      %v3219 = vunpack.c.l.b16 %v741
      %v3220 = vunpack.c.h.b16 %v741
      %v3221 = vunpack.c.l.b16 %v742
      %v3222 = vunpack.c.h.b16 %v742
      %v3223 = vunpack.c.l.b16 %v743
      %v3224 = vunpack.c.h.b16 %v743
      %v3225 = vunpack.c.l.b16 %v744
      %v3226 = vunpack.c.h.b16 %v744
      %v3227 = vunpack.c.l.b16 %v745
      %v3228 = vunpack.c.h.b16 %v745
      %v3229 = vunpack.c.l.b16 %v746
      %v3230 = vunpack.c.h.b16 %v746
      %v3231 = vunpack.c.l.b16 %v747
      %v3232 = vunpack.c.h.b16 %v747
      %v3233 = vunpack.c.l.b16 %v748
      %v3234 = vunpack.c.h.b16 %v748
      %v3235 = vunpack.c.l.b16 %v749
      %v3236 = vunpack.c.h.b16 %v749
      %v3237 = vunpack.c.l.b16 %v750
      %v3238 = vunpack.c.h.b16 %v750
      %v3239 = vunpack.c.l.b16 %v751
      %v3240 = vunpack.c.h.b16 %v751
      %v3241 = vunpack.c.l.b16 %v752
      %v3242 = vunpack.c.h.b16 %v752
      %v3243 = vunpack.c.l.b16 %v753
      %v3244 = vunpack.c.h.b16 %v753
      %v3245 = vunpack.c.l.b16 %v754
      %v3246 = vunpack.c.h.b16 %v754
      %v3247 = vunpack.c.l.b16 %v755
      %v3248 = vunpack.c.h.b16 %v755
      %v3249 = vunpack.c.l.b16 %v756
      %v3250 = vunpack.c.h.b16 %v756
      %v3251 = vunpack.c.l.b16 %v757
      %v3252 = vunpack.c.h.b16 %v757
      %v3253 = vunpack.c.l.b16 %v758
      %v3254 = vunpack.c.h.b16 %v758
      %v3255 = vunpack.c.l.b16 %v759
      %v3256 = vunpack.c.h.b16 %v759
      %v3257 = vunpack.c.l.b16 %v760
      %v3258 = vunpack.c.h.b16 %v760
      %v3259 = vunpack.c.l.b16 %v761
      %v3260 = vunpack.c.h.b16 %v761
      %v3261 = vunpack.c.l.b16 %v762
      %v3262 = vunpack.c.h.b16 %v762
      %v3263 = vunpack.c.l.b16 %v763
      %v3264 = vunpack.c.h.b16 %v763
      %v3265 = vunpack.c.l.b16 %v764
      %v3266 = vunpack.c.h.b16 %v764
      %v3267 = vunpack.c.l.b16 %v765
      %v3268 = vunpack.c.h.b16 %v765
      %v3269 = vunpack.c.l.b16 %v766
      %v3270 = vunpack.c.h.b16 %v766
      %v3271 = vunpack.c.l.b16 %v767
      %v3272 = vunpack.c.h.b16 %v767
      %v3273 = vunpack.c.l.b16 %v768
      %v3274 = vunpack.c.h.b16 %v768
      %v3275 = vunpack.c.l.b16 %v769
      %v3276 = vunpack.c.h.b16 %v769
      %v3277 = vunpack.c.l.b16 %v770
      %v3278 = vunpack.c.h.b16 %v770
      %v3279 = vunpack.c.l.b16 %v771
      %v3280 = vunpack.c.h.b16 %v771
      %v3281 = vunpack.c.l.b16 %v772
      %v3282 = vunpack.c.h.b16 %v772
      %v3283 = vunpack.c.l.b16 %v773
      %v3284 = vunpack.c.h.b16 %v773
      %v3285 = vunpack.c.l.b16 %v774
      %v3286 = vunpack.c.h.b16 %v774
      %v3287 = vunpack.c.l.b16 %v775
      %v3288 = vunpack.c.h.b16 %v775
      %v3289 = vunpack.c.l.b16 %v776
      %v3290 = vunpack.c.h.b16 %v776
      %v3291 = vunpack.c.l.b16 %v777
      %v3292 = vunpack.c.h.b16 %v777
      %v3293 = vunpack.c.l.b16 %v778
      %v3294 = vunpack.c.h.b16 %v778
      %v3295 = vunpack.c.l.b16 %v779
      %v3296 = vunpack.c.h.b16 %v779
      %v3297 = vunpack.c.l.b16 %v780
      %v3298 = vunpack.c.h.b16 %v780
      %v3299 = vunpack.c.l.b16 %v781
      %v3300 = vunpack.c.h.b16 %v781
      %v3301 = vunpack.c.l.b16 %v782
      %v3302 = vunpack.c.h.b16 %v782
      %v3303 = vunpack.c.l.b16 %v783
      %v3304 = vunpack.c.h.b16 %v783
      %v3305 = vunpack.c.l.b16 %v784
      %v3306 = vunpack.c.h.b16 %v784
      %v3307 = vunpack.c.l.b16 %v785
      %v3308 = vunpack.c.h.b16 %v785
      %v3309 = vunpack.c.l.b16 %v786
      %v3310 = vunpack.c.h.b16 %v786
      %v3311 = vunpack.c.l.b16 %v787
      %v3312 = vunpack.c.h.b16 %v787
      %v3313 = vunpack.c.l.b16 %v788
      %v3314 = vunpack.c.h.b16 %v788
      %v3315 = vunpack.c.l.b16 %v789
      %v3316 = vunpack.c.h.b16 %v789
      %v3317 = vunpack.c.l.b16 %v790
      %v3318 = vunpack.c.h.b16 %v790
      %v3319 = vunpack.c.l.b16 %v791
      %v3320 = vunpack.c.h.b16 %v791
      %v3321 = vunpack.c.l.b16 %v792
      %v3322 = vunpack.c.h.b16 %v792
      %v3323 = vunpack.c.l.b16 %v793
      %v3324 = vunpack.c.h.b16 %v793
      %v3325 = vunpack.c.l.b16 %v794
      %v3326 = vunpack.c.h.b16 %v794
      %v3327 = vunpack.c.l.b16 %v795
      %v3328 = vunpack.c.h.b16 %v795
      %v3329 = vunpack.c.l.b16 %v796
      %v3330 = vunpack.c.h.b16 %v796
      %v3331 = vunpack.c.l.b16 %v797
      %v3332 = vunpack.c.h.b16 %v797
      %v3333 = vunpack.c.l.b16 %v798
      %v3334 = vunpack.c.h.b16 %v798
      %v3335 = vunpack.c.l.b16 %v799
      %v3336 = vunpack.c.h.b16 %v799
      %v3337 = vunpack.c.l.b16 %v800
      %v3338 = vunpack.c.h.b16 %v800
      %v3339 = vunpack.c.l.b16 %v801
      %v3340 = vunpack.c.h.b16 %v801
      %v3341 = vunpack.c.l.b16 %v802
      %v3342 = vunpack.c.h.b16 %v802
      %v3343 = vunpack.c.l.b16 %v803
      %v3344 = vunpack.c.h.b16 %v803
      %v3345 = vunpack.c.l.b16 %v804
      %v3346 = vunpack.c.h.b16 %v804
      %v3347 = vunpack.c.l.b16 %v805
      %v3348 = vunpack.c.h.b16 %v805
      %v3349 = vunpack.c.l.b16 %v806
      %v3350 = vunpack.c.h.b16 %v806
      %v3351 = vunpack.c.l.b16 %v807
      %v3352 = vunpack.c.h.b16 %v807
      %v3353 = vunpack.c.l.b16 %v808
      %v3354 = vunpack.c.h.b16 %v808
      %v3355 = vunpack.c.l.b16 %v809
      %v3356 = vunpack.c.h.b16 %v809
      %v3357 = vunpack.c.l.b16 %v810
      %v3358 = vunpack.c.h.b16 %v810
      %v3359 = vunpack.c.l.b16 %v811
      %v3360 = vunpack.c.h.b16 %v811
      %v3361 = vunpack.c.l.b16 %v812
      %v3362 = vunpack.c.h.b16 %v812
      %v3363 = vunpack.c.l.b16 %v813
      %v3364 = vunpack.c.h.b16 %v813
      %v3365 = vunpack.c.l.b16 %v814
      %v3366 = vunpack.c.h.b16 %v814
      %v3367 = vunpack.c.l.b16 %v815
      %v3368 = vunpack.c.h.b16 %v815
      %v3369 = vunpack.c.l.b16 %v816
      %v3370 = vunpack.c.h.b16 %v816
      %v3371 = vunpack.c.l.b16 %v817
      %v3372 = vunpack.c.h.b16 %v817
      %v3373 = vunpack.c.l.b16 %v818
      %v3374 = vunpack.c.h.b16 %v818
      %v3375 = vunpack.c.l.b16 %v819
      %v3376 = vunpack.c.h.b16 %v819
      %v3377 = vunpack.c.l.b16 %v820
      %v3378 = vunpack.c.h.b16 %v820
      %v3379 = vunpack.c.l.b16 %v821
      %v3380 = vunpack.c.h.b16 %v821
      %v3381 = vunpack.c.l.b16 %v822
      %v3382 = vunpack.c.h.b16 %v822
      %v3383 = vunpack.c.l.b16 %v823
      %v3384 = vunpack.c.h.b16 %v823
      %v3385 = vunpack.c.l.b16 %v824
      %v3386 = vunpack.c.h.b16 %v824
      %v3387 = vunpack.c.l.b16 %v825
      %v3388 = vunpack.c.h.b16 %v825
      %v3389 = vunpack.c.l.b16 %v826
      %v3390 = vunpack.c.h.b16 %v826
      %v3391 = vunpack.c.l.b16 %v827
      %v3392 = vunpack.c.h.b16 %v827
      %v3393 = vunpack.c.l.b16 %v828
      %v3394 = vunpack.c.h.b16 %v828
      %v3395 = vunpack.c.l.b16 %v829
      %v3396 = vunpack.c.h.b16 %v829
      %v3397 = vunpack.c.l.b16 %v830
      %v3398 = vunpack.c.h.b16 %v830
      %v3399 = vunpack.c.l.b16 %v831
      %v3400 = vunpack.c.h.b16 %v831
      %v3401 = vunpack.c.l.b16 %v832
      %v3402 = vunpack.c.h.b16 %v832
      %v3403 = vunpack.c.l.b16 %v833
      %v3404 = vunpack.c.h.b16 %v833
      %v3405 = vunpack.c.l.b16 %v834
      %v3406 = vunpack.c.h.b16 %v834
      %v3407 = vunpack.c.l.b16 %v835
      %v3408 = vunpack.c.h.b16 %v835
      %v3409 = vunpack.c.l.b16 %v836
      %v3410 = vunpack.c.h.b16 %v836
      %v3411 = vunpack.c.l.b16 %v837
      %v3412 = vunpack.c.h.b16 %v837
      %v3413 = vunpack.c.l.b16 %v838
      %v3414 = vunpack.c.h.b16 %v838
      %v3415 = vunpack.c.l.b16 %v839
      %v3416 = vunpack.c.h.b16 %v839
      %v3417 = vunpack.c.l.b16 %v840
      %v3418 = vunpack.c.h.b16 %v840
      %v3419 = vunpack.c.l.b16 %v841
      %v3420 = vunpack.c.h.b16 %v841
      %v3421 = vunpack.c.l.b16 %v842
      %v3422 = vunpack.c.h.b16 %v842
      %v3423 = vunpack.c.l.b16 %v843
      %v3424 = vunpack.c.h.b16 %v843
      %v3425 = vunpack.c.l.b16 %v844
      %v3426 = vunpack.c.h.b16 %v844
      %v3427 = vunpack.c.l.b16 %v845
      %v3428 = vunpack.c.h.b16 %v845
      %v3429 = vunpack.c.l.b16 %v846
      %v3430 = vunpack.c.h.b16 %v846
      %v3431 = vunpack.c.l.b16 %v847
      %v3432 = vunpack.c.h.b16 %v847
      %v3433 = vunpack.c.l.b16 %v848
      %v3434 = vunpack.c.h.b16 %v848
      %v3435 = vunpack.c.l.b16 %v849
      %v3436 = vunpack.c.h.b16 %v849
      %v3437 = vunpack.c.l.b16 %v850
      %v3438 = vunpack.c.h.b16 %v850
      %v3439 = vunpack.c.l.b16 %v851
      %v3440 = vunpack.c.h.b16 %v851
      %v3441 = vunpack.c.l.b16 %v852
      %v3442 = vunpack.c.h.b16 %v852
      %v3443 = vunpack.c.l.b16 %v853
      %v3444 = vunpack.c.h.b16 %v853
      %v3445 = vunpack.c.l.b16 %v854
      %v3446 = vunpack.c.h.b16 %v854
      %v3447 = vunpack.c.l.b16 %v855
      %v3448 = vunpack.c.h.b16 %v855
      %v3449 = vunpack.c.l.b16 %v856
      %v3450 = vunpack.c.h.b16 %v856
      %v3451 = vunpack.c.l.b16 %v857
      %v3452 = vunpack.c.h.b16 %v857
      %v3453 = vunpack.c.l.b16 %v858
      %v3454 = vunpack.c.h.b16 %v858
      %v3455 = vunpack.c.l.b16 %v859
      %v3456 = vunpack.c.h.b16 %v859
      %v3457 = vunpack.c.l.b16 %v860
      %v3458 = vunpack.c.h.b16 %v860
      %v3459 = vunpack.c.l.b16 %v861
      %v3460 = vunpack.c.h.b16 %v861
      %v3461 = vunpack.c.l.b16 %v862
      %v3462 = vunpack.c.h.b16 %v862
      %v3463 = vunpack.c.l.b16 %v863
      %v3464 = vunpack.c.h.b16 %v863
      %v3465 = vunpack.c.l.b16 %v864
      %v3466 = vunpack.c.h.b16 %v864
      %v3467 = vunpack.c.l.b16 %v865
      %v3468 = vunpack.c.h.b16 %v865
      %v3469 = vunpack.c.l.b16 %v866
      %v3470 = vunpack.c.h.b16 %v866
      %v3471 = vunpack.c.l.b16 %v867
      %v3472 = vunpack.c.h.b16 %v867
      %v3473 = vunpack.c.l.b16 %v868
      %v3474 = vunpack.c.h.b16 %v868
      %v3475 = vunpack.c.l.b16 %v869
      %v3476 = vunpack.c.h.b16 %v869
      %v3477 = vunpack.c.l.b16 %v870
      %v3478 = vunpack.c.h.b16 %v870
      %v3479 = vunpack.c.l.b16 %v871
      %v3480 = vunpack.c.h.b16 %v871
      %v3481 = vunpack.c.l.b16 %v872
      %v3482 = vunpack.c.h.b16 %v872
      %v3483 = vunpack.c.l.b16 %v873
      %v3484 = vunpack.c.h.b16 %v873
      %v3485 = vunpack.c.l.b16 %v874
      %v3486 = vunpack.c.h.b16 %v874
      %v3487 = vunpack.c.l.b16 %v875
      %v3488 = vunpack.c.h.b16 %v875
      %v3489 = vunpack.c.l.b16 %v876
      %v3490 = vunpack.c.h.b16 %v876
      %v3491 = vunpack.c.l.b16 %v877
      %v3492 = vunpack.c.h.b16 %v877
      %v3493 = vunpack.c.l.b16 %v878
      %v3494 = vunpack.c.h.b16 %v878
      %v3495 = vunpack.c.l.b16 %v879
      %v3496 = vunpack.c.h.b16 %v879
      %v3497 = vunpack.c.l.b16 %v880
      %v3498 = vunpack.c.h.b16 %v880
      %v3499 = vunpack.c.l.b16 %v881
      %v3500 = vunpack.c.h.b16 %v881
      %v3501 = vunpack.c.l.b16 %v882
      %v3502 = vunpack.c.h.b16 %v882
      %v3503 = vunpack.c.l.b16 %v883
      %v3504 = vunpack.c.h.b16 %v883
      %v3505 = vunpack.c.l.b16 %v884
      %v3506 = vunpack.c.h.b16 %v884
      %v3507 = vunpack.c.l.b16 %v885
      %v3508 = vunpack.c.h.b16 %v885
      %v3509 = vunpack.c.l.b16 %v886
      %v3510 = vunpack.c.h.b16 %v886
      %v3511 = vunpack.c.l.b16 %v887
      %v3512 = vunpack.c.h.b16 %v887
      %v3513 = vunpack.c.l.b16 %v888
      %v3514 = vunpack.c.h.b16 %v888
      %v3515 = vunpack.c.l.b16 %v889
      %v3516 = vunpack.c.h.b16 %v889
      %v3517 = vunpack.c.l.b16 %v890
      %v3518 = vunpack.c.h.b16 %v890
      %v3519 = vunpack.c.l.b16 %v891
      %v3520 = vunpack.c.h.b16 %v891
      %v3521 = vunpack.c.l.b16 %v892
      %v3522 = vunpack.c.h.b16 %v892
      %v3523 = vunpack.c.l.b16 %v893
      %v3524 = vunpack.c.h.b16 %v893
      %v3525 = vunpack.c.l.b16 %v894
      %v3526 = vunpack.c.h.b16 %v894
      %v3527 = vunpack.c.l.b16 %v895
      %v3528 = vunpack.c.h.b16 %v895
      %v3529 = vunpack.c.l.b16 %v896
      %v3530 = vunpack.c.h.b16 %v896
      %v3531 = vunpack.c.l.b16 %v897
      %v3532 = vunpack.c.h.b16 %v897
      %v3533 = vunpack.c.l.b16 %v898
      %v3534 = vunpack.c.h.b16 %v898
      %v3535 = vunpack.c.l.b16 %v899
      %v3536 = vunpack.c.h.b16 %v899
      %v3537 = vunpack.c.l.b16 %v900
      %v3538 = vunpack.c.h.b16 %v900
      %v3539 = vunpack.c.l.b16 %v901
      %v3540 = vunpack.c.h.b16 %v901
      %v3541 = vunpack.c.l.b16 %v902
      %v3542 = vunpack.c.h.b16 %v902
      %v3543 = vunpack.c.l.b16 %v903
      %v3544 = vunpack.c.h.b16 %v903
      %v3545 = vunpack.c.l.b16 %v904
      %v3546 = vunpack.c.h.b16 %v904
      %v3547 = vunpack.c.l.b16 %v905
      %v3548 = vunpack.c.h.b16 %v905
      %v3549 = vunpack.c.l.b16 %v906
      %v3550 = vunpack.c.h.b16 %v906
      %v3551 = vunpack.c.l.b16 %v907
      %v3552 = vunpack.c.h.b16 %v907
      %v3553 = vunpack.c.l.b16 %v908
      %v3554 = vunpack.c.h.b16 %v908
      %v3555 = vunpack.c.l.b16 %v909
      %v3556 = vunpack.c.h.b16 %v909
      %v3557 = vunpack.c.l.b16 %v910
      %v3558 = vunpack.c.h.b16 %v910
      %v3559 = vunpack.c.l.b16 %v911
      %v3560 = vunpack.c.h.b16 %v911
      %v3561 = vunpack.c.l.b16 %v912
      %v3562 = vunpack.c.h.b16 %v912
      %v3563 = vunpack.c.l.b16 %v913
      %v3564 = vunpack.c.h.b16 %v913
      %v3565 = vunpack.c.l.b16 %v914
      %v3566 = vunpack.c.h.b16 %v914
      %v3567 = vunpack.c.l.b16 %v915
      %v3568 = vunpack.c.h.b16 %v915
      %v3569 = vunpack.c.l.b16 %v916
      %v3570 = vunpack.c.h.b16 %v916
      %v3571 = vunpack.c.l.b16 %v917
      %v3572 = vunpack.c.h.b16 %v917
      %v3573 = vunpack.c.l.b16 %v918
      %v3574 = vunpack.c.h.b16 %v918
      %v3575 = vunpack.c.l.b16 %v919
      %v3576 = vunpack.c.h.b16 %v919
      %v3577 = vunpack.c.l.b16 %v920
      %v3578 = vunpack.c.h.b16 %v920
      %v3579 = vunpack.c.l.b16 %v921
      %v3580 = vunpack.c.h.b16 %v921
      %v3581 = vunpack.c.l.b16 %v922
      %v3582 = vunpack.c.h.b16 %v922
      %v3583 = vunpack.c.l.b16 %v923
      %v3584 = vunpack.c.h.b16 %v923
      %v3585 = vunpack.c.l.b16 %v924
      %v3586 = vunpack.c.h.b16 %v924
      %v3587 = vunpack.c.l.b16 %v925
      %v3588 = vunpack.c.h.b16 %v925
      %v3589 = vunpack.c.l.b16 %v926
      %v3590 = vunpack.c.h.b16 %v926
      %v3591 = vunpack.c.l.b16 %v927
      %v3592 = vunpack.c.h.b16 %v927
      %v3593 = vunpack.c.l.b16 %v928
      %v3594 = vunpack.c.h.b16 %v928
      %v3595 = vunpack.c.l.b16 %v929
      %v3596 = vunpack.c.h.b16 %v929
      %v3597 = vunpack.c.l.b16 %v930
      %v3598 = vunpack.c.h.b16 %v930
      %v3599 = vunpack.c.l.b16 %v931
      %v3600 = vunpack.c.h.b16 %v931
      %v3601 = vunpack.c.l.b16 %v932
      %v3602 = vunpack.c.h.b16 %v932
      %v3603 = vunpack.c.l.b16 %v933
      %v3604 = vunpack.c.h.b16 %v933
      %v3605 = vunpack.c.l.b16 %v934
      %v3606 = vunpack.c.h.b16 %v934
      %v3607 = vunpack.c.l.b16 %v935
      %v3608 = vunpack.c.h.b16 %v935
      %v3609 = vunpack.c.l.b16 %v936
      %v3610 = vunpack.c.h.b16 %v936
      %v3611 = vunpack.c.l.b16 %v937
      %v3612 = vunpack.c.h.b16 %v937
      %v3613 = vunpack.c.l.b16 %v938
      %v3614 = vunpack.c.h.b16 %v938
      %v3615 = vunpack.c.l.b16 %v939
      %v3616 = vunpack.c.h.b16 %v939
      %v3617 = vunpack.c.l.b16 %v940
      %v3618 = vunpack.c.h.b16 %v940
      %v3619 = vunpack.c.l.b16 %v941
      %v3620 = vunpack.c.h.b16 %v941
      %v3621 = vunpack.c.l.b16 %v942
      %v3622 = vunpack.c.h.b16 %v942
      %v3623 = vunpack.c.l.b16 %v943
      %v3624 = vunpack.c.h.b16 %v943
      %v3625 = vunpack.c.l.b16 %v944
      %v3626 = vunpack.c.h.b16 %v944
      %v3627 = vunpack.c.l.b16 %v945
      %v3628 = vunpack.c.h.b16 %v945
      %v3629 = vunpack.c.l.b16 %v946
      %v3630 = vunpack.c.h.b16 %v946
      %v3631 = vunpack.c.l.b16 %v947
      %v3632 = vunpack.c.h.b16 %v947
      %v3633 = vunpack.c.l.b16 %v948
      %v3634 = vunpack.c.h.b16 %v948
      %v3635 = vunpack.c.l.b16 %v949
      %v3636 = vunpack.c.h.b16 %v949
      %v3637 = vunpack.c.l.b16 %v950
      %v3638 = vunpack.c.h.b16 %v950
      %v3639 = vunpack.c.l.b16 %v951
      %v3640 = vunpack.c.h.b16 %v951
      %v3641 = vunpack.c.l.b16 %v952
      %v3642 = vunpack.c.h.b16 %v952
      %v3643 = vunpack.c.l.b16 %v953
      %v3644 = vunpack.c.h.b16 %v953
      %v3645 = vunpack.c.l.b16 %v954
      %v3646 = vunpack.c.h.b16 %v954
      %v3647 = vunpack.c.l.b16 %v955
      %v3648 = vunpack.c.h.b16 %v955
      %v3649 = vunpack.c.l.b16 %v956
      %v3650 = vunpack.c.h.b16 %v956
      %v3651 = vunpack.c.l.b16 %v957
      %v3652 = vunpack.c.h.b16 %v957
      %v3653 = vunpack.c.l.b16 %v958
      %v3654 = vunpack.c.h.b16 %v958
      %v3655 = vunpack.c.l.b16 %v959
      %v3656 = vunpack.c.h.b16 %v959
      %v3657 = vunpack.c.l.b16 %v960
      %v3658 = vunpack.c.h.b16 %v960
      %v3659 = vunpack.c.l.b16 %v961
      %v3660 = vunpack.c.h.b16 %v961
      %v3661 = vunpack.c.l.b16 %v962
      %v3662 = vunpack.c.h.b16 %v962
      %v3663 = vunpack.c.l.b16 %v963
      %v3664 = vunpack.c.h.b16 %v963
      %v3665 = vunpack.c.l.b16 %v964
      %v3666 = vunpack.c.h.b16 %v964
      %v3667 = vunpack.c.l.b16 %v965
      %v3668 = vunpack.c.h.b16 %v965
      %v3669 = vunpack.c.l.b16 %v966
      %v3670 = vunpack.c.h.b16 %v966
      %v3671 = vunpack.c.l.b16 %v967
      %v3672 = vunpack.c.h.b16 %v967
      %v3673 = vunpack.c.l.b16 %v968
      %v3674 = vunpack.c.h.b16 %v968
      %v3675 = vunpack.c.l.b16 %v969
      %v3676 = vunpack.c.h.b16 %v969
      %v3677 = vunpack.c.l.b16 %v970
      %v3678 = vunpack.c.h.b16 %v970
      %v3679 = vunpack.c.l.b16 %v971
      %v3680 = vunpack.c.h.b16 %v971
      %v3681 = vunpack.c.l.b16 %v972
      %v3682 = vunpack.c.h.b16 %v972
      %v3683 = vunpack.c.l.b16 %v973
      %v3684 = vunpack.c.h.b16 %v973
      %v3685 = vunpack.c.l.b16 %v974
      %v3686 = vunpack.c.h.b16 %v974
      %v3687 = vunpack.c.l.b16 %v975
      %v3688 = vunpack.c.h.b16 %v975
      %v3689 = vunpack.c.l.b16 %v976
      %v3690 = vunpack.c.h.b16 %v976
      %v3691 = vunpack.c.l.b16 %v977
      %v3692 = vunpack.c.h.b16 %v977
      %v3693 = vunpack.c.l.b16 %v978
      %v3694 = vunpack.c.h.b16 %v978
      %v3695 = vunpack.c.l.b16 %v979
      %v3696 = vunpack.c.h.b16 %v979
      %v3697 = vunpack.c.l.b16 %v980
      %v3698 = vunpack.c.h.b16 %v980
      %v3699 = vunpack.c.l.b16 %v981
      %v3700 = vunpack.c.h.b16 %v981
      %v3701 = vunpack.c.l.b16 %v982
      %v3702 = vunpack.c.h.b16 %v982
      %v3703 = vunpack.c.l.b16 %v983
      %v3704 = vunpack.c.h.b16 %v983
      %v3705 = vunpack.c.l.b16 %v984
      %v3706 = vunpack.c.h.b16 %v984
      %v3707 = vunpack.c.l.b16 %v985
      %v3708 = vunpack.c.h.b16 %v985
      %v3709 = vunpack.c.l.b16 %v986
      %v3710 = vunpack.c.h.b16 %v986
      %v3711 = vunpack.c.l.b16 %v987
      %v3712 = vunpack.c.h.b16 %v987
      %v3713 = vunpack.c.l.b16 %v988
      %v3714 = vunpack.c.h.b16 %v988
      %v3715 = vunpack.c.l.b16 %v989
      %v3716 = vunpack.c.h.b16 %v989
      %v3717 = vunpack.c.l.b16 %v990
      %v3718 = vunpack.c.h.b16 %v990
      %v3719 = vunpack.c.l.b16 %v991
      %v3720 = vunpack.c.h.b16 %v991
      %v3721 = vunpack.c.l.b16 %v992
      %v3722 = vunpack.c.h.b16 %v992
      %v3723 = vunpack.c.l.b16 %v993
      %v3724 = vunpack.c.h.b16 %v993
      %v3725 = vunpack.c.l.b16 %v994
      %v3726 = vunpack.c.h.b16 %v994
      %v3727 = vunpack.c.l.b16 %v995
      %v3728 = vunpack.c.h.b16 %v995
      %v3729 = vunpack.c.l.b16 %v996
      %v3730 = vunpack.c.h.b16 %v996
      %v3731 = vunpack.c.l.b16 %v997
      %v3732 = vunpack.c.h.b16 %v997
      %v3733 = vunpack.c.l.b16 %v998
      %v3734 = vunpack.c.h.b16 %v998
      %v3735 = vunpack.c.l.b16 %v999
      %v3736 = vunpack.c.h.b16 %v999
      %v3737 = vunpack.c.l.b16 %v1000
      %v3738 = vunpack.c.h.b16 %v1000
      %v3739 = vunpack.c.l.b16 %v1001
      %v3740 = vunpack.c.h.b16 %v1001
      %v3741 = vunpack.c.l.b16 %v1002
      %v3742 = vunpack.c.h.b16 %v1002
      %v3743 = vunpack.c.l.b16 %v1003
      %v3744 = vunpack.c.h.b16 %v1003
      %v3745 = vunpack.c.l.b16 %v1004
      %v3746 = vunpack.c.h.b16 %v1004
      %v3747 = vunpack.c.l.b16 %v1005
      %v3748 = vunpack.c.h.b16 %v1005
      %v3749 = vunpack.c.l.b16 %v1006
      %v3750 = vunpack.c.h.b16 %v1006
      %v3751 = vunpack.c.l.b16 %v1007
      %v3752 = vunpack.c.h.b16 %v1007
      %v3753 = vunpack.c.l.b16 %v1008
      %v3754 = vunpack.c.h.b16 %v1008
      %v3755 = vunpack.c.l.b16 %v1009
      %v3756 = vunpack.c.h.b16 %v1009
      %v3757 = vunpack.c.l.b16 %v1010
      %v3758 = vunpack.c.h.b16 %v1010
      %v3759 = vunpack.c.l.b16 %v1011
      %v3760 = vunpack.c.h.b16 %v1011
      %v3761 = vunpack.c.l.b16 %v1012
      %v3762 = vunpack.c.h.b16 %v1012
      %v3763 = vunpack.c.l.b16 %v1013
      %v3764 = vunpack.c.h.b16 %v1013
      %v3765 = vunpack.c.l.b16 %v1014
      %v3766 = vunpack.c.h.b16 %v1014
      %v3767 = vunpack.c.l.b16 %v1015
      %v3768 = vunpack.c.h.b16 %v1015
      %v3769 = vunpack.c.l.b16 %v1016
      %v3770 = vunpack.c.h.b16 %v1016
      %v3771 = vunpack.c.l.b16 %v1017
      %v3772 = vunpack.c.h.b16 %v1017
      %v3773 = vunpack.c.l.b16 %v1018
      %v3774 = vunpack.c.h.b16 %v1018
      %v3775 = vunpack.c.l.b16 %v1019
      %v3776 = vunpack.c.h.b16 %v1019
      %v3777 = vunpack.c.l.b16 %v1020
      %v3778 = vunpack.c.h.b16 %v1020
      %v3779 = vunpack.c.l.b16 %v1021
      %v3780 = vunpack.c.h.b16 %v1021
      %v3781 = vunpack.c.l.b16 %v1022
      %v3782 = vunpack.c.h.b16 %v1022
      %v3783 = vunpack.c.l.b16 %v1023
      %v3784 = vunpack.c.h.b16 %v1023
      %v3785 = vunpack.c.l.b16 %v1024
      %v3786 = vunpack.c.h.b16 %v1024
      %v3787 = vunpack.c.l.b16 %v1025
      %v3788 = vunpack.c.h.b16 %v1025
      %v3789 = vunpack.c.l.b16 %v1026
      %v3790 = vunpack.c.h.b16 %v1026
      %v3791 = vunpack.c.l.b16 %v1027
      %v3792 = vunpack.c.h.b16 %v1027
      %v3793 = vunpack.c.l.b16 %v1028
      %v3794 = vunpack.c.h.b16 %v1028
      %v3795 = vunpack.c.l.b16 %v1029
      %v3796 = vunpack.c.h.b16 %v1029
      %v3797 = vunpack.c.l.b16 %v1030
      %v3798 = vunpack.c.h.b16 %v1030
      %v3799 = vunpack.c.l.b16 %v1031
      %v3800 = vunpack.c.h.b16 %v1031
      %v3801 = vunpack.c.l.b16 %v1032
      %v3802 = vunpack.c.h.b16 %v1032
      %v3803 = vunpack.c.l.b16 %v1033
      %v3804 = vunpack.c.h.b16 %v1033
      %v3805 = vunpack.c.l.b16 %v1034
      %v3806 = vunpack.c.h.b16 %v1034
      %v3807 = vunpack.c.l.b16 %v1035
      %v3808 = vunpack.c.h.b16 %v1035
      %v3809 = vunpack.c.l.b16 %v1036
      %v3810 = vunpack.c.h.b16 %v1036
      %v3811 = vunpack.c.l.b16 %v1037
      %v3812 = vunpack.c.h.b16 %v1037
      %v3813 = vunpack.c.l.b16 %v1038
      %v3814 = vunpack.c.h.b16 %v1038
      %v3815 = vpack.c.b16 %v2521, %v2519
      %v3816 = vpack.c.b16 %v2522, %v2520
      %v3817 = vpack.c.b16 %v2525, %v2523
      %v3818 = vpack.c.b16 %v2526, %v2524
      %v3819 = vpack.c.b16 %v2529, %v2527
      %v3820 = vpack.c.b16 %v2530, %v2528
      %v3821 = vpack.c.b16 %v2533, %v2531
      %v3822 = vpack.c.b16 %v2534, %v2532
      %v3823 = vpack.c.b16 %v2537, %v2535
      %v3824 = vpack.c.b16 %v2538, %v2536
      %v3825 = vpack.c.b16 %v2541, %v2539
      %v3826 = vpack.c.b16 %v2542, %v2540
      %v3827 = vpack.c.b16 %v2545, %v2543
      %v3828 = vpack.c.b16 %v2546, %v2544
      %v3829 = vpack.c.b16 %v2549, %v2547
      %v3830 = vpack.c.b16 %v2550, %v2548
      %v3831 = vpack.c.b16 %v2553, %v2551
      %v3832 = vpack.c.b16 %v2554, %v2552
      %v3833 = vpack.c.b16 %v2557, %v2555
      %v3834 = vpack.c.b16 %v2558, %v2556
      %v3835 = vpack.c.b16 %v2561, %v2559
      %v3836 = vpack.c.b16 %v2562, %v2560
      %v3837 = vpack.c.b16 %v2565, %v2563
      %v3838 = vpack.c.b16 %v2566, %v2564
      %v3839 = vpack.c.b16 %v2569, %v2567
      %v3840 = vpack.c.b16 %v2570, %v2568
      %v3841 = vpack.c.b16 %v2573, %v2571
      %v3842 = vpack.c.b16 %v2574, %v2572
      %v3843 = vpack.c.b16 %v2577, %v2575
      %v3844 = vpack.c.b16 %v2578, %v2576
      %v3845 = vpack.c.b16 %v2581, %v2579
      %v3846 = vpack.c.b16 %v2582, %v2580
      %v3847 = vpack.c.b16 %v2585, %v2583
      %v3848 = vpack.c.b16 %v2586, %v2584
      %v3849 = vpack.c.b16 %v2589, %v2587
      %v3850 = vpack.c.b16 %v2590, %v2588
      %v3851 = vpack.c.b16 %v2593, %v2591
      %v3852 = vpack.c.b16 %v2594, %v2592
      %v3853 = vpack.c.b16 %v2597, %v2595
      %v3854 = vpack.c.b16 %v2598, %v2596
      %v3855 = vpack.c.b16 %v2601, %v2599
      %v3856 = vpack.c.b16 %v2602, %v2600
      %v3857 = vpack.c.b16 %v2605, %v2603
      %v3858 = vpack.c.b16 %v2606, %v2604
      %v3859 = vpack.c.b16 %v2609, %v2607
      %v3860 = vpack.c.b16 %v2610, %v2608
      %v3861 = vpack.c.b16 %v2613, %v2611
      %v3862 = vpack.c.b16 %v2614, %v2612
      %v3863 = vpack.c.b16 %v2617, %v2615
      %v3864 = vpack.c.b16 %v2618, %v2616
      %v3865 = vpack.c.b16 %v2621, %v2619
      %v3866 = vpack.c.b16 %v2622, %v2620
      %v3867 = vpack.c.b16 %v2625, %v2623
      %v3868 = vpack.c.b16 %v2626, %v2624
      %v3869 = vpack.c.b16 %v2629, %v2627
      %v3870 = vpack.c.b16 %v2630, %v2628
      %v3871 = vpack.c.b16 %v2633, %v2631
      %v3872 = vpack.c.b16 %v2634, %v2632
      %v3873 = vpack.c.b16 %v2637, %v2635
      %v3874 = vpack.c.b16 %v2638, %v2636
      %v3875 = vpack.c.b16 %v2641, %v2639
      %v3876 = vpack.c.b16 %v2642, %v2640
      %v3877 = vpack.c.b16 %v2645, %v2643
      %v3878 = vpack.c.b16 %v2646, %v2644
      %v3879 = vpack.c.b16 %v2649, %v2647
      %v3880 = vpack.c.b16 %v2650, %v2648
      %v3881 = vpack.c.b16 %v2653, %v2651
      %v3882 = vpack.c.b16 %v2654, %v2652
      %v3883 = vpack.c.b16 %v2657, %v2655
      %v3884 = vpack.c.b16 %v2658, %v2656
      %v3885 = vpack.c.b16 %v2661, %v2659
      %v3886 = vpack.c.b16 %v2662, %v2660
      %v3887 = vpack.c.b16 %v2665, %v2663
      %v3888 = vpack.c.b16 %v2666, %v2664
      %v3889 = vpack.c.b16 %v2669, %v2667
      %v3890 = vpack.c.b16 %v2670, %v2668
      %v3891 = vpack.c.b16 %v2673, %v2671
      %v3892 = vpack.c.b16 %v2674, %v2672
      %v3893 = vpack.c.b16 %v2677, %v2675
      %v3894 = vpack.c.b16 %v2678, %v2676
      %v3895 = vpack.c.b16 %v2681, %v2679
      %v3896 = vpack.c.b16 %v2682, %v2680
      %v3897 = vpack.c.b16 %v2685, %v2683
      %v3898 = vpack.c.b16 %v2686, %v2684
      %v3899 = vpack.c.b16 %v2689, %v2687
      %v3900 = vpack.c.b16 %v2690, %v2688
      %v3901 = vpack.c.b16 %v2693, %v2691
      %v3902 = vpack.c.b16 %v2694, %v2692
      %v3903 = vpack.c.b16 %v2697, %v2695
      %v3904 = vpack.c.b16 %v2698, %v2696
      %v3905 = vpack.c.b16 %v2701, %v2699
      %v3906 = vpack.c.b16 %v2702, %v2700
      %v3907 = vpack.c.b16 %v2705, %v2703
      %v3908 = vpack.c.b16 %v2706, %v2704
      %v3909 = vpack.c.b16 %v2709, %v2707
      %v3910 = vpack.c.b16 %v2710, %v2708
      %v3911 = vpack.c.b16 %v2713, %v2711
      %v3912 = vpack.c.b16 %v2714, %v2712
      %v3913 = vpack.c.b16 %v2717, %v2715
      %v3914 = vpack.c.b16 %v2718, %v2716
      %v3915 = vpack.c.b16 %v2721, %v2719
      %v3916 = vpack.c.b16 %v2722, %v2720
      %v3917 = vpack.c.b16 %v2725, %v2723
      %v3918 = vpack.c.b16 %v2726, %v2724
      %v3919 = vpack.c.b16 %v2729, %v2727
      %v3920 = vpack.c.b16 %v2730, %v2728
      %v3921 = vpack.c.b16 %v2733, %v2731
      %v3922 = vpack.c.b16 %v2734, %v2732
      %v3923 = vpack.c.b16 %v2737, %v2735
      %v3924 = vpack.c.b16 %v2738, %v2736
      %v3925 = vpack.c.b16 %v2741, %v2739
      %v3926 = vpack.c.b16 %v2742, %v2740
      %v3927 = vpack.c.b16 %v2745, %v2743
      %v3928 = vpack.c.b16 %v2746, %v2744
      %v3929 = vpack.c.b16 %v2749, %v2747
      %v3930 = vpack.c.b16 %v2750, %v2748
      %v3931 = vpack.c.b16 %v2753, %v2751
      %v3932 = vpack.c.b16 %v2754, %v2752
      %v3933 = vpack.c.b16 %v2757, %v2755
      %v3934 = vpack.c.b16 %v2758, %v2756
      %v3935 = vpack.c.b16 %v2761, %v2759
      %v3936 = vpack.c.b16 %v2762, %v2760
      %v3937 = vpack.c.b16 %v2765, %v2763
      %v3938 = vpack.c.b16 %v2766, %v2764
      %v3939 = vpack.c.b16 %v2769, %v2767
      %v3940 = vpack.c.b16 %v2770, %v2768
      %v3941 = vpack.c.b16 %v2773, %v2771
      %v3942 = vpack.c.b16 %v2774, %v2772
      %v3943 = vpack.c.b16 %v2777, %v2775
      %v3944 = vpack.c.b16 %v2778, %v2776
      %v3945 = vpack.c.b16 %v2781, %v2779
      %v3946 = vpack.c.b16 %v2782, %v2780
      %v3947 = vpack.c.b16 %v2785, %v2783
      %v3948 = vpack.c.b16 %v2786, %v2784
      %v3949 = vpack.c.b16 %v2789, %v2787
      %v3950 = vpack.c.b16 %v2790, %v2788
      %v3951 = vpack.c.b16 %v2793, %v2791
      %v3952 = vpack.c.b16 %v2794, %v2792
      %v3953 = vpack.c.b16 %v2797, %v2795
      %v3954 = vpack.c.b16 %v2798, %v2796
      %v3955 = vpack.c.b16 %v2801, %v2799
      %v3956 = vpack.c.b16 %v2802, %v2800
      %v3957 = vpack.c.b16 %v2805, %v2803
      %v3958 = vpack.c.b16 %v2806, %v2804
      %v3959 = vpack.c.b16 %v2809, %v2807
      %v3960 = vpack.c.b16 %v2810, %v2808
      %v3961 = vpack.c.b16 %v2813, %v2811
      %v3962 = vpack.c.b16 %v2814, %v2812
      %v3963 = vpack.c.b16 %v2817, %v2815
      %v3964 = vpack.c.b16 %v2818, %v2816
      %v3965 = vpack.c.b16 %v2821, %v2819
      %v3966 = vpack.c.b16 %v2822, %v2820
      %v3967 = vpack.c.b16 %v2825, %v2823
      %v3968 = vpack.c.b16 %v2826, %v2824
      %v3969 = vpack.c.b16 %v2829, %v2827
      %v3970 = vpack.c.b16 %v2830, %v2828
      %v3971 = vpack.c.b16 %v2833, %v2831
      %v3972 = vpack.c.b16 %v2834, %v2832
      %v3973 = vpack.c.b16 %v2837, %v2835
      %v3974 = vpack.c.b16 %v2838, %v2836
      %v3975 = vpack.c.b16 %v2841, %v2839
      %v3976 = vpack.c.b16 %v2842, %v2840
      %v3977 = vpack.c.b16 %v2845, %v2843
      %v3978 = vpack.c.b16 %v2846, %v2844
      %v3979 = vpack.c.b16 %v2849, %v2847
      %v3980 = vpack.c.b16 %v2850, %v2848
      %v3981 = vpack.c.b16 %v2853, %v2851
      %v3982 = vpack.c.b16 %v2854, %v2852
      %v3983 = vpack.c.b16 %v2857, %v2855
      %v3984 = vpack.c.b16 %v2858, %v2856
      %v3985 = vpack.c.b16 %v2861, %v2859
      %v3986 = vpack.c.b16 %v2862, %v2860
      %v3987 = vpack.c.b16 %v2865, %v2863
      %v3988 = vpack.c.b16 %v2866, %v2864
      %v3989 = vpack.c.b16 %v2869, %v2867
      %v3990 = vpack.c.b16 %v2870, %v2868
      %v3991 = vpack.c.b16 %v2873, %v2871
      %v3992 = vpack.c.b16 %v2874, %v2872
      %v3993 = vpack.c.b16 %v2877, %v2875
      %v3994 = vpack.c.b16 %v2878, %v2876
      %v3995 = vpack.c.b16 %v2881, %v2879
      %v3996 = vpack.c.b16 %v2882, %v2880
      %v3997 = vpack.c.b16 %v2885, %v2883
      %v3998 = vpack.c.b16 %v2886, %v2884
      %v3999 = vpack.c.b16 %v2889, %v2887
      %v4000 = vpack.c.b16 %v2890, %v2888
      %v4001 = vpack.c.b16 %v2893, %v2891
      %v4002 = vpack.c.b16 %v2894, %v2892
      %v4003 = vpack.c.b16 %v2897, %v2895
      %v4004 = vpack.c.b16 %v2898, %v2896
      %v4005 = vpack.c.b16 %v2901, %v2899
      %v4006 = vpack.c.b16 %v2902, %v2900
      %v4007 = vpack.c.b16 %v2905, %v2903
      %v4008 = vpack.c.b16 %v2906, %v2904
      %v4009 = vpack.c.b16 %v2909, %v2907
      %v4010 = vpack.c.b16 %v2910, %v2908
      %v4011 = vpack.c.b16 %v2913, %v2911
      %v4012 = vpack.c.b16 %v2914, %v2912
      %v4013 = vpack.c.b16 %v2917, %v2915
      %v4014 = vpack.c.b16 %v2918, %v2916
      %v4015 = vpack.c.b16 %v2921, %v2919
      %v4016 = vpack.c.b16 %v2922, %v2920
      %v4017 = vpack.c.b16 %v2925, %v2923
      %v4018 = vpack.c.b16 %v2926, %v2924
      %v4019 = vpack.c.b16 %v2929, %v2927
      %v4020 = vpack.c.b16 %v2930, %v2928
      %v4021 = vpack.c.b16 %v2933, %v2931
      %v4022 = vpack.c.b16 %v2934, %v2932
      %v4023 = vpack.c.b16 %v2937, %v2935
      %v4024 = vpack.c.b16 %v2938, %v2936
      %v4025 = vpack.c.b16 %v2941, %v2939
      %v4026 = vpack.c.b16 %v2942, %v2940
      %v4027 = vpack.c.b16 %v2945, %v2943
      %v4028 = vpack.c.b16 %v2946, %v2944
      %v4029 = vpack.c.b16 %v2949, %v2947
      %v4030 = vpack.c.b16 %v2950, %v2948
      %v4031 = vpack.c.b16 %v2953, %v2951
      %v4032 = vpack.c.b16 %v2954, %v2952
      %v4033 = vpack.c.b16 %v2957, %v2955
      %v4034 = vpack.c.b16 %v2958, %v2956
      %v4035 = vpack.c.b16 %v2961, %v2959
      %v4036 = vpack.c.b16 %v2962, %v2960
      %v4037 = vpack.c.b16 %v2965, %v2963
      %v4038 = vpack.c.b16 %v2966, %v2964
      %v4039 = vpack.c.b16 %v2969, %v2967
      %v4040 = vpack.c.b16 %v2970, %v2968
      %v4041 = vpack.c.b16 %v2973, %v2971
      %v4042 = vpack.c.b16 %v2974, %v2972
      %v4043 = vpack.c.b16 %v2977, %v2975
      %v4044 = vpack.c.b16 %v2978, %v2976
      %v4045 = vpack.c.b16 %v2981, %v2979
      %v4046 = vpack.c.b16 %v2982, %v2980
      %v4047 = vpack.c.b16 %v2985, %v2983
      %v4048 = vpack.c.b16 %v2986, %v2984
      %v4049 = vpack.c.b16 %v2989, %v2987
      %v4050 = vpack.c.b16 %v2990, %v2988
      %v4051 = vpack.c.b16 %v2993, %v2991
      %v4052 = vpack.c.b16 %v2994, %v2992
      %v4053 = vpack.c.b16 %v2997, %v2995
      %v4054 = vpack.c.b16 %v2998, %v2996
      %v4055 = vpack.c.b16 %v3001, %v2999
      %v4056 = vpack.c.b16 %v3002, %v3000
      %v4057 = vpack.c.b16 %v3005, %v3003
      %v4058 = vpack.c.b16 %v3006, %v3004
      %v4059 = vpack.c.b16 %v3009, %v3007
      %v4060 = vpack.c.b16 %v3010, %v3008
      %v4061 = vpack.c.b16 %v3013, %v3011
      %v4062 = vpack.c.b16 %v3014, %v3012
      %v4063 = vpack.c.b16 %v3017, %v3015
      %v4064 = vpack.c.b16 %v3018, %v3016
      %v4065 = vpack.c.b16 %v3021, %v3019
      %v4066 = vpack.c.b16 %v3022, %v3020
      %v4067 = vpack.c.b16 %v3025, %v3023
      %v4068 = vpack.c.b16 %v3026, %v3024
      %v4069 = vpack.c.b16 %v3029, %v3027
      %v4070 = vpack.c.b16 %v3030, %v3028
      %v4071 = vpack.c.b16 %v3033, %v3031
      %v4072 = vpack.c.b16 %v3034, %v3032
      %v4073 = vpack.c.b16 %v3037, %v3035
      %v4074 = vpack.c.b16 %v3038, %v3036
      %v4075 = vpack.c.b16 %v3041, %v3039
      %v4076 = vpack.c.b16 %v3042, %v3040
      %v4077 = vpack.c.b16 %v3045, %v3043
      %v4078 = vpack.c.b16 %v3046, %v3044
      %v4079 = vpack.c.b16 %v3049, %v3047
      %v4080 = vpack.c.b16 %v3050, %v3048
      %v4081 = vpack.c.b16 %v3053, %v3051
      %v4082 = vpack.c.b16 %v3054, %v3052
      %v4083 = vpack.c.b16 %v3057, %v3055
      %v4084 = vpack.c.b16 %v3058, %v3056
      %v4085 = vpack.c.b16 %v3061, %v3059
      %v4086 = vpack.c.b16 %v3062, %v3060
      %v4087 = vpack.c.b16 %v3065, %v3063
      %v4088 = vpack.c.b16 %v3066, %v3064
      %v4089 = vpack.c.b16 %v3069, %v3067
      %v4090 = vpack.c.b16 %v3070, %v3068
      %v4091 = vpack.c.b16 %v3073, %v3071
      %v4092 = vpack.c.b16 %v3074, %v3072
      %v4093 = vpack.c.b16 %v3077, %v3075
      %v4094 = vpack.c.b16 %v3078, %v3076
      %v4095 = vpack.c.b16 %v3081, %v3079
      %v4096 = vpack.c.b16 %v3082, %v3080
      %v4097 = vpack.c.b16 %v3085, %v3083
      %v4098 = vpack.c.b16 %v3086, %v3084
      %v4099 = vpack.c.b16 %v3089, %v3087
      %v4100 = vpack.c.b16 %v3090, %v3088
      %v4101 = vpack.c.b16 %v3093, %v3091
      %v4102 = vpack.c.b16 %v3094, %v3092
      %v4103 = vpack.c.b16 %v3097, %v3095
      %v4104 = vpack.c.b16 %v3098, %v3096
      %v4105 = vpack.c.b16 %v3101, %v3099
      %v4106 = vpack.c.b16 %v3102, %v3100
      %v4107 = vpack.c.b16 %v3105, %v3103
      %v4108 = vpack.c.b16 %v3106, %v3104
      %v4109 = vpack.c.b16 %v3109, %v3107
      %v4110 = vpack.c.b16 %v3110, %v3108
      %v4111 = vpack.c.b16 %v3113, %v3111
      %v4112 = vpack.c.b16 %v3114, %v3112
      %v4113 = vpack.c.b16 %v3117, %v3115
      %v4114 = vpack.c.b16 %v3118, %v3116
      %v4115 = vpack.c.b16 %v3121, %v3119
      %v4116 = vpack.c.b16 %v3122, %v3120
      %v4117 = vpack.c.b16 %v3125, %v3123
      %v4118 = vpack.c.b16 %v3126, %v3124
      %v4119 = vpack.c.b16 %v3129, %v3127
      %v4120 = vpack.c.b16 %v3130, %v3128
      %v4121 = vpack.c.b16 %v3133, %v3131
      %v4122 = vpack.c.b16 %v3134, %v3132
      %v4123 = vpack.c.b16 %v3137, %v3135
      %v4124 = vpack.c.b16 %v3138, %v3136
      %v4125 = vpack.c.b16 %v3141, %v3139
      %v4126 = vpack.c.b16 %v3142, %v3140
      %v4127 = vpack.c.b16 %v3145, %v3143
      %v4128 = vpack.c.b16 %v3146, %v3144
      %v4129 = vpack.c.b16 %v3149, %v3147
      %v4130 = vpack.c.b16 %v3150, %v3148
      %v4131 = vpack.c.b16 %v3153, %v3151
      %v4132 = vpack.c.b16 %v3154, %v3152
      %v4133 = vpack.c.b16 %v3157, %v3155
      %v4134 = vpack.c.b16 %v3158, %v3156
      %v4135 = vpack.c.b16 %v3161, %v3159
      %v4136 = vpack.c.b16 %v3162, %v3160
      %v4137 = vpack.c.b16 %v3165, %v3163
      %v4138 = vpack.c.b16 %v3166, %v3164
      %v4139 = vpack.c.b16 %v3169, %v3167
      %v4140 = vpack.c.b16 %v3170, %v3168
      %v4141 = vpack.c.b16 %v3173, %v3171
      %v4142 = vpack.c.b16 %v3174, %v3172
      %v4143 = vpack.c.b16 %v3177, %v3175
      %v4144 = vpack.c.b16 %v3178, %v3176
      %v4145 = vpack.c.b16 %v3181, %v3179
      %v4146 = vpack.c.b16 %v3182, %v3180
      %v4147 = vpack.c.b16 %v3185, %v3183
      %v4148 = vpack.c.b16 %v3186, %v3184
      %v4149 = vpack.c.b16 %v3189, %v3187
      %v4150 = vpack.c.b16 %v3190, %v3188
      %v4151 = vpack.c.b16 %v3193, %v3191
      %v4152 = vpack.c.b16 %v3194, %v3192
      %v4153 = vpack.c.b16 %v3197, %v3195
      %v4154 = vpack.c.b16 %v3198, %v3196
      %v4155 = vpack.c.b16 %v3201, %v3199
      %v4156 = vpack.c.b16 %v3202, %v3200
      %v4157 = vpack.c.b16 %v3205, %v3203
      %v4158 = vpack.c.b16 %v3206, %v3204
      %v4159 = vpack.c.b16 %v3209, %v3207
      %v4160 = vpack.c.b16 %v3210, %v3208
      %v4161 = vpack.c.b16 %v3213, %v3211
      %v4162 = vpack.c.b16 %v3214, %v3212
      %v4163 = vpack.c.b16 %v3217, %v3215
      %v4164 = vpack.c.b16 %v3218, %v3216
      %v4165 = vpack.c.b16 %v3221, %v3219
      %v4166 = vpack.c.b16 %v3222, %v3220
      %v4167 = vpack.c.b16 %v3225, %v3223
      %v4168 = vpack.c.b16 %v3226, %v3224
      %v4169 = vpack.c.b16 %v3229, %v3227
      %v4170 = vpack.c.b16 %v3230, %v3228
      %v4171 = vpack.c.b16 %v3233, %v3231
      %v4172 = vpack.c.b16 %v3234, %v3232
      %v4173 = vpack.c.b16 %v3237, %v3235
      %v4174 = vpack.c.b16 %v3238, %v3236
      %v4175 = vpack.c.b16 %v3241, %v3239
      %v4176 = vpack.c.b16 %v3242, %v3240
      %v4177 = vpack.c.b16 %v3245, %v3243
      %v4178 = vpack.c.b16 %v3246, %v3244
      %v4179 = vpack.c.b16 %v3249, %v3247
      %v4180 = vpack.c.b16 %v3250, %v3248
      %v4181 = vpack.c.b16 %v3253, %v3251
      %v4182 = vpack.c.b16 %v3254, %v3252
      %v4183 = vpack.c.b16 %v3257, %v3255
      %v4184 = vpack.c.b16 %v3258, %v3256
      %v4185 = vpack.c.b16 %v3261, %v3259
      %v4186 = vpack.c.b16 %v3262, %v3260
      %v4187 = vpack.c.b16 %v3265, %v3263
      %v4188 = vpack.c.b16 %v3266, %v3264
      %v4189 = vpack.c.b16 %v3269, %v3267
      %v4190 = vpack.c.b16 %v3270, %v3268
      %v4191 = vpack.c.b16 %v3273, %v3271
      %v4192 = vpack.c.b16 %v3274, %v3272
      %v4193 = vpack.c.b16 %v3277, %v3275
      %v4194 = vpack.c.b16 %v3278, %v3276
      %v4195 = vpack.c.b16 %v3281, %v3279
      %v4196 = vpack.c.b16 %v3282, %v3280
      %v4197 = vpack.c.b16 %v3285, %v3283
      %v4198 = vpack.c.b16 %v3286, %v3284
      %v4199 = vpack.c.b16 %v3289, %v3287
      %v4200 = vpack.c.b16 %v3290, %v3288
      %v4201 = vpack.c.b16 %v3293, %v3291
      %v4202 = vpack.c.b16 %v3294, %v3292
      %v4203 = vpack.c.b16 %v3297, %v3295
      %v4204 = vpack.c.b16 %v3298, %v3296
      %v4205 = vpack.c.b16 %v3301, %v3299
      %v4206 = vpack.c.b16 %v3302, %v3300
      %v4207 = vpack.c.b16 %v3305, %v3303
      %v4208 = vpack.c.b16 %v3306, %v3304
      %v4209 = vpack.c.b16 %v3309, %v3307
      %v4210 = vpack.c.b16 %v3310, %v3308
      %v4211 = vpack.c.b16 %v3313, %v3311
      %v4212 = vpack.c.b16 %v3314, %v3312
      %v4213 = vpack.c.b16 %v3317, %v3315
      %v4214 = vpack.c.b16 %v3318, %v3316
      %v4215 = vpack.c.b16 %v3321, %v3319
      %v4216 = vpack.c.b16 %v3322, %v3320
      %v4217 = vpack.c.b16 %v3325, %v3323
      %v4218 = vpack.c.b16 %v3326, %v3324
      %v4219 = vpack.c.b16 %v3329, %v3327
      %v4220 = vpack.c.b16 %v3330, %v3328
      %v4221 = vpack.c.b16 %v3333, %v3331
      %v4222 = vpack.c.b16 %v3334, %v3332
      %v4223 = vpack.c.b16 %v3337, %v3335
      %v4224 = vpack.c.b16 %v3338, %v3336
      %v4225 = vpack.c.b16 %v3341, %v3339
      %v4226 = vpack.c.b16 %v3342, %v3340
      %v4227 = vpack.c.b16 %v3345, %v3343
      %v4228 = vpack.c.b16 %v3346, %v3344
      %v4229 = vpack.c.b16 %v3349, %v3347
      %v4230 = vpack.c.b16 %v3350, %v3348
      %v4231 = vpack.c.b16 %v3353, %v3351
      %v4232 = vpack.c.b16 %v3354, %v3352
      %v4233 = vpack.c.b16 %v3357, %v3355
      %v4234 = vpack.c.b16 %v3358, %v3356
      %v4235 = vpack.c.b16 %v3361, %v3359
      %v4236 = vpack.c.b16 %v3362, %v3360
      %v4237 = vpack.c.b16 %v3365, %v3363
      %v4238 = vpack.c.b16 %v3366, %v3364
      %v4239 = vpack.c.b16 %v3369, %v3367
      %v4240 = vpack.c.b16 %v3370, %v3368
      %v4241 = vpack.c.b16 %v3373, %v3371
      %v4242 = vpack.c.b16 %v3374, %v3372
      %v4243 = vpack.c.b16 %v3377, %v3375
      %v4244 = vpack.c.b16 %v3378, %v3376
      %v4245 = vpack.c.b16 %v3381, %v3379
      %v4246 = vpack.c.b16 %v3382, %v3380
      %v4247 = vpack.c.b16 %v3385, %v3383
      %v4248 = vpack.c.b16 %v3386, %v3384
      %v4249 = vpack.c.b16 %v3389, %v3387
      %v4250 = vpack.c.b16 %v3390, %v3388
      %v4251 = vpack.c.b16 %v3393, %v3391
      %v4252 = vpack.c.b16 %v3394, %v3392
      %v4253 = vpack.c.b16 %v3397, %v3395
      %v4254 = vpack.c.b16 %v3398, %v3396
      %v4255 = vpack.c.b16 %v3401, %v3399
      %v4256 = vpack.c.b16 %v3402, %v3400
      %v4257 = vpack.c.b16 %v3405, %v3403
      %v4258 = vpack.c.b16 %v3406, %v3404
      %v4259 = vpack.c.b16 %v3409, %v3407
      %v4260 = vpack.c.b16 %v3410, %v3408
      %v4261 = vpack.c.b16 %v3413, %v3411
      %v4262 = vpack.c.b16 %v3414, %v3412
      %v4263 = vpack.c.b16 %v3417, %v3415
      %v4264 = vpack.c.b16 %v3418, %v3416
      %v4265 = vpack.c.b16 %v3421, %v3419
      %v4266 = vpack.c.b16 %v3422, %v3420
      %v4267 = vpack.c.b16 %v3425, %v3423
      %v4268 = vpack.c.b16 %v3426, %v3424
      %v4269 = vpack.c.b16 %v3429, %v3427
      %v4270 = vpack.c.b16 %v3430, %v3428
      %v4271 = vpack.c.b16 %v3433, %v3431
      %v4272 = vpack.c.b16 %v3434, %v3432
      %v4273 = vpack.c.b16 %v3437, %v3435
      %v4274 = vpack.c.b16 %v3438, %v3436
      %v4275 = vpack.c.b16 %v3441, %v3439
      %v4276 = vpack.c.b16 %v3442, %v3440
      %v4277 = vpack.c.b16 %v3445, %v3443
      %v4278 = vpack.c.b16 %v3446, %v3444
      %v4279 = vpack.c.b16 %v3449, %v3447
      %v4280 = vpack.c.b16 %v3450, %v3448
      %v4281 = vpack.c.b16 %v3453, %v3451
      %v4282 = vpack.c.b16 %v3454, %v3452
      %v4283 = vpack.c.b16 %v3457, %v3455
      %v4284 = vpack.c.b16 %v3458, %v3456
      %v4285 = vpack.c.b16 %v3461, %v3459
      %v4286 = vpack.c.b16 %v3462, %v3460
      %v4287 = vpack.c.b16 %v3465, %v3463
      %v4288 = vpack.c.b16 %v3466, %v3464
      %v4289 = vpack.c.b16 %v3469, %v3467
      %v4290 = vpack.c.b16 %v3470, %v3468
      %v4291 = vpack.c.b16 %v3473, %v3471
      %v4292 = vpack.c.b16 %v3474, %v3472
      %v4293 = vpack.c.b16 %v3477, %v3475
      %v4294 = vpack.c.b16 %v3478, %v3476
      %v4295 = vpack.c.b16 %v3481, %v3479
      %v4296 = vpack.c.b16 %v3482, %v3480
      %v4297 = vpack.c.b16 %v3485, %v3483
      %v4298 = vpack.c.b16 %v3486, %v3484
      %v4299 = vpack.c.b16 %v3489, %v3487
      %v4300 = vpack.c.b16 %v3490, %v3488
      %v4301 = vpack.c.b16 %v3493, %v3491
      %v4302 = vpack.c.b16 %v3494, %v3492
      %v4303 = vpack.c.b16 %v3497, %v3495
      %v4304 = vpack.c.b16 %v3498, %v3496
      %v4305 = vpack.c.b16 %v3501, %v3499
      %v4306 = vpack.c.b16 %v3502, %v3500
      %v4307 = vpack.c.b16 %v3505, %v3503
      %v4308 = vpack.c.b16 %v3506, %v3504
      %v4309 = vpack.c.b16 %v3509, %v3507
      %v4310 = vpack.c.b16 %v3510, %v3508
      %v4311 = vpack.c.b16 %v3513, %v3511
      %v4312 = vpack.c.b16 %v3514, %v3512
      %v4313 = vpack.c.b16 %v3517, %v3515
      %v4314 = vpack.c.b16 %v3518, %v3516
      %v4315 = vpack.c.b16 %v3521, %v3519
      %v4316 = vpack.c.b16 %v3522, %v3520
      %v4317 = vpack.c.b16 %v3525, %v3523
      %v4318 = vpack.c.b16 %v3526, %v3524
      %v4319 = vpack.c.b16 %v3529, %v3527
      %v4320 = vpack.c.b16 %v3530, %v3528
      %v4321 = vpack.c.b16 %v3533, %v3531
      %v4322 = vpack.c.b16 %v3534, %v3532
      %v4323 = vpack.c.b16 %v3537, %v3535
      %v4324 = vpack.c.b16 %v3538, %v3536
      %v4325 = vpack.c.b16 %v3541, %v3539
      %v4326 = vpack.c.b16 %v3542, %v3540
      %v4327 = vpack.c.b16 %v3545, %v3543
      %v4328 = vpack.c.b16 %v3546, %v3544
      %v4329 = vpack.c.b16 %v3549, %v3547
      %v4330 = vpack.c.b16 %v3550, %v3548
      %v4331 = vpack.c.b16 %v3553, %v3551
      %v4332 = vpack.c.b16 %v3554, %v3552
      %v4333 = vpack.c.b16 %v3557, %v3555
      %v4334 = vpack.c.b16 %v3558, %v3556
      %v4335 = vpack.c.b16 %v3561, %v3559
      %v4336 = vpack.c.b16 %v3562, %v3560
      %v4337 = vpack.c.b16 %v3565, %v3563
      %v4338 = vpack.c.b16 %v3566, %v3564
      %v4339 = vpack.c.b16 %v3569, %v3567
      %v4340 = vpack.c.b16 %v3570, %v3568
      %v4341 = vpack.c.b16 %v3573, %v3571
      %v4342 = vpack.c.b16 %v3574, %v3572
      %v4343 = vpack.c.b16 %v3577, %v3575
      %v4344 = vpack.c.b16 %v3578, %v3576
      %v4345 = vpack.c.b16 %v3581, %v3579
      %v4346 = vpack.c.b16 %v3582, %v3580
      %v4347 = vpack.c.b16 %v3585, %v3583
      %v4348 = vpack.c.b16 %v3586, %v3584
      %v4349 = vpack.c.b16 %v3589, %v3587
      %v4350 = vpack.c.b16 %v3590, %v3588
      %v4351 = vpack.c.b16 %v3593, %v3591
      %v4352 = vpack.c.b16 %v3594, %v3592
      %v4353 = vpack.c.b16 %v3597, %v3595
      %v4354 = vpack.c.b16 %v3598, %v3596
      %v4355 = vpack.c.b16 %v3601, %v3599
      %v4356 = vpack.c.b16 %v3602, %v3600
      %v4357 = vpack.c.b16 %v3605, %v3603
      %v4358 = vpack.c.b16 %v3606, %v3604
      %v4359 = vpack.c.b16 %v3609, %v3607
      %v4360 = vpack.c.b16 %v3610, %v3608
      %v4361 = vpack.c.b16 %v3613, %v3611
      %v4362 = vpack.c.b16 %v3614, %v3612
      %v4363 = vpack.c.b16 %v3617, %v3615
      %v4364 = vpack.c.b16 %v3618, %v3616
      %v4365 = vpack.c.b16 %v3621, %v3619
      %v4366 = vpack.c.b16 %v3622, %v3620
      %v4367 = vpack.c.b16 %v3625, %v3623
      %v4368 = vpack.c.b16 %v3626, %v3624
      %v4369 = vpack.c.b16 %v3629, %v3627
      %v4370 = vpack.c.b16 %v3630, %v3628
      %v4371 = vpack.c.b16 %v3633, %v3631
      %v4372 = vpack.c.b16 %v3634, %v3632
      %v4373 = vpack.c.b16 %v3637, %v3635
      %v4374 = vpack.c.b16 %v3638, %v3636
      %v4375 = vpack.c.b16 %v3641, %v3639
      %v4376 = vpack.c.b16 %v3642, %v3640
      %v4377 = vpack.c.b16 %v3645, %v3643
      %v4378 = vpack.c.b16 %v3646, %v3644
      %v4379 = vpack.c.b16 %v3649, %v3647
      %v4380 = vpack.c.b16 %v3650, %v3648
      %v4381 = vpack.c.b16 %v3653, %v3651
      %v4382 = vpack.c.b16 %v3654, %v3652
      %v4383 = vpack.c.b16 %v3657, %v3655
      %v4384 = vpack.c.b16 %v3658, %v3656
      %v4385 = vpack.c.b16 %v3661, %v3659
      %v4386 = vpack.c.b16 %v3662, %v3660
      %v4387 = vpack.c.b16 %v3665, %v3663
      %v4388 = vpack.c.b16 %v3666, %v3664
      %v4389 = vpack.c.b16 %v3669, %v3667
      %v4390 = vpack.c.b16 %v3670, %v3668
      %v4391 = vpack.c.b16 %v3673, %v3671
      %v4392 = vpack.c.b16 %v3674, %v3672
      %v4393 = vpack.c.b16 %v3677, %v3675
      %v4394 = vpack.c.b16 %v3678, %v3676
      %v4395 = vpack.c.b16 %v3681, %v3679
      %v4396 = vpack.c.b16 %v3682, %v3680
      %v4397 = vpack.c.b16 %v3685, %v3683
      %v4398 = vpack.c.b16 %v3686, %v3684
      %v4399 = vpack.c.b16 %v3689, %v3687
      %v4400 = vpack.c.b16 %v3690, %v3688
      %v4401 = vpack.c.b16 %v3693, %v3691
      %v4402 = vpack.c.b16 %v3694, %v3692
      %v4403 = vpack.c.b16 %v3697, %v3695
      %v4404 = vpack.c.b16 %v3698, %v3696
      %v4405 = vpack.c.b16 %v3701, %v3699
      %v4406 = vpack.c.b16 %v3702, %v3700
      %v4407 = vpack.c.b16 %v3705, %v3703
      %v4408 = vpack.c.b16 %v3706, %v3704
      %v4409 = vpack.c.b16 %v3709, %v3707
      %v4410 = vpack.c.b16 %v3710, %v3708
      %v4411 = vpack.c.b16 %v3713, %v3711
      %v4412 = vpack.c.b16 %v3714, %v3712
      %v4413 = vpack.c.b16 %v3717, %v3715
      %v4414 = vpack.c.b16 %v3718, %v3716
      %v4415 = vpack.c.b16 %v3721, %v3719
      %v4416 = vpack.c.b16 %v3722, %v3720
      %v4417 = vpack.c.b16 %v3725, %v3723
      %v4418 = vpack.c.b16 %v3726, %v3724
      %v4419 = vpack.c.b16 %v3729, %v3727
      %v4420 = vpack.c.b16 %v3730, %v3728
      %v4421 = vpack.c.b16 %v3733, %v3731
      %v4422 = vpack.c.b16 %v3734, %v3732
      %v4423 = vpack.c.b16 %v3737, %v3735
      %v4424 = vpack.c.b16 %v3738, %v3736
      %v4425 = vpack.c.b16 %v3741, %v3739
      %v4426 = vpack.c.b16 %v3742, %v3740
      %v4427 = vpack.c.b16 %v3745, %v3743
      %v4428 = vpack.c.b16 %v3746, %v3744
      %v4429 = vpack.c.b16 %v3749, %v3747
      %v4430 = vpack.c.b16 %v3750, %v3748
      %v4431 = vpack.c.b16 %v3753, %v3751
      %v4432 = vpack.c.b16 %v3754, %v3752
      %v4433 = vpack.c.b16 %v3757, %v3755
      %v4434 = vpack.c.b16 %v3758, %v3756
      %v4435 = vpack.c.b16 %v3761, %v3759
      %v4436 = vpack.c.b16 %v3762, %v3760
      %v4437 = vpack.c.b16 %v3765, %v3763
      %v4438 = vpack.c.b16 %v3766, %v3764
      %v4439 = vpack.c.b16 %v3769, %v3767
      %v4440 = vpack.c.b16 %v3770, %v3768
      %v4441 = vpack.c.b16 %v3773, %v3771
      %v4442 = vpack.c.b16 %v3774, %v3772
      %v4443 = vpack.c.b16 %v3777, %v3775
      %v4444 = vpack.c.b16 %v3778, %v3776
      %v4445 = vpack.c.b16 %v3781, %v3779
      %v4446 = vpack.c.b16 %v3782, %v3780
      %v4447 = vpack.c.b16 %v3785, %v3783
      %v4448 = vpack.c.b16 %v3786, %v3784
      %v4449 = vpack.c.b16 %v3789, %v3787
      %v4450 = vpack.c.b16 %v3790, %v3788
      %v4451 = vpack.c.b16 %v3793, %v3791
      %v4452 = vpack.c.b16 %v3794, %v3792
      %v4453 = vpack.c.b16 %v3797, %v3795
      %v4454 = vpack.c.b16 %v3798, %v3796
      %v4455 = vpack.c.b16 %v3801, %v3799
      %v4456 = vpack.c.b16 %v3802, %v3800
      %v4457 = vpack.c.b16 %v3805, %v3803
      %v4458 = vpack.c.b16 %v3806, %v3804
      %v4459 = vpack.c.b16 %v3809, %v3807
      %v4460 = vpack.c.b16 %v3810, %v3808
      %v4461 = vpack.c.b16 %v3813, %v3811
      %v4462 = vpack.c.b16 %v3814, %v3812
      %vm5111 = vcmask 523264
      %v5113 = vsel %vm5111, %v1587, 0
      %v5116 = vsel %vm5111, %v1628, 0
      %v5119 = vsel %vm5111, %v1669, 0
      %v5122 = vsel %vm5111, %v1710, 0
      %5124 = vmatprep.subr.bf16.mxu0 %v3816
      %5125 = vmatpush1.bf16.msra.mxu0 %v3815
      %5126 = vmatprep.subr.bf16.mxu0 %v3818
      %5127 = vmatpush1.bf16.msra.mxu0 %v3817
      %5128 = vmatprep.subr.bf16.mxu0 %v3820
      %5129 = vmatpush1.bf16.msra.mxu0 %v3819
      %5130 = vmatprep.subr.bf16.mxu0 %v3822
      %5131 = vmatpush1.bf16.msra.mxu0 %v3821
      %5132 = vmatprep.subr.bf16.mxu0 %v3824
      %5133 = vmatpush1.bf16.msra.mxu0 %v3823
      %5134 = vmatprep.subr.bf16.mxu0 %v3826
      %5135 = vmatpush1.bf16.msra.mxu0 %v3825
      %5136 = vmatprep.subr.bf16.mxu0 %v3828
      %5137 = vmatpush1.bf16.msra.mxu0 %v3827
      %5138 = vmatprep.subr.bf16.mxu0 %v3830
      %5139 = vmatpush1.bf16.msra.mxu0 %v3829
      %5140 = vmatprep.subr.bf16.mxu0 %v3832
      %5141 = vmatpush1.bf16.msra.mxu0 %v3831
      %5142 = vmatprep.subr.bf16.mxu0 %v3834
      %5143 = vmatpush1.bf16.msra.mxu0 %v3833
      %5144 = vmatprep.subr.bf16.mxu0 %v3836
      %5145 = vmatpush1.bf16.msra.mxu0 %v3835
      %5146 = vmatprep.subr.bf16.mxu0 %v3838
      %5147 = vmatpush1.bf16.msra.mxu0 %v3837
      %5148 = vmatprep.subr.bf16.mxu0 %v3840
      %5149 = vmatpush1.bf16.msra.mxu0 %v3839
      %5150 = vmatprep.subr.bf16.mxu0 %v3842
      %5151 = vmatpush1.bf16.msra.mxu0 %v3841
      %5152 = vmatprep.subr.bf16.mxu0 %v3844
      %5153 = vmatpush1.bf16.msra.mxu0 %v3843
      %5154 = vmatprep.subr.bf16.mxu0 %v3846
      %5155 = vmatpush1.bf16.msra.mxu0 %v3845
      %5156 = vmatprep.mubr.bf16.mxu0 %v1548
      %5157 = vmatmul.mubr.bf16.gmra.mrb[0].mxu0 %v1547
      %v5158 = vpop.f32.mrb[0].mxu0
      %v5159 = vadd.f32 %v1044, %v5158
      %v5160 = vpop.f32.mrb[0].mxu0
      %v5161 = vadd.f32 %v1048, %v5160
      %v5162 = vpop.f32.mrb[0].mxu0
      %v5163 = vadd.f32 %v1044, %v5162
      %v5164 = vpop.f32.mrb[0].mxu0
      %v5165 = vadd.f32 %v1048, %v5164
      %5166 = vmatprep.mubr.bf16.mxu0 %v1589
      %5167 = vmatmul.mubr.bf16.gmra.mrb[0].mxu0 %v1588
      %v5168 = vpop.f32.mrb[0].mxu0
      %v5169 = vadd.f32 %v1044, %v5168
      %v5170 = vpop.f32.mrb[0].mxu0
      %v5171 = vadd.f32 %v1048, %v5170
      %v5172 = vpop.f32.mrb[0].mxu0
      %v5173 = vadd.f32 %v1044, %v5172
      %v5174 = vpop.f32.mrb[0].mxu0
      %v5175 = vadd.f32 %v1048, %v5174
      %5176 = vmatprep.mubr.bf16.mxu0 %v1630
      %5177 = vmatmul.mubr.bf16.gmra.mrb[0].mxu0 %v1629
      %v5178 = vpop.f32.mrb[0].mxu0
      %v5179 = vadd.f32 %v1044, %v5178
      %v5180 = vpop.f32.mrb[0].mxu0
      %v5181 = vadd.f32 %v1048, %v5180
      %v5182 = vpop.f32.mrb[0].mxu0
      %v5183 = vadd.f32 %v1044, %v5182
      %v5184 = vpop.f32.mrb[0].mxu0
      %v5185 = vadd.f32 %v1048, %v5184
      %5186 = vmatprep.mubr.bf16.mxu0 %v1671
      %5187 = vmatmul.mubr.bf16.gmra.mrb[0].mxu0 %v1670
      %v5188 = vpop.f32.mrb[0].mxu0
      %v5189 = vadd.f32 %v1044, %v5188
      %v5190 = vpop.f32.mrb[0].mxu0
      %v5191 = vadd.f32 %v1048, %v5190
      %v5192 = vpop.f32.mrb[0].mxu0
      %v5193 = vadd.f32 %v1044, %v5192
      %v5194 = vpop.f32.mrb[0].mxu0
      %v5195 = vadd.f32 %v1048, %v5194
      %5196 = vdwg.mxu0
      %5197 = vmatprep.subr.bf16.mxu0 %v3848
      %5198 = vmatpush1.bf16.msra.mxu0 %v3847
      %5199 = vmatprep.subr.bf16.mxu0 %v3850
      %5200 = vmatpush1.bf16.msra.mxu0 %v3849
      %5201 = vmatprep.subr.bf16.mxu0 %v3852
      %5202 = vmatpush1.bf16.msra.mxu0 %v3851
      %5203 = vmatprep.subr.bf16.mxu0 %v3854
      %5204 = vmatpush1.bf16.msra.mxu0 %v3853
      %5205 = vmatprep.subr.bf16.mxu0 %v3856
      %5206 = vmatpush1.bf16.msra.mxu0 %v3855
      %5207 = vmatprep.subr.bf16.mxu0 %v3858
      %5208 = vmatpush1.bf16.msra.mxu0 %v3857
      %5209 = vmatprep.subr.bf16.mxu0 %v3860
      %5210 = vmatpush1.bf16.msra.mxu0 %v3859
      %5211 = vmatprep.subr.bf16.mxu0 %v3862
      %5212 = vmatpush1.bf16.msra.mxu0 %v3861
      %5213 = vmatprep.subr.bf16.mxu0 %v3864
      %5214 = vmatpush1.bf16.msra.mxu0 %v3863
      %5215 = vmatprep.subr.bf16.mxu0 %v3866
      %5216 = vmatpush1.bf16.msra.mxu0 %v3865
      %5217 = vmatprep.subr.bf16.mxu0 %v3868
      %5218 = vmatpush1.bf16.msra.mxu0 %v3867
      %5219 = vmatprep.subr.bf16.mxu0 %v3870
      %5220 = vmatpush1.bf16.msra.mxu0 %v3869
      %5221 = vmatprep.subr.bf16.mxu0 %v3872
      %5222 = vmatpush1.bf16.msra.mxu0 %v3871
      %5223 = vmatprep.subr.bf16.mxu0 %v3874
      %5224 = vmatpush1.bf16.msra.mxu0 %v3873
      %5225 = vmatprep.subr.bf16.mxu0 %v3876
      %5226 = vmatpush1.bf16.msra.mxu0 %v3875
      %5227 = vmatprep.subr.bf16.mxu0 %v3878
      %5228 = vmatpush1.bf16.msra.mxu0 %v3877
      %5229 = vmatprep.mubr.bf16.mxu0 %v1550
      %5230 = vmatmul.mubr.bf16.gmra.mrb[0].mxu0 %v1549
      %v5231 = vpop.f32.mrb[0].mxu0
      %v5232 = vadd.f32 %v5159, %v5231
      %v5233 = vpop.f32.mrb[0].mxu0
      %v5234 = vadd.f32 %v5161, %v5233
      %v5235 = vpop.f32.mrb[0].mxu0
      %v5236 = vadd.f32 %v5163, %v5235
      %v5237 = vpop.f32.mrb[0].mxu0
      %v5238 = vadd.f32 %v5165, %v5237
      %5239 = vmatprep.mubr.bf16.mxu0 %v1591
      %5240 = vmatmul.mubr.bf16.gmra.mrb[0].mxu0 %v1590
      %v5241 = vpop.f32.mrb[0].mxu0
      %v5242 = vadd.f32 %v5169, %v5241
      %v5243 = vpop.f32.mrb[0].mxu0
      %v5244 = vadd.f32 %v5171, %v5243
      %v5245 = vpop.f32.mrb[0].mxu0
      %v5246 = vadd.f32 %v5173, %v5245
      %v5247 = vpop.f32.mrb[0].mxu0
      %v5248 = vadd.f32 %v5175, %v5247
      %5249 = vmatprep.mubr.bf16.mxu0 %v1632
      %5250 = vmatmul.mubr.bf16.gmra.mrb[0].mxu0 %v1631
      %v5251 = vpop.f32.mrb[0].mxu0
      %v5252 = vadd.f32 %v5179, %v5251
      %v5253 = vpop.f32.mrb[0].mxu0
      %v5254 = vadd.f32 %v5181, %v5253
      %v5255 = vpop.f32.mrb[0].mxu0
      %v5256 = vadd.f32 %v5183, %v5255
      %v5257 = vpop.f32.mrb[0].mxu0
      %v5258 = vadd.f32 %v5185, %v5257
      %5259 = vmatprep.mubr.bf16.mxu0 %v1673
      %5260 = vmatmul.mubr.bf16.gmra.mrb[0].mxu0 %v1672
      %v5261 = vpop.f32.mrb[0].mxu0
      %v5262 = vadd.f32 %v5189, %v5261
      %v5263 = vpop.f32.mrb[0].mxu0
      %v5264 = vadd.f32 %v5191, %v5263
      %v5265 = vpop.f32.mrb[0].mxu0
      %v5266 = vadd.f32 %v5193, %v5265
      %v5267 = vpop.f32.mrb[0].mxu0
      %v5268 = vadd.f32 %v5195, %v5267
      %5269 = vdwg.mxu0
      %5270 = vmatprep.subr.bf16.mxu0 %v3880
      %5271 = vmatpush1.bf16.msra.mxu0 %v3879
      %5272 = vmatprep.subr.bf16.mxu0 %v3882
      %5273 = vmatpush1.bf16.msra.mxu0 %v3881
      %5274 = vmatprep.subr.bf16.mxu0 %v3884
      %5275 = vmatpush1.bf16.msra.mxu0 %v3883
      %5276 = vmatprep.subr.bf16.mxu0 %v3886
      %5277 = vmatpush1.bf16.msra.mxu0 %v3885
      %5278 = vmatprep.subr.bf16.mxu0 %v3888
      %5279 = vmatpush1.bf16.msra.mxu0 %v3887
      %5280 = vmatprep.subr.bf16.mxu0 %v3890
      %5281 = vmatpush1.bf16.msra.mxu0 %v3889
      %5282 = vmatprep.subr.bf16.mxu0 %v3892
      %5283 = vmatpush1.bf16.msra.mxu0 %v3891
      %5284 = vmatprep.subr.bf16.mxu0 %v3894
      %5285 = vmatpush1.bf16.msra.mxu0 %v3893
      %5286 = vmatprep.subr.bf16.mxu0 %v3896
      %5287 = vmatpush1.bf16.msra.mxu0 %v3895
      %5288 = vmatprep.subr.bf16.mxu0 %v3898
      %5289 = vmatpush1.bf16.msra.mxu0 %v3897
      %5290 = vmatprep.subr.bf16.mxu0 %v3900
      %5291 = vmatpush1.bf16.msra.mxu0 %v3899
      %5292 = vmatprep.subr.bf16.mxu0 %v3902
      %5293 = vmatpush1.bf16.msra.mxu0 %v3901
      %5294 = vmatprep.subr.bf16.mxu0 %v3904
      %5295 = vmatpush1.bf16.msra.mxu0 %v3903
      %5296 = vmatprep.subr.bf16.mxu0 %v3906
      %5297 = vmatpush1.bf16.msra.mxu0 %v3905
      %5298 = vmatprep.subr.bf16.mxu0 %v3908
      %5299 = vmatpush1.bf16.msra.mxu0 %v3907
      %5300 = vmatprep.subr.bf16.mxu0 %v3910
      %5301 = vmatpush1.bf16.msra.mxu0 %v3909
      %5302 = vmatprep.mubr.bf16.mxu0 %v1552
      %5303 = vmatmul.mubr.bf16.gmra.mrb[0].mxu0 %v1551
      %v5304 = vpop.f32.mrb[0].mxu0
      %v5305 = vadd.f32 %v5232, %v5304
      %v5306 = vpop.f32.mrb[0].mxu0
      %v5307 = vadd.f32 %v5234, %v5306
      %v5308 = vpop.f32.mrb[0].mxu0
      %v5309 = vadd.f32 %v5236, %v5308
      %v5310 = vpop.f32.mrb[0].mxu0
      %v5311 = vadd.f32 %v5238, %v5310
      %5312 = vmatprep.mubr.bf16.mxu0 %v1593
      %5313 = vmatmul.mubr.bf16.gmra.mrb[0].mxu0 %v1592
      %v5314 = vpop.f32.mrb[0].mxu0
      %v5315 = vadd.f32 %v5242, %v5314
      %v5316 = vpop.f32.mrb[0].mxu0
      %v5317 = vadd.f32 %v5244, %v5316
      %v5318 = vpop.f32.mrb[0].mxu0
      %v5319 = vadd.f32 %v5246, %v5318
      %v5320 = vpop.f32.mrb[0].mxu0
      %v5321 = vadd.f32 %v5248, %v5320
      %5322 = vmatprep.mubr.bf16.mxu0 %v1634
      %5323 = vmatmul.mubr.bf16.gmra.mrb[0].mxu0 %v1633
      %v5324 = vpop.f32.mrb[0].mxu0
      %v5325 = vadd.f32 %v5252, %v5324
      %v5326 = vpop.f32.mrb[0].mxu0
      %v5327 = vadd.f32 %v5254, %v5326
      %v5328 = vpop.f32.mrb[0].mxu0
      %v5329 = vadd.f32 %v5256, %v5328
      %v5330 = vpop.f32.mrb[0].mxu0
      %v5331 = vadd.f32 %v5258, %v5330
      %5332 = vmatprep.mubr.bf16.mxu0 %v1675
      %5333 = vmatmul.mubr.bf16.gmra.mrb[0].mxu0 %v1674
      %v5334 = vpop.f32.mrb[0].mxu0
      %v5335 = vadd.f32 %v5262, %v5334
      %v5336 = vpop.f32.mrb[0].mxu0
      %v5337 = vadd.f32 %v5264, %v5336
      %v5338 = vpop.f32.mrb[0].mxu0
      %v5339 = vadd.f32 %v5266, %v5338
      %v5340 = vpop.f32.mrb[0].mxu0
      %v5341 = vadd.f32 %v5268, %v5340
      %5342 = vdwg.mxu0
      %5343 = vmatprep.subr.bf16.mxu0 %v3912
      %5344 = vmatpush1.bf16.msra.mxu0 %v3911
      %5345 = vmatprep.subr.bf16.mxu0 %v3914
      %5346 = vmatpush1.bf16.msra.mxu0 %v3913
      %5347 = vmatprep.subr.bf16.mxu0 %v3916
      %5348 = vmatpush1.bf16.msra.mxu0 %v3915
      %5349 = vmatprep.subr.bf16.mxu0 %v3918
      %5350 = vmatpush1.bf16.msra.mxu0 %v3917
      %5351 = vmatprep.subr.bf16.mxu0 %v3920
      %5352 = vmatpush1.bf16.msra.mxu0 %v3919
      %5353 = vmatprep.subr.bf16.mxu0 %v3922
      %5354 = vmatpush1.bf16.msra.mxu0 %v3921
      %5355 = vmatprep.subr.bf16.mxu0 %v3924
      %5356 = vmatpush1.bf16.msra.mxu0 %v3923
      %5357 = vmatprep.subr.bf16.mxu0 %v3926
      %5358 = vmatpush1.bf16.msra.mxu0 %v3925
      %5359 = vmatprep.subr.bf16.mxu0 %v3928
      %5360 = vmatpush1.bf16.msra.mxu0 %v3927
      %5361 = vmatprep.subr.bf16.mxu0 %v3930
      %5362 = vmatpush1.bf16.msra.mxu0 %v3929
      %5363 = vmatprep.subr.bf16.mxu0 %v3932
      %5364 = vmatpush1.bf16.msra.mxu0 %v3931
      %5365 = vmatprep.subr.bf16.mxu0 %v3934
      %5366 = vmatpush1.bf16.msra.mxu0 %v3933
      %5367 = vmatprep.subr.bf16.mxu0 %v3936
      %5368 = vmatpush1.bf16.msra.mxu0 %v3935
      %5369 = vmatprep.subr.bf16.mxu0 %v3938
      %5370 = vmatpush1.bf16.msra.mxu0 %v3937
      %5371 = vmatprep.subr.bf16.mxu0 %v3940
      %5372 = vmatpush1.bf16.msra.mxu0 %v3939
      %5373 = vmatprep.subr.bf16.mxu0 %v3942
      %5374 = vmatpush1.bf16.msra.mxu0 %v3941
      %5375 = vmatprep.mubr.bf16.mxu0 %v1554
      %5376 = vmatmul.mubr.bf16.gmra.mrb[0].mxu0 %v1553
      %v5377 = vpop.f32.mrb[0].mxu0
      %v5378 = vadd.f32 %v5305, %v5377
      %v5379 = vpop.f32.mrb[0].mxu0
      %v5380 = vadd.f32 %v5307, %v5379
      %v5381 = vpop.f32.mrb[0].mxu0
      %v5382 = vadd.f32 %v5309, %v5381
      %v5383 = vpop.f32.mrb[0].mxu0
      %v5384 = vadd.f32 %v5311, %v5383
      %5385 = vmatprep.mubr.bf16.mxu0 %v1595
      %5386 = vmatmul.mubr.bf16.gmra.mrb[0].mxu0 %v1594
      %v5387 = vpop.f32.mrb[0].mxu0
      %v5388 = vadd.f32 %v5315, %v5387
      %v5389 = vpop.f32.mrb[0].mxu0
      %v5390 = vadd.f32 %v5317, %v5389
      %v5391 = vpop.f32.mrb[0].mxu0
      %v5392 = vadd.f32 %v5319, %v5391
      %v5393 = vpop.f32.mrb[0].mxu0
      %v5394 = vadd.f32 %v5321, %v5393
      %5395 = vmatprep.mubr.bf16.mxu0 %v1636
      %5396 = vmatmul.mubr.bf16.gmra.mrb[0].mxu0 %v1635
      %v5397 = vpop.f32.mrb[0].mxu0
      %v5398 = vadd.f32 %v5325, %v5397
      %v5399 = vpop.f32.mrb[0].mxu0
      %v5400 = vadd.f32 %v5327, %v5399
      %v5401 = vpop.f32.mrb[0].mxu0
      %v5402 = vadd.f32 %v5329, %v5401
      %v5403 = vpop.f32.mrb[0].mxu0
      %v5404 = vadd.f32 %v5331, %v5403
      %5405 = vmatprep.mubr.bf16.mxu0 %v1677
      %5406 = vmatmul.mubr.bf16.gmra.mrb[0].mxu0 %v1676
      %v5407 = vpop.f32.mrb[0].mxu0
      %v5408 = vadd.f32 %v5335, %v5407
      %v5409 = vpop.f32.mrb[0].mxu0
      %v5410 = vadd.f32 %v5337, %v5409
      %v5411 = vpop.f32.mrb[0].mxu0
      %v5412 = vadd.f32 %v5339, %v5411
      %v5413 = vpop.f32.mrb[0].mxu0
      %v5414 = vadd.f32 %v5341, %v5413
      %5415 = vdwg.mxu0
      %5416 = vmatprep.subr.bf16.mxu0 %v3944
      %5417 = vmatpush1.bf16.msra.mxu0 %v3943
      %5418 = vmatprep.subr.bf16.mxu0 %v3946
      %5419 = vmatpush1.bf16.msra.mxu0 %v3945
      %5420 = vmatprep.subr.bf16.mxu0 %v3948
      %5421 = vmatpush1.bf16.msra.mxu0 %v3947
      %5422 = vmatprep.subr.bf16.mxu0 %v3950
      %5423 = vmatpush1.bf16.msra.mxu0 %v3949
      %5424 = vmatprep.subr.bf16.mxu0 %v3952
      %5425 = vmatpush1.bf16.msra.mxu0 %v3951
      %5426 = vmatprep.subr.bf16.mxu0 %v3954
      %5427 = vmatpush1.bf16.msra.mxu0 %v3953
      %5428 = vmatprep.subr.bf16.mxu0 %v3956
      %5429 = vmatpush1.bf16.msra.mxu0 %v3955
      %5430 = vmatprep.subr.bf16.mxu0 %v3958
      %5431 = vmatpush1.bf16.msra.mxu0 %v3957
      %5432 = vmatprep.subr.bf16.mxu0 %v3960
      %5433 = vmatpush1.bf16.msra.mxu0 %v3959
      %5434 = vmatprep.subr.bf16.mxu0 %v3962
      %5435 = vmatpush1.bf16.msra.mxu0 %v3961
      %5436 = vmatprep.subr.bf16.mxu0 %v3964
      %5437 = vmatpush1.bf16.msra.mxu0 %v3963
      %5438 = vmatprep.subr.bf16.mxu0 %v3966
      %5439 = vmatpush1.bf16.msra.mxu0 %v3965
      %5440 = vmatprep.subr.bf16.mxu0 %v3968
      %5441 = vmatpush1.bf16.msra.mxu0 %v3967
      %5442 = vmatprep.subr.bf16.mxu0 %v3970
      %5443 = vmatpush1.bf16.msra.mxu0 %v3969
      %5444 = vmatprep.subr.bf16.mxu0 %v3972
      %5445 = vmatpush1.bf16.msra.mxu0 %v3971
      %5446 = vmatprep.subr.bf16.mxu0 %v3974
      %5447 = vmatpush1.bf16.msra.mxu0 %v3973
      %5448 = vmatprep.mubr.bf16.mxu0 %v1556
      %5449 = vmatmul.mubr.bf16.gmra.mrb[0].mxu0 %v1555
      %v5450 = vpop.f32.mrb[0].mxu0
      %v5451 = vadd.f32 %v5378, %v5450
      %v5452 = vpop.f32.mrb[0].mxu0
      %v5453 = vadd.f32 %v5380, %v5452
      %v5454 = vpop.f32.mrb[0].mxu0
      %v5455 = vadd.f32 %v5382, %v5454
      %v5456 = vpop.f32.mrb[0].mxu0
      %v5457 = vadd.f32 %v5384, %v5456
      %5458 = vmatprep.mubr.bf16.mxu0 %v1597
      %5459 = vmatmul.mubr.bf16.gmra.mrb[0].mxu0 %v1596
      %v5460 = vpop.f32.mrb[0].mxu0
      %v5461 = vadd.f32 %v5388, %v5460
      %v5462 = vpop.f32.mrb[0].mxu0
      %v5463 = vadd.f32 %v5390, %v5462
      %v5464 = vpop.f32.mrb[0].mxu0
      %v5465 = vadd.f32 %v5392, %v5464
      %v5466 = vpop.f32.mrb[0].mxu0
      %v5467 = vadd.f32 %v5394, %v5466
      %5468 = vmatprep.mubr.bf16.mxu0 %v1638
      %5469 = vmatmul.mubr.bf16.gmra.mrb[0].mxu0 %v1637
      %v5470 = vpop.f32.mrb[0].mxu0
      %v5471 = vadd.f32 %v5398, %v5470
      %v5472 = vpop.f32.mrb[0].mxu0
      %v5473 = vadd.f32 %v5400, %v5472
      %v5474 = vpop.f32.mrb[0].mxu0
      %v5475 = vadd.f32 %v5402, %v5474
      %v5476 = vpop.f32.mrb[0].mxu0
      %v5477 = vadd.f32 %v5404, %v5476
      %5478 = vmatprep.mubr.bf16.mxu0 %v1679
      %5479 = vmatmul.mubr.bf16.gmra.mrb[0].mxu0 %v1678
      %v5480 = vpop.f32.mrb[0].mxu0
      %v5481 = vadd.f32 %v5408, %v5480
      %v5482 = vpop.f32.mrb[0].mxu0
      %v5483 = vadd.f32 %v5410, %v5482
      %v5484 = vpop.f32.mrb[0].mxu0
      %v5485 = vadd.f32 %v5412, %v5484
      %v5486 = vpop.f32.mrb[0].mxu0
      %v5487 = vadd.f32 %v5414, %v5486
      %5488 = vdwg.mxu0
      %5489 = vmatprep.subr.bf16.mxu0 %v3976
      %5490 = vmatpush1.bf16.msra.mxu0 %v3975
      %5491 = vmatprep.subr.bf16.mxu0 %v3978
      %5492 = vmatpush1.bf16.msra.mxu0 %v3977
      %5493 = vmatprep.subr.bf16.mxu0 %v3980
      %5494 = vmatpush1.bf16.msra.mxu0 %v3979
      %5495 = vmatprep.subr.bf16.mxu0 %v3982
      %5496 = vmatpush1.bf16.msra.mxu0 %v3981
      %5497 = vmatprep.subr.bf16.mxu0 %v3984
      %5498 = vmatpush1.bf16.msra.mxu0 %v3983
      %5499 = vmatprep.subr.bf16.mxu0 %v3986
      %5500 = vmatpush1.bf16.msra.mxu0 %v3985
      %5501 = vmatprep.subr.bf16.mxu0 %v3988
      %5502 = vmatpush1.bf16.msra.mxu0 %v3987
      %5503 = vmatprep.subr.bf16.mxu0 %v3990
      %5504 = vmatpush1.bf16.msra.mxu0 %v3989
      %5505 = vmatprep.subr.bf16.mxu0 %v3992
      %5506 = vmatpush1.bf16.msra.mxu0 %v3991
      %5507 = vmatprep.subr.bf16.mxu0 %v3994
      %5508 = vmatpush1.bf16.msra.mxu0 %v3993
      %5509 = vmatprep.subr.bf16.mxu0 %v3996
      %5510 = vmatpush1.bf16.msra.mxu0 %v3995
      %5511 = vmatprep.subr.bf16.mxu0 %v3998
      %5512 = vmatpush1.bf16.msra.mxu0 %v3997
      %5513 = vmatprep.subr.bf16.mxu0 %v4000
      %5514 = vmatpush1.bf16.msra.mxu0 %v3999
      %5515 = vmatprep.subr.bf16.mxu0 %v4002
      %5516 = vmatpush1.bf16.msra.mxu0 %v4001
      %5517 = vmatprep.subr.bf16.mxu0 %v4004
      %5518 = vmatpush1.bf16.msra.mxu0 %v4003
      %5519 = vmatprep.subr.bf16.mxu0 %v4006
      %5520 = vmatpush1.bf16.msra.mxu0 %v4005
      %5521 = vmatprep.mubr.bf16.mxu0 %v1558
      %5522 = vmatmul.mubr.bf16.gmra.mrb[0].mxu0 %v1557
      %v5523 = vpop.f32.mrb[0].mxu0
      %v5524 = vadd.f32 %v5451, %v5523
      %v5525 = vpop.f32.mrb[0].mxu0
      %v5526 = vadd.f32 %v5453, %v5525
      %v5527 = vpop.f32.mrb[0].mxu0
      %v5528 = vadd.f32 %v5455, %v5527
      %v5529 = vpop.f32.mrb[0].mxu0
      %v5530 = vadd.f32 %v5457, %v5529
      %5531 = vmatprep.mubr.bf16.mxu0 %v1599
      %5532 = vmatmul.mubr.bf16.gmra.mrb[0].mxu0 %v1598
      %v5533 = vpop.f32.mrb[0].mxu0
      %v5534 = vadd.f32 %v5461, %v5533
      %v5535 = vpop.f32.mrb[0].mxu0
      %v5536 = vadd.f32 %v5463, %v5535
      %v5537 = vpop.f32.mrb[0].mxu0
      %v5538 = vadd.f32 %v5465, %v5537
      %v5539 = vpop.f32.mrb[0].mxu0
      %v5540 = vadd.f32 %v5467, %v5539
      %5541 = vmatprep.mubr.bf16.mxu0 %v1640
      %5542 = vmatmul.mubr.bf16.gmra.mrb[0].mxu0 %v1639
      %v5543 = vpop.f32.mrb[0].mxu0
      %v5544 = vadd.f32 %v5471, %v5543
      %v5545 = vpop.f32.mrb[0].mxu0
      %v5546 = vadd.f32 %v5473, %v5545
      %v5547 = vpop.f32.mrb[0].mxu0
      %v5548 = vadd.f32 %v5475, %v5547
      %v5549 = vpop.f32.mrb[0].mxu0
      %v5550 = vadd.f32 %v5477, %v5549
      %5551 = vmatprep.mubr.bf16.mxu0 %v1681
      %5552 = vmatmul.mubr.bf16.gmra.mrb[0].mxu0 %v1680
      %v5553 = vpop.f32.mrb[0].mxu0
      %v5554 = vadd.f32 %v5481, %v5553
      %v5555 = vpop.f32.mrb[0].mxu0
      %v5556 = vadd.f32 %v5483, %v5555
      %v5557 = vpop.f32.mrb[0].mxu0
      %v5558 = vadd.f32 %v5485, %v5557
      %v5559 = vpop.f32.mrb[0].mxu0
      %v5560 = vadd.f32 %v5487, %v5559
      %5561 = vdwg.mxu0
      %5562 = vmatprep.subr.bf16.mxu0 %v4008
      %5563 = vmatpush1.bf16.msra.mxu0 %v4007
      %5564 = vmatprep.subr.bf16.mxu0 %v4010
      %5565 = vmatpush1.bf16.msra.mxu0 %v4009
      %5566 = vmatprep.subr.bf16.mxu0 %v4012
      %5567 = vmatpush1.bf16.msra.mxu0 %v4011
      %5568 = vmatprep.subr.bf16.mxu0 %v4014
      %5569 = vmatpush1.bf16.msra.mxu0 %v4013
      %5570 = vmatprep.subr.bf16.mxu0 %v4016
      %5571 = vmatpush1.bf16.msra.mxu0 %v4015
      %5572 = vmatprep.subr.bf16.mxu0 %v4018
      %5573 = vmatpush1.bf16.msra.mxu0 %v4017
      %5574 = vmatprep.subr.bf16.mxu0 %v4020
      %5575 = vmatpush1.bf16.msra.mxu0 %v4019
      %5576 = vmatprep.subr.bf16.mxu0 %v4022
      %5577 = vmatpush1.bf16.msra.mxu0 %v4021
      %5578 = vmatprep.subr.bf16.mxu0 %v4024
      %5579 = vmatpush1.bf16.msra.mxu0 %v4023
      %5580 = vmatprep.subr.bf16.mxu0 %v4026
      %5581 = vmatpush1.bf16.msra.mxu0 %v4025
      %5582 = vmatprep.subr.bf16.mxu0 %v4028
      %5583 = vmatpush1.bf16.msra.mxu0 %v4027
      %5584 = vmatprep.subr.bf16.mxu0 %v4030
      %5585 = vmatpush1.bf16.msra.mxu0 %v4029
      %5586 = vmatprep.subr.bf16.mxu0 %v4032
      %5587 = vmatpush1.bf16.msra.mxu0 %v4031
      %5588 = vmatprep.subr.bf16.mxu0 %v4034
      %5589 = vmatpush1.bf16.msra.mxu0 %v4033
      %5590 = vmatprep.subr.bf16.mxu0 %v4036
      %5591 = vmatpush1.bf16.msra.mxu0 %v4035
      %5592 = vmatprep.subr.bf16.mxu0 %v4038
      %5593 = vmatpush1.bf16.msra.mxu0 %v4037
      %5594 = vmatprep.mubr.bf16.mxu0 %v1560
      %5595 = vmatmul.mubr.bf16.gmra.mrb[0].mxu0 %v1559
      %v5596 = vpop.f32.mrb[0].mxu0
      %v5597 = vadd.f32 %v5524, %v5596
      %v5598 = vpop.f32.mrb[0].mxu0
      %v5599 = vadd.f32 %v5526, %v5598
      %v5600 = vpop.f32.mrb[0].mxu0
      %v5601 = vadd.f32 %v5528, %v5600
      %v5602 = vpop.f32.mrb[0].mxu0
      %v5603 = vadd.f32 %v5530, %v5602
      %5604 = vmatprep.mubr.bf16.mxu0 %v1601
      %5605 = vmatmul.mubr.bf16.gmra.mrb[0].mxu0 %v1600
      %v5606 = vpop.f32.mrb[0].mxu0
      %v5607 = vadd.f32 %v5534, %v5606
      %v5608 = vpop.f32.mrb[0].mxu0
      %v5609 = vadd.f32 %v5536, %v5608
      %v5610 = vpop.f32.mrb[0].mxu0
      %v5611 = vadd.f32 %v5538, %v5610
      %v5612 = vpop.f32.mrb[0].mxu0
      %v5613 = vadd.f32 %v5540, %v5612
      %5614 = vmatprep.mubr.bf16.mxu0 %v1642
      %5615 = vmatmul.mubr.bf16.gmra.mrb[0].mxu0 %v1641
      %v5616 = vpop.f32.mrb[0].mxu0
      %v5617 = vadd.f32 %v5544, %v5616
      %v5618 = vpop.f32.mrb[0].mxu0
      %v5619 = vadd.f32 %v5546, %v5618
      %v5620 = vpop.f32.mrb[0].mxu0
      %v5621 = vadd.f32 %v5548, %v5620
      %v5622 = vpop.f32.mrb[0].mxu0
      %v5623 = vadd.f32 %v5550, %v5622
      %5624 = vmatprep.mubr.bf16.mxu0 %v1683
      %5625 = vmatmul.mubr.bf16.gmra.mrb[0].mxu0 %v1682
      %v5626 = vpop.f32.mrb[0].mxu0
      %v5627 = vadd.f32 %v5554, %v5626
      %v5628 = vpop.f32.mrb[0].mxu0
      %v5629 = vadd.f32 %v5556, %v5628
      %v5630 = vpop.f32.mrb[0].mxu0
      %v5631 = vadd.f32 %v5558, %v5630
      %v5632 = vpop.f32.mrb[0].mxu0
      %v5633 = vadd.f32 %v5560, %v5632
      %5634 = vdwg.mxu0
      %5635 = vmatprep.subr.bf16.mxu0 %v4040
      %5636 = vmatpush1.bf16.msra.mxu0 %v4039
      %5637 = vmatprep.subr.bf16.mxu0 %v4042
      %5638 = vmatpush1.bf16.msra.mxu0 %v4041
      %5639 = vmatprep.subr.bf16.mxu0 %v4044
      %5640 = vmatpush1.bf16.msra.mxu0 %v4043
      %5641 = vmatprep.subr.bf16.mxu0 %v4046
      %5642 = vmatpush1.bf16.msra.mxu0 %v4045
      %5643 = vmatprep.subr.bf16.mxu0 %v4048
      %5644 = vmatpush1.bf16.msra.mxu0 %v4047
      %5645 = vmatprep.subr.bf16.mxu0 %v4050
      %5646 = vmatpush1.bf16.msra.mxu0 %v4049
      %5647 = vmatprep.subr.bf16.mxu0 %v4052
      %5648 = vmatpush1.bf16.msra.mxu0 %v4051
      %5649 = vmatprep.subr.bf16.mxu0 %v4054
      %5650 = vmatpush1.bf16.msra.mxu0 %v4053
      %5651 = vmatprep.subr.bf16.mxu0 %v4056
      %5652 = vmatpush1.bf16.msra.mxu0 %v4055
      %5653 = vmatprep.subr.bf16.mxu0 %v4058
      %5654 = vmatpush1.bf16.msra.mxu0 %v4057
      %5655 = vmatprep.subr.bf16.mxu0 %v4060
      %5656 = vmatpush1.bf16.msra.mxu0 %v4059
      %5657 = vmatprep.subr.bf16.mxu0 %v4062
      %5658 = vmatpush1.bf16.msra.mxu0 %v4061
      %5659 = vmatprep.subr.bf16.mxu0 %v4064
      %5660 = vmatpush1.bf16.msra.mxu0 %v4063
      %5661 = vmatprep.subr.bf16.mxu0 %v4066
      %5662 = vmatpush1.bf16.msra.mxu0 %v4065
      %5663 = vmatprep.subr.bf16.mxu0 %v4068
      %5664 = vmatpush1.bf16.msra.mxu0 %v4067
      %5665 = vmatprep.subr.bf16.mxu0 %v4070
      %5666 = vmatpush1.bf16.msra.mxu0 %v4069
      %5667 = vmatprep.mubr.bf16.mxu0 %v1562
      %5668 = vmatmul.mubr.bf16.gmra.mrb[0].mxu0 %v1561
      %v5669 = vpop.f32.mrb[0].mxu0
      %v5670 = vadd.f32 %v5597, %v5669
      %v5671 = vpop.f32.mrb[0].mxu0
      %v5672 = vadd.f32 %v5599, %v5671
      %v5673 = vpop.f32.mrb[0].mxu0
      %v5674 = vadd.f32 %v5601, %v5673
      %v5675 = vpop.f32.mrb[0].mxu0
      %v5676 = vadd.f32 %v5603, %v5675
      %5677 = vmatprep.mubr.bf16.mxu0 %v1603
      %5678 = vmatmul.mubr.bf16.gmra.mrb[0].mxu0 %v1602
      %v5679 = vpop.f32.mrb[0].mxu0
      %v5680 = vadd.f32 %v5607, %v5679
      %v5681 = vpop.f32.mrb[0].mxu0
      %v5682 = vadd.f32 %v5609, %v5681
      %v5683 = vpop.f32.mrb[0].mxu0
      %v5684 = vadd.f32 %v5611, %v5683
      %v5685 = vpop.f32.mrb[0].mxu0
      %v5686 = vadd.f32 %v5613, %v5685
      %5687 = vmatprep.mubr.bf16.mxu0 %v1644
      %5688 = vmatmul.mubr.bf16.gmra.mrb[0].mxu0 %v1643
      %v5689 = vpop.f32.mrb[0].mxu0
      %v5690 = vadd.f32 %v5617, %v5689
      %v5691 = vpop.f32.mrb[0].mxu0
      %v5692 = vadd.f32 %v5619, %v5691
      %v5693 = vpop.f32.mrb[0].mxu0
      %v5694 = vadd.f32 %v5621, %v5693
      %v5695 = vpop.f32.mrb[0].mxu0
      %v5696 = vadd.f32 %v5623, %v5695
      %5697 = vmatprep.mubr.bf16.mxu0 %v1685
      %5698 = vmatmul.mubr.bf16.gmra.mrb[0].mxu0 %v1684
      %v5699 = vpop.f32.mrb[0].mxu0
      %v5700 = vadd.f32 %v5627, %v5699
      %v5701 = vpop.f32.mrb[0].mxu0
      %v5702 = vadd.f32 %v5629, %v5701
      %v5703 = vpop.f32.mrb[0].mxu0
      %v5704 = vadd.f32 %v5631, %v5703
      %v5705 = vpop.f32.mrb[0].mxu0
      %v5706 = vadd.f32 %v5633, %v5705
      %5707 = vdwg.mxu0
      %5708 = vmatprep.subr.bf16.mxu0 %v4072
      %5709 = vmatpush1.bf16.msra.mxu0 %v4071
      %5710 = vmatprep.subr.bf16.mxu0 %v4074
      %5711 = vmatpush1.bf16.msra.mxu0 %v4073
      %5712 = vmatprep.subr.bf16.mxu0 %v4076
      %5713 = vmatpush1.bf16.msra.mxu0 %v4075
      %5714 = vmatprep.subr.bf16.mxu0 %v4078
      %5715 = vmatpush1.bf16.msra.mxu0 %v4077
      %5716 = vmatprep.subr.bf16.mxu0 %v4080
      %5717 = vmatpush1.bf16.msra.mxu0 %v4079
      %5718 = vmatprep.subr.bf16.mxu0 %v4082
      %5719 = vmatpush1.bf16.msra.mxu0 %v4081
      %5720 = vmatprep.subr.bf16.mxu0 %v4084
      %5721 = vmatpush1.bf16.msra.mxu0 %v4083
      %5722 = vmatprep.subr.bf16.mxu0 %v4086
      %5723 = vmatpush1.bf16.msra.mxu0 %v4085
      %5724 = vmatprep.subr.bf16.mxu0 %v4088
      %5725 = vmatpush1.bf16.msra.mxu0 %v4087
      %5726 = vmatprep.subr.bf16.mxu0 %v4090
      %5727 = vmatpush1.bf16.msra.mxu0 %v4089
      %5728 = vmatprep.subr.bf16.mxu0 %v4092
      %5729 = vmatpush1.bf16.msra.mxu0 %v4091
      %5730 = vmatprep.subr.bf16.mxu0 %v4094
      %5731 = vmatpush1.bf16.msra.mxu0 %v4093
      %5732 = vmatprep.subr.bf16.mxu0 %v4096
      %5733 = vmatpush1.bf16.msra.mxu0 %v4095
      %5734 = vmatprep.subr.bf16.mxu0 %v4098
      %5735 = vmatpush1.bf16.msra.mxu0 %v4097
      %5736 = vmatprep.subr.bf16.mxu0 %v4100
      %5737 = vmatpush1.bf16.msra.mxu0 %v4099
      %5738 = vmatprep.subr.bf16.mxu0 %v4102
      %5739 = vmatpush1.bf16.msra.mxu0 %v4101
      %5740 = vmatprep.mubr.bf16.mxu0 %v1564
      %5741 = vmatmul.mubr.bf16.gmra.mrb[0].mxu0 %v1563
      %v5742 = vpop.f32.mrb[0].mxu0
      %v5743 = vadd.f32 %v5670, %v5742
      %v5744 = vpop.f32.mrb[0].mxu0
      %v5745 = vadd.f32 %v5672, %v5744
      %v5746 = vpop.f32.mrb[0].mxu0
      %v5747 = vadd.f32 %v5674, %v5746
      %v5748 = vpop.f32.mrb[0].mxu0
      %v5749 = vadd.f32 %v5676, %v5748
      %5750 = vmatprep.mubr.bf16.mxu0 %v1605
      %5751 = vmatmul.mubr.bf16.gmra.mrb[0].mxu0 %v1604
      %v5752 = vpop.f32.mrb[0].mxu0
      %v5753 = vadd.f32 %v5680, %v5752
      %v5754 = vpop.f32.mrb[0].mxu0
      %v5755 = vadd.f32 %v5682, %v5754
      %v5756 = vpop.f32.mrb[0].mxu0
      %v5757 = vadd.f32 %v5684, %v5756
      %v5758 = vpop.f32.mrb[0].mxu0
      %v5759 = vadd.f32 %v5686, %v5758
      %5760 = vmatprep.mubr.bf16.mxu0 %v1646
      %5761 = vmatmul.mubr.bf16.gmra.mrb[0].mxu0 %v1645
      %v5762 = vpop.f32.mrb[0].mxu0
      %v5763 = vadd.f32 %v5690, %v5762
      %v5764 = vpop.f32.mrb[0].mxu0
      %v5765 = vadd.f32 %v5692, %v5764
      %v5766 = vpop.f32.mrb[0].mxu0
      %v5767 = vadd.f32 %v5694, %v5766
      %v5768 = vpop.f32.mrb[0].mxu0
      %v5769 = vadd.f32 %v5696, %v5768
      %5770 = vmatprep.mubr.bf16.mxu0 %v1687
      %5771 = vmatmul.mubr.bf16.gmra.mrb[0].mxu0 %v1686
      %v5772 = vpop.f32.mrb[0].mxu0
      %v5773 = vadd.f32 %v5700, %v5772
      %v5774 = vpop.f32.mrb[0].mxu0
      %v5775 = vadd.f32 %v5702, %v5774
      %v5776 = vpop.f32.mrb[0].mxu0
      %v5777 = vadd.f32 %v5704, %v5776
      %v5778 = vpop.f32.mrb[0].mxu0
      %v5779 = vadd.f32 %v5706, %v5778
      %5780 = vdwg.mxu0
      %5781 = vmatprep.subr.bf16.mxu0 %v4104
      %5782 = vmatpush1.bf16.msra.mxu0 %v4103
      %5783 = vmatprep.subr.bf16.mxu0 %v4106
      %5784 = vmatpush1.bf16.msra.mxu0 %v4105
      %5785 = vmatprep.subr.bf16.mxu0 %v4108
      %5786 = vmatpush1.bf16.msra.mxu0 %v4107
      %5787 = vmatprep.subr.bf16.mxu0 %v4110
      %5788 = vmatpush1.bf16.msra.mxu0 %v4109
      %5789 = vmatprep.subr.bf16.mxu0 %v4112
      %5790 = vmatpush1.bf16.msra.mxu0 %v4111
      %5791 = vmatprep.subr.bf16.mxu0 %v4114
      %5792 = vmatpush1.bf16.msra.mxu0 %v4113
      %5793 = vmatprep.subr.bf16.mxu0 %v4116
      %5794 = vmatpush1.bf16.msra.mxu0 %v4115
      %5795 = vmatprep.subr.bf16.mxu0 %v4118
      %5796 = vmatpush1.bf16.msra.mxu0 %v4117
      %5797 = vmatprep.subr.bf16.mxu0 %v4120
      %5798 = vmatpush1.bf16.msra.mxu0 %v4119
      %5799 = vmatprep.subr.bf16.mxu0 %v4122
      %5800 = vmatpush1.bf16.msra.mxu0 %v4121
      %5801 = vmatprep.subr.bf16.mxu0 %v4124
      %5802 = vmatpush1.bf16.msra.mxu0 %v4123
      %5803 = vmatprep.subr.bf16.mxu0 %v4126
      %5804 = vmatpush1.bf16.msra.mxu0 %v4125
      %5805 = vmatprep.subr.bf16.mxu0 %v4128
      %5806 = vmatpush1.bf16.msra.mxu0 %v4127
      %5807 = vmatprep.subr.bf16.mxu0 %v4130
      %5808 = vmatpush1.bf16.msra.mxu0 %v4129
      %5809 = vmatprep.subr.bf16.mxu0 %v4132
      %5810 = vmatpush1.bf16.msra.mxu0 %v4131
      %5811 = vmatprep.subr.bf16.mxu0 %v4134
      %5812 = vmatpush1.bf16.msra.mxu0 %v4133
      %5813 = vmatprep.mubr.bf16.mxu0 %v1566
      %5814 = vmatmul.mubr.bf16.gmra.mrb[0].mxu0 %v1565
      %v5815 = vpop.f32.mrb[0].mxu0
      %v5816 = vadd.f32 %v5743, %v5815
      %v5817 = vpop.f32.mrb[0].mxu0
      %v5818 = vadd.f32 %v5745, %v5817
      %v5819 = vpop.f32.mrb[0].mxu0
      %v5820 = vadd.f32 %v5747, %v5819
      %v5821 = vpop.f32.mrb[0].mxu0
      %v5822 = vadd.f32 %v5749, %v5821
      %5823 = vmatprep.mubr.bf16.mxu0 %v1607
      %5824 = vmatmul.mubr.bf16.gmra.mrb[0].mxu0 %v1606
      %v5825 = vpop.f32.mrb[0].mxu0
      %v5826 = vadd.f32 %v5753, %v5825
      %v5827 = vpop.f32.mrb[0].mxu0
      %v5828 = vadd.f32 %v5755, %v5827
      %v5829 = vpop.f32.mrb[0].mxu0
      %v5830 = vadd.f32 %v5757, %v5829
      %v5831 = vpop.f32.mrb[0].mxu0
      %v5832 = vadd.f32 %v5759, %v5831
      %5833 = vmatprep.mubr.bf16.mxu0 %v1648
      %5834 = vmatmul.mubr.bf16.gmra.mrb[0].mxu0 %v1647
      %v5835 = vpop.f32.mrb[0].mxu0
      %v5836 = vadd.f32 %v5763, %v5835
      %v5837 = vpop.f32.mrb[0].mxu0
      %v5838 = vadd.f32 %v5765, %v5837
      %v5839 = vpop.f32.mrb[0].mxu0
      %v5840 = vadd.f32 %v5767, %v5839
      %v5841 = vpop.f32.mrb[0].mxu0
      %v5842 = vadd.f32 %v5769, %v5841
      %5843 = vmatprep.mubr.bf16.mxu0 %v1689
      %5844 = vmatmul.mubr.bf16.gmra.mrb[0].mxu0 %v1688
      %v5845 = vpop.f32.mrb[0].mxu0
      %v5846 = vadd.f32 %v5773, %v5845
      %v5847 = vpop.f32.mrb[0].mxu0
      %v5848 = vadd.f32 %v5775, %v5847
      %v5849 = vpop.f32.mrb[0].mxu0
      %v5850 = vadd.f32 %v5777, %v5849
      %v5851 = vpop.f32.mrb[0].mxu0
      %v5852 = vadd.f32 %v5779, %v5851
      %5853 = vdwg.mxu0
      %5854 = vmatprep.subr.bf16.mxu0 %v4136
      %5855 = vmatpush1.bf16.msra.mxu0 %v4135
      %5856 = vmatprep.subr.bf16.mxu0 %v4138
      %5857 = vmatpush1.bf16.msra.mxu0 %v4137
      %5858 = vmatprep.subr.bf16.mxu0 %v4140
      %5859 = vmatpush1.bf16.msra.mxu0 %v4139
      %5860 = vmatprep.subr.bf16.mxu0 %v4142
      %5861 = vmatpush1.bf16.msra.mxu0 %v4141
      %5862 = vmatprep.subr.bf16.mxu0 %v4144
      %5863 = vmatpush1.bf16.msra.mxu0 %v4143
      %5864 = vmatprep.subr.bf16.mxu0 %v4146
      %5865 = vmatpush1.bf16.msra.mxu0 %v4145
      %5866 = vmatprep.subr.bf16.mxu0 %v4148
      %5867 = vmatpush1.bf16.msra.mxu0 %v4147
      %5868 = vmatprep.subr.bf16.mxu0 %v4150
      %5869 = vmatpush1.bf16.msra.mxu0 %v4149
      %5870 = vmatprep.subr.bf16.mxu0 %v4152
      %5871 = vmatpush1.bf16.msra.mxu0 %v4151
      %5872 = vmatprep.subr.bf16.mxu0 %v4154
      %5873 = vmatpush1.bf16.msra.mxu0 %v4153
      %5874 = vmatprep.subr.bf16.mxu0 %v4156
      %5875 = vmatpush1.bf16.msra.mxu0 %v4155
      %5876 = vmatprep.subr.bf16.mxu0 %v4158
      %5877 = vmatpush1.bf16.msra.mxu0 %v4157
      %5878 = vmatprep.subr.bf16.mxu0 %v4160
      %5879 = vmatpush1.bf16.msra.mxu0 %v4159
      %5880 = vmatprep.subr.bf16.mxu0 %v4162
      %5881 = vmatpush1.bf16.msra.mxu0 %v4161
      %5882 = vmatprep.subr.bf16.mxu0 %v4164
      %5883 = vmatpush1.bf16.msra.mxu0 %v4163
      %5884 = vmatprep.subr.bf16.mxu0 %v4166
      %5885 = vmatpush1.bf16.msra.mxu0 %v4165
      %5886 = vmatprep.mubr.bf16.mxu0 %v1568
      %5887 = vmatmul.mubr.bf16.gmra.mrb[0].mxu0 %v1567
      %v5888 = vpop.f32.mrb[0].mxu0
      %v5889 = vadd.f32 %v5816, %v5888
      %v5890 = vpop.f32.mrb[0].mxu0
      %v5891 = vadd.f32 %v5818, %v5890
      %v5892 = vpop.f32.mrb[0].mxu0
      %v5893 = vadd.f32 %v5820, %v5892
      %v5894 = vpop.f32.mrb[0].mxu0
      %v5895 = vadd.f32 %v5822, %v5894
      %5896 = vmatprep.mubr.bf16.mxu0 %v1609
      %5897 = vmatmul.mubr.bf16.gmra.mrb[0].mxu0 %v1608
      %v5898 = vpop.f32.mrb[0].mxu0
      %v5899 = vadd.f32 %v5826, %v5898
      %v5900 = vpop.f32.mrb[0].mxu0
      %v5901 = vadd.f32 %v5828, %v5900
      %v5902 = vpop.f32.mrb[0].mxu0
      %v5903 = vadd.f32 %v5830, %v5902
      %v5904 = vpop.f32.mrb[0].mxu0
      %v5905 = vadd.f32 %v5832, %v5904
      %5906 = vmatprep.mubr.bf16.mxu0 %v1650
      %5907 = vmatmul.mubr.bf16.gmra.mrb[0].mxu0 %v1649
      %v5908 = vpop.f32.mrb[0].mxu0
      %v5909 = vadd.f32 %v5836, %v5908
      %v5910 = vpop.f32.mrb[0].mxu0
      %v5911 = vadd.f32 %v5838, %v5910
      %v5912 = vpop.f32.mrb[0].mxu0
      %v5913 = vadd.f32 %v5840, %v5912
      %v5914 = vpop.f32.mrb[0].mxu0
      %v5915 = vadd.f32 %v5842, %v5914
      %5916 = vmatprep.mubr.bf16.mxu0 %v1691
      %5917 = vmatmul.mubr.bf16.gmra.mrb[0].mxu0 %v1690
      %v5918 = vpop.f32.mrb[0].mxu0
      %v5919 = vadd.f32 %v5846, %v5918
      %v5920 = vpop.f32.mrb[0].mxu0
      %v5921 = vadd.f32 %v5848, %v5920
      %v5922 = vpop.f32.mrb[0].mxu0
      %v5923 = vadd.f32 %v5850, %v5922
      %v5924 = vpop.f32.mrb[0].mxu0
      %v5925 = vadd.f32 %v5852, %v5924
      %5926 = vdwg.mxu0
      %5927 = vmatprep.subr.bf16.mxu0 %v4168
      %5928 = vmatpush1.bf16.msra.mxu0 %v4167
      %5929 = vmatprep.subr.bf16.mxu0 %v4170
      %5930 = vmatpush1.bf16.msra.mxu0 %v4169
      %5931 = vmatprep.subr.bf16.mxu0 %v4172
      %5932 = vmatpush1.bf16.msra.mxu0 %v4171
      %5933 = vmatprep.subr.bf16.mxu0 %v4174
      %5934 = vmatpush1.bf16.msra.mxu0 %v4173
      %5935 = vmatprep.subr.bf16.mxu0 %v4176
      %5936 = vmatpush1.bf16.msra.mxu0 %v4175
      %5937 = vmatprep.subr.bf16.mxu0 %v4178
      %5938 = vmatpush1.bf16.msra.mxu0 %v4177
      %5939 = vmatprep.subr.bf16.mxu0 %v4180
      %5940 = vmatpush1.bf16.msra.mxu0 %v4179
      %5941 = vmatprep.subr.bf16.mxu0 %v4182
      %5942 = vmatpush1.bf16.msra.mxu0 %v4181
      %5943 = vmatprep.subr.bf16.mxu0 %v4184
      %5944 = vmatpush1.bf16.msra.mxu0 %v4183
      %5945 = vmatprep.subr.bf16.mxu0 %v4186
      %5946 = vmatpush1.bf16.msra.mxu0 %v4185
      %5947 = vmatprep.subr.bf16.mxu0 %v4188
      %5948 = vmatpush1.bf16.msra.mxu0 %v4187
      %5949 = vmatprep.subr.bf16.mxu0 %v4190
      %5950 = vmatpush1.bf16.msra.mxu0 %v4189
      %5951 = vmatprep.subr.bf16.mxu0 %v4192
      %5952 = vmatpush1.bf16.msra.mxu0 %v4191
      %5953 = vmatprep.subr.bf16.mxu0 %v4194
      %5954 = vmatpush1.bf16.msra.mxu0 %v4193
      %5955 = vmatprep.subr.bf16.mxu0 %v4196
      %5956 = vmatpush1.bf16.msra.mxu0 %v4195
      %5957 = vmatprep.subr.bf16.mxu0 %v4198
      %5958 = vmatpush1.bf16.msra.mxu0 %v4197
      %5959 = vmatprep.mubr.bf16.mxu0 %v1570
      %5960 = vmatmul.mubr.bf16.gmra.mrb[0].mxu0 %v1569
      %v5961 = vpop.f32.mrb[0].mxu0
      %v5962 = vadd.f32 %v5889, %v5961
      %v5963 = vpop.f32.mrb[0].mxu0
      %v5964 = vadd.f32 %v5891, %v5963
      %v5965 = vpop.f32.mrb[0].mxu0
      %v5966 = vadd.f32 %v5893, %v5965
      %v5967 = vpop.f32.mrb[0].mxu0
      %v5968 = vadd.f32 %v5895, %v5967
      %5969 = vmatprep.mubr.bf16.mxu0 %v1611
      %5970 = vmatmul.mubr.bf16.gmra.mrb[0].mxu0 %v1610
      %v5971 = vpop.f32.mrb[0].mxu0
      %v5972 = vadd.f32 %v5899, %v5971
      %v5973 = vpop.f32.mrb[0].mxu0
      %v5974 = vadd.f32 %v5901, %v5973
      %v5975 = vpop.f32.mrb[0].mxu0
      %v5976 = vadd.f32 %v5903, %v5975
      %v5977 = vpop.f32.mrb[0].mxu0
      %v5978 = vadd.f32 %v5905, %v5977
      %5979 = vmatprep.mubr.bf16.mxu0 %v1652
      %5980 = vmatmul.mubr.bf16.gmra.mrb[0].mxu0 %v1651
      %v5981 = vpop.f32.mrb[0].mxu0
      %v5982 = vadd.f32 %v5909, %v5981
      %v5983 = vpop.f32.mrb[0].mxu0
      %v5984 = vadd.f32 %v5911, %v5983
      %v5985 = vpop.f32.mrb[0].mxu0
      %v5986 = vadd.f32 %v5913, %v5985
      %v5987 = vpop.f32.mrb[0].mxu0
      %v5988 = vadd.f32 %v5915, %v5987
      %5989 = vmatprep.mubr.bf16.mxu0 %v1693
      %5990 = vmatmul.mubr.bf16.gmra.mrb[0].mxu0 %v1692
      %v5991 = vpop.f32.mrb[0].mxu0
      %v5992 = vadd.f32 %v5919, %v5991
      %v5993 = vpop.f32.mrb[0].mxu0
      %v5994 = vadd.f32 %v5921, %v5993
      %v5995 = vpop.f32.mrb[0].mxu0
      %v5996 = vadd.f32 %v5923, %v5995
      %v5997 = vpop.f32.mrb[0].mxu0
      %v5998 = vadd.f32 %v5925, %v5997
      %5999 = vdwg.mxu0
      %6000 = vmatprep.subr.bf16.mxu0 %v4200
      %6001 = vmatpush1.bf16.msra.mxu0 %v4199
      %6002 = vmatprep.subr.bf16.mxu0 %v4202
      %6003 = vmatpush1.bf16.msra.mxu0 %v4201
      %6004 = vmatprep.subr.bf16.mxu0 %v4204
      %6005 = vmatpush1.bf16.msra.mxu0 %v4203
      %6006 = vmatprep.subr.bf16.mxu0 %v4206
      %6007 = vmatpush1.bf16.msra.mxu0 %v4205
      %6008 = vmatprep.subr.bf16.mxu0 %v4208
      %6009 = vmatpush1.bf16.msra.mxu0 %v4207
      %6010 = vmatprep.subr.bf16.mxu0 %v4210
      %6011 = vmatpush1.bf16.msra.mxu0 %v4209
      %6012 = vmatprep.subr.bf16.mxu0 %v4212
      %6013 = vmatpush1.bf16.msra.mxu0 %v4211
      %6014 = vmatprep.subr.bf16.mxu0 %v4214
      %6015 = vmatpush1.bf16.msra.mxu0 %v4213
      %6016 = vmatprep.subr.bf16.mxu0 %v4216
      %6017 = vmatpush1.bf16.msra.mxu0 %v4215
      %6018 = vmatprep.subr.bf16.mxu0 %v4218
      %6019 = vmatpush1.bf16.msra.mxu0 %v4217
      %6020 = vmatprep.subr.bf16.mxu0 %v4220
      %6021 = vmatpush1.bf16.msra.mxu0 %v4219
      %6022 = vmatprep.subr.bf16.mxu0 %v4222
      %6023 = vmatpush1.bf16.msra.mxu0 %v4221
      %6024 = vmatprep.subr.bf16.mxu0 %v4224
      %6025 = vmatpush1.bf16.msra.mxu0 %v4223
      %6026 = vmatprep.subr.bf16.mxu0 %v4226
      %6027 = vmatpush1.bf16.msra.mxu0 %v4225
      %6028 = vmatprep.subr.bf16.mxu0 %v4228
      %6029 = vmatpush1.bf16.msra.mxu0 %v4227
      %6030 = vmatprep.subr.bf16.mxu0 %v4230
      %6031 = vmatpush1.bf16.msra.mxu0 %v4229
      %6032 = vmatprep.mubr.bf16.mxu0 %v1572
      %6033 = vmatmul.mubr.bf16.gmra.mrb[0].mxu0 %v1571
      %v6034 = vpop.f32.mrb[0].mxu0
      %v6035 = vadd.f32 %v5962, %v6034
      %v6036 = vpop.f32.mrb[0].mxu0
      %v6037 = vadd.f32 %v5964, %v6036
      %v6038 = vpop.f32.mrb[0].mxu0
      %v6039 = vadd.f32 %v5966, %v6038
      %v6040 = vpop.f32.mrb[0].mxu0
      %v6041 = vadd.f32 %v5968, %v6040
      %6042 = vmatprep.mubr.bf16.mxu0 %v1613
      %6043 = vmatmul.mubr.bf16.gmra.mrb[0].mxu0 %v1612
      %v6044 = vpop.f32.mrb[0].mxu0
      %v6045 = vadd.f32 %v5972, %v6044
      %v6046 = vpop.f32.mrb[0].mxu0
      %v6047 = vadd.f32 %v5974, %v6046
      %v6048 = vpop.f32.mrb[0].mxu0
      %v6049 = vadd.f32 %v5976, %v6048
      %v6050 = vpop.f32.mrb[0].mxu0
      %v6051 = vadd.f32 %v5978, %v6050
      %6052 = vmatprep.mubr.bf16.mxu0 %v1654
      %6053 = vmatmul.mubr.bf16.gmra.mrb[0].mxu0 %v1653
      %v6054 = vpop.f32.mrb[0].mxu0
      %v6055 = vadd.f32 %v5982, %v6054
      %v6056 = vpop.f32.mrb[0].mxu0
      %v6057 = vadd.f32 %v5984, %v6056
      %v6058 = vpop.f32.mrb[0].mxu0
      %v6059 = vadd.f32 %v5986, %v6058
      %v6060 = vpop.f32.mrb[0].mxu0
      %v6061 = vadd.f32 %v5988, %v6060
      %6062 = vmatprep.mubr.bf16.mxu0 %v1695
      %6063 = vmatmul.mubr.bf16.gmra.mrb[0].mxu0 %v1694
      %v6064 = vpop.f32.mrb[0].mxu0
      %v6065 = vadd.f32 %v5992, %v6064
      %v6066 = vpop.f32.mrb[0].mxu0
      %v6067 = vadd.f32 %v5994, %v6066
      %v6068 = vpop.f32.mrb[0].mxu0
      %v6069 = vadd.f32 %v5996, %v6068
      %v6070 = vpop.f32.mrb[0].mxu0
      %v6071 = vadd.f32 %v5998, %v6070
      %6072 = vdwg.mxu0
      %6073 = vmatprep.subr.bf16.mxu0 %v4232
      %6074 = vmatpush1.bf16.msra.mxu0 %v4231
      %6075 = vmatprep.subr.bf16.mxu0 %v4234
      %6076 = vmatpush1.bf16.msra.mxu0 %v4233
      %6077 = vmatprep.subr.bf16.mxu0 %v4236
      %6078 = vmatpush1.bf16.msra.mxu0 %v4235
      %6079 = vmatprep.subr.bf16.mxu0 %v4238
      %6080 = vmatpush1.bf16.msra.mxu0 %v4237
      %6081 = vmatprep.subr.bf16.mxu0 %v4240
      %6082 = vmatpush1.bf16.msra.mxu0 %v4239
      %6083 = vmatprep.subr.bf16.mxu0 %v4242
      %6084 = vmatpush1.bf16.msra.mxu0 %v4241
      %6085 = vmatprep.subr.bf16.mxu0 %v4244
      %6086 = vmatpush1.bf16.msra.mxu0 %v4243
      %6087 = vmatprep.subr.bf16.mxu0 %v4246
      %6088 = vmatpush1.bf16.msra.mxu0 %v4245
      %6089 = vmatprep.subr.bf16.mxu0 %v4248
      %6090 = vmatpush1.bf16.msra.mxu0 %v4247
      %6091 = vmatprep.subr.bf16.mxu0 %v4250
      %6092 = vmatpush1.bf16.msra.mxu0 %v4249
      %6093 = vmatprep.subr.bf16.mxu0 %v4252
      %6094 = vmatpush1.bf16.msra.mxu0 %v4251
      %6095 = vmatprep.subr.bf16.mxu0 %v4254
      %6096 = vmatpush1.bf16.msra.mxu0 %v4253
      %6097 = vmatprep.subr.bf16.mxu0 %v4256
      %6098 = vmatpush1.bf16.msra.mxu0 %v4255
      %6099 = vmatprep.subr.bf16.mxu0 %v4258
      %6100 = vmatpush1.bf16.msra.mxu0 %v4257
      %6101 = vmatprep.subr.bf16.mxu0 %v4260
      %6102 = vmatpush1.bf16.msra.mxu0 %v4259
      %6103 = vmatprep.subr.bf16.mxu0 %v4262
      %6104 = vmatpush1.bf16.msra.mxu0 %v4261
      %6105 = vmatprep.mubr.bf16.mxu0 %v1574
      %6106 = vmatmul.mubr.bf16.gmra.mrb[0].mxu0 %v1573
      %v6107 = vpop.f32.mrb[0].mxu0
      %v6108 = vadd.f32 %v6035, %v6107
      %v6109 = vpop.f32.mrb[0].mxu0
      %v6110 = vadd.f32 %v6037, %v6109
      %v6111 = vpop.f32.mrb[0].mxu0
      %v6112 = vadd.f32 %v6039, %v6111
      %v6113 = vpop.f32.mrb[0].mxu0
      %v6114 = vadd.f32 %v6041, %v6113
      %6115 = vmatprep.mubr.bf16.mxu0 %v1615
      %6116 = vmatmul.mubr.bf16.gmra.mrb[0].mxu0 %v1614
      %v6117 = vpop.f32.mrb[0].mxu0
      %v6118 = vadd.f32 %v6045, %v6117
      %v6119 = vpop.f32.mrb[0].mxu0
      %v6120 = vadd.f32 %v6047, %v6119
      %v6121 = vpop.f32.mrb[0].mxu0
      %v6122 = vadd.f32 %v6049, %v6121
      %v6123 = vpop.f32.mrb[0].mxu0
      %v6124 = vadd.f32 %v6051, %v6123
      %6125 = vmatprep.mubr.bf16.mxu0 %v1656
      %6126 = vmatmul.mubr.bf16.gmra.mrb[0].mxu0 %v1655
      %v6127 = vpop.f32.mrb[0].mxu0
      %v6128 = vadd.f32 %v6055, %v6127
      %v6129 = vpop.f32.mrb[0].mxu0
      %v6130 = vadd.f32 %v6057, %v6129
      %v6131 = vpop.f32.mrb[0].mxu0
      %v6132 = vadd.f32 %v6059, %v6131
      %v6133 = vpop.f32.mrb[0].mxu0
      %v6134 = vadd.f32 %v6061, %v6133
      %6135 = vmatprep.mubr.bf16.mxu0 %v1697
      %6136 = vmatmul.mubr.bf16.gmra.mrb[0].mxu0 %v1696
      %v6137 = vpop.f32.mrb[0].mxu0
      %v6138 = vadd.f32 %v6065, %v6137
      %v6139 = vpop.f32.mrb[0].mxu0
      %v6140 = vadd.f32 %v6067, %v6139
      %v6141 = vpop.f32.mrb[0].mxu0
      %v6142 = vadd.f32 %v6069, %v6141
      %v6143 = vpop.f32.mrb[0].mxu0
      %v6144 = vadd.f32 %v6071, %v6143
      %6145 = vdwg.mxu0
      %6146 = vmatprep.subr.bf16.mxu0 %v4264
      %6147 = vmatpush1.bf16.msra.mxu0 %v4263
      %6148 = vmatprep.subr.bf16.mxu0 %v4266
      %6149 = vmatpush1.bf16.msra.mxu0 %v4265
      %6150 = vmatprep.subr.bf16.mxu0 %v4268
      %6151 = vmatpush1.bf16.msra.mxu0 %v4267
      %6152 = vmatprep.subr.bf16.mxu0 %v4270
      %6153 = vmatpush1.bf16.msra.mxu0 %v4269
      %6154 = vmatprep.subr.bf16.mxu0 %v4272
      %6155 = vmatpush1.bf16.msra.mxu0 %v4271
      %6156 = vmatprep.subr.bf16.mxu0 %v4274
      %6157 = vmatpush1.bf16.msra.mxu0 %v4273
      %6158 = vmatprep.subr.bf16.mxu0 %v4276
      %6159 = vmatpush1.bf16.msra.mxu0 %v4275
      %6160 = vmatprep.subr.bf16.mxu0 %v4278
      %6161 = vmatpush1.bf16.msra.mxu0 %v4277
      %6162 = vmatprep.subr.bf16.mxu0 %v4280
      %6163 = vmatpush1.bf16.msra.mxu0 %v4279
      %6164 = vmatprep.subr.bf16.mxu0 %v4282
      %6165 = vmatpush1.bf16.msra.mxu0 %v4281
      %6166 = vmatprep.subr.bf16.mxu0 %v4284
      %6167 = vmatpush1.bf16.msra.mxu0 %v4283
      %6168 = vmatprep.subr.bf16.mxu0 %v4286
      %6169 = vmatpush1.bf16.msra.mxu0 %v4285
      %6170 = vmatprep.subr.bf16.mxu0 %v4288
      %6171 = vmatpush1.bf16.msra.mxu0 %v4287
      %6172 = vmatprep.subr.bf16.mxu0 %v4290
      %6173 = vmatpush1.bf16.msra.mxu0 %v4289
      %6174 = vmatprep.subr.bf16.mxu0 %v4292
      %6175 = vmatpush1.bf16.msra.mxu0 %v4291
      %6176 = vmatprep.subr.bf16.mxu0 %v4294
      %6177 = vmatpush1.bf16.msra.mxu0 %v4293
      %6178 = vmatprep.mubr.bf16.mxu0 %v1576
      %6179 = vmatmul.mubr.bf16.gmra.mrb[0].mxu0 %v1575
      %v6180 = vpop.f32.mrb[0].mxu0
      %v6181 = vadd.f32 %v6108, %v6180
      %v6182 = vpop.f32.mrb[0].mxu0
      %v6183 = vadd.f32 %v6110, %v6182
      %v6184 = vpop.f32.mrb[0].mxu0
      %v6185 = vadd.f32 %v6112, %v6184
      %v6186 = vpop.f32.mrb[0].mxu0
      %v6187 = vadd.f32 %v6114, %v6186
      %6188 = vmatprep.mubr.bf16.mxu0 %v1617
      %6189 = vmatmul.mubr.bf16.gmra.mrb[0].mxu0 %v1616
      %v6190 = vpop.f32.mrb[0].mxu0
      %v6191 = vadd.f32 %v6118, %v6190
      %v6192 = vpop.f32.mrb[0].mxu0
      %v6193 = vadd.f32 %v6120, %v6192
      %v6194 = vpop.f32.mrb[0].mxu0
      %v6195 = vadd.f32 %v6122, %v6194
      %v6196 = vpop.f32.mrb[0].mxu0
      %v6197 = vadd.f32 %v6124, %v6196
      %6198 = vmatprep.mubr.bf16.mxu0 %v1658
      %6199 = vmatmul.mubr.bf16.gmra.mrb[0].mxu0 %v1657
      %v6200 = vpop.f32.mrb[0].mxu0
      %v6201 = vadd.f32 %v6128, %v6200
      %v6202 = vpop.f32.mrb[0].mxu0
      %v6203 = vadd.f32 %v6130, %v6202
      %v6204 = vpop.f32.mrb[0].mxu0
      %v6205 = vadd.f32 %v6132, %v6204
      %v6206 = vpop.f32.mrb[0].mxu0
      %v6207 = vadd.f32 %v6134, %v6206
      %6208 = vmatprep.mubr.bf16.mxu0 %v1699
      %6209 = vmatmul.mubr.bf16.gmra.mrb[0].mxu0 %v1698
      %v6210 = vpop.f32.mrb[0].mxu0
      %v6211 = vadd.f32 %v6138, %v6210
      %v6212 = vpop.f32.mrb[0].mxu0
      %v6213 = vadd.f32 %v6140, %v6212
      %v6214 = vpop.f32.mrb[0].mxu0
      %v6215 = vadd.f32 %v6142, %v6214
      %v6216 = vpop.f32.mrb[0].mxu0
      %v6217 = vadd.f32 %v6144, %v6216
      %6218 = vdwg.mxu0
      %6219 = vmatprep.subr.bf16.mxu0 %v4296
      %6220 = vmatpush1.bf16.msra.mxu0 %v4295
      %6221 = vmatprep.subr.bf16.mxu0 %v4298
      %6222 = vmatpush1.bf16.msra.mxu0 %v4297
      %6223 = vmatprep.subr.bf16.mxu0 %v4300
      %6224 = vmatpush1.bf16.msra.mxu0 %v4299
      %6225 = vmatprep.subr.bf16.mxu0 %v4302
      %6226 = vmatpush1.bf16.msra.mxu0 %v4301
      %6227 = vmatprep.subr.bf16.mxu0 %v4304
      %6228 = vmatpush1.bf16.msra.mxu0 %v4303
      %6229 = vmatprep.subr.bf16.mxu0 %v4306
      %6230 = vmatpush1.bf16.msra.mxu0 %v4305
      %6231 = vmatprep.subr.bf16.mxu0 %v4308
      %6232 = vmatpush1.bf16.msra.mxu0 %v4307
      %6233 = vmatprep.subr.bf16.mxu0 %v4310
      %6234 = vmatpush1.bf16.msra.mxu0 %v4309
      %6235 = vmatprep.subr.bf16.mxu0 %v4312
      %6236 = vmatpush1.bf16.msra.mxu0 %v4311
      %6237 = vmatprep.subr.bf16.mxu0 %v4314
      %6238 = vmatpush1.bf16.msra.mxu0 %v4313
      %6239 = vmatprep.subr.bf16.mxu0 %v4316
      %6240 = vmatpush1.bf16.msra.mxu0 %v4315
      %6241 = vmatprep.subr.bf16.mxu0 %v4318
      %6242 = vmatpush1.bf16.msra.mxu0 %v4317
      %6243 = vmatprep.subr.bf16.mxu0 %v4320
      %6244 = vmatpush1.bf16.msra.mxu0 %v4319
      %6245 = vmatprep.subr.bf16.mxu0 %v4322
      %6246 = vmatpush1.bf16.msra.mxu0 %v4321
      %6247 = vmatprep.subr.bf16.mxu0 %v4324
      %6248 = vmatpush1.bf16.msra.mxu0 %v4323
      %6249 = vmatprep.subr.bf16.mxu0 %v4326
      %6250 = vmatpush1.bf16.msra.mxu0 %v4325
      %6251 = vmatprep.mubr.bf16.mxu0 %v1578
      %6252 = vmatmul.mubr.bf16.gmra.mrb[0].mxu0 %v1577
      %v6253 = vpop.f32.mrb[0].mxu0
      %v6254 = vadd.f32 %v6181, %v6253
      %v6255 = vpop.f32.mrb[0].mxu0
      %v6256 = vadd.f32 %v6183, %v6255
      %v6257 = vpop.f32.mrb[0].mxu0
      %v6258 = vadd.f32 %v6185, %v6257
      %v6259 = vpop.f32.mrb[0].mxu0
      %v6260 = vadd.f32 %v6187, %v6259
      %6261 = vmatprep.mubr.bf16.mxu0 %v1619
      %6262 = vmatmul.mubr.bf16.gmra.mrb[0].mxu0 %v1618
      %v6263 = vpop.f32.mrb[0].mxu0
      %v6264 = vadd.f32 %v6191, %v6263
      %v6265 = vpop.f32.mrb[0].mxu0
      %v6266 = vadd.f32 %v6193, %v6265
      %v6267 = vpop.f32.mrb[0].mxu0
      %v6268 = vadd.f32 %v6195, %v6267
      %v6269 = vpop.f32.mrb[0].mxu0
      %v6270 = vadd.f32 %v6197, %v6269
      %6271 = vmatprep.mubr.bf16.mxu0 %v1660
      %6272 = vmatmul.mubr.bf16.gmra.mrb[0].mxu0 %v1659
      %v6273 = vpop.f32.mrb[0].mxu0
      %v6274 = vadd.f32 %v6201, %v6273
      %v6275 = vpop.f32.mrb[0].mxu0
      %v6276 = vadd.f32 %v6203, %v6275
      %v6277 = vpop.f32.mrb[0].mxu0
      %v6278 = vadd.f32 %v6205, %v6277
      %v6279 = vpop.f32.mrb[0].mxu0
      %v6280 = vadd.f32 %v6207, %v6279
      %6281 = vmatprep.mubr.bf16.mxu0 %v1701
      %6282 = vmatmul.mubr.bf16.gmra.mrb[0].mxu0 %v1700
      %v6283 = vpop.f32.mrb[0].mxu0
      %v6284 = vadd.f32 %v6211, %v6283
      %v6285 = vpop.f32.mrb[0].mxu0
      %v6286 = vadd.f32 %v6213, %v6285
      %v6287 = vpop.f32.mrb[0].mxu0
      %v6288 = vadd.f32 %v6215, %v6287
      %v6289 = vpop.f32.mrb[0].mxu0
      %v6290 = vadd.f32 %v6217, %v6289
      %6291 = vdwg.mxu0
      %6292 = vmatprep.subr.bf16.mxu0 %v4328
      %6293 = vmatpush1.bf16.msra.mxu0 %v4327
      %6294 = vmatprep.subr.bf16.mxu0 %v4330
      %6295 = vmatpush1.bf16.msra.mxu0 %v4329
      %6296 = vmatprep.subr.bf16.mxu0 %v4332
      %6297 = vmatpush1.bf16.msra.mxu0 %v4331
      %6298 = vmatprep.subr.bf16.mxu0 %v4334
      %6299 = vmatpush1.bf16.msra.mxu0 %v4333
      %6300 = vmatprep.subr.bf16.mxu0 %v4336
      %6301 = vmatpush1.bf16.msra.mxu0 %v4335
      %6302 = vmatprep.subr.bf16.mxu0 %v4338
      %6303 = vmatpush1.bf16.msra.mxu0 %v4337
      %6304 = vmatprep.subr.bf16.mxu0 %v4340
      %6305 = vmatpush1.bf16.msra.mxu0 %v4339
      %6306 = vmatprep.subr.bf16.mxu0 %v4342
      %6307 = vmatpush1.bf16.msra.mxu0 %v4341
      %6308 = vmatprep.subr.bf16.mxu0 %v4344
      %6309 = vmatpush1.bf16.msra.mxu0 %v4343
      %6310 = vmatprep.subr.bf16.mxu0 %v4346
      %6311 = vmatpush1.bf16.msra.mxu0 %v4345
      %6312 = vmatprep.subr.bf16.mxu0 %v4348
      %6313 = vmatpush1.bf16.msra.mxu0 %v4347
      %6314 = vmatprep.subr.bf16.mxu0 %v4350
      %6315 = vmatpush1.bf16.msra.mxu0 %v4349
      %6316 = vmatprep.subr.bf16.mxu0 %v4352
      %6317 = vmatpush1.bf16.msra.mxu0 %v4351
      %6318 = vmatprep.subr.bf16.mxu0 %v4354
      %6319 = vmatpush1.bf16.msra.mxu0 %v4353
      %6320 = vmatprep.subr.bf16.mxu0 %v4356
      %6321 = vmatpush1.bf16.msra.mxu0 %v4355
      %6322 = vmatprep.subr.bf16.mxu0 %v4358
      %6323 = vmatpush1.bf16.msra.mxu0 %v4357
      %6324 = vmatprep.mubr.bf16.mxu0 %v1580
      %6325 = vmatmul.mubr.bf16.gmra.mrb[0].mxu0 %v1579
      %v6326 = vpop.f32.mrb[0].mxu0
      %v6327 = vadd.f32 %v6254, %v6326
      %v6328 = vpop.f32.mrb[0].mxu0
      %v6329 = vadd.f32 %v6256, %v6328
      %v6330 = vpop.f32.mrb[0].mxu0
      %v6331 = vadd.f32 %v6258, %v6330
      %v6332 = vpop.f32.mrb[0].mxu0
      %v6333 = vadd.f32 %v6260, %v6332
      %6334 = vmatprep.mubr.bf16.mxu0 %v1621
      %6335 = vmatmul.mubr.bf16.gmra.mrb[0].mxu0 %v1620
      %v6336 = vpop.f32.mrb[0].mxu0
      %v6337 = vadd.f32 %v6264, %v6336
      %v6338 = vpop.f32.mrb[0].mxu0
      %v6339 = vadd.f32 %v6266, %v6338
      %v6340 = vpop.f32.mrb[0].mxu0
      %v6341 = vadd.f32 %v6268, %v6340
      %v6342 = vpop.f32.mrb[0].mxu0
      %v6343 = vadd.f32 %v6270, %v6342
      %6344 = vmatprep.mubr.bf16.mxu0 %v1662
      %6345 = vmatmul.mubr.bf16.gmra.mrb[0].mxu0 %v1661
      %v6346 = vpop.f32.mrb[0].mxu0
      %v6347 = vadd.f32 %v6274, %v6346
      %v6348 = vpop.f32.mrb[0].mxu0
      %v6349 = vadd.f32 %v6276, %v6348
      %v6350 = vpop.f32.mrb[0].mxu0
      %v6351 = vadd.f32 %v6278, %v6350
      %v6352 = vpop.f32.mrb[0].mxu0
      %v6353 = vadd.f32 %v6280, %v6352
      %6354 = vmatprep.mubr.bf16.mxu0 %v1703
      %6355 = vmatmul.mubr.bf16.gmra.mrb[0].mxu0 %v1702
      %v6356 = vpop.f32.mrb[0].mxu0
      %v6357 = vadd.f32 %v6284, %v6356
      %v6358 = vpop.f32.mrb[0].mxu0
      %v6359 = vadd.f32 %v6286, %v6358
      %v6360 = vpop.f32.mrb[0].mxu0
      %v6361 = vadd.f32 %v6288, %v6360
      %v6362 = vpop.f32.mrb[0].mxu0
      %v6363 = vadd.f32 %v6290, %v6362
      %6364 = vdwg.mxu0
      %6365 = vmatprep.subr.bf16.mxu0 %v4360
      %6366 = vmatpush1.bf16.msra.mxu0 %v4359
      %6367 = vmatprep.subr.bf16.mxu0 %v4362
      %6368 = vmatpush1.bf16.msra.mxu0 %v4361
      %6369 = vmatprep.subr.bf16.mxu0 %v4364
      %6370 = vmatpush1.bf16.msra.mxu0 %v4363
      %6371 = vmatprep.subr.bf16.mxu0 %v4366
      %6372 = vmatpush1.bf16.msra.mxu0 %v4365
      %6373 = vmatprep.subr.bf16.mxu0 %v4368
      %6374 = vmatpush1.bf16.msra.mxu0 %v4367
      %6375 = vmatprep.subr.bf16.mxu0 %v4370
      %6376 = vmatpush1.bf16.msra.mxu0 %v4369
      %6377 = vmatprep.subr.bf16.mxu0 %v4372
      %6378 = vmatpush1.bf16.msra.mxu0 %v4371
      %6379 = vmatprep.subr.bf16.mxu0 %v4374
      %6380 = vmatpush1.bf16.msra.mxu0 %v4373
      %6381 = vmatprep.subr.bf16.mxu0 %v4376
      %6382 = vmatpush1.bf16.msra.mxu0 %v4375
      %6383 = vmatprep.subr.bf16.mxu0 %v4378
      %6384 = vmatpush1.bf16.msra.mxu0 %v4377
      %6385 = vmatprep.subr.bf16.mxu0 %v4380
      %6386 = vmatpush1.bf16.msra.mxu0 %v4379
      %6387 = vmatprep.subr.bf16.mxu0 %v4382
      %6388 = vmatpush1.bf16.msra.mxu0 %v4381
      %6389 = vmatprep.subr.bf16.mxu0 %v4384
      %6390 = vmatpush1.bf16.msra.mxu0 %v4383
      %6391 = vmatprep.subr.bf16.mxu0 %v4386
      %6392 = vmatpush1.bf16.msra.mxu0 %v4385
      %6393 = vmatprep.subr.bf16.mxu0 %v4388
      %6394 = vmatpush1.bf16.msra.mxu0 %v4387
      %6395 = vmatprep.subr.bf16.mxu0 %v4390
      %6396 = vmatpush1.bf16.msra.mxu0 %v4389
      %6397 = vmatprep.mubr.bf16.mxu0 %v1582
      %6398 = vmatmul.mubr.bf16.gmra.mrb[0].mxu0 %v1581
      %v6399 = vpop.f32.mrb[0].mxu0
      %v6400 = vadd.f32 %v6327, %v6399
      %v6401 = vpop.f32.mrb[0].mxu0
      %v6402 = vadd.f32 %v6329, %v6401
      %v6403 = vpop.f32.mrb[0].mxu0
      %v6404 = vadd.f32 %v6331, %v6403
      %v6405 = vpop.f32.mrb[0].mxu0
      %v6406 = vadd.f32 %v6333, %v6405
      %6407 = vmatprep.mubr.bf16.mxu0 %v1623
      %6408 = vmatmul.mubr.bf16.gmra.mrb[0].mxu0 %v1622
      %v6409 = vpop.f32.mrb[0].mxu0
      %v6410 = vadd.f32 %v6337, %v6409
      %v6411 = vpop.f32.mrb[0].mxu0
      %v6412 = vadd.f32 %v6339, %v6411
      %v6413 = vpop.f32.mrb[0].mxu0
      %v6414 = vadd.f32 %v6341, %v6413
      %v6415 = vpop.f32.mrb[0].mxu0
      %v6416 = vadd.f32 %v6343, %v6415
      %6417 = vmatprep.mubr.bf16.mxu0 %v1664
      %6418 = vmatmul.mubr.bf16.gmra.mrb[0].mxu0 %v1663
      %v6419 = vpop.f32.mrb[0].mxu0
      %v6420 = vadd.f32 %v6347, %v6419
      %v6421 = vpop.f32.mrb[0].mxu0
      %v6422 = vadd.f32 %v6349, %v6421
      %v6423 = vpop.f32.mrb[0].mxu0
      %v6424 = vadd.f32 %v6351, %v6423
      %v6425 = vpop.f32.mrb[0].mxu0
      %v6426 = vadd.f32 %v6353, %v6425
      %6427 = vmatprep.mubr.bf16.mxu0 %v1705
      %6428 = vmatmul.mubr.bf16.gmra.mrb[0].mxu0 %v1704
      %v6429 = vpop.f32.mrb[0].mxu0
      %v6430 = vadd.f32 %v6357, %v6429
      %v6431 = vpop.f32.mrb[0].mxu0
      %v6432 = vadd.f32 %v6359, %v6431
      %v6433 = vpop.f32.mrb[0].mxu0
      %v6434 = vadd.f32 %v6361, %v6433
      %v6435 = vpop.f32.mrb[0].mxu0
      %v6436 = vadd.f32 %v6363, %v6435
      %6437 = vdwg.mxu0
      %6438 = vmatprep.subr.bf16.mxu0 %v4392
      %6439 = vmatpush1.bf16.msra.mxu0 %v4391
      %6440 = vmatprep.subr.bf16.mxu0 %v4394
      %6441 = vmatpush1.bf16.msra.mxu0 %v4393
      %6442 = vmatprep.subr.bf16.mxu0 %v4396
      %6443 = vmatpush1.bf16.msra.mxu0 %v4395
      %6444 = vmatprep.subr.bf16.mxu0 %v4398
      %6445 = vmatpush1.bf16.msra.mxu0 %v4397
      %6446 = vmatprep.subr.bf16.mxu0 %v4400
      %6447 = vmatpush1.bf16.msra.mxu0 %v4399
      %6448 = vmatprep.subr.bf16.mxu0 %v4402
      %6449 = vmatpush1.bf16.msra.mxu0 %v4401
      %6450 = vmatprep.subr.bf16.mxu0 %v4404
      %6451 = vmatpush1.bf16.msra.mxu0 %v4403
      %6452 = vmatprep.subr.bf16.mxu0 %v4406
      %6453 = vmatpush1.bf16.msra.mxu0 %v4405
      %6454 = vmatprep.subr.bf16.mxu0 %v4408
      %6455 = vmatpush1.bf16.msra.mxu0 %v4407
      %6456 = vmatprep.subr.bf16.mxu0 %v4410
      %6457 = vmatpush1.bf16.msra.mxu0 %v4409
      %6458 = vmatprep.subr.bf16.mxu0 %v4412
      %6459 = vmatpush1.bf16.msra.mxu0 %v4411
      %6460 = vmatprep.subr.bf16.mxu0 %v4414
      %6461 = vmatpush1.bf16.msra.mxu0 %v4413
      %6462 = vmatprep.subr.bf16.mxu0 %v4416
      %6463 = vmatpush1.bf16.msra.mxu0 %v4415
      %6464 = vmatprep.subr.bf16.mxu0 %v4418
      %6465 = vmatpush1.bf16.msra.mxu0 %v4417
      %6466 = vmatprep.subr.bf16.mxu0 %v4420
      %6467 = vmatpush1.bf16.msra.mxu0 %v4419
      %6468 = vmatprep.subr.bf16.mxu0 %v4422
      %6469 = vmatpush1.bf16.msra.mxu0 %v4421
      %6470 = vmatprep.mubr.bf16.mxu0 %v1584
      %6471 = vmatmul.mubr.bf16.gmra.mrb[0].mxu0 %v1583
      %v6472 = vpop.f32.mrb[0].mxu0
      %v6473 = vadd.f32 %v6400, %v6472
      %v6474 = vpop.f32.mrb[0].mxu0
      %v6475 = vadd.f32 %v6402, %v6474
      %v6476 = vpop.f32.mrb[0].mxu0
      %v6477 = vadd.f32 %v6404, %v6476
      %v6478 = vpop.f32.mrb[0].mxu0
      %v6479 = vadd.f32 %v6406, %v6478
      %6480 = vmatprep.mubr.bf16.mxu0 %v1625
      %6481 = vmatmul.mubr.bf16.gmra.mrb[0].mxu0 %v1624
      %v6482 = vpop.f32.mrb[0].mxu0
      %v6483 = vadd.f32 %v6410, %v6482
      %v6484 = vpop.f32.mrb[0].mxu0
      %v6485 = vadd.f32 %v6412, %v6484
      %v6486 = vpop.f32.mrb[0].mxu0
      %v6487 = vadd.f32 %v6414, %v6486
      %v6488 = vpop.f32.mrb[0].mxu0
      %v6489 = vadd.f32 %v6416, %v6488
      %6490 = vmatprep.mubr.bf16.mxu0 %v1666
      %6491 = vmatmul.mubr.bf16.gmra.mrb[0].mxu0 %v1665
      %v6492 = vpop.f32.mrb[0].mxu0
      %v6493 = vadd.f32 %v6420, %v6492
      %v6494 = vpop.f32.mrb[0].mxu0
      %v6495 = vadd.f32 %v6422, %v6494
      %v6496 = vpop.f32.mrb[0].mxu0
      %v6497 = vadd.f32 %v6424, %v6496
      %v6498 = vpop.f32.mrb[0].mxu0
      %v6499 = vadd.f32 %v6426, %v6498
      %6500 = vmatprep.mubr.bf16.mxu0 %v1707
      %6501 = vmatmul.mubr.bf16.gmra.mrb[0].mxu0 %v1706
      %v6502 = vpop.f32.mrb[0].mxu0
      %v6503 = vadd.f32 %v6430, %v6502
      %v6504 = vpop.f32.mrb[0].mxu0
      %v6505 = vadd.f32 %v6432, %v6504
      %v6506 = vpop.f32.mrb[0].mxu0
      %v6507 = vadd.f32 %v6434, %v6506
      %v6508 = vpop.f32.mrb[0].mxu0
      %v6509 = vadd.f32 %v6436, %v6508
      %6510 = vdwg.mxu0
      %6511 = vmatprep.subr.bf16.mxu0 %v4424
      %6512 = vmatpush1.bf16.msra.mxu0 %v4423
      %6513 = vmatprep.subr.bf16.mxu0 %v4426
      %6514 = vmatpush1.bf16.msra.mxu0 %v4425
      %6515 = vmatprep.subr.bf16.mxu0 %v4428
      %6516 = vmatpush1.bf16.msra.mxu0 %v4427
      %6517 = vmatprep.subr.bf16.mxu0 %v4430
      %6518 = vmatpush1.bf16.msra.mxu0 %v4429
      %6519 = vmatprep.subr.bf16.mxu0 %v4432
      %6520 = vmatpush1.bf16.msra.mxu0 %v4431
      %6521 = vmatprep.subr.bf16.mxu0 %v4434
      %6522 = vmatpush1.bf16.msra.mxu0 %v4433
      %6523 = vmatprep.subr.bf16.mxu0 %v4436
      %6524 = vmatpush1.bf16.msra.mxu0 %v4435
      %6525 = vmatprep.subr.bf16.mxu0 %v4438
      %6526 = vmatpush1.bf16.msra.mxu0 %v4437
      %6527 = vmatprep.subr.bf16.mxu0 %v4440
      %6528 = vmatpush1.bf16.msra.mxu0 %v4439
      %6529 = vmatprep.subr.bf16.mxu0 %v4442
      %6530 = vmatpush1.bf16.msra.mxu0 %v4441
      %6531 = vmatprep.subr.bf16.mxu0 %v4444
      %6532 = vmatpush1.bf16.msra.mxu0 %v4443
      %6533 = vmatprep.subr.bf16.mxu0 %v4446
      %6534 = vmatpush1.bf16.msra.mxu0 %v4445
      %6535 = vmatprep.subr.bf16.mxu0 %v4448
      %6536 = vmatpush1.bf16.msra.mxu0 %v4447
      %6537 = vmatprep.subr.bf16.mxu0 %v4450
      %6538 = vmatpush1.bf16.msra.mxu0 %v4449
      %6539 = vmatprep.subr.bf16.mxu0 %v4452
      %6540 = vmatpush1.bf16.msra.mxu0 %v4451
      %6541 = vmatprep.subr.bf16.mxu0 %v4454
      %6542 = vmatpush1.bf16.msra.mxu0 %v4453
      %6543 = vmatprep.mubr.bf16.mxu0 %v1586
      %6544 = vmatmul.mubr.bf16.gmra.mrb[0].mxu0 %v1585
      %v6545 = vpop.f32.mrb[0].mxu0
      %v6546 = vadd.f32 %v6473, %v6545
      %v6547 = vpop.f32.mrb[0].mxu0
      %v6548 = vadd.f32 %v6475, %v6547
      %v6549 = vpop.f32.mrb[0].mxu0
      %v6550 = vadd.f32 %v6477, %v6549
      %v6551 = vpop.f32.mrb[0].mxu0
      %v6552 = vadd.f32 %v6479, %v6551
      %6553 = vmatprep.mubr.bf16.mxu0 %v1627
      %6554 = vmatmul.mubr.bf16.gmra.mrb[0].mxu0 %v1626
      %v6555 = vpop.f32.mrb[0].mxu0
      %v6556 = vadd.f32 %v6483, %v6555
      %v6557 = vpop.f32.mrb[0].mxu0
      %v6558 = vadd.f32 %v6485, %v6557
      %v6559 = vpop.f32.mrb[0].mxu0
      %v6560 = vadd.f32 %v6487, %v6559
      %v6561 = vpop.f32.mrb[0].mxu0
      %v6562 = vadd.f32 %v6489, %v6561
      %6563 = vmatprep.mubr.bf16.mxu0 %v1668
      %6564 = vmatmul.mubr.bf16.gmra.mrb[0].mxu0 %v1667
      %v6565 = vpop.f32.mrb[0].mxu0
      %v6566 = vadd.f32 %v6493, %v6565
      %v6567 = vpop.f32.mrb[0].mxu0
      %v6568 = vadd.f32 %v6495, %v6567
      %v6569 = vpop.f32.mrb[0].mxu0
      %v6570 = vadd.f32 %v6497, %v6569
      %v6571 = vpop.f32.mrb[0].mxu0
      %v6572 = vadd.f32 %v6499, %v6571
      %6573 = vmatprep.mubr.bf16.mxu0 %v1709
      %6574 = vmatmul.mubr.bf16.gmra.mrb[0].mxu0 %v1708
      %v6575 = vpop.f32.mrb[0].mxu0
      %v6576 = vadd.f32 %v6503, %v6575
      %v6577 = vpop.f32.mrb[0].mxu0
      %v6578 = vadd.f32 %v6505, %v6577
      %v6579 = vpop.f32.mrb[0].mxu0
      %v6580 = vadd.f32 %v6507, %v6579
      %v6581 = vpop.f32.mrb[0].mxu0
      %v6582 = vadd.f32 %v6509, %v6581
      %6583 = vdwg.mxu0
      %6584 = vmatprep.subr.bf16.mxu0 %v4456
      %6585 = vmatpush1.bf16.msra.mxu0 %v4455
      %6586 = vmatprep.subr.bf16.mxu0 %v4458
      %6587 = vmatpush1.bf16.msra.mxu0 %v4457
      %6588 = vmatprep.subr.bf16.mxu0 %v4460
      %6589 = vmatpush1.bf16.msra.mxu0 %v4459
      %6590 = vmatprep.subr.bf16.mxu0 %v4462
      %6591 = vmatpush1.bf16.msra.mxu0 %v4461
      %6592 = vmatprep.subr.bf16.mxu0 0
      %6593 = vmatpush1.bf16.msra.mxu0 0
      %6594 = vmatprep.subr.bf16.mxu0 0
      %6595 = vmatpush1.bf16.msra.mxu0 0
      %6596 = vmatprep.subr.bf16.mxu0 0
      %6597 = vmatpush1.bf16.msra.mxu0 0
      %6598 = vmatprep.subr.bf16.mxu0 0
      %6599 = vmatpush1.bf16.msra.mxu0 0
      %6600 = vmatprep.subr.bf16.mxu0 0
      %6601 = vmatpush1.bf16.msra.mxu0 0
      %6602 = vmatprep.subr.bf16.mxu0 0
      %6603 = vmatpush1.bf16.msra.mxu0 0
      %6604 = vmatprep.subr.bf16.mxu0 0
      %6605 = vmatpush1.bf16.msra.mxu0 0
      %6606 = vmatprep.subr.bf16.mxu0 0
      %6607 = vmatpush1.bf16.msra.mxu0 0
      %6608 = vmatprep.subr.bf16.mxu0 0
      %6609 = vmatpush1.bf16.msra.mxu0 0
      %6610 = vmatprep.subr.bf16.mxu0 0
      %6611 = vmatpush1.bf16.msra.mxu0 0
      %6612 = vmatprep.subr.bf16.mxu0 0
      %6613 = vmatpush1.bf16.msra.mxu0 0
      %6614 = vmatprep.subr.bf16.mxu0 0
      %6615 = vmatpush1.bf16.msra.mxu0 0
      %6616 = vmatprep.mubr.bf16.mxu0 0
      %6617 = vmatmul.mubr.bf16.gmra.mrb[0].mxu0 %v5113
      %v6618 = vpop.f32.mrb[0].mxu0
      %v6619 = vadd.f32 %v6546, %v6618
      %v6620 = vpop.f32.mrb[0].mxu0
      %v6621 = vadd.f32 %v6548, %v6620
      %v6622 = vpop.f32.mrb[0].mxu0
      %v6623 = vadd.f32 %v6550, %v6622
      %v6624 = vpop.f32.mrb[0].mxu0
      %v6625 = vadd.f32 %v6552, %v6624
      %6626 = vmatprep.mubr.bf16.mxu0 0
      %6627 = vmatmul.mubr.bf16.gmra.mrb[0].mxu0 %v5116
      %v6628 = vpop.f32.mrb[0].mxu0
      %v6629 = vadd.f32 %v6556, %v6628
      %v6630 = vpop.f32.mrb[0].mxu0
      %v6631 = vadd.f32 %v6558, %v6630
      %v6632 = vpop.f32.mrb[0].mxu0
      %v6633 = vadd.f32 %v6560, %v6632
      %v6634 = vpop.f32.mrb[0].mxu0
      %v6635 = vadd.f32 %v6562, %v6634
      %6636 = vmatprep.mubr.bf16.mxu0 0
      %6637 = vmatmul.mubr.bf16.gmra.mrb[0].mxu0 %v5119
      %v6638 = vpop.f32.mrb[0].mxu0
      %v6639 = vadd.f32 %v6566, %v6638
      %v6640 = vpop.f32.mrb[0].mxu0
      %v6641 = vadd.f32 %v6568, %v6640
      %v6642 = vpop.f32.mrb[0].mxu0
      %v6643 = vadd.f32 %v6570, %v6642
      %v6644 = vpop.f32.mrb[0].mxu0
      %v6645 = vadd.f32 %v6572, %v6644
      %6646 = vmatprep.mubr.bf16.mxu0 0
      %6647 = vmatmul.mubr.bf16.gmra.mrb[0].mxu0 %v5122
      %v6648 = vpop.f32.mrb[0].mxu0
      %v6649 = vadd.f32 %v6576, %v6648
      %v6650 = vpop.f32.mrb[0].mxu0
      %v6651 = vadd.f32 %v6578, %v6650
      %v6652 = vpop.f32.mrb[0].mxu0
      %v6653 = vadd.f32 %v6580, %v6652
      %v6654 = vpop.f32.mrb[0].mxu0
      %v6655 = vadd.f32 %v6582, %v6654
      %6656 = vdwg.mxu0
      %v6657 = vmax.f32 %v6619, 0.0
      %v6658 = vmax.f32 %v6621, 0.0
      %v6659 = vmax.f32 %v6623, 0.0
      %v6660 = vmax.f32 %v6625, 0.0
      %v6661 = vmax.f32 %v6629, 0.0
      %v6662 = vmax.f32 %v6631, 0.0
      %v6663 = vmax.f32 %v6633, 0.0
      %v6664 = vmax.f32 %v6635, 0.0
      %v6665 = vmax.f32 %v6639, 0.0
      %v6666 = vmax.f32 %v6641, 0.0
      %v6667 = vmax.f32 %v6643, 0.0
      %v6668 = vmax.f32 %v6645, 0.0
      %v6669 = vmax.f32 %v6649, 0.0
      %v6670 = vmax.f32 %v6651, 0.0
      %v6671 = vmax.f32 %v6653, 0.0
      %v6672 = vmax.f32 %v6655, 0.0
      %6673 = vst [vmem:[%s213] sm:$0xff] %v6657
      %6674 = vst.msk [vmem:[%s213 + $0x8] sm:$0xff] %vm5111, %v6658
      %6675 = vst [vmem:[%s213 + $0x10] sm:$0xff] %v6659
      %6676 = vst.msk [vmem:[%s213 + $0x18] sm:$0xff] %vm5111, %v6660
      %6677 = vst [vmem:[%s213 + $0x20] sm:$0xff] %v6661
      %6678 = vst.msk [vmem:[%s213 + $0x28] sm:$0xff] %vm5111, %v6662
      %6679 = vst [vmem:[%s213 + $0x30] sm:$0xff] %v6663
      %6680 = vst.msk [vmem:[%s213 + $0x38] sm:$0xff] %vm5111, %v6664
      %6681 = vst [vmem:[%s213 + $0x40] sm:$0xff] %v6665
      %6682 = vst.msk [vmem:[%s213 + $0x48] sm:$0xff] %vm5111, %v6666
      %6683 = vst [vmem:[%s213 + $0x50] sm:$0xff] %v6667
      %6684 = vst.msk [vmem:[%s213 + $0x58] sm:$0xff] %vm5111, %v6668
      %6685 = vst [vmem:[%s213 + $0x60] sm:$0xff] %v6669
      %6686 = vst.msk [vmem:[%s213 + $0x68] sm:$0xff] %vm5111, %v6670
      %6687 = vst [vmem:[%s213 + $0x70] sm:$0xff] %v6671
      %6688 = vst.msk [vmem:[%s213 + $0x78] sm:$0xff] %vm5111, %v6672
      %v6689 = vld [vmem:[%s206] sm:$0xff]
      %v6690 = vld [vmem:[%s206 + $0xa4] sm:$0xff]
      %v6691 = vld [vmem:[%s206 + $0x148] sm:$0xff]
      %v6692 = vld [vmem:[%s206 + $0x1ec] sm:$0xff]
      %v6693 = vld [vmem:[%s206 + $0x290] sm:$0xff]
      %v6694 = vld [vmem:[%s206 + $0x334] sm:$0xff]
      %v6695 = vld [vmem:[%s206 + $0x3d8] sm:$0xff]
      %v6696 = vld [vmem:[%s206 + $0x47c] sm:$0xff]
      %v6697 = vld [vmem:[%s206 + $0x4] sm:$0xff]
      %v6698 = vld [vmem:[%s206 + $0xa8] sm:$0xff]
      %v6699 = vld [vmem:[%s206 + $0x14c] sm:$0xff]
      %v6700 = vld [vmem:[%s206 + $0x1f0] sm:$0xff]
      %v6701 = vld [vmem:[%s206 + $0x294] sm:$0xff]
      %v6702 = vld [vmem:[%s206 + $0x338] sm:$0xff]
      %v6703 = vld [vmem:[%s206 + $0x3dc] sm:$0xff]
      %v6704 = vld [vmem:[%s206 + $0x480] sm:$0xff]
      %6713 = vrot.lane.b32.xlu0 %v6697, 64
      %v6714 = vpop.permute.xlu0 %6713
      %6715 = vrot.lane.b32.xlu0 %v6698, 64
      %v6716 = vpop.permute.xlu0 %6715
      %6717 = vrot.lane.b32.xlu0 %v6699, 64
      %v6718 = vpop.permute.xlu0 %6717
      %6719 = vrot.lane.b32.xlu0 %v6700, 64
      %v6720 = vpop.permute.xlu0 %6719
      %6721 = vrot.lane.b32.xlu0 %v6701, 64
      %v6722 = vpop.permute.xlu0 %6721
      %6723 = vrot.lane.b32.xlu0 %v6702, 64
      %v6724 = vpop.permute.xlu0 %6723
      %6725 = vrot.lane.b32.xlu0 %v6703, 64
      %v6726 = vpop.permute.xlu0 %6725
      %6727 = vrot.lane.b32.xlu0 %v6704, 64
      %v6728 = vpop.permute.xlu0 %6727
      %v6729 = vrot.slane %v6714, 4
      %v6730 = vrot.slane %v6716, 4
      %v6731 = vrot.slane %v6718, 4
      %v6732 = vrot.slane %v6720, 4
      %v6733 = vrot.slane %v6722, 4
      %v6734 = vrot.slane %v6724, 4
      %v6735 = vrot.slane %v6726, 4
      %v6736 = vrot.slane %v6728, 4
      %vm6737 = vcmask 523264
      %v6738 = vsel %vm6737, %v6714, %v6729
      %v6739 = vsel %vm6737, %v6716, %v6730
      %v6740 = vsel %vm6737, %v6718, %v6731
      %v6741 = vsel %vm6737, %v6720, %v6732
      %v6742 = vsel %vm6737, %v6722, %v6733
      %v6743 = vsel %vm6737, %v6724, %v6734
      %v6744 = vsel %vm6737, %v6726, %v6735
      %v6745 = vsel %vm6737, %v6728, %v6736
      %v6754 = vmax.bf16 %v6689, %v6738
      %v6755 = vmax.bf16 %v6690, %v6739
      %v6756 = vmax.bf16 %v6691, %v6740
      %v6757 = vmax.bf16 %v6692, %v6741
      %v6758 = vmax.bf16 %v6693, %v6742
      %v6759 = vmax.bf16 %v6694, %v6743
      %v6760 = vmax.bf16 %v6695, %v6744
      %v6761 = vmax.bf16 %v6696, %v6745
      %v6762 = vld [vmem:[%s206 + $0xc] sm:$0xff]
      %v6763 = vld [vmem:[%s206 + $0xb0] sm:$0xff]
      %v6764 = vld [vmem:[%s206 + $0x154] sm:$0xff]
      %v6765 = vld [vmem:[%s206 + $0x1f8] sm:$0xff]
      %v6766 = vld [vmem:[%s206 + $0x29c] sm:$0xff]
      %v6767 = vld [vmem:[%s206 + $0x340] sm:$0xff]
      %v6768 = vld [vmem:[%s206 + $0x3e4] sm:$0xff]
      %v6769 = vld [vmem:[%s206 + $0x488] sm:$0xff]
      %v6770 = vmax.bf16 %v6754, %v6762
      %v6771 = vmax.bf16 %v6755, %v6763
      %v6772 = vmax.bf16 %v6756, %v6764
      %v6773 = vmax.bf16 %v6757, %v6765
      %v6774 = vmax.bf16 %v6758, %v6766
      %v6775 = vmax.bf16 %v6759, %v6767
      %v6776 = vmax.bf16 %v6760, %v6768
      %v6777 = vmax.bf16 %v6761, %v6769
      %v6778 = vld [vmem:[%s206 + $0x10] sm:$0xff]
      %v6779 = vld [vmem:[%s206 + $0xb4] sm:$0xff]
      %v6780 = vld [vmem:[%s206 + $0x158] sm:$0xff]
      %v6781 = vld [vmem:[%s206 + $0x1fc] sm:$0xff]
      %v6782 = vld [vmem:[%s206 + $0x2a0] sm:$0xff]
      %v6783 = vld [vmem:[%s206 + $0x344] sm:$0xff]
      %v6784 = vld [vmem:[%s206 + $0x3e8] sm:$0xff]
      %v6785 = vld [vmem:[%s206 + $0x48c] sm:$0xff]
      %6794 = vrot.lane.b32.xlu0 %v6778, 64
      %v6795 = vpop.permute.xlu0 %6794
      %6796 = vrot.lane.b32.xlu0 %v6779, 64
      %v6797 = vpop.permute.xlu0 %6796
      %6798 = vrot.lane.b32.xlu0 %v6780, 64
      %v6799 = vpop.permute.xlu0 %6798
      %6800 = vrot.lane.b32.xlu0 %v6781, 64
      %v6801 = vpop.permute.xlu0 %6800
      %6802 = vrot.lane.b32.xlu0 %v6782, 64
      %v6803 = vpop.permute.xlu0 %6802
      %6804 = vrot.lane.b32.xlu0 %v6783, 64
      %v6805 = vpop.permute.xlu0 %6804
      %6806 = vrot.lane.b32.xlu0 %v6784, 64
      %v6807 = vpop.permute.xlu0 %6806
      %6808 = vrot.lane.b32.xlu0 %v6785, 64
      %v6809 = vpop.permute.xlu0 %6808
      %v6810 = vrot.slane %v6795, 4
      %v6811 = vrot.slane %v6797, 4
      %v6812 = vrot.slane %v6799, 4
      %v6813 = vrot.slane %v6801, 4
      %v6814 = vrot.slane %v6803, 4
      %v6815 = vrot.slane %v6805, 4
      %v6816 = vrot.slane %v6807, 4
      %v6817 = vrot.slane %v6809, 4
      %v6818 = vsel %vm6737, %v6795, %v6810
      %v6819 = vsel %vm6737, %v6797, %v6811
      %v6820 = vsel %vm6737, %v6799, %v6812
      %v6821 = vsel %vm6737, %v6801, %v6813
      %v6822 = vsel %vm6737, %v6803, %v6814
      %v6823 = vsel %vm6737, %v6805, %v6815
      %v6824 = vsel %vm6737, %v6807, %v6816
      %v6825 = vsel %vm6737, %v6809, %v6817
      %v6834 = vmax.bf16 %v6770, %v6818
      %v6835 = vmax.bf16 %v6771, %v6819
      %v6836 = vmax.bf16 %v6772, %v6820
      %v6837 = vmax.bf16 %v6773, %v6821
      %v6838 = vmax.bf16 %v6774, %v6822
      %v6839 = vmax.bf16 %v6775, %v6823
      %v6840 = vmax.bf16 %v6776, %v6824
      %v6841 = vmax.bf16 %v6777, %v6825
      %v6842 = vld [vmem:[%s206 + $0x18] sm:$0xff]
      %v6843 = vld [vmem:[%s206 + $0xbc] sm:$0xff]
      %v6844 = vld [vmem:[%s206 + $0x160] sm:$0xff]
      %v6845 = vld [vmem:[%s206 + $0x204] sm:$0xff]
      %v6846 = vld [vmem:[%s206 + $0x2a8] sm:$0xff]
      %v6847 = vld [vmem:[%s206 + $0x34c] sm:$0xff]
      %v6848 = vld [vmem:[%s206 + $0x3f0] sm:$0xff]
      %v6849 = vld [vmem:[%s206 + $0x494] sm:$0xff]
      %v6850 = vmax.bf16 %v6834, %v6842
      %v6851 = vmax.bf16 %v6835, %v6843
      %v6852 = vmax.bf16 %v6836, %v6844
      %v6853 = vmax.bf16 %v6837, %v6845
      %v6854 = vmax.bf16 %v6838, %v6846
      %v6855 = vmax.bf16 %v6839, %v6847
      %v6856 = vmax.bf16 %v6840, %v6848
      %v6857 = vmax.bf16 %v6841, %v6849
      %v6858 = vld [vmem:[%s206 + $0x1c] sm:$0xff]
      %v6859 = vld [vmem:[%s206 + $0xc0] sm:$0xff]
      %v6860 = vld [vmem:[%s206 + $0x164] sm:$0xff]
      %v6861 = vld [vmem:[%s206 + $0x208] sm:$0xff]
      %v6862 = vld [vmem:[%s206 + $0x2ac] sm:$0xff]
      %v6863 = vld [vmem:[%s206 + $0x350] sm:$0xff]
      %v6864 = vld [vmem:[%s206 + $0x3f4] sm:$0xff]
      %v6865 = vld [vmem:[%s206 + $0x498] sm:$0xff]
      %6874 = vrot.lane.b32.xlu0 %v6858, 64
      %v6875 = vpop.permute.xlu0 %6874
      %6876 = vrot.lane.b32.xlu0 %v6859, 64
      %v6877 = vpop.permute.xlu0 %6876
      %6878 = vrot.lane.b32.xlu0 %v6860, 64
      %v6879 = vpop.permute.xlu0 %6878
      %6880 = vrot.lane.b32.xlu0 %v6861, 64
      %v6881 = vpop.permute.xlu0 %6880
      %6882 = vrot.lane.b32.xlu0 %v6862, 64
      %v6883 = vpop.permute.xlu0 %6882
      %6884 = vrot.lane.b32.xlu0 %v6863, 64
      %v6885 = vpop.permute.xlu0 %6884
      %6886 = vrot.lane.b32.xlu0 %v6864, 64
      %v6887 = vpop.permute.xlu0 %6886
      %6888 = vrot.lane.b32.xlu0 %v6865, 64
      %v6889 = vpop.permute.xlu0 %6888
      %v6890 = vrot.slane %v6875, 4
      %v6891 = vrot.slane %v6877, 4
      %v6892 = vrot.slane %v6879, 4
      %v6893 = vrot.slane %v6881, 4
      %v6894 = vrot.slane %v6883, 4
      %v6895 = vrot.slane %v6885, 4
      %v6896 = vrot.slane %v6887, 4
      %v6897 = vrot.slane %v6889, 4
      %v6898 = vsel %vm6737, %v6875, %v6890
      %v6899 = vsel %vm6737, %v6877, %v6891
      %v6900 = vsel %vm6737, %v6879, %v6892
      %v6901 = vsel %vm6737, %v6881, %v6893
      %v6902 = vsel %vm6737, %v6883, %v6894
      %v6903 = vsel %vm6737, %v6885, %v6895
      %v6904 = vsel %vm6737, %v6887, %v6896
      %v6905 = vsel %vm6737, %v6889, %v6897
      %v6914 = vmax.bf16 %v6850, %v6898
      %v6915 = vmax.bf16 %v6851, %v6899
      %v6916 = vmax.bf16 %v6852, %v6900
      %v6917 = vmax.bf16 %v6853, %v6901
      %v6918 = vmax.bf16 %v6854, %v6902
      %v6919 = vmax.bf16 %v6855, %v6903
      %v6920 = vmax.bf16 %v6856, %v6904
      %v6921 = vmax.bf16 %v6857, %v6905
      %v6922 = vld [vmem:[%s206 + $0x24] sm:$0xff]
      %v6923 = vld [vmem:[%s206 + $0xc8] sm:$0xff]
      %v6924 = vld [vmem:[%s206 + $0x16c] sm:$0xff]
      %v6925 = vld [vmem:[%s206 + $0x210] sm:$0xff]
      %v6926 = vld [vmem:[%s206 + $0x2b4] sm:$0xff]
      %v6927 = vld [vmem:[%s206 + $0x358] sm:$0xff]
      %v6928 = vld [vmem:[%s206 + $0x3fc] sm:$0xff]
      %v6929 = vld [vmem:[%s206 + $0x4a0] sm:$0xff]
      %v6930 = vmax.bf16 %v6914, %v6922
      %v6931 = vmax.bf16 %v6915, %v6923
      %v6932 = vmax.bf16 %v6916, %v6924
      %v6933 = vmax.bf16 %v6917, %v6925
      %v6934 = vmax.bf16 %v6918, %v6926
      %v6935 = vmax.bf16 %v6919, %v6927
      %v6936 = vmax.bf16 %v6920, %v6928
      %v6937 = vmax.bf16 %v6921, %v6929
      %v6938 = vld [vmem:[%s206 + $0x28] sm:$0xff]
      %v6939 = vld [vmem:[%s206 + $0xcc] sm:$0xff]
      %v6940 = vld [vmem:[%s206 + $0x170] sm:$0xff]
      %v6941 = vld [vmem:[%s206 + $0x214] sm:$0xff]
      %v6942 = vld [vmem:[%s206 + $0x2b8] sm:$0xff]
      %v6943 = vld [vmem:[%s206 + $0x35c] sm:$0xff]
      %v6944 = vld [vmem:[%s206 + $0x400] sm:$0xff]
      %v6945 = vld [vmem:[%s206 + $0x4a4] sm:$0xff]
      %6954 = vrot.lane.b32.xlu0 %v6938, 64
      %v6955 = vpop.permute.xlu0 %6954
      %6956 = vrot.lane.b32.xlu0 %v6939, 64
      %v6957 = vpop.permute.xlu0 %6956
      %6958 = vrot.lane.b32.xlu0 %v6940, 64
      %v6959 = vpop.permute.xlu0 %6958
      %6960 = vrot.lane.b32.xlu0 %v6941, 64
      %v6961 = vpop.permute.xlu0 %6960
      %6962 = vrot.lane.b32.xlu0 %v6942, 64
      %v6963 = vpop.permute.xlu0 %6962
      %6964 = vrot.lane.b32.xlu0 %v6943, 64
      %v6965 = vpop.permute.xlu0 %6964
      %6966 = vrot.lane.b32.xlu0 %v6944, 64
      %v6967 = vpop.permute.xlu0 %6966
      %6968 = vrot.lane.b32.xlu0 %v6945, 64
      %v6969 = vpop.permute.xlu0 %6968
      %v6970 = vrot.slane %v6955, 4
      %v6971 = vrot.slane %v6957, 4
      %v6972 = vrot.slane %v6959, 4
      %v6973 = vrot.slane %v6961, 4
      %v6974 = vrot.slane %v6963, 4
      %v6975 = vrot.slane %v6965, 4
      %v6976 = vrot.slane %v6967, 4
      %v6977 = vrot.slane %v6969, 4
      %v6978 = vsel %vm6737, %v6955, %v6970
      %v6979 = vsel %vm6737, %v6957, %v6971
      %v6980 = vsel %vm6737, %v6959, %v6972
      %v6981 = vsel %vm6737, %v6961, %v6973
      %v6982 = vsel %vm6737, %v6963, %v6974
      %v6983 = vsel %vm6737, %v6965, %v6975
      %v6984 = vsel %vm6737, %v6967, %v6976
      %v6985 = vsel %vm6737, %v6969, %v6977
      %v6994 = vmax.bf16 %v6930, %v6978
      %v6995 = vmax.bf16 %v6931, %v6979
      %v6996 = vmax.bf16 %v6932, %v6980
      %v6997 = vmax.bf16 %v6933, %v6981
      %v6998 = vmax.bf16 %v6934, %v6982
      %v6999 = vmax.bf16 %v6935, %v6983
      %v7000 = vmax.bf16 %v6936, %v6984
      %v7001 = vmax.bf16 %v6937, %v6985
      %v7002 = vld [vmem:[%s206 + $0x30] sm:$0xff]
      %v7003 = vld [vmem:[%s206 + $0xd4] sm:$0xff]
      %v7004 = vld [vmem:[%s206 + $0x178] sm:$0xff]
      %v7005 = vld [vmem:[%s206 + $0x21c] sm:$0xff]
      %v7006 = vld [vmem:[%s206 + $0x2c0] sm:$0xff]
      %v7007 = vld [vmem:[%s206 + $0x364] sm:$0xff]
      %v7008 = vld [vmem:[%s206 + $0x408] sm:$0xff]
      %v7009 = vld [vmem:[%s206 + $0x4ac] sm:$0xff]
      %v7010 = vmax.bf16 %v6994, %v7002
      %v7011 = vmax.bf16 %v6995, %v7003
      %v7012 = vmax.bf16 %v6996, %v7004
      %v7013 = vmax.bf16 %v6997, %v7005
      %v7014 = vmax.bf16 %v6998, %v7006
      %v7015 = vmax.bf16 %v6999, %v7007
      %v7016 = vmax.bf16 %v7000, %v7008
      %v7017 = vmax.bf16 %v7001, %v7009
      %v7018 = vld [vmem:[%s206 + $0x34] sm:$0xff]
      %v7019 = vld [vmem:[%s206 + $0xd8] sm:$0xff]
      %v7020 = vld [vmem:[%s206 + $0x17c] sm:$0xff]
      %v7021 = vld [vmem:[%s206 + $0x220] sm:$0xff]
      %v7022 = vld [vmem:[%s206 + $0x2c4] sm:$0xff]
      %v7023 = vld [vmem:[%s206 + $0x368] sm:$0xff]
      %v7024 = vld [vmem:[%s206 + $0x40c] sm:$0xff]
      %v7025 = vld [vmem:[%s206 + $0x4b0] sm:$0xff]
      %7034 = vrot.lane.b32.xlu0 %v7018, 64
      %v7035 = vpop.permute.xlu0 %7034
      %7036 = vrot.lane.b32.xlu0 %v7019, 64
      %v7037 = vpop.permute.xlu0 %7036
      %7038 = vrot.lane.b32.xlu0 %v7020, 64
      %v7039 = vpop.permute.xlu0 %7038
      %7040 = vrot.lane.b32.xlu0 %v7021, 64
      %v7041 = vpop.permute.xlu0 %7040
      %7042 = vrot.lane.b32.xlu0 %v7022, 64
      %v7043 = vpop.permute.xlu0 %7042
      %7044 = vrot.lane.b32.xlu0 %v7023, 64
      %v7045 = vpop.permute.xlu0 %7044
      %7046 = vrot.lane.b32.xlu0 %v7024, 64
      %v7047 = vpop.permute.xlu0 %7046
      %7048 = vrot.lane.b32.xlu0 %v7025, 64
      %v7049 = vpop.permute.xlu0 %7048
      %v7050 = vrot.slane %v7035, 4
      %v7051 = vrot.slane %v7037, 4
      %v7052 = vrot.slane %v7039, 4
      %v7053 = vrot.slane %v7041, 4
      %v7054 = vrot.slane %v7043, 4
      %v7055 = vrot.slane %v7045, 4
      %v7056 = vrot.slane %v7047, 4
      %v7057 = vrot.slane %v7049, 4
      %v7058 = vsel %vm6737, %v7035, %v7050
      %v7059 = vsel %vm6737, %v7037, %v7051
      %v7060 = vsel %vm6737, %v7039, %v7052
      %v7061 = vsel %vm6737, %v7041, %v7053
      %v7062 = vsel %vm6737, %v7043, %v7054
      %v7063 = vsel %vm6737, %v7045, %v7055
      %v7064 = vsel %vm6737, %v7047, %v7056
      %v7065 = vsel %vm6737, %v7049, %v7057
      %v7074 = vmax.bf16 %v7010, %v7058
      %v7075 = vmax.bf16 %v7011, %v7059
      %v7076 = vmax.bf16 %v7012, %v7060
      %v7077 = vmax.bf16 %v7013, %v7061
      %v7078 = vmax.bf16 %v7014, %v7062
      %v7079 = vmax.bf16 %v7015, %v7063
      %v7080 = vmax.bf16 %v7016, %v7064
      %v7081 = vmax.bf16 %v7017, %v7065
      %v7082 = vld [vmem:[%s206 + $0x3c] sm:$0xff]
      %v7083 = vld [vmem:[%s206 + $0xe0] sm:$0xff]
      %v7084 = vld [vmem:[%s206 + $0x184] sm:$0xff]
      %v7085 = vld [vmem:[%s206 + $0x228] sm:$0xff]
      %v7086 = vld [vmem:[%s206 + $0x2cc] sm:$0xff]
      %v7087 = vld [vmem:[%s206 + $0x370] sm:$0xff]
      %v7088 = vld [vmem:[%s206 + $0x414] sm:$0xff]
      %v7089 = vld [vmem:[%s206 + $0x4b8] sm:$0xff]
      %v7090 = vmax.bf16 %v7074, %v7082
      %v7091 = vmax.bf16 %v7075, %v7083
      %v7092 = vmax.bf16 %v7076, %v7084
      %v7093 = vmax.bf16 %v7077, %v7085
      %v7094 = vmax.bf16 %v7078, %v7086
      %v7095 = vmax.bf16 %v7079, %v7087
      %v7096 = vmax.bf16 %v7080, %v7088
      %v7097 = vmax.bf16 %v7081, %v7089
      %v7098 = vld [vmem:[%s206 + $0x40] sm:$0xff]
      %v7099 = vld [vmem:[%s206 + $0xe4] sm:$0xff]
      %v7100 = vld [vmem:[%s206 + $0x188] sm:$0xff]
      %v7101 = vld [vmem:[%s206 + $0x22c] sm:$0xff]
      %v7102 = vld [vmem:[%s206 + $0x2d0] sm:$0xff]
      %v7103 = vld [vmem:[%s206 + $0x374] sm:$0xff]
      %v7104 = vld [vmem:[%s206 + $0x418] sm:$0xff]
      %v7105 = vld [vmem:[%s206 + $0x4bc] sm:$0xff]
      %7114 = vrot.lane.b32.xlu0 %v7098, 64
      %v7115 = vpop.permute.xlu0 %7114
      %7116 = vrot.lane.b32.xlu0 %v7099, 64
      %v7117 = vpop.permute.xlu0 %7116
      %7118 = vrot.lane.b32.xlu0 %v7100, 64
      %v7119 = vpop.permute.xlu0 %7118
      %7120 = vrot.lane.b32.xlu0 %v7101, 64
      %v7121 = vpop.permute.xlu0 %7120
      %7122 = vrot.lane.b32.xlu0 %v7102, 64
      %v7123 = vpop.permute.xlu0 %7122
      %7124 = vrot.lane.b32.xlu0 %v7103, 64
      %v7125 = vpop.permute.xlu0 %7124
      %7126 = vrot.lane.b32.xlu0 %v7104, 64
      %v7127 = vpop.permute.xlu0 %7126
      %7128 = vrot.lane.b32.xlu0 %v7105, 64
      %v7129 = vpop.permute.xlu0 %7128
      %v7130 = vrot.slane %v7115, 4
      %v7131 = vrot.slane %v7117, 4
      %v7132 = vrot.slane %v7119, 4
      %v7133 = vrot.slane %v7121, 4
      %v7134 = vrot.slane %v7123, 4
      %v7135 = vrot.slane %v7125, 4
      %v7136 = vrot.slane %v7127, 4
      %v7137 = vrot.slane %v7129, 4
      %v7138 = vsel %vm6737, %v7115, %v7130
      %v7139 = vsel %vm6737, %v7117, %v7131
      %v7140 = vsel %vm6737, %v7119, %v7132
      %v7141 = vsel %vm6737, %v7121, %v7133
      %v7142 = vsel %vm6737, %v7123, %v7134
      %v7143 = vsel %vm6737, %v7125, %v7135
      %v7144 = vsel %vm6737, %v7127, %v7136
      %v7145 = vsel %vm6737, %v7129, %v7137
      %v7154 = vmax.bf16 %v7090, %v7138
      %v7155 = vmax.bf16 %v7091, %v7139
      %v7156 = vmax.bf16 %v7092, %v7140
      %v7157 = vmax.bf16 %v7093, %v7141
      %v7158 = vmax.bf16 %v7094, %v7142
      %v7159 = vmax.bf16 %v7095, %v7143
      %v7160 = vmax.bf16 %v7096, %v7144
      %v7161 = vmax.bf16 %v7097, %v7145
      %v7162 = vld [vmem:[%s206 + $0x48] sm:$0xff]
      %v7163 = vld [vmem:[%s206 + $0xec] sm:$0xff]
      %v7164 = vld [vmem:[%s206 + $0x190] sm:$0xff]
      %v7165 = vld [vmem:[%s206 + $0x234] sm:$0xff]
      %v7166 = vld [vmem:[%s206 + $0x2d8] sm:$0xff]
      %v7167 = vld [vmem:[%s206 + $0x37c] sm:$0xff]
      %v7168 = vld [vmem:[%s206 + $0x420] sm:$0xff]
      %v7169 = vld [vmem:[%s206 + $0x4c4] sm:$0xff]
      %v7170 = vmax.bf16 %v7154, %v7162
      %v7171 = vmax.bf16 %v7155, %v7163
      %v7172 = vmax.bf16 %v7156, %v7164
      %v7173 = vmax.bf16 %v7157, %v7165
      %v7174 = vmax.bf16 %v7158, %v7166
      %v7175 = vmax.bf16 %v7159, %v7167
      %v7176 = vmax.bf16 %v7160, %v7168
      %v7177 = vmax.bf16 %v7161, %v7169
      %v7178 = vld [vmem:[%s206 + $0x4c] sm:$0xff]
      %v7179 = vld [vmem:[%s206 + $0xf0] sm:$0xff]
      %v7180 = vld [vmem:[%s206 + $0x194] sm:$0xff]
      %v7181 = vld [vmem:[%s206 + $0x238] sm:$0xff]
      %v7182 = vld [vmem:[%s206 + $0x2dc] sm:$0xff]
      %v7183 = vld [vmem:[%s206 + $0x380] sm:$0xff]
      %v7184 = vld [vmem:[%s206 + $0x424] sm:$0xff]
      %v7185 = vld [vmem:[%s206 + $0x4c8] sm:$0xff]
      %7194 = vrot.lane.b32.xlu0 %v7178, 64
      %v7195 = vpop.permute.xlu0 %7194
      %7196 = vrot.lane.b32.xlu0 %v7179, 64
      %v7197 = vpop.permute.xlu0 %7196
      %7198 = vrot.lane.b32.xlu0 %v7180, 64
      %v7199 = vpop.permute.xlu0 %7198
      %7200 = vrot.lane.b32.xlu0 %v7181, 64
      %v7201 = vpop.permute.xlu0 %7200
      %7202 = vrot.lane.b32.xlu0 %v7182, 64
      %v7203 = vpop.permute.xlu0 %7202
      %7204 = vrot.lane.b32.xlu0 %v7183, 64
      %v7205 = vpop.permute.xlu0 %7204
      %7206 = vrot.lane.b32.xlu0 %v7184, 64
      %v7207 = vpop.permute.xlu0 %7206
      %7208 = vrot.lane.b32.xlu0 %v7185, 64
      %v7209 = vpop.permute.xlu0 %7208
      %v7210 = vrot.slane %v7195, 4
      %v7211 = vrot.slane %v7197, 4
      %v7212 = vrot.slane %v7199, 4
      %v7213 = vrot.slane %v7201, 4
      %v7214 = vrot.slane %v7203, 4
      %v7215 = vrot.slane %v7205, 4
      %v7216 = vrot.slane %v7207, 4
      %v7217 = vrot.slane %v7209, 4
      %v7218 = vsel %vm6737, %v7195, %v7210
      %v7219 = vsel %vm6737, %v7197, %v7211
      %v7220 = vsel %vm6737, %v7199, %v7212
      %v7221 = vsel %vm6737, %v7201, %v7213
      %v7222 = vsel %vm6737, %v7203, %v7214
      %v7223 = vsel %vm6737, %v7205, %v7215
      %v7224 = vsel %vm6737, %v7207, %v7216
      %v7225 = vsel %vm6737, %v7209, %v7217
      %v7234 = vmax.bf16 %v7170, %v7218
      %v7235 = vmax.bf16 %v7171, %v7219
      %v7236 = vmax.bf16 %v7172, %v7220
      %v7237 = vmax.bf16 %v7173, %v7221
      %v7238 = vmax.bf16 %v7174, %v7222
      %v7239 = vmax.bf16 %v7175, %v7223
      %v7240 = vmax.bf16 %v7176, %v7224
      %v7241 = vmax.bf16 %v7177, %v7225
      %v7242 = vld [vmem:[%s206 + $0x54] sm:$0xff]
      %v7243 = vld [vmem:[%s206 + $0xf8] sm:$0xff]
      %v7244 = vld [vmem:[%s206 + $0x19c] sm:$0xff]
      %v7245 = vld [vmem:[%s206 + $0x240] sm:$0xff]
      %v7246 = vld [vmem:[%s206 + $0x2e4] sm:$0xff]
      %v7247 = vld [vmem:[%s206 + $0x388] sm:$0xff]
      %v7248 = vld [vmem:[%s206 + $0x42c] sm:$0xff]
      %v7249 = vld [vmem:[%s206 + $0x4d0] sm:$0xff]
      %v7250 = vmax.bf16 %v7234, %v7242
      %v7251 = vmax.bf16 %v7235, %v7243
      %v7252 = vmax.bf16 %v7236, %v7244
      %v7253 = vmax.bf16 %v7237, %v7245
      %v7254 = vmax.bf16 %v7238, %v7246
      %v7255 = vmax.bf16 %v7239, %v7247
      %v7256 = vmax.bf16 %v7240, %v7248
      %v7257 = vmax.bf16 %v7241, %v7249
      %v7258 = vld [vmem:[%s206 + $0x58] sm:$0xff]
      %v7259 = vld [vmem:[%s206 + $0xfc] sm:$0xff]
      %v7260 = vld [vmem:[%s206 + $0x1a0] sm:$0xff]
      %v7261 = vld [vmem:[%s206 + $0x244] sm:$0xff]
      %v7262 = vld [vmem:[%s206 + $0x2e8] sm:$0xff]
      %v7263 = vld [vmem:[%s206 + $0x38c] sm:$0xff]
      %v7264 = vld [vmem:[%s206 + $0x430] sm:$0xff]
      %v7265 = vld [vmem:[%s206 + $0x4d4] sm:$0xff]
      %7274 = vrot.lane.b32.xlu0 %v7258, 64
      %v7275 = vpop.permute.xlu0 %7274
      %7276 = vrot.lane.b32.xlu0 %v7259, 64
      %v7277 = vpop.permute.xlu0 %7276
      %7278 = vrot.lane.b32.xlu0 %v7260, 64
      %v7279 = vpop.permute.xlu0 %7278
      %7280 = vrot.lane.b32.xlu0 %v7261, 64
      %v7281 = vpop.permute.xlu0 %7280
      %7282 = vrot.lane.b32.xlu0 %v7262, 64
      %v7283 = vpop.permute.xlu0 %7282
      %7284 = vrot.lane.b32.xlu0 %v7263, 64
      %v7285 = vpop.permute.xlu0 %7284
      %7286 = vrot.lane.b32.xlu0 %v7264, 64
      %v7287 = vpop.permute.xlu0 %7286
      %7288 = vrot.lane.b32.xlu0 %v7265, 64
      %v7289 = vpop.permute.xlu0 %7288
      %v7290 = vrot.slane %v7275, 4
      %v7291 = vrot.slane %v7277, 4
      %v7292 = vrot.slane %v7279, 4
      %v7293 = vrot.slane %v7281, 4
      %v7294 = vrot.slane %v7283, 4
      %v7295 = vrot.slane %v7285, 4
      %v7296 = vrot.slane %v7287, 4
      %v7297 = vrot.slane %v7289, 4
      %v7298 = vsel %vm6737, %v7275, %v7290
      %v7299 = vsel %vm6737, %v7277, %v7291
      %v7300 = vsel %vm6737, %v7279, %v7292
      %v7301 = vsel %vm6737, %v7281, %v7293
      %v7302 = vsel %vm6737, %v7283, %v7294
      %v7303 = vsel %vm6737, %v7285, %v7295
      %v7304 = vsel %vm6737, %v7287, %v7296
      %v7305 = vsel %vm6737, %v7289, %v7297
      %v7314 = vmax.bf16 %v7250, %v7298
      %v7315 = vmax.bf16 %v7251, %v7299
      %v7316 = vmax.bf16 %v7252, %v7300
      %v7317 = vmax.bf16 %v7253, %v7301
      %v7318 = vmax.bf16 %v7254, %v7302
      %v7319 = vmax.bf16 %v7255, %v7303
      %v7320 = vmax.bf16 %v7256, %v7304
      %v7321 = vmax.bf16 %v7257, %v7305
      %v7322 = vld [vmem:[%s206 + $0x60] sm:$0xff]
      %v7323 = vld [vmem:[%s206 + $0x104] sm:$0xff]
      %v7324 = vld [vmem:[%s206 + $0x1a8] sm:$0xff]
      %v7325 = vld [vmem:[%s206 + $0x24c] sm:$0xff]
      %v7326 = vld [vmem:[%s206 + $0x2f0] sm:$0xff]
      %v7327 = vld [vmem:[%s206 + $0x394] sm:$0xff]
      %v7328 = vld [vmem:[%s206 + $0x438] sm:$0xff]
      %v7329 = vld [vmem:[%s206 + $0x4dc] sm:$0xff]
      %v7330 = vmax.bf16 %v7314, %v7322
      %v7331 = vmax.bf16 %v7315, %v7323
      %v7332 = vmax.bf16 %v7316, %v7324
      %v7333 = vmax.bf16 %v7317, %v7325
      %v7334 = vmax.bf16 %v7318, %v7326
      %v7335 = vmax.bf16 %v7319, %v7327
      %v7336 = vmax.bf16 %v7320, %v7328
      %v7337 = vmax.bf16 %v7321, %v7329
      %v7338 = vld [vmem:[%s206 + $0x64] sm:$0xff]
      %v7339 = vld [vmem:[%s206 + $0x108] sm:$0xff]
      %v7340 = vld [vmem:[%s206 + $0x1ac] sm:$0xff]
      %v7341 = vld [vmem:[%s206 + $0x250] sm:$0xff]
      %v7342 = vld [vmem:[%s206 + $0x2f4] sm:$0xff]
      %v7343 = vld [vmem:[%s206 + $0x398] sm:$0xff]
      %v7344 = vld [vmem:[%s206 + $0x43c] sm:$0xff]
      %v7345 = vld [vmem:[%s206 + $0x4e0] sm:$0xff]
      %7354 = vrot.lane.b32.xlu0 %v7338, 64
      %v7355 = vpop.permute.xlu0 %7354
      %7356 = vrot.lane.b32.xlu0 %v7339, 64
      %v7357 = vpop.permute.xlu0 %7356
      %7358 = vrot.lane.b32.xlu0 %v7340, 64
      %v7359 = vpop.permute.xlu0 %7358
      %7360 = vrot.lane.b32.xlu0 %v7341, 64
      %v7361 = vpop.permute.xlu0 %7360
      %7362 = vrot.lane.b32.xlu0 %v7342, 64
      %v7363 = vpop.permute.xlu0 %7362
      %7364 = vrot.lane.b32.xlu0 %v7343, 64
      %v7365 = vpop.permute.xlu0 %7364
      %7366 = vrot.lane.b32.xlu0 %v7344, 64
      %v7367 = vpop.permute.xlu0 %7366
      %7368 = vrot.lane.b32.xlu0 %v7345, 64
      %v7369 = vpop.permute.xlu0 %7368
      %v7370 = vrot.slane %v7355, 4
      %v7371 = vrot.slane %v7357, 4
      %v7372 = vrot.slane %v7359, 4
      %v7373 = vrot.slane %v7361, 4
      %v7374 = vrot.slane %v7363, 4
      %v7375 = vrot.slane %v7365, 4
      %v7376 = vrot.slane %v7367, 4
      %v7377 = vrot.slane %v7369, 4
      %v7378 = vsel %vm6737, %v7355, %v7370
      %v7379 = vsel %vm6737, %v7357, %v7371
      %v7380 = vsel %vm6737, %v7359, %v7372
      %v7381 = vsel %vm6737, %v7361, %v7373
      %v7382 = vsel %vm6737, %v7363, %v7374
      %v7383 = vsel %vm6737, %v7365, %v7375
      %v7384 = vsel %vm6737, %v7367, %v7376
      %v7385 = vsel %vm6737, %v7369, %v7377
      %v7394 = vmax.bf16 %v7330, %v7378
      %v7395 = vmax.bf16 %v7331, %v7379
      %v7396 = vmax.bf16 %v7332, %v7380
      %v7397 = vmax.bf16 %v7333, %v7381
      %v7398 = vmax.bf16 %v7334, %v7382
      %v7399 = vmax.bf16 %v7335, %v7383
      %v7400 = vmax.bf16 %v7336, %v7384
      %v7401 = vmax.bf16 %v7337, %v7385
      %v7402 = vld [vmem:[%s206 + $0x6c] sm:$0xff]
      %v7403 = vld [vmem:[%s206 + $0x110] sm:$0xff]
      %v7404 = vld [vmem:[%s206 + $0x1b4] sm:$0xff]
      %v7405 = vld [vmem:[%s206 + $0x258] sm:$0xff]
      %v7406 = vld [vmem:[%s206 + $0x2fc] sm:$0xff]
      %v7407 = vld [vmem:[%s206 + $0x3a0] sm:$0xff]
      %v7408 = vld [vmem:[%s206 + $0x444] sm:$0xff]
      %v7409 = vld [vmem:[%s206 + $0x4e8] sm:$0xff]
      %v7410 = vmax.bf16 %v7394, %v7402
      %v7411 = vmax.bf16 %v7395, %v7403
      %v7412 = vmax.bf16 %v7396, %v7404
      %v7413 = vmax.bf16 %v7397, %v7405
      %v7414 = vmax.bf16 %v7398, %v7406
      %v7415 = vmax.bf16 %v7399, %v7407
      %v7416 = vmax.bf16 %v7400, %v7408
      %v7417 = vmax.bf16 %v7401, %v7409
      %v7418 = vld [vmem:[%s206 + $0x70] sm:$0xff]
      %v7419 = vld [vmem:[%s206 + $0x114] sm:$0xff]
      %v7420 = vld [vmem:[%s206 + $0x1b8] sm:$0xff]
      %v7421 = vld [vmem:[%s206 + $0x25c] sm:$0xff]
      %v7422 = vld [vmem:[%s206 + $0x300] sm:$0xff]
      %v7423 = vld [vmem:[%s206 + $0x3a4] sm:$0xff]
      %v7424 = vld [vmem:[%s206 + $0x448] sm:$0xff]
      %v7425 = vld [vmem:[%s206 + $0x4ec] sm:$0xff]
      %7434 = vrot.lane.b32.xlu0 %v7418, 64
      %v7435 = vpop.permute.xlu0 %7434
      %7436 = vrot.lane.b32.xlu0 %v7419, 64
      %v7437 = vpop.permute.xlu0 %7436
      %7438 = vrot.lane.b32.xlu0 %v7420, 64
      %v7439 = vpop.permute.xlu0 %7438
      %7440 = vrot.lane.b32.xlu0 %v7421, 64
      %v7441 = vpop.permute.xlu0 %7440
      %7442 = vrot.lane.b32.xlu0 %v7422, 64
      %v7443 = vpop.permute.xlu0 %7442
      %7444 = vrot.lane.b32.xlu0 %v7423, 64
      %v7445 = vpop.permute.xlu0 %7444
      %7446 = vrot.lane.b32.xlu0 %v7424, 64
      %v7447 = vpop.permute.xlu0 %7446
      %7448 = vrot.lane.b32.xlu0 %v7425, 64
      %v7449 = vpop.permute.xlu0 %7448
      %v7450 = vrot.slane %v7435, 4
      %v7451 = vrot.slane %v7437, 4
      %v7452 = vrot.slane %v7439, 4
      %v7453 = vrot.slane %v7441, 4
      %v7454 = vrot.slane %v7443, 4
      %v7455 = vrot.slane %v7445, 4
      %v7456 = vrot.slane %v7447, 4
      %v7457 = vrot.slane %v7449, 4
      %v7458 = vsel %vm6737, %v7435, %v7450
      %v7459 = vsel %vm6737, %v7437, %v7451
      %v7460 = vsel %vm6737, %v7439, %v7452
      %v7461 = vsel %vm6737, %v7441, %v7453
      %v7462 = vsel %vm6737, %v7443, %v7454
      %v7463 = vsel %vm6737, %v7445, %v7455
      %v7464 = vsel %vm6737, %v7447, %v7456
      %v7465 = vsel %vm6737, %v7449, %v7457
      %v7474 = vmax.bf16 %v7410, %v7458
      %v7475 = vmax.bf16 %v7411, %v7459
      %v7476 = vmax.bf16 %v7412, %v7460
      %v7477 = vmax.bf16 %v7413, %v7461
      %v7478 = vmax.bf16 %v7414, %v7462
      %v7479 = vmax.bf16 %v7415, %v7463
      %v7480 = vmax.bf16 %v7416, %v7464
      %v7481 = vmax.bf16 %v7417, %v7465
      %v7482 = vld [vmem:[%s206 + $0x78] sm:$0xff]
      %v7483 = vld [vmem:[%s206 + $0x11c] sm:$0xff]
      %v7484 = vld [vmem:[%s206 + $0x1c0] sm:$0xff]
      %v7485 = vld [vmem:[%s206 + $0x264] sm:$0xff]
      %v7486 = vld [vmem:[%s206 + $0x308] sm:$0xff]
      %v7487 = vld [vmem:[%s206 + $0x3ac] sm:$0xff]
      %v7488 = vld [vmem:[%s206 + $0x450] sm:$0xff]
      %v7489 = vld [vmem:[%s206 + $0x4f4] sm:$0xff]
      %v7490 = vmax.bf16 %v7474, %v7482
      %v7491 = vmax.bf16 %v7475, %v7483
      %v7492 = vmax.bf16 %v7476, %v7484
      %v7493 = vmax.bf16 %v7477, %v7485
      %v7494 = vmax.bf16 %v7478, %v7486
      %v7495 = vmax.bf16 %v7479, %v7487
      %v7496 = vmax.bf16 %v7480, %v7488
      %v7497 = vmax.bf16 %v7481, %v7489
      %v7498 = vld [vmem:[%s206 + $0x7c] sm:$0xff]
      %v7499 = vld [vmem:[%s206 + $0x120] sm:$0xff]
      %v7500 = vld [vmem:[%s206 + $0x1c4] sm:$0xff]
      %v7501 = vld [vmem:[%s206 + $0x268] sm:$0xff]
      %v7502 = vld [vmem:[%s206 + $0x30c] sm:$0xff]
      %v7503 = vld [vmem:[%s206 + $0x3b0] sm:$0xff]
      %v7504 = vld [vmem:[%s206 + $0x454] sm:$0xff]
      %v7505 = vld [vmem:[%s206 + $0x4f8] sm:$0xff]
      %7514 = vrot.lane.b32.xlu0 %v7498, 64
      %v7515 = vpop.permute.xlu0 %7514
      %7516 = vrot.lane.b32.xlu0 %v7499, 64
      %v7517 = vpop.permute.xlu0 %7516
      %7518 = vrot.lane.b32.xlu0 %v7500, 64
      %v7519 = vpop.permute.xlu0 %7518
      %7520 = vrot.lane.b32.xlu0 %v7501, 64
      %v7521 = vpop.permute.xlu0 %7520
      %7522 = vrot.lane.b32.xlu0 %v7502, 64
      %v7523 = vpop.permute.xlu0 %7522
      %7524 = vrot.lane.b32.xlu0 %v7503, 64
      %v7525 = vpop.permute.xlu0 %7524
      %7526 = vrot.lane.b32.xlu0 %v7504, 64
      %v7527 = vpop.permute.xlu0 %7526
      %7528 = vrot.lane.b32.xlu0 %v7505, 64
      %v7529 = vpop.permute.xlu0 %7528
      %v7530 = vrot.slane %v7515, 4
      %v7531 = vrot.slane %v7517, 4
      %v7532 = vrot.slane %v7519, 4
      %v7533 = vrot.slane %v7521, 4
      %v7534 = vrot.slane %v7523, 4
      %v7535 = vrot.slane %v7525, 4
      %v7536 = vrot.slane %v7527, 4
      %v7537 = vrot.slane %v7529, 4
      %v7538 = vsel %vm6737, %v7515, %v7530
      %v7539 = vsel %vm6737, %v7517, %v7531
      %v7540 = vsel %vm6737, %v7519, %v7532
      %v7541 = vsel %vm6737, %v7521, %v7533
      %v7542 = vsel %vm6737, %v7523, %v7534
      %v7543 = vsel %vm6737, %v7525, %v7535
      %v7544 = vsel %vm6737, %v7527, %v7536
      %v7545 = vsel %vm6737, %v7529, %v7537
      %v7554 = vmax.bf16 %v7490, %v7538
      %v7555 = vmax.bf16 %v7491, %v7539
      %v7556 = vmax.bf16 %v7492, %v7540
      %v7557 = vmax.bf16 %v7493, %v7541
      %v7558 = vmax.bf16 %v7494, %v7542
      %v7559 = vmax.bf16 %v7495, %v7543
      %v7560 = vmax.bf16 %v7496, %v7544
      %v7561 = vmax.bf16 %v7497, %v7545
      %v7562 = vld [vmem:[%s206 + $0x84] sm:$0xff]
      %v7563 = vld [vmem:[%s206 + $0x128] sm:$0xff]
      %v7564 = vld [vmem:[%s206 + $0x1cc] sm:$0xff]
      %v7565 = vld [vmem:[%s206 + $0x270] sm:$0xff]
      %v7566 = vld [vmem:[%s206 + $0x314] sm:$0xff]
      %v7567 = vld [vmem:[%s206 + $0x3b8] sm:$0xff]
      %v7568 = vld [vmem:[%s206 + $0x45c] sm:$0xff]
      %v7569 = vld [vmem:[%s206 + $0x500] sm:$0xff]
      %v7570 = vmax.bf16 %v7554, %v7562
      %v7571 = vmax.bf16 %v7555, %v7563
      %v7572 = vmax.bf16 %v7556, %v7564
      %v7573 = vmax.bf16 %v7557, %v7565
      %v7574 = vmax.bf16 %v7558, %v7566
      %v7575 = vmax.bf16 %v7559, %v7567
      %v7576 = vmax.bf16 %v7560, %v7568
      %v7577 = vmax.bf16 %v7561, %v7569
      %v7578 = vld [vmem:[%s206 + $0x88] sm:$0xff]
      %v7579 = vld [vmem:[%s206 + $0x12c] sm:$0xff]
      %v7580 = vld [vmem:[%s206 + $0x1d0] sm:$0xff]
      %v7581 = vld [vmem:[%s206 + $0x274] sm:$0xff]
      %v7582 = vld [vmem:[%s206 + $0x318] sm:$0xff]
      %v7583 = vld [vmem:[%s206 + $0x3bc] sm:$0xff]
      %v7584 = vld [vmem:[%s206 + $0x460] sm:$0xff]
      %v7585 = vld [vmem:[%s206 + $0x504] sm:$0xff]
      %7594 = vrot.lane.b32.xlu0 %v7578, 64
      %v7595 = vpop.permute.xlu0 %7594
      %7596 = vrot.lane.b32.xlu0 %v7579, 64
      %v7597 = vpop.permute.xlu0 %7596
      %7598 = vrot.lane.b32.xlu0 %v7580, 64
      %v7599 = vpop.permute.xlu0 %7598
      %7600 = vrot.lane.b32.xlu0 %v7581, 64
      %v7601 = vpop.permute.xlu0 %7600
      %7602 = vrot.lane.b32.xlu0 %v7582, 64
      %v7603 = vpop.permute.xlu0 %7602
      %7604 = vrot.lane.b32.xlu0 %v7583, 64
      %v7605 = vpop.permute.xlu0 %7604
      %7606 = vrot.lane.b32.xlu0 %v7584, 64
      %v7607 = vpop.permute.xlu0 %7606
      %7608 = vrot.lane.b32.xlu0 %v7585, 64
      %v7609 = vpop.permute.xlu0 %7608
      %v7610 = vrot.slane %v7595, 4
      %v7611 = vrot.slane %v7597, 4
      %v7612 = vrot.slane %v7599, 4
      %v7613 = vrot.slane %v7601, 4
      %v7614 = vrot.slane %v7603, 4
      %v7615 = vrot.slane %v7605, 4
      %v7616 = vrot.slane %v7607, 4
      %v7617 = vrot.slane %v7609, 4
      %v7618 = vsel %vm6737, %v7595, %v7610
      %v7619 = vsel %vm6737, %v7597, %v7611
      %v7620 = vsel %vm6737, %v7599, %v7612
      %v7621 = vsel %vm6737, %v7601, %v7613
      %v7622 = vsel %vm6737, %v7603, %v7614
      %v7623 = vsel %vm6737, %v7605, %v7615
      %v7624 = vsel %vm6737, %v7607, %v7616
      %v7625 = vsel %vm6737, %v7609, %v7617
      %v7634 = vmax.bf16 %v7570, %v7618
      %v7635 = vmax.bf16 %v7571, %v7619
      %v7636 = vmax.bf16 %v7572, %v7620
      %v7637 = vmax.bf16 %v7573, %v7621
      %v7638 = vmax.bf16 %v7574, %v7622
      %v7639 = vmax.bf16 %v7575, %v7623
      %v7640 = vmax.bf16 %v7576, %v7624
      %v7641 = vmax.bf16 %v7577, %v7625
      %v7642 = vld [vmem:[%s206 + $0x90] sm:$0xff]
      %v7643 = vld [vmem:[%s206 + $0x134] sm:$0xff]
      %v7644 = vld [vmem:[%s206 + $0x1d8] sm:$0xff]
      %v7645 = vld [vmem:[%s206 + $0x27c] sm:$0xff]
      %v7646 = vld [vmem:[%s206 + $0x320] sm:$0xff]
      %v7647 = vld [vmem:[%s206 + $0x3c4] sm:$0xff]
      %v7648 = vld [vmem:[%s206 + $0x468] sm:$0xff]
      %v7649 = vld [vmem:[%s206 + $0x50c] sm:$0xff]
      %v7650 = vmax.bf16 %v7634, %v7642
      %v7651 = vmax.bf16 %v7635, %v7643
      %v7652 = vmax.bf16 %v7636, %v7644
      %v7653 = vmax.bf16 %v7637, %v7645
      %v7654 = vmax.bf16 %v7638, %v7646
      %v7655 = vmax.bf16 %v7639, %v7647
      %v7656 = vmax.bf16 %v7640, %v7648
      %v7657 = vmax.bf16 %v7641, %v7649
      %v7658 = vld [vmem:[%s206 + $0x94] sm:$0xff]
      %v7659 = vld [vmem:[%s206 + $0x138] sm:$0xff]
      %v7660 = vld [vmem:[%s206 + $0x1dc] sm:$0xff]
      %v7661 = vld [vmem:[%s206 + $0x280] sm:$0xff]
      %v7662 = vld [vmem:[%s206 + $0x324] sm:$0xff]
      %v7663 = vld [vmem:[%s206 + $0x3c8] sm:$0xff]
      %v7664 = vld [vmem:[%s206 + $0x46c] sm:$0xff]
      %v7665 = vld [vmem:[%s206 + $0x510] sm:$0xff]
      %7674 = vrot.lane.b32.xlu0 %v7658, 64
      %v7675 = vpop.permute.xlu0 %7674
      %7676 = vrot.lane.b32.xlu0 %v7659, 64
      %v7677 = vpop.permute.xlu0 %7676
      %7678 = vrot.lane.b32.xlu0 %v7660, 64
      %v7679 = vpop.permute.xlu0 %7678
      %7680 = vrot.lane.b32.xlu0 %v7661, 64
      %v7681 = vpop.permute.xlu0 %7680
      %7682 = vrot.lane.b32.xlu0 %v7662, 64
      %v7683 = vpop.permute.xlu0 %7682
      %7684 = vrot.lane.b32.xlu0 %v7663, 64
      %v7685 = vpop.permute.xlu0 %7684
      %7686 = vrot.lane.b32.xlu0 %v7664, 64
      %v7687 = vpop.permute.xlu0 %7686
      %7688 = vrot.lane.b32.xlu0 %v7665, 64
      %v7689 = vpop.permute.xlu0 %7688
      %v7690 = vrot.slane %v7675, 4
      %v7691 = vrot.slane %v7677, 4
      %v7692 = vrot.slane %v7679, 4
      %v7693 = vrot.slane %v7681, 4
      %v7694 = vrot.slane %v7683, 4
      %v7695 = vrot.slane %v7685, 4
      %v7696 = vrot.slane %v7687, 4
      %v7697 = vrot.slane %v7689, 4
      %v7698 = vsel %vm6737, %v7675, %v7690
      %v7699 = vsel %vm6737, %v7677, %v7691
      %v7700 = vsel %vm6737, %v7679, %v7692
      %v7701 = vsel %vm6737, %v7681, %v7693
      %v7702 = vsel %vm6737, %v7683, %v7694
      %v7703 = vsel %vm6737, %v7685, %v7695
      %v7704 = vsel %vm6737, %v7687, %v7696
      %v7705 = vsel %vm6737, %v7689, %v7697
      %v7714 = vmax.bf16 %v7650, %v7698
      %v7715 = vmax.bf16 %v7651, %v7699
      %v7716 = vmax.bf16 %v7652, %v7700
      %v7717 = vmax.bf16 %v7653, %v7701
      %v7718 = vmax.bf16 %v7654, %v7702
      %v7719 = vmax.bf16 %v7655, %v7703
      %v7720 = vmax.bf16 %v7656, %v7704
      %v7721 = vmax.bf16 %v7657, %v7705
      %v7722 = vld [vmem:[%s206 + $0x9c] sm:$0xff]
      %v7723 = vld [vmem:[%s206 + $0x140] sm:$0xff]
      %v7724 = vld [vmem:[%s206 + $0x1e4] sm:$0xff]
      %v7725 = vld [vmem:[%s206 + $0x288] sm:$0xff]
      %v7726 = vld [vmem:[%s206 + $0x32c] sm:$0xff]
      %v7727 = vld [vmem:[%s206 + $0x3d0] sm:$0xff]
      %v7728 = vld [vmem:[%s206 + $0x474] sm:$0xff]
      %v7729 = vld [vmem:[%s206 + $0x518] sm:$0xff]
      %v7730 = vmax.bf16 %v7714, %v7722
      %v7731 = vmax.bf16 %v7715, %v7723
      %v7732 = vmax.bf16 %v7716, %v7724
      %v7733 = vmax.bf16 %v7717, %v7725
      %v7734 = vmax.bf16 %v7718, %v7726
      %v7735 = vmax.bf16 %v7719, %v7727
      %v7736 = vmax.bf16 %v7720, %v7728
      %v7737 = vmax.bf16 %v7721, %v7729
      %v7738 = vunpack.c.l.bf16 %v7730
      %v7739 = vunpack.c.h.bf16 %v7730
      %v7740 = vunpack.c.l.bf16 %v7731
      %v7741 = vunpack.c.h.bf16 %v7731
      %v7742 = vunpack.c.l.bf16 %v7732
      %v7743 = vunpack.c.h.bf16 %v7732
      %v7744 = vunpack.c.l.bf16 %v7733
      %v7745 = vunpack.c.h.bf16 %v7733
      %v7746 = vunpack.c.l.bf16 %v7734
      %v7747 = vunpack.c.h.bf16 %v7734
      %v7748 = vunpack.c.l.bf16 %v7735
      %v7749 = vunpack.c.h.bf16 %v7735
      %v7750 = vunpack.c.l.bf16 %v7736
      %v7751 = vunpack.c.h.bf16 %v7736
      %v7752 = vunpack.c.l.bf16 %v7737
      %v7753 = vunpack.c.h.bf16 %v7737
      %7754 = vst [vmem:[%s220] sm:$0xff] %v7738
      %7755 = vst.msk [vmem:[%s220 + $0x8] sm:$0xff] %vm5111, %v7739
      %7756 = vst [vmem:[%s220 + $0x10] sm:$0xff] %v7740
      %7757 = vst.msk [vmem:[%s220 + $0x18] sm:$0xff] %vm5111, %v7741
      %7758 = vst [vmem:[%s220 + $0x20] sm:$0xff] %v7742
      %7759 = vst.msk [vmem:[%s220 + $0x28] sm:$0xff] %vm5111, %v7743
      %7760 = vst [vmem:[%s220 + $0x30] sm:$0xff] %v7744
      %7761 = vst.msk [vmem:[%s220 + $0x38] sm:$0xff] %vm5111, %v7745
      %7762 = vst [vmem:[%s220 + $0x40] sm:$0xff] %v7746
      %7763 = vst.msk [vmem:[%s220 + $0x48] sm:$0xff] %vm5111, %v7747
      %7764 = vst [vmem:[%s220 + $0x50] sm:$0xff] %v7748
      %7765 = vst.msk [vmem:[%s220 + $0x58] sm:$0xff] %vm5111, %v7749
      %7766 = vst [vmem:[%s220 + $0x60] sm:$0xff] %v7750
      %7767 = vst.msk [vmem:[%s220 + $0x68] sm:$0xff] %vm5111, %v7751
      %7768 = vst [vmem:[%s220 + $0x70] sm:$0xff] %v7752
      %7769 = vst.msk [vmem:[%s220 + $0x78] sm:$0xff] %vm5111, %v7753
      %s7770 = smul.u32 8, %s16
      %p7771 = scmp.lt.s32.totalorder %s7770, 15
      %s7772 = scalar_select %p7771, %s7770, 15
      %s7773 = smul.addr %s7772, 2
      %s7774 = smul.addr %s7773, 8
      %s7775 = scalar_lea.vmem %s3, %s7774
      %s7776 = smul.u32 8, %s16
      %p7777 = scmp.lt.s32.totalorder %s7776, 15
      %s7778 = scalar_select %p7777, %s7776, 15
      %s7779 = smul.addr %s7778, 2
      %s7780 = smul.addr %s7779, 8
      %s7781 = scalar_lea.vmem %s4, %s7780
      // Predicated region
      $region33: #{mixed5a_forward.1} parent=31 // pred_check
        %p7782 = pneg %p102
      $region34: #{mixed5a_forward.1} parent=31 // pred_check_branch
        %7784 = sbr.rel (%p7782) target = $region36
      $region35: #{mixed5a_forward.1} parent=31 // pred_region
        %s7785 = smul.u32 8, %s16
      $region36: #{mixed5a_forward.1} parent=31 // pred_fallthru
        _
      // Predicated region
      $region37: #{mixed5a_forward.1} parent=31 // pred_check
        %p7786 = pneg %p128
      $region38: #{mixed5a_forward.1} parent=31 // pred_check_branch
        %7788 = sbr.rel (%p7786) target = $region40
      $region39: #{mixed5a_forward.1} parent=31 // pred_region
        %s7789 = smul.u32 8, %s16
      $region40: #{mixed5a_forward.1} parent=31 // pred_fallthru
        _
    $region32: #{mixed5a_forward.1} parent=5 // pred_fallthru
      _
    %p7790 = scmp.le.s32.totalorder 2, %s11
    // Predicated region
    $region41: #{mixed5a_forward.1} parent=5 // pred_check
      %p7791 = pneg %p7790
    $region42: #{mixed5a_forward.1} parent=5 // pred_check_branch
      %7793 = sbr.rel (%p7791) target = $region44
    $region43: #{mixed5a_forward.1} parent=5 // pred_region
      %s7794 = ssub.s32 %s11, 2
      // Predicated region
      $region45: #{mixed5a_forward.1} parent=43 // pred_check
        %p7795 = pneg %p108
      $region46: #{mixed5a_forward.1} parent=43 // pred_check_branch
        %7797 = sbr.rel (%p7795) target = $region48
      $region47: #{mixed5a_forward.1} parent=43 // pred_region
        %s7798 = smul.u32 8, %s17
        %p7799 = scmp.lt.s32.totalorder %s7798, 15
        %s7800 = scalar_select %p7799, %s7798, 15
        %s7801 = smul.addr %s7800, 2
        %s7802 = smul.addr %s7801, 8
        %s7803 = scalar_lea.vmem %s3, %s7802
      $region48: #{mixed5a_forward.1} parent=43 // pred_fallthru
        _
      // Predicated region
      $region49: #{mixed5a_forward.1} parent=43 // pred_check
        %p7804 = pneg %p134
      $region50: #{mixed5a_forward.1} parent=43 // pred_check_branch
        %7806 = sbr.rel (%p7804) target = $region52
      $region51: #{mixed5a_forward.1} parent=43 // pred_region
        %s7807 = smul.u32 8, %s17
        %p7808 = scmp.lt.s32.totalorder %s7807, 15
        %s7809 = scalar_select %p7808, %s7807, 15
        %s7810 = smul.addr %s7809, 2
        %s7811 = smul.addr %s7810, 8
        %s7812 = scalar_lea.vmem %s4, %s7811
      $region52: #{mixed5a_forward.1} parent=43 // pred_fallthru
        _
    $region44: #{mixed5a_forward.1} parent=5 // pred_fallthru
      _
  $region6: #{mixed5a_forward.1} parent=0 // loop_footer
    %s15 = sadd.s32 1, %s11
  $region7: #{mixed5a_forward.1} parent=0 // loop_footer_branch
    %10 = sbr.rel target = $region3
  $region8: #{mixed5a_forward.1} parent=0 // loop_exit
    _

</llo_original>
